<compile_context>
chip_gen: v7x
topology: tpu7x:2x2x1
jax: 0.10.0
libtpu: 0.0.40
codegen_flags: <defaults>
</compile_context>

<pallas_src>
import math
from functools import partial

import jax
import jax.numpy as jnp
from jax.experimental import pallas as pl
from jax.experimental.pallas import tpu as pltpu

_SEQ_ALIGN = 64                   # pad L to a multiple of this
_VMEM_LIMIT = 64 * 1024 * 1024    # <= v7x physical VMEM; ample headroom on v5e/v6e


def _round_up(x, m):
    return ((x + m - 1) // m) * m


def _fit(dim, target, align):
    """Largest tile <= target that divides `dim` and is a multiple of `align`,
    falling back to the full dimension (always a legal BlockSpec block)."""
    if dim <= target:
        return dim
    t = (target // align) * align
    while t >= align:
        if dim % t == 0:
            return t
        t -= align
    return dim


def _cparams(semantics):
    return pltpu.CompilerParams(dimension_semantics=semantics,
                                vmem_limit_bytes=_VMEM_LIMIT)


# ---------------------------------------------------------------------------
# Fused linear: o = [LayerNorm]( x @ w + b [+ residual] )
# ---------------------------------------------------------------------------
def _fused_linear(x, w, b, *, residual=None, gamma=None, beta=None,
                  out_dtype=jnp.bfloat16, eps=1e-5, tm=256, tn=256, tk=512):
    """x:(M,K) bf16, w:(K,N) bf16 (pre-transposed), b:(1,N) f32 (pre-reshaped).

    If gamma/beta are given, residual-add + LayerNorm over the last dim is
    fused into the matmul epilogue (the output block then spans the full N
    row).  LayerNorm stats are computed in one pass (E[x^2]-E[x]^2) in f32.
    """
    M, K = x.shape
    N = w.shape[1]
    ln = gamma is not None

    tm = _fit(M, tm, 8)
    tk = _fit(K, tk, 128)
    tn = N if ln else _fit(N, tn, 128)
    nm, nn, nk = M // tm, N // tn, K // tk

    def kernel(*refs):
        if ln:
            x_ref, w_ref, b_ref, r_ref, g_ref, bt_ref, o_ref, acc_ref = refs
        else:
            x_ref, w_ref, b_ref, o_ref, acc_ref = refs

        @pl.when(pl.program_id(2) == 0)
        def _():
            acc_ref[...] = jnp.zeros(acc_ref.shape, jnp.float32)

        acc_ref[...] += jnp.dot(x_ref[...], w_ref[...],
                                preferred_element_type=jnp.float32)

        @pl.when(pl.program_id(2) == pl.num_programs(2) - 1)
        def _():
            y = acc_ref[...] + b_ref[...]
            if ln:
                y = y + r_ref[...].astype(jnp.float32)
                inv_n = 1.0 / N
                mean = jnp.sum(y, axis=-1, keepdims=True) * inv_n
                var = jnp.sum(y * y, axis=-1, keepdims=True) * inv_n - mean * mean
                y = (y - mean) * jax.lax.rsqrt(var + eps)
                y = y * g_ref[...] + bt_ref[...]
            o_ref[...] = y.astype(o_ref.dtype)

    in_specs = [
        pl.BlockSpec((tm, tk), lambda i, j, k: (i, k)),
        pl.BlockSpec((tk, tn), lambda i, j, k: (k, j)),
        pl.BlockSpec((1, tn), lambda i, j, k: (0, j)),
    ]
    args = [x, w, b]
    if ln:
        in_specs += [
            pl.BlockSpec((tm, tn), lambda i, j, k: (i, j)),
            pl.BlockSpec((1, tn), lambda i, j, k: (0, j)),
            pl.BlockSpec((1, tn), lambda i, j, k: (0, j)),
        ]
        args += [residual, gamma, beta]

    return pl.pallas_call(
        kernel,
        out_shape=jax.ShapeDtypeStruct((M, N), out_dtype),
        grid_spec=pltpu.PrefetchScalarGridSpec(
            num_scalar_prefetch=0,
            grid=(nm, nn, nk),
            in_specs=in_specs,
            out_specs=pl.BlockSpec((tm, tn), lambda i, j, k: (i, j)),
            scratch_shapes=[pltpu.VMEM((tm, tn), jnp.float32)],
        ),
        compiler_params=_cparams(("parallel", "parallel", "arbitrary")),
    )(*args)


# ---------------------------------------------------------------------------
# Fused FFN: o = LayerNorm( x + relu(x @ w1 + b1) @ w2 + b2 )
# ---------------------------------------------------------------------------
def _fused_ffn(x, w1, b1, w2, b2, gamma, beta, *, out_dtype=jnp.bfloat16,
               eps=1e-5, tm=256, tdff=512):
    """Single pallas_call for the whole FFN block.

    Grid axis 1 walks dff tiles: the (tm, tdff) ReLU intermediate lives only in
    VMEM/vregs (never written to HBM) and a (tm, E) f32 accumulator carries the
    second matmul across dff tiles.  The x block doubles as the residual and
    stays resident across the dff axis (its block index does not depend on j).
    """
    M, E = x.shape
    dff = w1.shape[1]
    Eo = w2.shape[1]
    assert Eo == E, "residual requires d_model == embed_dim"

    tm = _fit(M, tm, 8)
    tdff = _fit(dff, tdff, 128)
    nm, nd = M // tm, dff // tdff

    def kernel(x_ref, w1_ref, b1_ref, w2_ref, b2_ref, g_ref, bt_ref,
               o_ref, acc_ref):
        j = pl.program_id(1)

        @pl.when(j == 0)
        def _():
            acc_ref[...] = jnp.zeros(acc_ref.shape, jnp.float32)

        h = jnp.dot(x_ref[...], w1_ref[...], preferred_element_type=jnp.float32)
        h = jnp.maximum(h + b1_ref[...], 0.0)
        acc_ref[...] += jnp.dot(h.astype(w2_ref.dtype), w2_ref[...],
                                preferred_element_type=jnp.float32)

        @pl.when(j == pl.num_programs(1) - 1)
        def _():
            y = acc_ref[...] + b2_ref[...] + x_ref[...].astype(jnp.float32)
            inv_n = 1.0 / Eo
            mean = jnp.sum(y, axis=-1, keepdims=True) * inv_n
            var = jnp.sum(y * y, axis=-1, keepdims=True) * inv_n - mean * mean
            y = (y - mean) * jax.lax.rsqrt(var + eps)
            o_ref[...] = (y * g_ref[...] + bt_ref[...]).astype(o_ref.dtype)

    return pl.pallas_call(
        kernel,
        out_shape=jax.ShapeDtypeStruct((M, Eo), out_dtype),
        grid_spec=pltpu.PrefetchScalarGridSpec(
            num_scalar_prefetch=0,
            grid=(nm, nd),
            in_specs=[
                pl.BlockSpec((tm, E), lambda i, j: (i, 0)),     # x (resident over j)
                pl.BlockSpec((E, tdff), lambda i, j: (0, j)),   # w1 tile
                pl.BlockSpec((1, tdff), lambda i, j: (0, j)),   # b1 tile
                pl.BlockSpec((tdff, Eo), lambda i, j: (j, 0)),  # w2 tile
                pl.BlockSpec((1, Eo), lambda i, j: (0, 0)),     # b2
                pl.BlockSpec((1, Eo), lambda i, j: (0, 0)),     # gamma
                pl.BlockSpec((1, Eo), lambda i, j: (0, 0)),     # beta
            ],
            out_specs=pl.BlockSpec((tm, Eo), lambda i, j: (i, 0)),
            scratch_shapes=[pltpu.VMEM((tm, Eo), jnp.float32)],
        ),
        compiler_params=_cparams(("parallel", "arbitrary")),
    )(x, w1, b1, w2, b2, gamma, beta)


# ---------------------------------------------------------------------------
# Flash-style multi-head attention: softmax(q @ k^T) @ v   (q pre-scaled)
# ---------------------------------------------------------------------------
def _flash_mha(qkv, *, seq_len, hb=8, tq=256, tkv=512):
    """qkv: (3, B*H, L_pad, Dh) bf16 -> (B*H, L_pad, Dh) bf16.

    Online softmax over KV tiles with f32 VMEM accumulators; `hb` heads per
    grid step.  KV positions >= seq_len (padding) are masked; the mask code is
    only emitted when L_pad != seq_len.  The same qkv array is passed three
    times with different index maps (q/k/v) so no XLA slab slices are made.
    """
    _, BH, L_pad, Dh = qkv.shape
    hb = _fit(BH, hb, 1)
    tq = _fit(L_pad, tq, 8)
    tkv = _fit(L_pad, tkv, 8)
    nb, nq, nk = BH // hb, L_pad // tq, L_pad // tkv
    masked = L_pad != seq_len

    def kernel(q_ref, k_ref, v_ref, o_ref, m_sc, l_sc, acc_sc):
        ki = pl.program_id(2)

        @pl.when(ki == 0)
        def _():
            m_sc[...] = jnp.full(m_sc.shape, -jnp.inf, jnp.float32)
            l_sc[...] = jnp.zeros(l_sc.shape, jnp.float32)
            acc_sc[...] = jnp.zeros(acc_sc.shape, jnp.float32)

        q = q_ref[0]                                    # (hb, tq, Dh)
        k = k_ref[0]                                    # (hb, tkv, Dh)
        v = v_ref[0]
        # TODO(synk): feed K pre-transposed (contraction over a leading dim) to
        # avoid the per-tile XLU transpose implied by the last-dim contraction.
        s = jnp.einsum("bqd,bkd->bqk", q, k,
                       preferred_element_type=jnp.float32)   # (hb, tq, tkv)
        if masked:
            kpos = jax.lax.broadcasted_iota(jnp.int32, s.shape, 2) + ki * tkv
            s = jnp.where(kpos < seq_len, s, -1e30)
        m_new = jnp.maximum(m_sc[...], jnp.max(s, axis=-1, keepdims=True))
        alpha = jnp.exp(m_sc[...] - m_new)
        p = jnp.exp(s - m_new)
        l_sc[...] = alpha * l_sc[...] + jnp.sum(p, axis=-1, keepdims=True)
        acc_sc[...] = alpha * acc_sc[...] + jnp.einsum(
            "bqk,bkd->bqd", p.astype(v.dtype), v,
            preferred_element_type=jnp.float32)
        m_sc[...] = m_new

        @pl.when(ki == pl.num_programs(2) - 1)
        def _():
            o_ref[...] = (acc_sc[...] *
                          pl.reciprocal(l_sc[...], approx=True)
                          ).astype(o_ref.dtype)

    q_spec = pl.BlockSpec((1, hb, tq, Dh), lambda b, qi, ki: (0, b, qi, 0))
    k_spec = pl.BlockSpec((1, hb, tkv, Dh), lambda b, qi, ki: (1, b, ki, 0))
    v_spec = pl.BlockSpec((1, hb, tkv, Dh), lambda b, qi, ki: (2, b, ki, 0))
    return pl.pallas_call(
        kernel,
        out_shape=jax.ShapeDtypeStruct((BH, L_pad, Dh), qkv.dtype),
        grid_spec=pltpu.PrefetchScalarGridSpec(
            num_scalar_prefetch=0,
            grid=(nb, nq, nk),
            in_specs=[q_spec, k_spec, v_spec],
            out_specs=pl.BlockSpec((hb, tq, Dh), lambda b, qi, ki: (b, qi, 0)),
            scratch_shapes=[pltpu.VMEM((hb, tq, 1), jnp.float32),
                            pltpu.VMEM((hb, tq, 1), jnp.float32),
                            pltpu.VMEM((hb, tq, Dh), jnp.float32)],
        ),
        compiler_params=_cparams(("parallel", "parallel", "arbitrary")),
    )(qkv, qkv, qkv)


# ---------------------------------------------------------------------------
# Encoder layer / encoder (glue in plain JAX, batch-major (N*L_pad, E) slabs)
# ---------------------------------------------------------------------------
def encoder_layer(x2d, p, num_heads, batch, l_pad, seq_len):
    M, E = x2d.shape
    H = num_heads
    Dh = E // H

    # QKV projection (1/sqrt(Dh) already folded into the q slice of w/b).
    qkv = _fused_linear(x2d, p["w_qkv"], p["b_qkv"])               # (M, 3E)

    # Head split: one XLA relayout per layer to (3, B*H, L_pad, Dh).
    # TODO(synk): fold the split/merge into attention / out-proj BlockSpecs;
    # the naive version needs Dh(=64)-lane matmul tiles that underfill the
    # 256-wide MXUs on v6e/v7x, so the explicit relayout is kept for now.
    qkv_h = qkv.reshape(batch, l_pad, 3, H, Dh).transpose(2, 0, 3, 1, 4)
    qkv_h = qkv_h.reshape(3, batch * H, l_pad, Dh)
    ctx = _flash_mha(qkv_h, seq_len=seq_len)                       # (B*H, L_pad, Dh)
    ctx = ctx.reshape(batch, H, l_pad, Dh).transpose(0, 2, 1, 3).reshape(M, E)

    # out-proj + residual + LayerNorm1, fused epilogue.
    x1 = _fused_linear(ctx, p["w_out"], p["b_out"],
                       residual=x2d, gamma=p["ln1_g"], beta=p["ln1_b"])

    # FFN: Linear->ReLU->Linear + residual + LayerNorm2 in one kernel; the
    # (M, dff) ReLU intermediate never touches HBM.
    x2 = _fused_ffn(x1, p["w_ffn1"], p["b_ffn1"], p["w_ffn2"], p["b_ffn2"],
                    p["ln2_g"], p["ln2_b"])
    return x2


def transformer_encoder(x, params, num_heads):
    """x: (L, N, E) f32 (PyTorch MultiheadAttention layout) -> (L, N, d_model)."""
    L, N, E = x.shape
    L_pad = _round_up(L, _SEQ_ALIGN)
    # Single layout change to batch-major bf16 (padded) for the whole stack.
    xb = x.transpose(1, 0, 2).astype(jnp.bfloat16)                 # (N, L, E)
    if L_pad != L:
        xb = jnp.pad(xb, ((0, 0), (0, L_pad - L), (0, 0)))
    xb = xb.reshape(N * L_pad, E)
    for p in params:
        xb = encoder_layer(xb, p, num_heads, N, L_pad, L)
    d_model = xb.shape[-1]
    y = xb.reshape(N, L_pad, d_model)[:, :L]                       # drop pad rows
    return y.transpose(1, 0, 2).astype(jnp.float32)


# ---------------------------------------------------------------------------
# Parameters: raw init in PyTorch layout, then one-time prep (transpose /
# bf16 cast / scale fold / bias+gamma reshape) hoisted out of the forward path.
# ---------------------------------------------------------------------------
def init_layer_params(key, embed_dim, d_model, dff):
    ks = jax.random.split(key, 4)
    s = 0.05
    f32 = jnp.float32
    return dict(
        in_proj_w=jax.random.normal(ks[0], (3 * embed_dim, embed_dim), f32) * s,
        in_proj_b=jnp.zeros((3 * embed_dim,), f32),
        out_proj_w=jax.random.normal(ks[1], (embed_dim, embed_dim), f32) * s,
        out_proj_b=jnp.zeros((embed_dim,), f32),
        ln1_g=jnp.ones((embed_dim,), f32),
        ln1_b=jnp.zeros((embed_dim,), f32),
        ffn1_w=jax.random.normal(ks[2], (dff, embed_dim), f32) * s,   # (out, in)
        ffn1_b=jnp.zeros((dff,), f32),
        ffn2_w=jax.random.normal(ks[3], (d_model, dff), f32) * s,     # (out, in)
        ffn2_b=jnp.zeros((d_model,), f32),
        ln2_g=jnp.ones((d_model,), f32),
        ln2_b=jnp.zeros((d_model,), f32),
    )


def prepare_layer_params(p, num_heads):
    E = p["out_proj_w"].shape[0]
    scale = 1.0 / math.sqrt(E // num_heads)
    # Fold the attention scale into the q rows of the in-projection.
    w_qkv = p["in_proj_w"].at[:E].multiply(scale)
    b_qkv = p["in_proj_b"].at[:E].multiply(scale)
    bf16, f32 = jnp.bfloat16, jnp.float32
    row = lambda v: v.reshape(1, -1).astype(f32)   # (1, N) f32, kernel-ready
    return dict(
        w_qkv=w_qkv.T.astype(bf16), b_qkv=row(b_qkv),
        w_out=p["out_proj_w"].T.astype(bf16), b_out=row(p["out_proj_b"]),
        ln1_g=row(p["ln1_g"]), ln1_b=row(p["ln1_b"]),
        w_ffn1=p["ffn1_w"].T.astype(bf16), b_ffn1=row(p["ffn1_b"]),
        w_ffn2=p["ffn2_w"].T.astype(bf16), b_ffn2=row(p["ffn2_b"]),
        ln2_g=row(p["ln2_g"]), ln2_b=row(p["ln2_b"]),
    )


# ---------------------------------------------------------------------------
if __name__ == "__main__":
    # Small, self-consistent shapes (residuals require embed_dim == d_model).
    embed_dim = d_model = 32
    num_heads = 4
    dff = 64
    num_layers = 2
    seq_len, batch = 8, 2

    key = jax.random.PRNGKey(0)
    kx, kp = jax.random.split(key)
    x = jax.random.normal(kx, (seq_len, batch, embed_dim), jnp.float32)

    keys = jax.random.split(kp, num_layers)
    raw = [init_layer_params(keys[i],
                             embed_dim if i == 0 else d_model, d_model, dff)
           for i in range(num_layers)]
    params = [prepare_layer_params(p, num_heads) for p in raw]

    fwd = jax.jit(partial(transformer_encoder, num_heads=num_heads))
    y = jax.block_until_ready(fwd(x, params))
    assert y.shape == (seq_len, batch, d_model), y.shape
    assert bool(jnp.all(jnp.isfinite(y)))
    print("KERNEL_OK")
</pallas_src>

<mosaic_0001>
module attributes {stable_mosaic.version = 11 : i64} {
  func.func @kernel(%arg0: i32, %arg1: i32, %arg2: i32, %arg3: memref<128x32xbf16, #tpu.memory_space<vmem>>, %arg4: memref<32x96xbf16, #tpu.memory_space<vmem>>, %arg5: memref<1x96xf32, #tpu.memory_space<vmem>>, %arg6: memref<128x96xbf16, #tpu.memory_space<vmem>>, %arg7: memref<128x96xf32, #tpu.memory_space<vmem>>) attributes {dimension_semantics = [#tpu.dimension_semantics<parallel>, #tpu.dimension_semantics<parallel>, #tpu.dimension_semantics<arbitrary>], iteration_bounds = array<i64: 1, 1, 1>, scalar_prefetch = 0 : i64, scratch_operands = 1 : i64, tpu.core_type = #tpu.core_type<tc>, window_params = [{transform_indices = @transform_0, window_bounds = array<i64: 128, 32>}, {transform_indices = @transform_1, window_bounds = array<i64: 32, 96>}, {transform_indices = @transform_2, window_bounds = array<i64: 1, 96>}, {transform_indices = @transform_3, window_bounds = array<i64: 128, 96>}]} {
    %c0_i32 = arith.constant 0 : i32
    %0 = arith.cmpi eq, %arg2, %c0_i32 : i32
    %1 = arith.extui %0 : i1 to i32
    %c0_i32_0 = arith.constant 0 : i32
    %2 = arith.cmpi ne, %1, %c0_i32_0 : i32
    scf.if %2 {
      %cst_10 = arith.constant 0.000000e+00 : f32
      %12 = vector.broadcast %cst_10 : f32 to vector<128x96xf32>
      %c0_11 = arith.constant 0 : index
      %c0_12 = arith.constant 0 : index
      %13 = vector.load %arg7[%c0_11, %c0_12] : memref<128x96xf32, #tpu.memory_space<vmem>>, vector<128x96xf32>
      tpu.vector_store %arg7[%c0_11, %c0_12], %12 {strides = array<i32>} : memref<128x96xf32, #tpu.memory_space<vmem>>, vector<128x96xf32>,
    } else {
    }
    %c0 = arith.constant 0 : index
    %c0_1 = arith.constant 0 : index
    %3 = vector.load %arg7[%c0, %c0_1] : memref<128x96xf32, #tpu.memory_space<vmem>>, vector<128x96xf32>
    %c0_2 = arith.constant 0 : index
    %c0_3 = arith.constant 0 : index
    %4 = vector.load %arg3[%c0_2, %c0_3] : memref<128x32xbf16, #tpu.memory_space<vmem>>, vector<128x32xbf16>
    %c0_4 = arith.constant 0 : index
    %c0_5 = arith.constant 0 : index
    %5 = vector.load %arg4[%c0_4, %c0_5] : memref<32x96xbf16, #tpu.memory_space<vmem>>, vector<32x96xbf16>
    %cst = arith.constant dense<0.000000e+00> : vector<128x96xf32>
    %6 = tpu.matmul %4, %5, %cst {dimension_numbers = #tpu.dot_dimension_numbers<[1], [0], [0], [1], [0, 0, 1, 1], [], []>} : vector<128x32xbf16>, vector<32x96xbf16>, vector<128x96xf32> -> vector<128x96xf32>
    %7 = arith.addf %3, %6 : vector<128x96xf32>
    %c0_6 = arith.constant 0 : index
    %c0_7 = arith.constant 0 : index
    %8 = vector.load %arg7[%c0_6, %c0_7] : memref<128x96xf32, #tpu.memory_space<vmem>>, vector<128x96xf32>
    tpu.vector_store %arg7[%c0_6, %c0_7], %7 {strides = array<i32>} : memref<128x96xf32, #tpu.memory_space<vmem>>, vector<128x96xf32>,
    %c0_i32_8 = arith.constant 0 : i32
    %9 = arith.cmpi eq, %arg2, %c0_i32_8 : i32
    %10 = arith.extui %9 : i1 to i32
    %c0_i32_9 = arith.constant 0 : i32
    %11 = arith.cmpi ne, %10, %c0_i32_9 : i32
    scf.if %11 {
      %c0_10 = arith.constant 0 : index
      %c0_11 = arith.constant 0 : index
      %12 = vector.load %arg7[%c0_10, %c0_11] : memref<128x96xf32, #tpu.memory_space<vmem>>, vector<128x96xf32>
      %c0_12 = arith.constant 0 : index
      %c0_13 = arith.constant 0 : index
      %13 = vector.load %arg5[%c0_12, %c0_13] : memref<1x96xf32, #tpu.memory_space<vmem>>, vector<1x96xf32>
      %14 = vector.broadcast %13 : vector<1x96xf32> to vector<128x96xf32>
      %15 = arith.addf %12, %14 : vector<128x96xf32>
      %16 = arith.truncf %15 : vector<128x96xf32> to vector<128x96xbf16>
      %c0_14 = arith.constant 0 : index
      %c0_15 = arith.constant 0 : index
      %17 = vector.load %arg6[%c0_14, %c0_15] : memref<128x96xbf16, #tpu.memory_space<vmem>>, vector<128x96xbf16>
      tpu.vector_store %arg6[%c0_14, %c0_15], %16 {strides = array<i32>} : memref<128x96xbf16, #tpu.memory_space<vmem>>, vector<128x96xbf16>,
    } else {
    }
    return
  }
  func.func @transform_0(%arg0: i32, %arg1: i32, %arg2: i32) -> (i32, i32) {
    %c0_i32 = arith.constant 0 : i32
    return %arg0, %arg2 : i32, i32
  }
  func.func @transform_1(%arg0: i32, %arg1: i32, %arg2: i32) -> (i32, i32) {
    %c0_i32 = arith.constant 0 : i32
    return %arg2, %arg1 : i32, i32
  }
  func.func @transform_2(%arg0: i32, %arg1: i32, %arg2: i32) -> (i32, i32) {
    %c0_i32 = arith.constant 0 : i32
    %c0_i32_0 = arith.constant 0 : i32
    return %c0_i32, %arg1 : i32, i32
  }
  func.func @transform_3(%arg0: i32, %arg1: i32, %arg2: i32) -> (i32, i32) {
    %c0_i32 = arith.constant 0 : i32
    return %arg0, %arg1 : i32, i32
  }
}

module attributes {stable_mosaic.version = 11 : i64} {
  func.func @kernel(%arg0: i32, %arg1: i32, %arg2: i32, %arg3: memref<1x8x64x8xbf16, #tpu.memory_space<vmem>>, %arg4: memref<1x8x64x8xbf16, #tpu.memory_space<vmem>>, %arg5: memref<1x8x64x8xbf16, #tpu.memory_space<vmem>>, %arg6: memref<8x64x8xbf16, #tpu.memory_space<vmem>>, %arg7: memref<8x64x1xf32, #tpu.memory_space<vmem>>, %arg8: memref<8x64x1xf32, #tpu.memory_space<vmem>>, %arg9: memref<8x64x8xf32, #tpu.memory_space<vmem>>) attributes {dimension_semantics = [#tpu.dimension_semantics<parallel>, #tpu.dimension_semantics<parallel>, #tpu.dimension_semantics<arbitrary>], iteration_bounds = array<i64: 1, 1, 1>, scalar_prefetch = 0 : i64, scratch_operands = 3 : i64, tpu.core_type = #tpu.core_type<tc>, window_params = [{transform_indices = @transform_0, window_bounds = array<i64: 1, 8, 64, 8>}, {transform_indices = @transform_1, window_bounds = array<i64: 1, 8, 64, 8>}, {transform_indices = @transform_2, window_bounds = array<i64: 1, 8, 64, 8>}, {transform_indices = @transform_3, window_bounds = array<i64: 8, 64, 8>}]} {
    %c0_i32 = arith.constant 0 : i32
    %0 = arith.cmpi eq, %arg2, %c0_i32 : i32
    %1 = arith.extui %0 : i1 to i32
    %c0_i32_0 = arith.constant 0 : i32
    %2 = arith.cmpi ne, %1, %c0_i32_0 : i32
    scf.if %2 {
      %cst_39 = arith.constant 0xFF800000 : f32
      %45 = vector.broadcast %cst_39 : f32 to vector<8x64x1xf32>
      %c0_40 = arith.constant 0 : index
      %c0_41 = arith.constant 0 : index
      %c0_42 = arith.constant 0 : index
      %46 = vector.load %arg7[%c0_40, %c0_41, %c0_42] : memref<8x64x1xf32, #tpu.memory_space<vmem>>, vector<8x64x1xf32>
      tpu.vector_store %arg7[%c0_40, %c0_41, %c0_42], %45 {strides = array<i32>} : memref<8x64x1xf32, #tpu.memory_space<vmem>>, vector<8x64x1xf32>,
      %cst_43 = arith.constant 0.000000e+00 : f32
      %47 = vector.broadcast %cst_43 : f32 to vector<8x64x1xf32>
      %c0_44 = arith.constant 0 : index
      %c0_45 = arith.constant 0 : index
      %c0_46 = arith.constant 0 : index
      %48 = vector.load %arg8[%c0_44, %c0_45, %c0_46] : memref<8x64x1xf32, #tpu.memory_space<vmem>>, vector<8x64x1xf32>
      tpu.vector_store %arg8[%c0_44, %c0_45, %c0_46], %47 {strides = array<i32>} : memref<8x64x1xf32, #tpu.memory_space<vmem>>, vector<8x64x1xf32>,
      %cst_47 = arith.constant 0.000000e+00 : f32
      %49 = vector.broadcast %cst_47 : f32 to vector<8x64x8xf32>
      %c0_48 = arith.constant 0 : index
      %c0_49 = arith.constant 0 : index
      %c0_50 = arith.constant 0 : index
      %50 = vector.load %arg9[%c0_48, %c0_49, %c0_50] : memref<8x64x8xf32, #tpu.memory_space<vmem>>, vector<8x64x8xf32>
      tpu.vector_store %arg9[%c0_48, %c0_49, %c0_50], %49 {strides = array<i32>} : memref<8x64x8xf32, #tpu.memory_space<vmem>>, vector<8x64x8xf32>,
    } else {
    }
    %c0 = arith.constant 0 : index
    %c0_1 = arith.constant 0 : index
    %c0_2 = arith.constant 0 : index
    %c0_3 = arith.constant 0 : index
    %3 = vector.load %arg3[%c0, %c0_1, %c0_2, %c0_3] : memref<1x8x64x8xbf16, #tpu.memory_space<vmem>>, vector<1x8x64x8xbf16>
    %4 = vector.shape_cast %3 : vector<1x8x64x8xbf16> to vector<8x64x8xbf16>
    %c0_4 = arith.constant 0 : index
    %c0_5 = arith.constant 0 : index
    %c0_6 = arith.constant 0 : index
    %c0_7 = arith.constant 0 : index
    %5 = vector.load %arg4[%c0_4, %c0_5, %c0_6, %c0_7] : memref<1x8x64x8xbf16, #tpu.memory_space<vmem>>, vector<1x8x64x8xbf16>
    %6 = vector.shape_cast %5 : vector<1x8x64x8xbf16> to vector<8x64x8xbf16>
    %c0_8 = arith.constant 0 : index
    %c0_9 = arith.constant 0 : index
    %c0_10 = arith.constant 0 : index
    %c0_11 = arith.constant 0 : index
    %7 = vector.load %arg5[%c0_8, %c0_9, %c0_10, %c0_11] : memref<1x8x64x8xbf16, #tpu.memory_space<vmem>>, vector<1x8x64x8xbf16>
    %8 = vector.shape_cast %7 : vector<1x8x64x8xbf16> to vector<8x64x8xbf16>
    "tpu.trace_start"() <{level = 10 : i32, message = "bqd,bkd->bqk"}> : () -> ()
    %cst = arith.constant dense<0.000000e+00> : vector<8x64x64xf32>
    %9 = tpu.matmul %4, %6, %cst {dimension_numbers = #tpu.dot_dimension_numbers<[2], [2], [1], [1], [0, 0, 0, 1, 1, 1], [0], [0]>} : vector<8x64x8xbf16>, vector<8x64x8xbf16>, vector<8x64x64xf32> -> vector<8x64x64xf32>
    "tpu.trace_stop"() : () -> ()
    %10 = tpu.iota {dimensions = array<i32: 2>} : vector<8x64x64xi32>
    %c64_i32 = arith.constant 64 : i32
    %11 = arith.muli %arg2, %c64_i32 : i32
    %12 = vector.broadcast %11 : i32 to vector<8x64x64xi32>
    %13 = arith.addi %10, %12 : vector<8x64x64xi32>
    %c8_i32 = arith.constant 8 : i32
    %14 = vector.broadcast %c8_i32 : i32 to vector<8x64x64xi32>
    %15 = arith.cmpi slt, %13, %14 : vector<8x64x64xi32>
    %cst_12 = arith.constant -1.000000e+30 : f32
    %16 = vector.broadcast %cst_12 : f32 to vector<8x64x64xf32>
    %17 = arith.select %15, %9, %16 : vector<8x64x64xi1>, vector<8x64x64xf32>
    %c0_13 = arith.constant 0 : index
    %c0_14 = arith.constant 0 : index
    %c0_15 = arith.constant 0 : index
    %18 = vector.load %arg7[%c0_13, %c0_14, %c0_15] : memref<8x64x1xf32, #tpu.memory_space<vmem>>, vector<8x64x1xf32>
    %cst_16 = arith.constant dense<0xFF800000> : vector<8x64xf32>
    %19 = vector.multi_reduction <maximumf>, %17, %cst_16 [2] : vector<8x64x64xf32> to vector<8x64xf32>
    %20 = vector.shape_cast %19 : vector<8x64xf32> to vector<8x64x1xf32>
    %21 = arith.maximumf %18, %20 : vector<8x64x1xf32>
    %c0_17 = arith.constant 0 : index
    %c0_18 = arith.constant 0 : index
    %c0_19 = arith.constant 0 : index
    %22 = vector.load %arg7[%c0_17, %c0_18, %c0_19] : memref<8x64x1xf32, #tpu.memory_space<vmem>>, vector<8x64x1xf32>
    %23 = arith.subf %22, %21 : vector<8x64x1xf32>
    %24 = math.exp %23 : vector<8x64x1xf32>
    %25 = vector.broadcast %21 : vector<8x64x1xf32> to vector<8x64x64xf32>
    %26 = arith.subf %17, %25 : vector<8x64x64xf32>
    %27 = math.exp %26 : vector<8x64x64xf32>
    %c0_20 = arith.constant 0 : index
    %c0_21 = arith.constant 0 : index
    %c0_22 = arith.constant 0 : index
    %28 = vector.load %arg8[%c0_20, %c0_21, %c0_22] : memref<8x64x1xf32, #tpu.memory_space<vmem>>, vector<8x64x1xf32>
    %29 = arith.mulf %24, %28 : vector<8x64x1xf32>
    %cst_23 = arith.constant dense<0.000000e+00> : vector<8x64xf32>
    %30 = vector.multi_reduction <add>, %27, %cst_23 [2] : vector<8x64x64xf32> to vector<8x64xf32>
    %31 = vector.shape_cast %30 : vector<8x64xf32> to vector<8x64x1xf32>
    %32 = arith.addf %29, %31 : vector<8x64x1xf32>
    %c0_24 = arith.constant 0 : index
    %c0_25 = arith.constant 0 : index
    %c0_26 = arith.constant 0 : index
    %33 = vector.load %arg8[%c0_24, %c0_25, %c0_26] : memref<8x64x1xf32, #tpu.memory_space<vmem>>, vector<8x64x1xf32>
    tpu.vector_store %arg8[%c0_24, %c0_25, %c0_26], %32 {strides = array<i32>} : memref<8x64x1xf32, #tpu.memory_space<vmem>>, vector<8x64x1xf32>,
    %c0_27 = arith.constant 0 : index
    %c0_28 = arith.constant 0 : index
    %c0_29 = arith.constant 0 : index
    %34 = vector.load %arg9[%c0_27, %c0_28, %c0_29] : memref<8x64x8xf32, #tpu.memory_space<vmem>>, vector<8x64x8xf32>
    %35 = vector.broadcast %24 : vector<8x64x1xf32> to vector<8x64x8xf32>
    %36 = arith.mulf %35, %34 : vector<8x64x8xf32>
    %37 = arith.truncf %27 : vector<8x64x64xf32> to vector<8x64x64xbf16>
    "tpu.trace_start"() <{level = 10 : i32, message = "bqk,bkd->bqd"}> : () -> ()
    %cst_30 = arith.constant dense<0.000000e+00> : vector<8x64x8xf32>
    %38 = tpu.matmul %37, %8, %cst_30 {dimension_numbers = #tpu.dot_dimension_numbers<[2], [1], [1], [2], [0, 0, 0, 1, 1, 2], [0], [0]>} : vector<8x64x64xbf16>, vector<8x64x8xbf16>, vector<8x64x8xf32> -> vector<8x64x8xf32>
    "tpu.trace_stop"() : () -> ()
    %39 = arith.addf %36, %38 : vector<8x64x8xf32>
    %c0_31 = arith.constant 0 : index
    %c0_32 = arith.constant 0 : index
    %c0_33 = arith.constant 0 : index
    %40 = vector.load %arg9[%c0_31, %c0_32, %c0_33] : memref<8x64x8xf32, #tpu.memory_space<vmem>>, vector<8x64x8xf32>
    tpu.vector_store %arg9[%c0_31, %c0_32, %c0_33], %39 {strides = array<i32>} : memref<8x64x8xf32, #tpu.memory_space<vmem>>, vector<8x64x8xf32>,
    %c0_34 = arith.constant 0 : index
    %c0_35 = arith.constant 0 : index
    %c0_36 = arith.constant 0 : index
    %41 = vector.load %arg7[%c0_34, %c0_35, %c0_36] : memref<8x64x1xf32, #tpu.memory_space<vmem>>, vector<8x64x1xf32>
    tpu.vector_store %arg7[%c0_34, %c0_35, %c0_36], %21 {strides = array<i32>} : memref<8x64x1xf32, #tpu.memory_space<vmem>>, vector<8x64x1xf32>,
    %c0_i32_37 = arith.constant 0 : i32
    %42 = arith.cmpi eq, %arg2, %c0_i32_37 : i32
    %43 = arith.extui %42 : i1 to i32
    %c0_i32_38 = arith.constant 0 : i32
    %44 = arith.cmpi ne, %43, %c0_i32_38 : i32
    scf.if %44 {
      %c0_39 = arith.constant 0 : index
      %c0_40 = arith.constant 0 : index
      %c0_41 = arith.constant 0 : index
      %45 = vector.load %arg9[%c0_39, %c0_40, %c0_41] : memref<8x64x8xf32, #tpu.memory_space<vmem>>, vector<8x64x8xf32>
      %c0_42 = arith.constant 0 : index
      %c0_43 = arith.constant 0 : index
      %c0_44 = arith.constant 0 : index
      %46 = vector.load %arg8[%c0_42, %c0_43, %c0_44] : memref<8x64x1xf32, #tpu.memory_space<vmem>>, vector<8x64x1xf32>
      %47 = tpu.reciprocal %46 {approx = true} : vector<8x64x1xf32> -> vector<8x64x1xf32>
      %48 = vector.broadcast %47 : vector<8x64x1xf32> to vector<8x64x8xf32>
      %49 = arith.mulf %45, %48 : vector<8x64x8xf32>
      %50 = arith.truncf %49 : vector<8x64x8xf32> to vector<8x64x8xbf16>
      %c0_45 = arith.constant 0 : index
      %c0_46 = arith.constant 0 : index
      %c0_47 = arith.constant 0 : index
      %51 = vector.load %arg6[%c0_45, %c0_46, %c0_47] : memref<8x64x8xbf16, #tpu.memory_space<vmem>>, vector<8x64x8xbf16>
      tpu.vector_store %arg6[%c0_45, %c0_46, %c0_47], %50 {strides = array<i32>} : memref<8x64x8xbf16, #tpu.memory_space<vmem>>, vector<8x64x8xbf16>,
    } else {
    }
    return
  }
  func.func @transform_0(%arg0: i32, %arg1: i32, %arg2: i32) -> (i32, i32, i32, i32) {
    %c0_i32 = arith.constant 0 : i32
    %c0_i32_0 = arith.constant 0 : i32
    %c0_i32_1 = arith.constant 0 : i32
    return %c0_i32, %arg0, %arg1, %c0_i32_0 : i32, i32, i32, i32
  }
  func.func @transform_1(%arg0: i32, %arg1: i32, %arg2: i32) -> (i32, i32, i32, i32) {
    %c1_i32 = arith.constant 1 : i32
    %c0_i32 = arith.constant 0 : i32
    %c0_i32_0 = arith.constant 0 : i32
    return %c1_i32, %arg0, %arg2, %c0_i32 : i32, i32, i32, i32
  }
  func.func @transform_2(%arg0: i32, %arg1: i32, %arg2: i32) -> (i32, i32, i32, i32) {
    %c2_i32 = arith.constant 2 : i32
    %c0_i32 = arith.constant 0 : i32
    %c0_i32_0 = arith.constant 0 : i32
    return %c2_i32, %arg0, %arg2, %c0_i32 : i32, i32, i32, i32
  }
  func.func @transform_3(%arg0: i32, %arg1: i32, %arg2: i32) -> (i32, i32, i32) {
    %c0_i32 = arith.constant 0 : i32
    %c0_i32_0 = arith.constant 0 : i32
    return %arg0, %arg1, %c0_i32 : i32, i32, i32
  }
}

module attributes {stable_mosaic.version = 11 : i64} {
  func.func @kernel(%arg0: i32, %arg1: i32, %arg2: i32, %arg3: memref<128x32xbf16, #tpu.memory_space<vmem>>, %arg4: memref<32x32xbf16, #tpu.memory_space<vmem>>, %arg5: memref<1x32xf32, #tpu.memory_space<vmem>>, %arg6: memref<128x32xbf16, #tpu.memory_space<vmem>>, %arg7: memref<1x32xf32, #tpu.memory_space<vmem>>, %arg8: memref<1x32xf32, #tpu.memory_space<vmem>>, %arg9: memref<128x32xbf16, #tpu.memory_space<vmem>>, %arg10: memref<128x32xf32, #tpu.memory_space<vmem>>) attributes {dimension_semantics = [#tpu.dimension_semantics<parallel>, #tpu.dimension_semantics<parallel>, #tpu.dimension_semantics<arbitrary>], iteration_bounds = array<i64: 1, 1, 1>, scalar_prefetch = 0 : i64, scratch_operands = 1 : i64, tpu.core_type = #tpu.core_type<tc>, window_params = [{transform_indices = @transform_0, window_bounds = array<i64: 128, 32>}, {transform_indices = @transform_1, window_bounds = array<i64: 32, 32>}, {transform_indices = @transform_2, window_bounds = array<i64: 1, 32>}, {transform_indices = @transform_3, window_bounds = array<i64: 128, 32>}, {transform_indices = @transform_4, window_bounds = array<i64: 1, 32>}, {transform_indices = @transform_5, window_bounds = array<i64: 1, 32>}, {transform_indices = @transform_6, window_bounds = array<i64: 128, 32>}]} {
    %c0_i32 = arith.constant 0 : i32
    %0 = arith.cmpi eq, %arg2, %c0_i32 : i32
    %1 = arith.extui %0 : i1 to i32
    %c0_i32_0 = arith.constant 0 : i32
    %2 = arith.cmpi ne, %1, %c0_i32_0 : i32
    scf.if %2 {
      %cst_10 = arith.constant 0.000000e+00 : f32
      %12 = vector.broadcast %cst_10 : f32 to vector<128x32xf32>
      %c0_11 = arith.constant 0 : index
      %c0_12 = arith.constant 0 : index
      %13 = vector.load %arg10[%c0_11, %c0_12] : memref<128x32xf32, #tpu.memory_space<vmem>>, vector<128x32xf32>
      tpu.vector_store %arg10[%c0_11, %c0_12], %12 {strides = array<i32>} : memref<128x32xf32, #tpu.memory_space<vmem>>, vector<128x32xf32>,
    } else {
    }
    %c0 = arith.constant 0 : index
    %c0_1 = arith.constant 0 : index
    %3 = vector.load %arg10[%c0, %c0_1] : memref<128x32xf32, #tpu.memory_space<vmem>>, vector<128x32xf32>
    %c0_2 = arith.constant 0 : index
    %c0_3 = arith.constant 0 : index
    %4 = vector.load %arg3[%c0_2, %c0_3] : memref<128x32xbf16, #tpu.memory_space<vmem>>, vector<128x32xbf16>
    %c0_4 = arith.constant 0 : index
    %c0_5 = arith.constant 0 : index
    %5 = vector.load %arg4[%c0_4, %c0_5] : memref<32x32xbf16, #tpu.memory_space<vmem>>, vector<32x32xbf16>
    %cst = arith.constant dense<0.000000e+00> : vector<128x32xf32>
    %6 = tpu.matmul %4, %5, %cst {dimension_numbers = #tpu.dot_dimension_numbers<[1], [0], [0], [1], [0, 0, 1, 1], [], []>} : vector<128x32xbf16>, vector<32x32xbf16>, vector<128x32xf32> -> vector<128x32xf32>
    %7 = arith.addf %3, %6 : vector<128x32xf32>
    %c0_6 = arith.constant 0 : index
    %c0_7 = arith.constant 0 : index
    %8 = vector.load %arg10[%c0_6, %c0_7] : memref<128x32xf32, #tpu.memory_space<vmem>>, vector<128x32xf32>
    tpu.vector_store %arg10[%c0_6, %c0_7], %7 {strides = array<i32>} : memref<128x32xf32, #tpu.memory_space<vmem>>, vector<128x32xf32>,
    %c0_i32_8 = arith.constant 0 : i32
    %9 = arith.cmpi eq, %arg2, %c0_i32_8 : i32
    %10 = arith.extui %9 : i1 to i32
    %c0_i32_9 = arith.constant 0 : i32
    %11 = arith.cmpi ne, %10, %c0_i32_9 : i32
    scf.if %11 {
      %c0_10 = arith.constant 0 : index
      %c0_11 = arith.constant 0 : index
      %12 = vector.load %arg10[%c0_10, %c0_11] : memref<128x32xf32, #tpu.memory_space<vmem>>, vector<128x32xf32>
      %c0_12 = arith.constant 0 : index
      %c0_13 = arith.constant 0 : index
      %13 = vector.load %arg5[%c0_12, %c0_13] : memref<1x32xf32, #tpu.memory_space<vmem>>, vector<1x32xf32>
      %14 = vector.broadcast %13 : vector<1x32xf32> to vector<128x32xf32>
      %15 = arith.addf %12, %14 : vector<128x32xf32>
      %c0_14 = arith.constant 0 : index
      %c0_15 = arith.constant 0 : index
      %16 = vector.load %arg6[%c0_14, %c0_15] : memref<128x32xbf16, #tpu.memory_space<vmem>>, vector<128x32xbf16>
      %17 = arith.extf %16 : vector<128x32xbf16> to vector<128x32xf32>
      %18 = arith.addf %15, %17 : vector<128x32xf32>
      %cst_16 = arith.constant dense<0.000000e+00> : vector<128xf32>
      %19 = vector.multi_reduction <add>, %18, %cst_16 [1] : vector<128x32xf32> to vector<128xf32>
      %20 = vector.shape_cast %19 : vector<128xf32> to vector<128x1xf32>
      %cst_17 = arith.constant 3.125000e-02 : f32
      %21 = vector.broadcast %cst_17 : f32 to vector<128x1xf32>
      %22 = arith.mulf %20, %21 : vector<128x1xf32>
      %23 = arith.mulf %18, %18 : vector<128x32xf32>
      %cst_18 = arith.constant dense<0.000000e+00> : vector<128xf32>
      %24 = vector.multi_reduction <add>, %23, %cst_18 [1] : vector<128x32xf32> to vector<128xf32>
      %25 = vector.shape_cast %24 : vector<128xf32> to vector<128x1xf32>
      %cst_19 = arith.constant 3.125000e-02 : f32
      %26 = vector.broadcast %cst_19 : f32 to vector<128x1xf32>
      %27 = arith.mulf %25, %26 : vector<128x1xf32>
      %28 = arith.mulf %22, %22 : vector<128x1xf32>
      %29 = arith.subf %27, %28 : vector<128x1xf32>
      %30 = vector.broadcast %22 : vector<128x1xf32> to vector<128x32xf32>
      %31 = arith.subf %18, %30 : vector<128x32xf32>
      %cst_20 = arith.constant 9.99999974E-6 : f32
      %32 = vector.broadcast %cst_20 : f32 to vector<128x1xf32>
      %33 = arith.addf %29, %32 : vector<128x1xf32>
      %34 = math.rsqrt %33 : vector<128x1xf32>
      %35 = vector.broadcast %34 : vector<128x1xf32> to vector<128x32xf32>
      %36 = arith.mulf %31, %35 : vector<128x32xf32>
      %c0_21 = arith.constant 0 : index
      %c0_22 = arith.constant 0 : index
      %37 = vector.load %arg7[%c0_21, %c0_22] : memref<1x32xf32, #tpu.memory_space<vmem>>, vector<1x32xf32>
      %38 = vector.broadcast %37 : vector<1x32xf32> to vector<128x32xf32>
      %39 = arith.mulf %36, %38 : vector<128x32xf32>
      %c0_23 = arith.constant 0 : index
      %c0_24 = arith.constant 0 : index
      %40 = vector.load %arg8[%c0_23, %c0_24] : memref<1x32xf32, #tpu.memory_space<vmem>>, vector<1x32xf32>
      %41 = vector.broadcast %40 : vector<1x32xf32> to vector<128x32xf32>
      %42 = arith.addf %39, %41 : vector<128x32xf32>
      %43 = arith.truncf %42 : vector<128x32xf32> to vector<128x32xbf16>
      %c0_25 = arith.constant 0 : index
      %c0_26 = arith.constant 0 : index
      %44 = vector.load %arg9[%c0_25, %c0_26] : memref<128x32xbf16, #tpu.memory_space<vmem>>, vector<128x32xbf16>
      tpu.vector_store %arg9[%c0_25, %c0_26], %43 {strides = array<i32>} : memref<128x32xbf16, #tpu.memory_space<vmem>>, vector<128x32xbf16>,
    } else {
    }
    return
  }
  func.func @transform_0(%arg0: i32, %arg1: i32, %arg2: i32) -> (i32, i32) {
    %c0_i32 = arith.constant 0 : i32
    return %arg0, %arg2 : i32, i32
  }
  func.func @transform_1(%arg0: i32, %arg1: i32, %arg2: i32) -> (i32, i32) {
    %c0_i32 = arith.constant 0 : i32
    return %arg2, %arg1 : i32, i32
  }
  func.func @transform_2(%arg0: i32, %arg1: i32, %arg2: i32) -> (i32, i32) {
    %c0_i32 = arith.constant 0 : i32
    %c0_i32_0 = arith.constant 0 : i32
    return %c0_i32, %arg1 : i32, i32
  }
  func.func @transform_3(%arg0: i32, %arg1: i32, %arg2: i32) -> (i32, i32) {
    %c0_i32 = arith.constant 0 : i32
    return %arg0, %arg1 : i32, i32
  }
  func.func @transform_4(%arg0: i32, %arg1: i32, %arg2: i32) -> (i32, i32) {
    %c0_i32 = arith.constant 0 : i32
    %c0_i32_0 = arith.constant 0 : i32
    return %c0_i32, %arg1 : i32, i32
  }
  func.func @transform_5(%arg0: i32, %arg1: i32, %arg2: i32) -> (i32, i32) {
    %c0_i32 = arith.constant 0 : i32
    %c0_i32_0 = arith.constant 0 : i32
    return %c0_i32, %arg1 : i32, i32
  }
  func.func @transform_6(%arg0: i32, %arg1: i32, %arg2: i32) -> (i32, i32) {
    %c0_i32 = arith.constant 0 : i32
    return %arg0, %arg1 : i32, i32
  }
}

module attributes {stable_mosaic.version = 11 : i64} {
  func.func @kernel(%arg0: i32, %arg1: i32, %arg2: memref<128x32xbf16, #tpu.memory_space<vmem>>, %arg3: memref<32x64xbf16, #tpu.memory_space<vmem>>, %arg4: memref<1x64xf32, #tpu.memory_space<vmem>>, %arg5: memref<64x32xbf16, #tpu.memory_space<vmem>>, %arg6: memref<1x32xf32, #tpu.memory_space<vmem>>, %arg7: memref<1x32xf32, #tpu.memory_space<vmem>>, %arg8: memref<1x32xf32, #tpu.memory_space<vmem>>, %arg9: memref<128x32xbf16, #tpu.memory_space<vmem>>, %arg10: memref<128x32xf32, #tpu.memory_space<vmem>>) attributes {dimension_semantics = [#tpu.dimension_semantics<parallel>, #tpu.dimension_semantics<arbitrary>], iteration_bounds = array<i64: 1, 1>, scalar_prefetch = 0 : i64, scratch_operands = 1 : i64, tpu.core_type = #tpu.core_type<tc>, window_params = [{transform_indices = @transform_0, window_bounds = array<i64: 128, 32>}, {transform_indices = @transform_1, window_bounds = array<i64: 32, 64>}, {transform_indices = @transform_2, window_bounds = array<i64: 1, 64>}, {transform_indices = @transform_3, window_bounds = array<i64: 64, 32>}, {pipeline_mode = #tpu.pipeline_mode<synchronous>, transform_indices = @transform_4, window_bounds = array<i64: 1, 32>}, {pipeline_mode = #tpu.pipeline_mode<synchronous>, transform_indices = @transform_5, window_bounds = array<i64: 1, 32>}, {pipeline_mode = #tpu.pipeline_mode<synchronous>, transform_indices = @transform_6, window_bounds = array<i64: 1, 32>}, {transform_indices = @transform_7, window_bounds = array<i64: 128, 32>}]} {
    %c0_i32 = arith.constant 0 : i32
    %0 = arith.cmpi eq, %arg1, %c0_i32 : i32
    %1 = arith.extui %0 : i1 to i32
    %c0_i32_0 = arith.constant 0 : i32
    %2 = arith.cmpi ne, %1, %c0_i32_0 : i32
    scf.if %2 {
      %cst_16 = arith.constant 0.000000e+00 : f32
      %20 = vector.broadcast %cst_16 : f32 to vector<128x32xf32>
      %c0_17 = arith.constant 0 : index
      %c0_18 = arith.constant 0 : index
      %21 = vector.load %arg10[%c0_17, %c0_18] : memref<128x32xf32, #tpu.memory_space<vmem>>, vector<128x32xf32>
      tpu.vector_store %arg10[%c0_17, %c0_18], %20 {strides = array<i32>} : memref<128x32xf32, #tpu.memory_space<vmem>>, vector<128x32xf32>,
    } else {
    }
    %c0 = arith.constant 0 : index
    %c0_1 = arith.constant 0 : index
    %3 = vector.load %arg2[%c0, %c0_1] : memref<128x32xbf16, #tpu.memory_space<vmem>>, vector<128x32xbf16>
    %c0_2 = arith.constant 0 : index
    %c0_3 = arith.constant 0 : index
    %4 = vector.load %arg3[%c0_2, %c0_3] : memref<32x64xbf16, #tpu.memory_space<vmem>>, vector<32x64xbf16>
    %cst = arith.constant dense<0.000000e+00> : vector<128x64xf32>
    %5 = tpu.matmul %3, %4, %cst {dimension_numbers = #tpu.dot_dimension_numbers<[1], [0], [0], [1], [0, 0, 1, 1], [], []>} : vector<128x32xbf16>, vector<32x64xbf16>, vector<128x64xf32> -> vector<128x64xf32>
    %c0_4 = arith.constant 0 : index
    %c0_5 = arith.constant 0 : index
    %6 = vector.load %arg4[%c0_4, %c0_5] : memref<1x64xf32, #tpu.memory_space<vmem>>, vector<1x64xf32>
    %7 = vector.broadcast %6 : vector<1x64xf32> to vector<128x64xf32>
    %8 = arith.addf %5, %7 : vector<128x64xf32>
    %cst_6 = arith.constant 0.000000e+00 : f32
    %9 = vector.broadcast %cst_6 : f32 to vector<128x64xf32>
    %10 = arith.maximumf %8, %9 : vector<128x64xf32>
    %c0_7 = arith.constant 0 : index
    %c0_8 = arith.constant 0 : index
    %11 = vector.load %arg10[%c0_7, %c0_8] : memref<128x32xf32, #tpu.memory_space<vmem>>, vector<128x32xf32>
    %12 = arith.truncf %10 : vector<128x64xf32> to vector<128x64xbf16>
    %c0_9 = arith.constant 0 : index
    %c0_10 = arith.constant 0 : index
    %13 = vector.load %arg5[%c0_9, %c0_10] : memref<64x32xbf16, #tpu.memory_space<vmem>>, vector<64x32xbf16>
    %cst_11 = arith.constant dense<0.000000e+00> : vector<128x32xf32>
    %14 = tpu.matmul %12, %13, %cst_11 {dimension_numbers = #tpu.dot_dimension_numbers<[1], [0], [0], [1], [0, 0, 1, 1], [], []>} : vector<128x64xbf16>, vector<64x32xbf16>, vector<128x32xf32> -> vector<128x32xf32>
    %15 = arith.addf %11, %14 : vector<128x32xf32>
    %c0_12 = arith.constant 0 : index
    %c0_13 = arith.constant 0 : index
    %16 = vector.load %arg10[%c0_12, %c0_13] : memref<128x32xf32, #tpu.memory_space<vmem>>, vector<128x32xf32>
    tpu.vector_store %arg10[%c0_12, %c0_13], %15 {strides = array<i32>} : memref<128x32xf32, #tpu.memory_space<vmem>>, vector<128x32xf32>,
    %c0_i32_14 = arith.constant 0 : i32
    %17 = arith.cmpi eq, %arg1, %c0_i32_14 : i32
    %18 = arith.extui %17 : i1 to i32
    %c0_i32_15 = arith.constant 0 : i32
    %19 = arith.cmpi ne, %18, %c0_i32_15 : i32
    scf.if %19 {
      %c0_16 = arith.constant 0 : index
      %c0_17 = arith.constant 0 : index
      %20 = vector.load %arg10[%c0_16, %c0_17] : memref<128x32xf32, #tpu.memory_space<vmem>>, vector<128x32xf32>
      %c0_18 = arith.constant 0 : index
      %c0_19 = arith.constant 0 : index
      %21 = vector.load %arg6[%c0_18, %c0_19] : memref<1x32xf32, #tpu.memory_space<vmem>>, vector<1x32xf32>
      %22 = vector.broadcast %21 : vector<1x32xf32> to vector<128x32xf32>
      %23 = arith.addf %20, %22 : vector<128x32xf32>
      %c0_20 = arith.constant 0 : index
      %c0_21 = arith.constant 0 : index
      %24 = vector.load %arg2[%c0_20, %c0_21] : memref<128x32xbf16, #tpu.memory_space<vmem>>, vector<128x32xbf16>
      %25 = arith.extf %24 : vector<128x32xbf16> to vector<128x32xf32>
      %26 = arith.addf %23, %25 : vector<128x32xf32>
      %cst_22 = arith.constant dense<0.000000e+00> : vector<128xf32>
      %27 = vector.multi_reduction <add>, %26, %cst_22 [1] : vector<128x32xf32> to vector<128xf32>
      %28 = vector.shape_cast %27 : vector<128xf32> to vector<128x1xf32>
      %cst_23 = arith.constant 3.125000e-02 : f32
      %29 = vector.broadcast %cst_23 : f32 to vector<128x1xf32>
      %30 = arith.mulf %28, %29 : vector<128x1xf32>
      %31 = arith.mulf %26, %26 : vector<128x32xf32>
      %cst_24 = arith.constant dense<0.000000e+00> : vector<128xf32>
      %32 = vector.multi_reduction <add>, %31, %cst_24 [1] : vector<128x32xf32> to vector<128xf32>
      %33 = vector.shape_cast %32 : vector<128xf32> to vector<128x1xf32>
      %cst_25 = arith.constant 3.125000e-02 : f32
      %34 = vector.broadcast %cst_25 : f32 to vector<128x1xf32>
      %35 = arith.mulf %33, %34 : vector<128x1xf32>
      %36 = arith.mulf %30, %30 : vector<128x1xf32>
      %37 = arith.subf %35, %36 : vector<128x1xf32>
      %38 = vector.broadcast %30 : vector<128x1xf32> to vector<128x32xf32>
      %39 = arith.subf %26, %38 : vector<128x32xf32>
      %cst_26 = arith.constant 9.99999974E-6 : f32
      %40 = vector.broadcast %cst_26 : f32 to vector<128x1xf32>
      %41 = arith.addf %37, %40 : vector<128x1xf32>
      %42 = math.rsqrt %41 : vector<128x1xf32>
      %43 = vector.broadcast %42 : vector<128x1xf32> to vector<128x32xf32>
      %44 = arith.mulf %39, %43 : vector<128x32xf32>
      %c0_27 = arith.constant 0 : index
      %c0_28 = arith.constant 0 : index
      %45 = vector.load %arg7[%c0_27, %c0_28] : memref<1x32xf32, #tpu.memory_space<vmem>>, vector<1x32xf32>
      %46 = vector.broadcast %45 : vector<1x32xf32> to vector<128x32xf32>
      %47 = arith.mulf %44, %46 : vector<128x32xf32>
      %c0_29 = arith.constant 0 : index
      %c0_30 = arith.constant 0 : index
      %48 = vector.load %arg8[%c0_29, %c0_30] : memref<1x32xf32, #tpu.memory_space<vmem>>, vector<1x32xf32>
      %49 = vector.broadcast %48 : vector<1x32xf32> to vector<128x32xf32>
      %50 = arith.addf %47, %49 : vector<128x32xf32>
      %51 = arith.truncf %50 : vector<128x32xf32> to vector<128x32xbf16>
      %c0_31 = arith.constant 0 : index
      %c0_32 = arith.constant 0 : index
      %52 = vector.load %arg9[%c0_31, %c0_32] : memref<128x32xbf16, #tpu.memory_space<vmem>>, vector<128x32xbf16>
      tpu.vector_store %arg9[%c0_31, %c0_32], %51 {strides = array<i32>} : memref<128x32xbf16, #tpu.memory_space<vmem>>, vector<128x32xbf16>,
    } else {
    }
    return
  }
  func.func @transform_0(%arg0: i32, %arg1: i32) -> (i32, i32) {
    %c0_i32 = arith.constant 0 : i32
    %c0_i32_0 = arith.constant 0 : i32
    return %arg0, %c0_i32 : i32, i32
  }
  func.func @transform_1(%arg0: i32, %arg1: i32) -> (i32, i32) {
    %c0_i32 = arith.constant 0 : i32
    %c0_i32_0 = arith.constant 0 : i32
    return %c0_i32, %arg1 : i32, i32
  }
  func.func @transform_2(%arg0: i32, %arg1: i32) -> (i32, i32) {
    %c0_i32 = arith.constant 0 : i32
    %c0_i32_0 = arith.constant 0 : i32
    return %c0_i32, %arg1 : i32, i32
  }
  func.func @transform_3(%arg0: i32, %arg1: i32) -> (i32, i32) {
    %c0_i32 = arith.constant 0 : i32
    %c0_i32_0 = arith.constant 0 : i32
    return %arg1, %c0_i32 : i32, i32
  }
  func.func @transform_4(%arg0: i32, %arg1: i32) -> (i32, i32) {
    %c0_i32 = arith.constant 0 : i32
    %c0_i32_0 = arith.constant 0 : i32
    %c0_i32_1 = arith.constant 0 : i32
    return %c0_i32, %c0_i32_0 : i32, i32
  }
  func.func @transform_5(%arg0: i32, %arg1: i32) -> (i32, i32) {
    %c0_i32 = arith.constant 0 : i32
    %c0_i32_0 = arith.constant 0 : i32
    %c0_i32_1 = arith.constant 0 : i32
    return %c0_i32, %c0_i32_0 : i32, i32
  }
  func.func @transform_6(%arg0: i32, %arg1: i32) -> (i32, i32) {
    %c0_i32 = arith.constant 0 : i32
    %c0_i32_0 = arith.constant 0 : i32
    %c0_i32_1 = arith.constant 0 : i32
    return %c0_i32, %c0_i32_0 : i32, i32
  }
  func.func @transform_7(%arg0: i32, %arg1: i32) -> (i32, i32) {
    %c0_i32 = arith.constant 0 : i32
    %c0_i32_0 = arith.constant 0 : i32
    return %arg0, %c0_i32 : i32, i32
  }
}

</mosaic_0001>

<llo_original>
// kernel: transformer_encoder.8
$region0: #{transformer_encoder.8}
  #allocation0 [shape = 'u32[]', space=smem, size = 0x4, offset = 0x4, fixed_abs, tag = 'smem constant byte address 0x4 - core index']
  #allocation1 [shape = 'u32[144,128]{1,0:T(1,128)}', space=vmem, size = 0x12000, scoped, tag = 'internal scratch']
  #allocation2 [shape = 'f32[128,96]{1,0:T(8,128)}', space=vmem, size = 0x10000, scoped, tag = 'scratch operand']
  %s0 = inlined_call_operand.hbm [shape: bf16[128,32], index: 0, kind: input, shape index: {}]
  %s1 = inlined_call_operand.hbm [shape: bf16[32,96], index: 1, kind: input, shape index: {}]
  %s2 = inlined_call_operand.hbm [shape: f32[1,96], index: 2, kind: input, shape index: {}]
  %s3 = inlined_call_operand.hbm [shape: bf16[128,96], index: 3, kind: output, shape index: {}]
  %s4 = sld [smem:[#allocation0]]
  $region42: #{transformer_encoder.8} parent=0
    _
  %s6 = ssub.s32 1, %s4
  %s7 = scalar_select 0, %s6, %s4
  $region1: #{transformer_encoder.8} parent=0
    #allocation3 [shape = 'u8[32768]{0}', space=vmem, size = 0x8000, scoped, tag = 'input window, operand 0, single buffered']
    #allocation4 [shape = 's32[1]{0}', space=sflag, size = 0x4, scoped, tag = 'scoped memory for transformer_encoder.8']
    #allocation5 [shape = 's32[1]{0}', space=sflag, size = 0x4, scoped, tag = 'scoped memory for transformer_encoder.8']
    #allocation6 [shape = 'u8[8192]{0}', space=vmem, size = 0x2000, scoped, tag = 'input window, operand 1, single buffered']
    #allocation7 [shape = 's32[1]{0}', space=sflag, size = 0x4, scoped, tag = 'scoped memory for transformer_encoder.8']
    #allocation8 [shape = 'u8[512]{0}', space=vmem, size = 0x400, scoped, tag = 'input window, operand 2, single buffered']
    #allocation9 [shape = 'u8[32768]{0}', space=vmem, size = 0x8000, scoped, tag = 'output window, operand 0, single buffered']
    %8 = vsyncpa [#allocation4], 0
    %9 = vsyncpa [#allocation7], 0
    %10 = vsyncpa [#allocation5], 0
    // Predicated region
    $region2: #{transformer_encoder.8} parent=1 // pred_check
      _
    $region3: #{transformer_encoder.8} parent=1 // pred_check_branch
      %12 = sbr.rel (0) target = $region5
    $region4: #{transformer_encoder.8} parent=1 // pred_region
      %s14 = ssub.s32 1024, 1024
      %15 = vsyncadd [#allocation4], %s14
      %s16 = sshll.u32 [#allocation3], 4
      %s17 = int_to_ptr.vmem [resolvable:$true] %s16
      %22 = dma.hbm_to_vmem [thread:$0]  %s0, 1024, %s17, [#allocation4], 64, 64, 4
    $region5: #{transformer_encoder.8} parent=1 // pred_fallthru
      _
    // Predicated region
    $region6: #{transformer_encoder.8} parent=1 // pred_check
      _
    $region7: #{transformer_encoder.8} parent=1 // pred_check_branch
      %24 = sbr.rel (0) target = $region9
    $region8: #{transformer_encoder.8} parent=1 // pred_region
      %s26 = ssub.s32 256, 256
      %27 = vsyncadd [#allocation7], %s26
      %s28 = sshll.u32 [#allocation6], 4
      %s29 = int_to_ptr.vmem [resolvable:$true] %s28
      %34 = dma.hbm_to_vmem [thread:$0]  %s1, 256, %s29, [#allocation7], 64, 64, 4
    $region9: #{transformer_encoder.8} parent=1 // pred_fallthru
      _
    // Predicated region
    $region10: #{transformer_encoder.8} parent=1 // pred_check
      _
    $region11: #{transformer_encoder.8} parent=1 // pred_check_branch
      %36 = sbr.rel (0) target = $region13
    $region12: #{transformer_encoder.8} parent=1 // pred_region
      %s38 = ssub.s32 16, 16
      %39 = vsyncadd [#allocation7], %s38
      %s41 = sshll.u32 [#allocation8], 4
      %s42 = int_to_ptr.vmem [resolvable:$true] %s41
      %44 = dma.hbm_to_vmem [thread:$0]  %s2, 16, %s42, [#allocation7]
    $region13: #{transformer_encoder.8} parent=1 // pred_fallthru
      _
    // Predicated region
    $region14: #{transformer_encoder.8} parent=1 // pred_check
      _
    $region15: #{transformer_encoder.8} parent=1 // pred_check_branch
      %46 = sbr.rel (0) target = $region17
    $region16: #{transformer_encoder.8} parent=1 // pred_region
      %47 = dma.done [#allocation4], 1024
    $region17: #{transformer_encoder.8} parent=1 // pred_fallthru
      _
    // Predicated region
    $region18: #{transformer_encoder.8} parent=1 // pred_check
      _
    $region19: #{transformer_encoder.8} parent=1 // pred_check_branch
      %49 = sbr.rel (0) target = $region21
    $region20: #{transformer_encoder.8} parent=1 // pred_region
      %50 = dma.done [#allocation7], 256
    $region21: #{transformer_encoder.8} parent=1 // pred_fallthru
      _
    // Predicated region
    $region22: #{transformer_encoder.8} parent=1 // pred_check
      _
    $region23: #{transformer_encoder.8} parent=1 // pred_check_branch
      %52 = sbr.rel (0) target = $region25
    $region24: #{transformer_encoder.8} parent=1 // pred_region
      %53 = dma.done [#allocation7], 16
    $region25: #{transformer_encoder.8} parent=1 // pred_fallthru
      _
    %p55 = scmp.eq.s32.totalorder 0, 0
    // Predicated region
    $region26: #{transformer_encoder.8} parent=1 // pred_check
      %p56 = pneg %p55
    $region27: #{transformer_encoder.8} parent=1 // pred_check_branch
      %58 = sbr.rel (%p56) target = $region29
    $region28: #{transformer_encoder.8} parent=1 // pred_region
      %vm59 = vcmask 785408
      %60 = vst.msk [vmem:[#allocation2] sm:$0xff] %vm59, 0.0
      %61 = vst.msk [vmem:[#allocation2 + $0x8] sm:$0xff] %vm59, 0.0
      %62 = vst.msk [vmem:[#allocation2 + $0x10] sm:$0xff] %vm59, 0.0
      %63 = vst.msk [vmem:[#allocation2 + $0x18] sm:$0xff] %vm59, 0.0
      %64 = vst.msk [vmem:[#allocation2 + $0x20] sm:$0xff] %vm59, 0.0
      %65 = vst.msk [vmem:[#allocation2 + $0x28] sm:$0xff] %vm59, 0.0
      %66 = vst.msk [vmem:[#allocation2 + $0x30] sm:$0xff] %vm59, 0.0
      %67 = vst.msk [vmem:[#allocation2 + $0x38] sm:$0xff] %vm59, 0.0
      %68 = vst.msk [vmem:[#allocation2 + $0x40] sm:$0xff] %vm59, 0.0
      %69 = vst.msk [vmem:[#allocation2 + $0x48] sm:$0xff] %vm59, 0.0
      %70 = vst.msk [vmem:[#allocation2 + $0x50] sm:$0xff] %vm59, 0.0
      %71 = vst.msk [vmem:[#allocation2 + $0x58] sm:$0xff] %vm59, 0.0
      %72 = vst.msk [vmem:[#allocation2 + $0x60] sm:$0xff] %vm59, 0.0
      %73 = vst.msk [vmem:[#allocation2 + $0x68] sm:$0xff] %vm59, 0.0
      %74 = vst.msk [vmem:[#allocation2 + $0x70] sm:$0xff] %vm59, 0.0
      %75 = vst.msk [vmem:[#allocation2 + $0x78] sm:$0xff] %vm59, 0.0
    $region29: #{transformer_encoder.8} parent=1 // pred_fallthru
      _
    %v76 = vld [vmem:[#allocation2] sm:$0xff]
    %v77 = vld [vmem:[#allocation2 + $0x8] sm:$0xff]
    %v78 = vld [vmem:[#allocation2 + $0x10] sm:$0xff]
    %v79 = vld [vmem:[#allocation2 + $0x18] sm:$0xff]
    %v80 = vld [vmem:[#allocation2 + $0x20] sm:$0xff]
    %v81 = vld [vmem:[#allocation2 + $0x28] sm:$0xff]
    %v82 = vld [vmem:[#allocation2 + $0x30] sm:$0xff]
    %v83 = vld [vmem:[#allocation2 + $0x38] sm:$0xff]
    %v84 = vld [vmem:[#allocation2 + $0x40] sm:$0xff]
    %v85 = vld [vmem:[#allocation2 + $0x48] sm:$0xff]
    %v86 = vld [vmem:[#allocation2 + $0x50] sm:$0xff]
    %v87 = vld [vmem:[#allocation2 + $0x58] sm:$0xff]
    %v88 = vld [vmem:[#allocation2 + $0x60] sm:$0xff]
    %v89 = vld [vmem:[#allocation2 + $0x68] sm:$0xff]
    %v90 = vld [vmem:[#allocation2 + $0x70] sm:$0xff]
    %v91 = vld [vmem:[#allocation2 + $0x78] sm:$0xff]
    %v92 = vld [vmem:[#allocation3] sm:$0xf]
    %v93 = vld [vmem:[#allocation3 + $0x4] sm:$0xf]
    %v94 = vld [vmem:[#allocation3 + $0x8] sm:$0xf]
    %v95 = vld [vmem:[#allocation3 + $0xc] sm:$0xf]
    %v96 = vld [vmem:[#allocation3 + $0x10] sm:$0xf]
    %v97 = vld [vmem:[#allocation3 + $0x14] sm:$0xf]
    %v98 = vld [vmem:[#allocation3 + $0x18] sm:$0xf]
    %v99 = vld [vmem:[#allocation3 + $0x1c] sm:$0xf]
    %v100 = vld [vmem:[#allocation3 + $0x20] sm:$0xf]
    %v101 = vld [vmem:[#allocation3 + $0x24] sm:$0xf]
    %v102 = vld [vmem:[#allocation3 + $0x28] sm:$0xf]
    %v103 = vld [vmem:[#allocation3 + $0x2c] sm:$0xf]
    %v104 = vld [vmem:[#allocation3 + $0x30] sm:$0xf]
    %v105 = vld [vmem:[#allocation3 + $0x34] sm:$0xf]
    %v106 = vld [vmem:[#allocation3 + $0x38] sm:$0xf]
    %v107 = vld [vmem:[#allocation3 + $0x3c] sm:$0xf]
    %v108 = vld [vmem:[#allocation6] sm:$0xf]
    %v109 = vld [vmem:[#allocation6 + $0x4] sm:$0xf]
    %v110 = vld [vmem:[#allocation6 + $0x8] sm:$0xf]
    %v111 = vld [vmem:[#allocation6 + $0xc] sm:$0xf]
    %v128 = vunpack.c.l.b16 %v92
    %v129 = vunpack.c.l.b16 %v93
    %v130 = vunpack.c.l.b16 %v94
    %v131 = vunpack.c.l.b16 %v95
    %v132 = vunpack.c.l.b16 %v96
    %v133 = vunpack.c.l.b16 %v97
    %v134 = vunpack.c.l.b16 %v98
    %v135 = vunpack.c.l.b16 %v99
    %v136 = vunpack.c.l.b16 %v100
    %v137 = vunpack.c.l.b16 %v101
    %v138 = vunpack.c.l.b16 %v102
    %v139 = vunpack.c.l.b16 %v103
    %v140 = vunpack.c.l.b16 %v104
    %v141 = vunpack.c.l.b16 %v105
    %v142 = vunpack.c.l.b16 %v106
    %v143 = vunpack.c.l.b16 %v107
    %v144 = vpack.c.b16 %v129, %v128
    %v145 = vpack.c.b16 %v131, %v130
    %v146 = vpack.c.b16 %v133, %v132
    %v147 = vpack.c.b16 %v135, %v134
    %v148 = vpack.c.b16 %v137, %v136
    %v149 = vpack.c.b16 %v139, %v138
    %v150 = vpack.c.b16 %v141, %v140
    %v151 = vpack.c.b16 %v143, %v142
    %v156 = vunpack.c.l.b16 %v108
    %v157 = vunpack.c.l.b16 %v109
    %v158 = vunpack.c.l.b16 %v110
    %v159 = vunpack.c.l.b16 %v111
    %v160 = vpack.c.b16 %v157, %v156
    %v161 = vpack.c.b16 %v159, %v158
    %vm164 = vcmask 261120
    %v166 = vsel %vm164, %v144, 0
    %v169 = vsel %vm164, %v145, 0
    %v172 = vsel %vm164, %v146, 0
    %v175 = vsel %vm164, %v147, 0
    %v178 = vsel %vm164, %v148, 0
    %v181 = vsel %vm164, %v149, 0
    %v184 = vsel %vm164, %v150, 0
    %v187 = vsel %vm164, %v151, 0
    %189 = vmatprep.subr.bf16.mxu0 0
    %190 = vmatpush1.bf16.msra.mxu0 %v160
    %191 = vmatprep.subr.bf16.mxu0 0
    %192 = vmatpush1.bf16.msra.mxu0 %v161
    %193 = vmatprep.subr.bf16.mxu0 0
    %194 = vmatpush1.bf16.msra.mxu0 0
    %195 = vmatprep.subr.bf16.mxu0 0
    %196 = vmatpush1.bf16.msra.mxu0 0
    %197 = vmatprep.subr.bf16.mxu0 0
    %198 = vmatpush1.bf16.msra.mxu0 0
    %199 = vmatprep.subr.bf16.mxu0 0
    %200 = vmatpush1.bf16.msra.mxu0 0
    %201 = vmatprep.subr.bf16.mxu0 0
    %202 = vmatpush1.bf16.msra.mxu0 0
    %203 = vmatprep.subr.bf16.mxu0 0
    %204 = vmatpush1.bf16.msra.mxu0 0
    %205 = vmatprep.subr.bf16.mxu0 0
    %206 = vmatpush1.bf16.msra.mxu0 0
    %207 = vmatprep.subr.bf16.mxu0 0
    %208 = vmatpush1.bf16.msra.mxu0 0
    %209 = vmatprep.subr.bf16.mxu0 0
    %210 = vmatpush1.bf16.msra.mxu0 0
    %211 = vmatprep.subr.bf16.mxu0 0
    %212 = vmatpush1.bf16.msra.mxu0 0
    %213 = vmatprep.subr.bf16.mxu0 0
    %214 = vmatpush1.bf16.msra.mxu0 0
    %215 = vmatprep.subr.bf16.mxu0 0
    %216 = vmatpush1.bf16.msra.mxu0 0
    %217 = vmatprep.subr.bf16.mxu0 0
    %218 = vmatpush1.bf16.msra.mxu0 0
    %219 = vmatprep.subr.bf16.mxu0 0
    %220 = vmatpush1.bf16.msra.mxu0 0
    %221 = vmatprep.mubr.bf16.mxu0 0
    %222 = vmatmul.mubr.bf16.gmra.mrb[0].mxu0 %v166
    %v223 = vpop.f32.mrb[0].mxu0
    %v224 = vadd.f32 0.0, %v223
    %v225 = vpop.f32.mrb[0].mxu0
    %v226 = vpop.f32.mrb[0].mxu0
    %v227 = vadd.f32 0.0, %v226
    %v228 = vpop.f32.mrb[0].mxu0
    %229 = vmatprep.mubr.bf16.mxu0 0
    %230 = vmatmul.mubr.bf16.gmra.mrb[0].mxu0 %v169
    %v231 = vpop.f32.mrb[0].mxu0
    %v232 = vadd.f32 0.0, %v231
    %v233 = vpop.f32.mrb[0].mxu0
    %v234 = vpop.f32.mrb[0].mxu0
    %v235 = vadd.f32 0.0, %v234
    %v236 = vpop.f32.mrb[0].mxu0
    %237 = vmatprep.mubr.bf16.mxu0 0
    %238 = vmatmul.mubr.bf16.gmra.mrb[0].mxu0 %v172
    %v239 = vpop.f32.mrb[0].mxu0
    %v240 = vadd.f32 0.0, %v239
    %v241 = vpop.f32.mrb[0].mxu0
    %v242 = vpop.f32.mrb[0].mxu0
    %v243 = vadd.f32 0.0, %v242
    %v244 = vpop.f32.mrb[0].mxu0
    %245 = vmatprep.mubr.bf16.mxu0 0
    %246 = vmatmul.mubr.bf16.gmra.mrb[0].mxu0 %v175
    %v247 = vpop.f32.mrb[0].mxu0
    %v248 = vadd.f32 0.0, %v247
    %v249 = vpop.f32.mrb[0].mxu0
    %v250 = vpop.f32.mrb[0].mxu0
    %v251 = vadd.f32 0.0, %v250
    %v252 = vpop.f32.mrb[0].mxu0
    %253 = vmatprep.mubr.bf16.mxu0 0
    %254 = vmatmul.mubr.bf16.gmra.mrb[0].mxu0 %v178
    %v255 = vpop.f32.mrb[0].mxu0
    %v256 = vadd.f32 0.0, %v255
    %v257 = vpop.f32.mrb[0].mxu0
    %v258 = vpop.f32.mrb[0].mxu0
    %v259 = vadd.f32 0.0, %v258
    %v260 = vpop.f32.mrb[0].mxu0
    %261 = vmatprep.mubr.bf16.mxu0 0
    %262 = vmatmul.mubr.bf16.gmra.mrb[0].mxu0 %v181
    %v263 = vpop.f32.mrb[0].mxu0
    %v264 = vadd.f32 0.0, %v263
    %v265 = vpop.f32.mrb[0].mxu0
    %v266 = vpop.f32.mrb[0].mxu0
    %v267 = vadd.f32 0.0, %v266
    %v268 = vpop.f32.mrb[0].mxu0
    %269 = vmatprep.mubr.bf16.mxu0 0
    %270 = vmatmul.mubr.bf16.gmra.mrb[0].mxu0 %v184
    %v271 = vpop.f32.mrb[0].mxu0
    %v272 = vadd.f32 0.0, %v271
    %v273 = vpop.f32.mrb[0].mxu0
    %v274 = vpop.f32.mrb[0].mxu0
    %v275 = vadd.f32 0.0, %v274
    %v276 = vpop.f32.mrb[0].mxu0
    %277 = vmatprep.mubr.bf16.mxu0 0
    %278 = vmatmul.mubr.bf16.gmra.mrb[0].mxu0 %v187
    %v279 = vpop.f32.mrb[0].mxu0
    %v280 = vadd.f32 0.0, %v279
    %v281 = vpop.f32.mrb[0].mxu0
    %v282 = vpop.f32.mrb[0].mxu0
    %v283 = vadd.f32 0.0, %v282
    %v284 = vpop.f32.mrb[0].mxu0
    %285 = vdwg.mxu0
    %v286 = vadd.f32 %v76, %v224
    %v287 = vadd.f32 %v77, %v227
    %v288 = vadd.f32 %v78, %v232
    %v289 = vadd.f32 %v79, %v235
    %v290 = vadd.f32 %v80, %v240
    %v291 = vadd.f32 %v81, %v243
    %v292 = vadd.f32 %v82, %v248
    %v293 = vadd.f32 %v83, %v251
    %v294 = vadd.f32 %v84, %v256
    %v295 = vadd.f32 %v85, %v259
    %v296 = vadd.f32 %v86, %v264
    %v297 = vadd.f32 %v87, %v267
    %v298 = vadd.f32 %v88, %v272
    %v299 = vadd.f32 %v89, %v275
    %v300 = vadd.f32 %v90, %v280
    %v301 = vadd.f32 %v91, %v283
    %vm302 = vcmask 785408
    %303 = vst.msk [vmem:[#allocation2] sm:$0xff] %vm302, %v286
    %304 = vst.msk [vmem:[#allocation2 + $0x8] sm:$0xff] %vm302, %v287
    %305 = vst.msk [vmem:[#allocation2 + $0x10] sm:$0xff] %vm302, %v288
    %306 = vst.msk [vmem:[#allocation2 + $0x18] sm:$0xff] %vm302, %v289
    %307 = vst.msk [vmem:[#allocation2 + $0x20] sm:$0xff] %vm302, %v290
    %308 = vst.msk [vmem:[#allocation2 + $0x28] sm:$0xff] %vm302, %v291
    %309 = vst.msk [vmem:[#allocation2 + $0x30] sm:$0xff] %vm302, %v292
    %310 = vst.msk [vmem:[#allocation2 + $0x38] sm:$0xff] %vm302, %v293
    %311 = vst.msk [vmem:[#allocation2 + $0x40] sm:$0xff] %vm302, %v294
    %312 = vst.msk [vmem:[#allocation2 + $0x48] sm:$0xff] %vm302, %v295
    %313 = vst.msk [vmem:[#allocation2 + $0x50] sm:$0xff] %vm302, %v296
    %314 = vst.msk [vmem:[#allocation2 + $0x58] sm:$0xff] %vm302, %v297
    %315 = vst.msk [vmem:[#allocation2 + $0x60] sm:$0xff] %vm302, %v298
    %316 = vst.msk [vmem:[#allocation2 + $0x68] sm:$0xff] %vm302, %v299
    %317 = vst.msk [vmem:[#allocation2 + $0x70] sm:$0xff] %vm302, %v300
    %318 = vst.msk [vmem:[#allocation2 + $0x78] sm:$0xff] %vm302, %v301
    // Predicated region
    $region30: #{transformer_encoder.8} parent=1 // pred_check
      %p319 = pneg %p55
    $region31: #{transformer_encoder.8} parent=1 // pred_check_branch
      %321 = sbr.rel (%p319) target = $region33
    $region32: #{transformer_encoder.8} parent=1 // pred_region
      %v322 = vld [vmem:[#allocation2] sm:$0xff]
      %v323 = vld [vmem:[#allocation2 + $0x8] sm:$0xff]
      %v324 = vld [vmem:[#allocation2 + $0x10] sm:$0xff]
      %v325 = vld [vmem:[#allocation2 + $0x18] sm:$0xff]
      %v326 = vld [vmem:[#allocation2 + $0x20] sm:$0xff]
      %v327 = vld [vmem:[#allocation2 + $0x28] sm:$0xff]
      %v328 = vld [vmem:[#allocation2 + $0x30] sm:$0xff]
      %v329 = vld [vmem:[#allocation2 + $0x38] sm:$0xff]
      %v330 = vld [vmem:[#allocation2 + $0x40] sm:$0xff]
      %v331 = vld [vmem:[#allocation2 + $0x48] sm:$0xff]
      %v332 = vld [vmem:[#allocation2 + $0x50] sm:$0xff]
      %v333 = vld [vmem:[#allocation2 + $0x58] sm:$0xff]
      %v334 = vld [vmem:[#allocation2 + $0x60] sm:$0xff]
      %v335 = vld [vmem:[#allocation2 + $0x68] sm:$0xff]
      %v336 = vld [vmem:[#allocation2 + $0x70] sm:$0xff]
      %v337 = vld [vmem:[#allocation2 + $0x78] sm:$0xff]
      %v338 = vld [vmem:[#allocation8] sm:$0x1]
      %v340 = vlaneseq
      %v341 = vshrl.u32 %v340, 7
      %v342 = vsub.s32 0, %v341
      %v343 = vrot.slane %v338, %v342
      %v345 = vadd.f32 %v322, %v343
      %v346 = vadd.f32 %v323, %v343
      %v347 = vadd.f32 %v324, %v343
      %v348 = vadd.f32 %v325, %v343
      %v349 = vadd.f32 %v326, %v343
      %v350 = vadd.f32 %v327, %v343
      %v351 = vadd.f32 %v328, %v343
      %v352 = vadd.f32 %v329, %v343
      %v353 = vadd.f32 %v330, %v343
      %v354 = vadd.f32 %v331, %v343
      %v355 = vadd.f32 %v332, %v343
      %v356 = vadd.f32 %v333, %v343
      %v357 = vadd.f32 %v334, %v343
      %v358 = vadd.f32 %v335, %v343
      %v359 = vadd.f32 %v336, %v343
      %v360 = vadd.f32 %v337, %v343
      %v361 = vpack.c.bf16 %v346, %v345
      %v362 = vpack.c.bf16 %v348, %v347
      %v363 = vpack.c.bf16 %v350, %v349
      %v364 = vpack.c.bf16 %v352, %v351
      %v365 = vpack.c.bf16 %v354, %v353
      %v366 = vpack.c.bf16 %v356, %v355
      %v367 = vpack.c.bf16 %v358, %v357
      %v368 = vpack.c.bf16 %v360, %v359
      %v377 = vunpack.c.l.b16 %v361
      %v378 = vunpack.c.h.b16 %v361
      %v379 = vunpack.c.l.b16 %v362
      %v380 = vunpack.c.h.b16 %v362
      %v381 = vunpack.c.l.b16 %v363
      %v382 = vunpack.c.h.b16 %v363
      %v383 = vunpack.c.l.b16 %v364
      %v384 = vunpack.c.h.b16 %v364
      %v385 = vunpack.c.l.b16 %v365
      %v386 = vunpack.c.h.b16 %v365
      %v387 = vunpack.c.l.b16 %v366
      %v388 = vunpack.c.h.b16 %v366
      %v389 = vunpack.c.l.b16 %v367
      %v390 = vunpack.c.h.b16 %v367
      %v391 = vunpack.c.l.b16 %v368
      %v392 = vunpack.c.h.b16 %v368
      %v393 = vpack.c.b16 %v377, %v377
      %v394 = vpack.c.b16 %v378, %v378
      %v395 = vpack.c.b16 %v379, %v379
      %v396 = vpack.c.b16 %v380, %v380
      %v397 = vpack.c.b16 %v381, %v381
      %v398 = vpack.c.b16 %v382, %v382
      %v399 = vpack.c.b16 %v383, %v383
      %v400 = vpack.c.b16 %v384, %v384
      %v401 = vpack.c.b16 %v385, %v385
      %v402 = vpack.c.b16 %v386, %v386
      %v403 = vpack.c.b16 %v387, %v387
      %v404 = vpack.c.b16 %v388, %v388
      %v405 = vpack.c.b16 %v389, %v389
      %v406 = vpack.c.b16 %v390, %v390
      %v407 = vpack.c.b16 %v391, %v391
      %v408 = vpack.c.b16 %v392, %v392
      %vm425 = vcmask 781312
      %426 = vst.msk [vmem:[#allocation9] sm:$0xf] %vm425, %v393
      %427 = vst.msk [vmem:[#allocation9 + $0x4] sm:$0xf] %vm425, %v394
      %428 = vst.msk [vmem:[#allocation9 + $0x8] sm:$0xf] %vm425, %v395
      %429 = vst.msk [vmem:[#allocation9 + $0xc] sm:$0xf] %vm425, %v396
      %430 = vst.msk [vmem:[#allocation9 + $0x10] sm:$0xf] %vm425, %v397
      %431 = vst.msk [vmem:[#allocation9 + $0x14] sm:$0xf] %vm425, %v398
      %432 = vst.msk [vmem:[#allocation9 + $0x18] sm:$0xf] %vm425, %v399
      %433 = vst.msk [vmem:[#allocation9 + $0x1c] sm:$0xf] %vm425, %v400
      %434 = vst.msk [vmem:[#allocation9 + $0x20] sm:$0xf] %vm425, %v401
      %435 = vst.msk [vmem:[#allocation9 + $0x24] sm:$0xf] %vm425, %v402
      %436 = vst.msk [vmem:[#allocation9 + $0x28] sm:$0xf] %vm425, %v403
      %437 = vst.msk [vmem:[#allocation9 + $0x2c] sm:$0xf] %vm425, %v404
      %438 = vst.msk [vmem:[#allocation9 + $0x30] sm:$0xf] %vm425, %v405
      %439 = vst.msk [vmem:[#allocation9 + $0x34] sm:$0xf] %vm425, %v406
      %440 = vst.msk [vmem:[#allocation9 + $0x38] sm:$0xf] %vm425, %v407
      %441 = vst.msk [vmem:[#allocation9 + $0x3c] sm:$0xf] %vm425, %v408
    $region33: #{transformer_encoder.8} parent=1 // pred_fallthru
      _
    // Predicated region
    $region34: #{transformer_encoder.8} parent=1 // pred_check
      _
    $region35: #{transformer_encoder.8} parent=1 // pred_check_branch
      %443 = sbr.rel (0) target = $region37
    $region36: #{transformer_encoder.8} parent=1 // pred_region
      %s445 = ssub.s32 1024, 1024
      %446 = vsyncadd [#allocation5], %s445
      %s447 = sshll.u32 [#allocation9], 4
      %s448 = int_to_ptr.vmem [resolvable:$true] %s447
      %453 = dma.vmem_to_hbm [thread:$0]  %s448, 1024, %s3, [#allocation5], 64, 64, 4
    $region37: #{transformer_encoder.8} parent=1 // pred_fallthru
      _
    // Predicated region
    $region38: #{transformer_encoder.8} parent=1 // pred_check
      _
    $region39: #{transformer_encoder.8} parent=1 // pred_check_branch
      %455 = sbr.rel (0) target = $region41
    $region40: #{transformer_encoder.8} parent=1 // pred_region
      %456 = dma.done [#allocation5], 1024
    $region41: #{transformer_encoder.8} parent=1 // pred_fallthru
      _
    %457 = vsyncpa [#allocation4], 1
    %458 = vsyncpa [#allocation7], 1
    %459 = vsyncpa [#allocation5], 1

// kernel: transformer_encoder.10
$region0: #{transformer_encoder.10}
  #allocation0 [shape = 'u32[]', space=smem, size = 0x4, offset = 0x4, fixed_abs, tag = 'smem constant byte address 0x4 - core index']
  #allocation1 [shape = 'u32[144,128]{1,0:T(1,128)}', space=vmem, size = 0x12000, scoped, tag = 'internal scratch']
  #allocation2 [shape = 'f32[128,32]{1,0:T(8,128)}', space=vmem, size = 0x10000, scoped, tag = 'scratch operand']
  %s0 = inlined_call_operand.hbm [shape: bf16[128,32], index: 0, kind: input, shape index: {}]
  %s1 = inlined_call_operand.hbm [shape: bf16[32,32], index: 1, kind: input, shape index: {}]
  %s2 = inlined_call_operand.hbm [shape: f32[1,32], index: 2, kind: input, shape index: {}]
  %s3 = inlined_call_operand.hbm [shape: bf16[128,32], index: 3, kind: input, shape index: {}]
  %s4 = inlined_call_operand.hbm [shape: f32[1,32], index: 4, kind: input, shape index: {}]
  %s5 = inlined_call_operand.hbm [shape: f32[1,32], index: 5, kind: input, shape index: {}]
  %s6 = inlined_call_operand.hbm [shape: bf16[128,32], index: 6, kind: output, shape index: {}]
  %s7 = sld [smem:[#allocation0]]
  $region66: #{transformer_encoder.10} parent=0
    _
  %s9 = ssub.s32 1, %s7
  %s10 = scalar_select 0, %s9, %s7
  $region1: #{transformer_encoder.10} parent=0
    #allocation3 [shape = 'u8[32768]{0}', space=vmem, size = 0x8000, scoped, tag = 'input window, operand 0, single buffered']
    #allocation4 [shape = 's32[1]{0}', space=sflag, size = 0x4, scoped, tag = 'scoped memory for transformer_encoder.10']
    #allocation5 [shape = 's32[1]{0}', space=sflag, size = 0x4, scoped, tag = 'scoped memory for transformer_encoder.10']
    #allocation6 [shape = 'u8[8192]{0}', space=vmem, size = 0x2000, scoped, tag = 'input window, operand 1, single buffered']
    #allocation7 [shape = 's32[1]{0}', space=sflag, size = 0x4, scoped, tag = 'scoped memory for transformer_encoder.10']
    #allocation8 [shape = 'u8[512]{0}', space=vmem, size = 0x400, scoped, tag = 'input window, operand 2, single buffered']
    #allocation9 [shape = 'u8[32768]{0}', space=vmem, size = 0x8000, scoped, tag = 'input window, operand 3, single buffered']
    #allocation10 [shape = 's32[1]{0}', space=sflag, size = 0x4, scoped, tag = 'scoped memory for transformer_encoder.10']
    #allocation11 [shape = 'u8[512]{0}', space=vmem, size = 0x400, scoped, tag = 'input window, operand 4, single buffered']
    #allocation12 [shape = 'u8[512]{0}', space=vmem, size = 0x400, scoped, tag = 'input window, operand 5, single buffered']
    #allocation13 [shape = 's32[1]{0}', space=sflag, size = 0x4, scoped, tag = 'scoped memory for transformer_encoder.10']
    #allocation14 [shape = 'u8[32768]{0}', space=vmem, size = 0x8000, scoped, tag = 'output window, operand 0, single buffered']
    %11 = vsyncpa [#allocation4], 0
    %12 = vsyncpa [#allocation7], 0
    %13 = vsyncpa [#allocation10], 0
    %14 = vsyncpa [#allocation13], 0
    %15 = vsyncpa [#allocation5], 0
    // Predicated region
    $region2: #{transformer_encoder.10} parent=1 // pred_check
      _
    $region3: #{transformer_encoder.10} parent=1 // pred_check_branch
      %17 = sbr.rel (0) target = $region5
    $region4: #{transformer_encoder.10} parent=1 // pred_region
      %s19 = ssub.s32 1024, 1024
      %20 = vsyncadd [#allocation4], %s19
      %s21 = sshll.u32 [#allocation3], 4
      %s22 = int_to_ptr.vmem [resolvable:$true] %s21
      %27 = dma.hbm_to_vmem [thread:$0]  %s0, 1024, %s22, [#allocation4], 64, 64, 4
    $region5: #{transformer_encoder.10} parent=1 // pred_fallthru
      _
    // Predicated region
    $region6: #{transformer_encoder.10} parent=1 // pred_check
      _
    $region7: #{transformer_encoder.10} parent=1 // pred_check_branch
      %29 = sbr.rel (0) target = $region9
    $region8: #{transformer_encoder.10} parent=1 // pred_region
      %s31 = ssub.s32 256, 256
      %32 = vsyncadd [#allocation7], %s31
      %s33 = sshll.u32 [#allocation6], 4
      %s34 = int_to_ptr.vmem [resolvable:$true] %s33
      %39 = dma.hbm_to_vmem [thread:$0]  %s1, 256, %s34, [#allocation7], 64, 64, 4
    $region9: #{transformer_encoder.10} parent=1 // pred_fallthru
      _
    // Predicated region
    $region10: #{transformer_encoder.10} parent=1 // pred_check
      _
    $region11: #{transformer_encoder.10} parent=1 // pred_check_branch
      %41 = sbr.rel (0) target = $region13
    $region12: #{transformer_encoder.10} parent=1 // pred_region
      %s43 = ssub.s32 16, 16
      %44 = vsyncadd [#allocation7], %s43
      %s46 = sshll.u32 [#allocation8], 4
      %s47 = int_to_ptr.vmem [resolvable:$true] %s46
      %49 = dma.hbm_to_vmem [thread:$0]  %s2, 16, %s47, [#allocation7]
    $region13: #{transformer_encoder.10} parent=1 // pred_fallthru
      _
    // Predicated region
    $region14: #{transformer_encoder.10} parent=1 // pred_check
      _
    $region15: #{transformer_encoder.10} parent=1 // pred_check_branch
      %51 = sbr.rel (0) target = $region17
    $region16: #{transformer_encoder.10} parent=1 // pred_region
      %s53 = ssub.s32 1024, 1024
      %54 = vsyncadd [#allocation10], %s53
      %s55 = sshll.u32 [#allocation9], 4
      %s56 = int_to_ptr.vmem [resolvable:$true] %s55
      %61 = dma.hbm_to_vmem [thread:$0]  %s3, 1024, %s56, [#allocation10], 64, 64, 4
    $region17: #{transformer_encoder.10} parent=1 // pred_fallthru
      _
    // Predicated region
    $region18: #{transformer_encoder.10} parent=1 // pred_check
      _
    $region19: #{transformer_encoder.10} parent=1 // pred_check_branch
      %63 = sbr.rel (0) target = $region21
    $region20: #{transformer_encoder.10} parent=1 // pred_region
      %s65 = ssub.s32 16, 16
      %66 = vsyncadd [#allocation10], %s65
      %s68 = sshll.u32 [#allocation11], 4
      %s69 = int_to_ptr.vmem [resolvable:$true] %s68
      %71 = dma.hbm_to_vmem [thread:$0]  %s4, 16, %s69, [#allocation10]
    $region21: #{transformer_encoder.10} parent=1 // pred_fallthru
      _
    // Predicated region
    $region22: #{transformer_encoder.10} parent=1 // pred_check
      _
    $region23: #{transformer_encoder.10} parent=1 // pred_check_branch
      %73 = sbr.rel (0) target = $region25
    $region24: #{transformer_encoder.10} parent=1 // pred_region
      %s75 = ssub.s32 16, 16
      %76 = vsyncadd [#allocation13], %s75
      %s78 = sshll.u32 [#allocation12], 4
      %s79 = int_to_ptr.vmem [resolvable:$true] %s78
      %81 = dma.hbm_to_vmem [thread:$0]  %s5, 16, %s79, [#allocation13]
    $region25: #{transformer_encoder.10} parent=1 // pred_fallthru
      _
    // Predicated region
    $region26: #{transformer_encoder.10} parent=1 // pred_check
      _
    $region27: #{transformer_encoder.10} parent=1 // pred_check_branch
      %83 = sbr.rel (0) target = $region29
    $region28: #{transformer_encoder.10} parent=1 // pred_region
      %84 = dma.done [#allocation4], 1024
    $region29: #{transformer_encoder.10} parent=1 // pred_fallthru
      _
    // Predicated region
    $region30: #{transformer_encoder.10} parent=1 // pred_check
      _
    $region31: #{transformer_encoder.10} parent=1 // pred_check_branch
      %86 = sbr.rel (0) target = $region33
    $region32: #{transformer_encoder.10} parent=1 // pred_region
      %87 = dma.done [#allocation7], 256
    $region33: #{transformer_encoder.10} parent=1 // pred_fallthru
      _
    // Predicated region
    $region34: #{transformer_encoder.10} parent=1 // pred_check
      _
    $region35: #{transformer_encoder.10} parent=1 // pred_check_branch
      %89 = sbr.rel (0) target = $region37
    $region36: #{transformer_encoder.10} parent=1 // pred_region
      %90 = dma.done [#allocation7], 16
    $region37: #{transformer_encoder.10} parent=1 // pred_fallthru
      _
    // Predicated region
    $region38: #{transformer_encoder.10} parent=1 // pred_check
      _
    $region39: #{transformer_encoder.10} parent=1 // pred_check_branch
      %92 = sbr.rel (0) target = $region41
    $region40: #{transformer_encoder.10} parent=1 // pred_region
      %93 = dma.done [#allocation10], 1024
    $region41: #{transformer_encoder.10} parent=1 // pred_fallthru
      _
    // Predicated region
    $region42: #{transformer_encoder.10} parent=1 // pred_check
      _
    $region43: #{transformer_encoder.10} parent=1 // pred_check_branch
      %95 = sbr.rel (0) target = $region45
    $region44: #{transformer_encoder.10} parent=1 // pred_region
      %96 = dma.done [#allocation10], 16
    $region45: #{transformer_encoder.10} parent=1 // pred_fallthru
      _
    // Predicated region
    $region46: #{transformer_encoder.10} parent=1 // pred_check
      _
    $region47: #{transformer_encoder.10} parent=1 // pred_check_branch
      %98 = sbr.rel (0) target = $region49
    $region48: #{transformer_encoder.10} parent=1 // pred_region
      %99 = dma.done [#allocation13], 16
    $region49: #{transformer_encoder.10} parent=1 // pred_fallthru
      _
    %p101 = scmp.eq.s32.totalorder 0, 0
    // Predicated region
    $region50: #{transformer_encoder.10} parent=1 // pred_check
      %p102 = pneg %p101
    $region51: #{transformer_encoder.10} parent=1 // pred_check_branch
      %104 = sbr.rel (%p102) target = $region53
    $region52: #{transformer_encoder.10} parent=1 // pred_region
      %vm105 = vcmask 261120
      %106 = vst.msk [vmem:[#allocation2] sm:$0xff] %vm105, 0.0
      %107 = vst.msk [vmem:[#allocation2 + $0x8] sm:$0xff] %vm105, 0.0
      %108 = vst.msk [vmem:[#allocation2 + $0x10] sm:$0xff] %vm105, 0.0
      %109 = vst.msk [vmem:[#allocation2 + $0x18] sm:$0xff] %vm105, 0.0
      %110 = vst.msk [vmem:[#allocation2 + $0x20] sm:$0xff] %vm105, 0.0
      %111 = vst.msk [vmem:[#allocation2 + $0x28] sm:$0xff] %vm105, 0.0
      %112 = vst.msk [vmem:[#allocation2 + $0x30] sm:$0xff] %vm105, 0.0
      %113 = vst.msk [vmem:[#allocation2 + $0x38] sm:$0xff] %vm105, 0.0
      %114 = vst.msk [vmem:[#allocation2 + $0x40] sm:$0xff] %vm105, 0.0
      %115 = vst.msk [vmem:[#allocation2 + $0x48] sm:$0xff] %vm105, 0.0
      %116 = vst.msk [vmem:[#allocation2 + $0x50] sm:$0xff] %vm105, 0.0
      %117 = vst.msk [vmem:[#allocation2 + $0x58] sm:$0xff] %vm105, 0.0
      %118 = vst.msk [vmem:[#allocation2 + $0x60] sm:$0xff] %vm105, 0.0
      %119 = vst.msk [vmem:[#allocation2 + $0x68] sm:$0xff] %vm105, 0.0
      %120 = vst.msk [vmem:[#allocation2 + $0x70] sm:$0xff] %vm105, 0.0
      %121 = vst.msk [vmem:[#allocation2 + $0x78] sm:$0xff] %vm105, 0.0
    $region53: #{transformer_encoder.10} parent=1 // pred_fallthru
      _
    %v122 = vld [vmem:[#allocation2] sm:$0xff]
    %v123 = vld [vmem:[#allocation2 + $0x8] sm:$0xff]
    %v124 = vld [vmem:[#allocation2 + $0x10] sm:$0xff]
    %v125 = vld [vmem:[#allocation2 + $0x18] sm:$0xff]
    %v126 = vld [vmem:[#allocation2 + $0x20] sm:$0xff]
    %v127 = vld [vmem:[#allocation2 + $0x28] sm:$0xff]
    %v128 = vld [vmem:[#allocation2 + $0x30] sm:$0xff]
    %v129 = vld [vmem:[#allocation2 + $0x38] sm:$0xff]
    %v130 = vld [vmem:[#allocation2 + $0x40] sm:$0xff]
    %v131 = vld [vmem:[#allocation2 + $0x48] sm:$0xff]
    %v132 = vld [vmem:[#allocation2 + $0x50] sm:$0xff]
    %v133 = vld [vmem:[#allocation2 + $0x58] sm:$0xff]
    %v134 = vld [vmem:[#allocation2 + $0x60] sm:$0xff]
    %v135 = vld [vmem:[#allocation2 + $0x68] sm:$0xff]
    %v136 = vld [vmem:[#allocation2 + $0x70] sm:$0xff]
    %v137 = vld [vmem:[#allocation2 + $0x78] sm:$0xff]
    %v138 = vld [vmem:[#allocation3] sm:$0xf]
    %v139 = vld [vmem:[#allocation3 + $0x4] sm:$0xf]
    %v140 = vld [vmem:[#allocation3 + $0x8] sm:$0xf]
    %v141 = vld [vmem:[#allocation3 + $0xc] sm:$0xf]
    %v142 = vld [vmem:[#allocation3 + $0x10] sm:$0xf]
    %v143 = vld [vmem:[#allocation3 + $0x14] sm:$0xf]
    %v144 = vld [vmem:[#allocation3 + $0x18] sm:$0xf]
    %v145 = vld [vmem:[#allocation3 + $0x1c] sm:$0xf]
    %v146 = vld [vmem:[#allocation3 + $0x20] sm:$0xf]
    %v147 = vld [vmem:[#allocation3 + $0x24] sm:$0xf]
    %v148 = vld [vmem:[#allocation3 + $0x28] sm:$0xf]
    %v149 = vld [vmem:[#allocation3 + $0x2c] sm:$0xf]
    %v150 = vld [vmem:[#allocation3 + $0x30] sm:$0xf]
    %v151 = vld [vmem:[#allocation3 + $0x34] sm:$0xf]
    %v152 = vld [vmem:[#allocation3 + $0x38] sm:$0xf]
    %v153 = vld [vmem:[#allocation3 + $0x3c] sm:$0xf]
    %v154 = vld [vmem:[#allocation6] sm:$0xf]
    %v155 = vld [vmem:[#allocation6 + $0x4] sm:$0xf]
    %v156 = vld [vmem:[#allocation6 + $0x8] sm:$0xf]
    %v157 = vld [vmem:[#allocation6 + $0xc] sm:$0xf]
    %v174 = vunpack.c.l.b16 %v138
    %v175 = vunpack.c.l.b16 %v139
    %v176 = vunpack.c.l.b16 %v140
    %v177 = vunpack.c.l.b16 %v141
    %v178 = vunpack.c.l.b16 %v142
    %v179 = vunpack.c.l.b16 %v143
    %v180 = vunpack.c.l.b16 %v144
    %v181 = vunpack.c.l.b16 %v145
    %v182 = vunpack.c.l.b16 %v146
    %v183 = vunpack.c.l.b16 %v147
    %v184 = vunpack.c.l.b16 %v148
    %v185 = vunpack.c.l.b16 %v149
    %v186 = vunpack.c.l.b16 %v150
    %v187 = vunpack.c.l.b16 %v151
    %v188 = vunpack.c.l.b16 %v152
    %v189 = vunpack.c.l.b16 %v153
    %v190 = vpack.c.b16 %v175, %v174
    %v191 = vpack.c.b16 %v177, %v176
    %v192 = vpack.c.b16 %v179, %v178
    %v193 = vpack.c.b16 %v181, %v180
    %v194 = vpack.c.b16 %v183, %v182
    %v195 = vpack.c.b16 %v185, %v184
    %v196 = vpack.c.b16 %v187, %v186
    %v197 = vpack.c.b16 %v189, %v188
    %v202 = vunpack.c.l.b16 %v154
    %v203 = vunpack.c.l.b16 %v155
    %v204 = vunpack.c.l.b16 %v156
    %v205 = vunpack.c.l.b16 %v157
    %v206 = vpack.c.b16 %v203, %v202
    %v207 = vpack.c.b16 %v205, %v204
    %vm210 = vcmask 261120
    %v212 = vsel %vm210, %v190, 0
    %v215 = vsel %vm210, %v191, 0
    %v218 = vsel %vm210, %v192, 0
    %v221 = vsel %vm210, %v193, 0
    %v224 = vsel %vm210, %v194, 0
    %v227 = vsel %vm210, %v195, 0
    %v230 = vsel %vm210, %v196, 0
    %v233 = vsel %vm210, %v197, 0
    %235 = vmatprep.subr.bf16.mxu0 0
    %236 = vmatpush1.bf16.msra.mxu0 %v206
    %237 = vmatprep.subr.bf16.mxu0 0
    %238 = vmatpush1.bf16.msra.mxu0 %v207
    %239 = vmatprep.subr.bf16.mxu0 0
    %240 = vmatpush1.bf16.msra.mxu0 0
    %241 = vmatprep.subr.bf16.mxu0 0
    %242 = vmatpush1.bf16.msra.mxu0 0
    %243 = vmatprep.subr.bf16.mxu0 0
    %244 = vmatpush1.bf16.msra.mxu0 0
    %245 = vmatprep.subr.bf16.mxu0 0
    %246 = vmatpush1.bf16.msra.mxu0 0
    %247 = vmatprep.subr.bf16.mxu0 0
    %248 = vmatpush1.bf16.msra.mxu0 0
    %249 = vmatprep.subr.bf16.mxu0 0
    %250 = vmatpush1.bf16.msra.mxu0 0
    %251 = vmatprep.subr.bf16.mxu0 0
    %252 = vmatpush1.bf16.msra.mxu0 0
    %253 = vmatprep.subr.bf16.mxu0 0
    %254 = vmatpush1.bf16.msra.mxu0 0
    %255 = vmatprep.subr.bf16.mxu0 0
    %256 = vmatpush1.bf16.msra.mxu0 0
    %257 = vmatprep.subr.bf16.mxu0 0
    %258 = vmatpush1.bf16.msra.mxu0 0
    %259 = vmatprep.subr.bf16.mxu0 0
    %260 = vmatpush1.bf16.msra.mxu0 0
    %261 = vmatprep.subr.bf16.mxu0 0
    %262 = vmatpush1.bf16.msra.mxu0 0
    %263 = vmatprep.subr.bf16.mxu0 0
    %264 = vmatpush1.bf16.msra.mxu0 0
    %265 = vmatprep.subr.bf16.mxu0 0
    %266 = vmatpush1.bf16.msra.mxu0 0
    %267 = vmatprep.mubr.bf16.mxu0 0
    %268 = vmatmul.mubr.bf16.gmra.mrb[0].mxu0 %v212
    %v269 = vpop.f32.mrb[0].mxu0
    %v270 = vadd.f32 0.0, %v269
    %v271 = vpop.f32.mrb[0].mxu0
    %v272 = vpop.f32.mrb[0].mxu0
    %v273 = vadd.f32 0.0, %v272
    %v274 = vpop.f32.mrb[0].mxu0
    %275 = vmatprep.mubr.bf16.mxu0 0
    %276 = vmatmul.mubr.bf16.gmra.mrb[0].mxu0 %v215
    %v277 = vpop.f32.mrb[0].mxu0
    %v278 = vadd.f32 0.0, %v277
    %v279 = vpop.f32.mrb[0].mxu0
    %v280 = vpop.f32.mrb[0].mxu0
    %v281 = vadd.f32 0.0, %v280
    %v282 = vpop.f32.mrb[0].mxu0
    %283 = vmatprep.mubr.bf16.mxu0 0
    %284 = vmatmul.mubr.bf16.gmra.mrb[0].mxu0 %v218
    %v285 = vpop.f32.mrb[0].mxu0
    %v286 = vadd.f32 0.0, %v285
    %v287 = vpop.f32.mrb[0].mxu0
    %v288 = vpop.f32.mrb[0].mxu0
    %v289 = vadd.f32 0.0, %v288
    %v290 = vpop.f32.mrb[0].mxu0
    %291 = vmatprep.mubr.bf16.mxu0 0
    %292 = vmatmul.mubr.bf16.gmra.mrb[0].mxu0 %v221
    %v293 = vpop.f32.mrb[0].mxu0
    %v294 = vadd.f32 0.0, %v293
    %v295 = vpop.f32.mrb[0].mxu0
    %v296 = vpop.f32.mrb[0].mxu0
    %v297 = vadd.f32 0.0, %v296
    %v298 = vpop.f32.mrb[0].mxu0
    %299 = vmatprep.mubr.bf16.mxu0 0
    %300 = vmatmul.mubr.bf16.gmra.mrb[0].mxu0 %v224
    %v301 = vpop.f32.mrb[0].mxu0
    %v302 = vadd.f32 0.0, %v301
    %v303 = vpop.f32.mrb[0].mxu0
    %v304 = vpop.f32.mrb[0].mxu0
    %v305 = vadd.f32 0.0, %v304
    %v306 = vpop.f32.mrb[0].mxu0
    %307 = vmatprep.mubr.bf16.mxu0 0
    %308 = vmatmul.mubr.bf16.gmra.mrb[0].mxu0 %v227
    %v309 = vpop.f32.mrb[0].mxu0
    %v310 = vadd.f32 0.0, %v309
    %v311 = vpop.f32.mrb[0].mxu0
    %v312 = vpop.f32.mrb[0].mxu0
    %v313 = vadd.f32 0.0, %v312
    %v314 = vpop.f32.mrb[0].mxu0
    %315 = vmatprep.mubr.bf16.mxu0 0
    %316 = vmatmul.mubr.bf16.gmra.mrb[0].mxu0 %v230
    %v317 = vpop.f32.mrb[0].mxu0
    %v318 = vadd.f32 0.0, %v317
    %v319 = vpop.f32.mrb[0].mxu0
    %v320 = vpop.f32.mrb[0].mxu0
    %v321 = vadd.f32 0.0, %v320
    %v322 = vpop.f32.mrb[0].mxu0
    %323 = vmatprep.mubr.bf16.mxu0 0
    %324 = vmatmul.mubr.bf16.gmra.mrb[0].mxu0 %v233
    %v325 = vpop.f32.mrb[0].mxu0
    %v326 = vadd.f32 0.0, %v325
    %v327 = vpop.f32.mrb[0].mxu0
    %v328 = vpop.f32.mrb[0].mxu0
    %v329 = vadd.f32 0.0, %v328
    %v330 = vpop.f32.mrb[0].mxu0
    %331 = vdwg.mxu0
    %v332 = vadd.f32 %v122, %v270
    %v333 = vadd.f32 %v123, %v273
    %v334 = vadd.f32 %v124, %v278
    %v335 = vadd.f32 %v125, %v281
    %v336 = vadd.f32 %v126, %v286
    %v337 = vadd.f32 %v127, %v289
    %v338 = vadd.f32 %v128, %v294
    %v339 = vadd.f32 %v129, %v297
    %v340 = vadd.f32 %v130, %v302
    %v341 = vadd.f32 %v131, %v305
    %v342 = vadd.f32 %v132, %v310
    %v343 = vadd.f32 %v133, %v313
    %v344 = vadd.f32 %v134, %v318
    %v345 = vadd.f32 %v135, %v321
    %v346 = vadd.f32 %v136, %v326
    %v347 = vadd.f32 %v137, %v329
    %348 = vst.msk [vmem:[#allocation2] sm:$0xff] %vm210, %v332
    %349 = vst.msk [vmem:[#allocation2 + $0x8] sm:$0xff] %vm210, %v333
    %350 = vst.msk [vmem:[#allocation2 + $0x10] sm:$0xff] %vm210, %v334
    %351 = vst.msk [vmem:[#allocation2 + $0x18] sm:$0xff] %vm210, %v335
    %352 = vst.msk [vmem:[#allocation2 + $0x20] sm:$0xff] %vm210, %v336
    %353 = vst.msk [vmem:[#allocation2 + $0x28] sm:$0xff] %vm210, %v337
    %354 = vst.msk [vmem:[#allocation2 + $0x30] sm:$0xff] %vm210, %v338
    %355 = vst.msk [vmem:[#allocation2 + $0x38] sm:$0xff] %vm210, %v339
    %356 = vst.msk [vmem:[#allocation2 + $0x40] sm:$0xff] %vm210, %v340
    %357 = vst.msk [vmem:[#allocation2 + $0x48] sm:$0xff] %vm210, %v341
    %358 = vst.msk [vmem:[#allocation2 + $0x50] sm:$0xff] %vm210, %v342
    %359 = vst.msk [vmem:[#allocation2 + $0x58] sm:$0xff] %vm210, %v343
    %360 = vst.msk [vmem:[#allocation2 + $0x60] sm:$0xff] %vm210, %v344
    %361 = vst.msk [vmem:[#allocation2 + $0x68] sm:$0xff] %vm210, %v345
    %362 = vst.msk [vmem:[#allocation2 + $0x70] sm:$0xff] %vm210, %v346
    %363 = vst.msk [vmem:[#allocation2 + $0x78] sm:$0xff] %vm210, %v347
    // Predicated region
    $region54: #{transformer_encoder.10} parent=1 // pred_check
      %p364 = pneg %p101
    $region55: #{transformer_encoder.10} parent=1 // pred_check_branch
      %366 = sbr.rel (%p364) target = $region57
    $region56: #{transformer_encoder.10} parent=1 // pred_region
      %v367 = vld [vmem:[#allocation2] sm:$0xff]
      %v368 = vld [vmem:[#allocation2 + $0x8] sm:$0xff]
      %v369 = vld [vmem:[#allocation2 + $0x10] sm:$0xff]
      %v370 = vld [vmem:[#allocation2 + $0x18] sm:$0xff]
      %v371 = vld [vmem:[#allocation2 + $0x20] sm:$0xff]
      %v372 = vld [vmem:[#allocation2 + $0x28] sm:$0xff]
      %v373 = vld [vmem:[#allocation2 + $0x30] sm:$0xff]
      %v374 = vld [vmem:[#allocation2 + $0x38] sm:$0xff]
      %v375 = vld [vmem:[#allocation2 + $0x40] sm:$0xff]
      %v376 = vld [vmem:[#allocation2 + $0x48] sm:$0xff]
      %v377 = vld [vmem:[#allocation2 + $0x50] sm:$0xff]
      %v378 = vld [vmem:[#allocation2 + $0x58] sm:$0xff]
      %v379 = vld [vmem:[#allocation2 + $0x60] sm:$0xff]
      %v380 = vld [vmem:[#allocation2 + $0x68] sm:$0xff]
      %v381 = vld [vmem:[#allocation2 + $0x70] sm:$0xff]
      %v382 = vld [vmem:[#allocation2 + $0x78] sm:$0xff]
      %v383 = vld [vmem:[#allocation8] sm:$0x1]
      %v385 = vlaneseq
      %v386 = vshrl.u32 %v385, 7
      %v387 = vsub.s32 0, %v386
      %v388 = vrot.slane %v383, %v387
      %v390 = vadd.f32 %v367, %v388
      %v391 = vadd.f32 %v368, %v388
      %v392 = vadd.f32 %v369, %v388
      %v393 = vadd.f32 %v370, %v388
      %v394 = vadd.f32 %v371, %v388
      %v395 = vadd.f32 %v372, %v388
      %v396 = vadd.f32 %v373, %v388
      %v397 = vadd.f32 %v374, %v388
      %v398 = vadd.f32 %v375, %v388
      %v399 = vadd.f32 %v376, %v388
      %v400 = vadd.f32 %v377, %v388
      %v401 = vadd.f32 %v378, %v388
      %v402 = vadd.f32 %v379, %v388
      %v403 = vadd.f32 %v380, %v388
      %v404 = vadd.f32 %v381, %v388
      %v405 = vadd.f32 %v382, %v388
      %v406 = vld [vmem:[#allocation9] sm:$0xf]
      %v407 = vld [vmem:[#allocation9 + $0x4] sm:$0xf]
      %v408 = vld [vmem:[#allocation9 + $0x8] sm:$0xf]
      %v409 = vld [vmem:[#allocation9 + $0xc] sm:$0xf]
      %v410 = vld [vmem:[#allocation9 + $0x10] sm:$0xf]
      %v411 = vld [vmem:[#allocation9 + $0x14] sm:$0xf]
      %v412 = vld [vmem:[#allocation9 + $0x18] sm:$0xf]
      %v413 = vld [vmem:[#allocation9 + $0x1c] sm:$0xf]
      %v414 = vld [vmem:[#allocation9 + $0x20] sm:$0xf]
      %v415 = vld [vmem:[#allocation9 + $0x24] sm:$0xf]
      %v416 = vld [vmem:[#allocation9 + $0x28] sm:$0xf]
      %v417 = vld [vmem:[#allocation9 + $0x2c] sm:$0xf]
      %v418 = vld [vmem:[#allocation9 + $0x30] sm:$0xf]
      %v419 = vld [vmem:[#allocation9 + $0x34] sm:$0xf]
      %v420 = vld [vmem:[#allocation9 + $0x38] sm:$0xf]
      %v421 = vld [vmem:[#allocation9 + $0x3c] sm:$0xf]
      %v422 = vunpack.c.l.bf16 %v406
      %v423 = vunpack.c.l.bf16 %v407
      %v424 = vunpack.c.l.bf16 %v408
      %v425 = vunpack.c.l.bf16 %v409
      %v426 = vunpack.c.l.bf16 %v410
      %v427 = vunpack.c.l.bf16 %v411
      %v428 = vunpack.c.l.bf16 %v412
      %v429 = vunpack.c.l.bf16 %v413
      %v430 = vunpack.c.l.bf16 %v414
      %v431 = vunpack.c.l.bf16 %v415
      %v432 = vunpack.c.l.bf16 %v416
      %v433 = vunpack.c.l.bf16 %v417
      %v434 = vunpack.c.l.bf16 %v418
      %v435 = vunpack.c.l.bf16 %v419
      %v436 = vunpack.c.l.bf16 %v420
      %v437 = vunpack.c.l.bf16 %v421
      %v438 = vadd.f32 %v390, %v422
      %v439 = vadd.f32 %v391, %v423
      %v440 = vadd.f32 %v392, %v424
      %v441 = vadd.f32 %v393, %v425
      %v442 = vadd.f32 %v394, %v426
      %v443 = vadd.f32 %v395, %v427
      %v444 = vadd.f32 %v396, %v428
      %v445 = vadd.f32 %v397, %v429
      %v446 = vadd.f32 %v398, %v430
      %v447 = vadd.f32 %v399, %v431
      %v448 = vadd.f32 %v400, %v432
      %v449 = vadd.f32 %v401, %v433
      %v450 = vadd.f32 %v402, %v434
      %v451 = vadd.f32 %v403, %v435
      %v452 = vadd.f32 %v404, %v436
      %v453 = vadd.f32 %v405, %v437
      %v454 = vsel %vm210, %v438, 0.0
      %455 = vadd.xlane.f32.xlu0 %v454
      %v456 = vpop.xlane.xlu0 %455
      %v457 = vsel %vm210, %v439, 0.0
      %458 = vadd.xlane.f32.xlu0 %v457
      %v459 = vpop.xlane.xlu0 %458
      %v460 = vsel %vm210, %v440, 0.0
      %461 = vadd.xlane.f32.xlu0 %v460
      %v462 = vpop.xlane.xlu0 %461
      %v463 = vsel %vm210, %v441, 0.0
      %464 = vadd.xlane.f32.xlu0 %v463
      %v465 = vpop.xlane.xlu0 %464
      %v466 = vsel %vm210, %v442, 0.0
      %467 = vadd.xlane.f32.xlu0 %v466
      %v468 = vpop.xlane.xlu0 %467
      %v469 = vsel %vm210, %v443, 0.0
      %470 = vadd.xlane.f32.xlu0 %v469
      %v471 = vpop.xlane.xlu0 %470
      %v472 = vsel %vm210, %v444, 0.0
      %473 = vadd.xlane.f32.xlu0 %v472
      %v474 = vpop.xlane.xlu0 %473
      %v475 = vsel %vm210, %v445, 0.0
      %476 = vadd.xlane.f32.xlu0 %v475
      %v477 = vpop.xlane.xlu0 %476
      %v478 = vsel %vm210, %v446, 0.0
      %479 = vadd.xlane.f32.xlu0 %v478
      %v480 = vpop.xlane.xlu0 %479
      %v481 = vsel %vm210, %v447, 0.0
      %482 = vadd.xlane.f32.xlu0 %v481
      %v483 = vpop.xlane.xlu0 %482
      %v484 = vsel %vm210, %v448, 0.0
      %485 = vadd.xlane.f32.xlu0 %v484
      %v486 = vpop.xlane.xlu0 %485
      %v487 = vsel %vm210, %v449, 0.0
      %488 = vadd.xlane.f32.xlu0 %v487
      %v489 = vpop.xlane.xlu0 %488
      %v490 = vsel %vm210, %v450, 0.0
      %491 = vadd.xlane.f32.xlu0 %v490
      %v492 = vpop.xlane.xlu0 %491
      %v493 = vsel %vm210, %v451, 0.0
      %494 = vadd.xlane.f32.xlu0 %v493
      %v495 = vpop.xlane.xlu0 %494
      %v496 = vsel %vm210, %v452, 0.0
      %497 = vadd.xlane.f32.xlu0 %v496
      %v498 = vpop.xlane.xlu0 %497
      %v499 = vsel %vm210, %v453, 0.0
      %500 = vadd.xlane.f32.xlu0 %v499
      %v501 = vpop.xlane.xlu0 %500
      %v502 = vmul.f32 %v456, 0.03125
      %v503 = vmul.f32 %v459, 0.03125
      %v504 = vmul.f32 %v462, 0.03125
      %v505 = vmul.f32 %v465, 0.03125
      %v506 = vmul.f32 %v468, 0.03125
      %v507 = vmul.f32 %v471, 0.03125
      %v508 = vmul.f32 %v474, 0.03125
      %v509 = vmul.f32 %v477, 0.03125
      %v510 = vmul.f32 %v480, 0.03125
      %v511 = vmul.f32 %v483, 0.03125
      %v512 = vmul.f32 %v486, 0.03125
      %v513 = vmul.f32 %v489, 0.03125
      %v514 = vmul.f32 %v492, 0.03125
      %v515 = vmul.f32 %v495, 0.03125
      %v516 = vmul.f32 %v498, 0.03125
      %v517 = vmul.f32 %v501, 0.03125
      %v518 = vmul.f32 %v438, %v438
      %v519 = vmul.f32 %v439, %v439
      %v520 = vmul.f32 %v440, %v440
      %v521 = vmul.f32 %v441, %v441
      %v522 = vmul.f32 %v442, %v442
      %v523 = vmul.f32 %v443, %v443
      %v524 = vmul.f32 %v444, %v444
      %v525 = vmul.f32 %v445, %v445
      %v526 = vmul.f32 %v446, %v446
      %v527 = vmul.f32 %v447, %v447
      %v528 = vmul.f32 %v448, %v448
      %v529 = vmul.f32 %v449, %v449
      %v530 = vmul.f32 %v450, %v450
      %v531 = vmul.f32 %v451, %v451
      %v532 = vmul.f32 %v452, %v452
      %v533 = vmul.f32 %v453, %v453
      %v534 = vsel %vm210, %v518, 0.0
      %535 = vadd.xlane.f32.xlu0 %v534
      %v536 = vpop.xlane.xlu0 %535
      %v537 = vsel %vm210, %v519, 0.0
      %538 = vadd.xlane.f32.xlu0 %v537
      %v539 = vpop.xlane.xlu0 %538
      %v540 = vsel %vm210, %v520, 0.0
      %541 = vadd.xlane.f32.xlu0 %v540
      %v542 = vpop.xlane.xlu0 %541
      %v543 = vsel %vm210, %v521, 0.0
      %544 = vadd.xlane.f32.xlu0 %v543
      %v545 = vpop.xlane.xlu0 %544
      %v546 = vsel %vm210, %v522, 0.0
      %547 = vadd.xlane.f32.xlu0 %v546
      %v548 = vpop.xlane.xlu0 %547
      %v549 = vsel %vm210, %v523, 0.0
      %550 = vadd.xlane.f32.xlu0 %v549
      %v551 = vpop.xlane.xlu0 %550
      %v552 = vsel %vm210, %v524, 0.0
      %553 = vadd.xlane.f32.xlu0 %v552
      %v554 = vpop.xlane.xlu0 %553
      %v555 = vsel %vm210, %v525, 0.0
      %556 = vadd.xlane.f32.xlu0 %v555
      %v557 = vpop.xlane.xlu0 %556
      %v558 = vsel %vm210, %v526, 0.0
      %559 = vadd.xlane.f32.xlu0 %v558
      %v560 = vpop.xlane.xlu0 %559
      %v561 = vsel %vm210, %v527, 0.0
      %562 = vadd.xlane.f32.xlu0 %v561
      %v563 = vpop.xlane.xlu0 %562
      %v564 = vsel %vm210, %v528, 0.0
      %565 = vadd.xlane.f32.xlu0 %v564
      %v566 = vpop.xlane.xlu0 %565
      %v567 = vsel %vm210, %v529, 0.0
      %568 = vadd.xlane.f32.xlu0 %v567
      %v569 = vpop.xlane.xlu0 %568
      %v570 = vsel %vm210, %v530, 0.0
      %571 = vadd.xlane.f32.xlu0 %v570
      %v572 = vpop.xlane.xlu0 %571
      %v573 = vsel %vm210, %v531, 0.0
      %574 = vadd.xlane.f32.xlu0 %v573
      %v575 = vpop.xlane.xlu0 %574
      %v576 = vsel %vm210, %v532, 0.0
      %577 = vadd.xlane.f32.xlu0 %v576
      %v578 = vpop.xlane.xlu0 %577
      %v579 = vsel %vm210, %v533, 0.0
      %580 = vadd.xlane.f32.xlu0 %v579
      %v581 = vpop.xlane.xlu0 %580
      %v582 = vmul.f32 %v536, 0.03125
      %v583 = vmul.f32 %v539, 0.03125
      %v584 = vmul.f32 %v542, 0.03125
      %v585 = vmul.f32 %v545, 0.03125
      %v586 = vmul.f32 %v548, 0.03125
      %v587 = vmul.f32 %v551, 0.03125
      %v588 = vmul.f32 %v554, 0.03125
      %v589 = vmul.f32 %v557, 0.03125
      %v590 = vmul.f32 %v560, 0.03125
      %v591 = vmul.f32 %v563, 0.03125
      %v592 = vmul.f32 %v566, 0.03125
      %v593 = vmul.f32 %v569, 0.03125
      %v594 = vmul.f32 %v572, 0.03125
      %v595 = vmul.f32 %v575, 0.03125
      %v596 = vmul.f32 %v578, 0.03125
      %v597 = vmul.f32 %v581, 0.03125
      %v598 = vmul.f32 %v502, %v502
      %v599 = vmul.f32 %v503, %v503
      %v600 = vmul.f32 %v504, %v504
      %v601 = vmul.f32 %v505, %v505
      %v602 = vmul.f32 %v506, %v506
      %v603 = vmul.f32 %v507, %v507
      %v604 = vmul.f32 %v508, %v508
      %v605 = vmul.f32 %v509, %v509
      %v606 = vmul.f32 %v510, %v510
      %v607 = vmul.f32 %v511, %v511
      %v608 = vmul.f32 %v512, %v512
      %v609 = vmul.f32 %v513, %v513
      %v610 = vmul.f32 %v514, %v514
      %v611 = vmul.f32 %v515, %v515
      %v612 = vmul.f32 %v516, %v516
      %v613 = vmul.f32 %v517, %v517
      %v614 = vsub.f32 %v582, %v598
      %v615 = vsub.f32 %v583, %v599
      %v616 = vsub.f32 %v584, %v600
      %v617 = vsub.f32 %v585, %v601
      %v618 = vsub.f32 %v586, %v602
      %v619 = vsub.f32 %v587, %v603
      %v620 = vsub.f32 %v588, %v604
      %v621 = vsub.f32 %v589, %v605
      %v622 = vsub.f32 %v590, %v606
      %v623 = vsub.f32 %v591, %v607
      %v624 = vsub.f32 %v592, %v608
      %v625 = vsub.f32 %v593, %v609
      %v626 = vsub.f32 %v594, %v610
      %v627 = vsub.f32 %v595, %v611
      %v628 = vsub.f32 %v596, %v612
      %v629 = vsub.f32 %v597, %v613
      %v630 = vsub.f32 %v438, %v502
      %v631 = vsub.f32 %v439, %v503
      %v632 = vsub.f32 %v440, %v504
      %v633 = vsub.f32 %v441, %v505
      %v634 = vsub.f32 %v442, %v506
      %v635 = vsub.f32 %v443, %v507
      %v636 = vsub.f32 %v444, %v508
      %v637 = vsub.f32 %v445, %v509
      %v638 = vsub.f32 %v446, %v510
      %v639 = vsub.f32 %v447, %v511
      %v640 = vsub.f32 %v448, %v512
      %v641 = vsub.f32 %v449, %v513
      %v642 = vsub.f32 %v450, %v514
      %v643 = vsub.f32 %v451, %v515
      %v644 = vsub.f32 %v452, %v516
      %v645 = vsub.f32 %v453, %v517
      %v646 = vadd.f32 %v614, 1e-05
      %v647 = vadd.f32 %v615, 1e-05
      %v648 = vadd.f32 %v616, 1e-05
      %v649 = vadd.f32 %v617, 1e-05
      %v650 = vadd.f32 %v618, 1e-05
      %v651 = vadd.f32 %v619, 1e-05
      %v652 = vadd.f32 %v620, 1e-05
      %v653 = vadd.f32 %v621, 1e-05
      %v654 = vadd.f32 %v622, 1e-05
      %v655 = vadd.f32 %v623, 1e-05
      %v656 = vadd.f32 %v624, 1e-05
      %v657 = vadd.f32 %v625, 1e-05
      %v658 = vadd.f32 %v626, 1e-05
      %v659 = vadd.f32 %v627, 1e-05
      %v660 = vadd.f32 %v628, 1e-05
      %v661 = vadd.f32 %v629, 1e-05
      %v662 = vrsqrt.pop %v646
      %v663 = vrsqrt.pop %v647
      %v664 = vrsqrt.pop %v648
      %v665 = vrsqrt.pop %v649
      %v666 = vrsqrt.pop %v650
      %v667 = vrsqrt.pop %v651
      %v668 = vrsqrt.pop %v652
      %v669 = vrsqrt.pop %v653
      %v670 = vrsqrt.pop %v654
      %v671 = vrsqrt.pop %v655
      %v672 = vrsqrt.pop %v656
      %v673 = vrsqrt.pop %v657
      %v674 = vrsqrt.pop %v658
      %v675 = vrsqrt.pop %v659
      %v676 = vrsqrt.pop %v660
      %v677 = vrsqrt.pop %v661
      %v678 = vmul.f32 %v630, %v662
      %v679 = vmul.f32 %v631, %v663
      %v680 = vmul.f32 %v632, %v664
      %v681 = vmul.f32 %v633, %v665
      %v682 = vmul.f32 %v634, %v666
      %v683 = vmul.f32 %v635, %v667
      %v684 = vmul.f32 %v636, %v668
      %v685 = vmul.f32 %v637, %v669
      %v686 = vmul.f32 %v638, %v670
      %v687 = vmul.f32 %v639, %v671
      %v688 = vmul.f32 %v640, %v672
      %v689 = vmul.f32 %v641, %v673
      %v690 = vmul.f32 %v642, %v674
      %v691 = vmul.f32 %v643, %v675
      %v692 = vmul.f32 %v644, %v676
      %v693 = vmul.f32 %v645, %v677
      %v694 = vld [vmem:[#allocation11] sm:$0x1]
      %v696 = vlaneseq
      %v697 = vshrl.u32 %v696, 7
      %v698 = vsub.s32 0, %v697
      %v699 = vrot.slane %v694, %v698
      %v701 = vmul.f32 %v678, %v699
      %v702 = vmul.f32 %v679, %v699
      %v703 = vmul.f32 %v680, %v699
      %v704 = vmul.f32 %v681, %v699
      %v705 = vmul.f32 %v682, %v699
      %v706 = vmul.f32 %v683, %v699
      %v707 = vmul.f32 %v684, %v699
      %v708 = vmul.f32 %v685, %v699
      %v709 = vmul.f32 %v686, %v699
      %v710 = vmul.f32 %v687, %v699
      %v711 = vmul.f32 %v688, %v699
      %v712 = vmul.f32 %v689, %v699
      %v713 = vmul.f32 %v690, %v699
      %v714 = vmul.f32 %v691, %v699
      %v715 = vmul.f32 %v692, %v699
      %v716 = vmul.f32 %v693, %v699
      %v717 = vld [vmem:[#allocation12] sm:$0x1]
      %v719 = vlaneseq
      %v720 = vshrl.u32 %v719, 7
      %v721 = vsub.s32 0, %v720
      %v722 = vrot.slane %v717, %v721
      %v724 = vadd.f32 %v701, %v722
      %v725 = vadd.f32 %v702, %v722
      %v726 = vadd.f32 %v703, %v722
      %v727 = vadd.f32 %v704, %v722
      %v728 = vadd.f32 %v705, %v722
      %v729 = vadd.f32 %v706, %v722
      %v730 = vadd.f32 %v707, %v722
      %v731 = vadd.f32 %v708, %v722
      %v732 = vadd.f32 %v709, %v722
      %v733 = vadd.f32 %v710, %v722
      %v734 = vadd.f32 %v711, %v722
      %v735 = vadd.f32 %v712, %v722
      %v736 = vadd.f32 %v713, %v722
      %v737 = vadd.f32 %v714, %v722
      %v738 = vadd.f32 %v715, %v722
      %v739 = vadd.f32 %v716, %v722
      %v740 = vpack.c.bf16 %v725, %v724
      %v741 = vpack.c.bf16 %v727, %v726
      %v742 = vpack.c.bf16 %v729, %v728
      %v743 = vpack.c.bf16 %v731, %v730
      %v744 = vpack.c.bf16 %v733, %v732
      %v745 = vpack.c.bf16 %v735, %v734
      %v746 = vpack.c.bf16 %v737, %v736
      %v747 = vpack.c.bf16 %v739, %v738
      %v756 = vunpack.c.l.b16 %v740
      %v757 = vunpack.c.h.b16 %v740
      %v758 = vunpack.c.l.b16 %v741
      %v759 = vunpack.c.h.b16 %v741
      %v760 = vunpack.c.l.b16 %v742
      %v761 = vunpack.c.h.b16 %v742
      %v762 = vunpack.c.l.b16 %v743
      %v763 = vunpack.c.h.b16 %v743
      %v764 = vunpack.c.l.b16 %v744
      %v765 = vunpack.c.h.b16 %v744
      %v766 = vunpack.c.l.b16 %v745
      %v767 = vunpack.c.h.b16 %v745
      %v768 = vunpack.c.l.b16 %v746
      %v769 = vunpack.c.h.b16 %v746
      %v770 = vunpack.c.l.b16 %v747
      %v771 = vunpack.c.h.b16 %v747
      %v772 = vpack.c.b16 %v756, %v756
      %v773 = vpack.c.b16 %v757, %v757
      %v774 = vpack.c.b16 %v758, %v758
      %v775 = vpack.c.b16 %v759, %v759
      %v776 = vpack.c.b16 %v760, %v760
      %v777 = vpack.c.b16 %v761, %v761
      %v778 = vpack.c.b16 %v762, %v762
      %v779 = vpack.c.b16 %v763, %v763
      %v780 = vpack.c.b16 %v764, %v764
      %v781 = vpack.c.b16 %v765, %v765
      %v782 = vpack.c.b16 %v766, %v766
      %v783 = vpack.c.b16 %v767, %v767
      %v784 = vpack.c.b16 %v768, %v768
      %v785 = vpack.c.b16 %v769, %v769
      %v786 = vpack.c.b16 %v770, %v770
      %v787 = vpack.c.b16 %v771, %v771
      %vm804 = vcmask 257024
      %805 = vst.msk [vmem:[#allocation14] sm:$0xf] %vm804, %v772
      %806 = vst.msk [vmem:[#allocation14 + $0x4] sm:$0xf] %vm804, %v773
      %807 = vst.msk [vmem:[#allocation14 + $0x8] sm:$0xf] %vm804, %v774
      %808 = vst.msk [vmem:[#allocation14 + $0xc] sm:$0xf] %vm804, %v775
      %809 = vst.msk [vmem:[#allocation14 + $0x10] sm:$0xf] %vm804, %v776
      %810 = vst.msk [vmem:[#allocation14 + $0x14] sm:$0xf] %vm804, %v777
      %811 = vst.msk [vmem:[#allocation14 + $0x18] sm:$0xf] %vm804, %v778
      %812 = vst.msk [vmem:[#allocation14 + $0x1c] sm:$0xf] %vm804, %v779
      %813 = vst.msk [vmem:[#allocation14 + $0x20] sm:$0xf] %vm804, %v780
      %814 = vst.msk [vmem:[#allocation14 + $0x24] sm:$0xf] %vm804, %v781
      %815 = vst.msk [vmem:[#allocation14 + $0x28] sm:$0xf] %vm804, %v782
      %816 = vst.msk [vmem:[#allocation14 + $0x2c] sm:$0xf] %vm804, %v783
      %817 = vst.msk [vmem:[#allocation14 + $0x30] sm:$0xf] %vm804, %v784
      %818 = vst.msk [vmem:[#allocation14 + $0x34] sm:$0xf] %vm804, %v785
      %819 = vst.msk [vmem:[#allocation14 + $0x38] sm:$0xf] %vm804, %v786
      %820 = vst.msk [vmem:[#allocation14 + $0x3c] sm:$0xf] %vm804, %v787
    $region57: #{transformer_encoder.10} parent=1 // pred_fallthru
      _
    // Predicated region
    $region58: #{transformer_encoder.10} parent=1 // pred_check
      _
    $region59: #{transformer_encoder.10} parent=1 // pred_check_branch
      %822 = sbr.rel (0) target = $region61
    $region60: #{transformer_encoder.10} parent=1 // pred_region
      %s824 = ssub.s32 1024, 1024
      %825 = vsyncadd [#allocation5], %s824
      %s826 = sshll.u32 [#allocation14], 4
      %s827 = int_to_ptr.vmem [resolvable:$true] %s826
      %832 = dma.vmem_to_hbm [thread:$0]  %s827, 1024, %s6, [#allocation5], 64, 64, 4
    $region61: #{transformer_encoder.10} parent=1 // pred_fallthru
      _
    // Predicated region
    $region62: #{transformer_encoder.10} parent=1 // pred_check
      _
    $region63: #{transformer_encoder.10} parent=1 // pred_check_branch
      %834 = sbr.rel (0) target = $region65
    $region64: #{transformer_encoder.10} parent=1 // pred_region
      %835 = dma.done [#allocation5], 1024
    $region65: #{transformer_encoder.10} parent=1 // pred_fallthru
      _
    %836 = vsyncpa [#allocation4], 1
    %837 = vsyncpa [#allocation7], 1
    %838 = vsyncpa [#allocation10], 1
    %839 = vsyncpa [#allocation13], 1
    %840 = vsyncpa [#allocation5], 1

// kernel: transformer_encoder.11
$region0: #{transformer_encoder.11}
  #allocation0 [shape = 'u32[]', space=smem, size = 0x4, offset = 0x4, fixed_abs, tag = 'smem constant byte address 0x4 - core index']
  #allocation1 [shape = 'u32[144,128]{1,0:T(1,128)}', space=vmem, size = 0x12000, scoped, tag = 'internal scratch']
  #allocation2 [shape = 'f32[128,32]{1,0:T(8,128)}', space=vmem, size = 0x10000, scoped, tag = 'scratch operand']
  %s0 = inlined_call_operand.hbm [shape: bf16[128,32], index: 0, kind: input, shape index: {}]
  %s1 = inlined_call_operand.hbm [shape: bf16[32,64], index: 1, kind: input, shape index: {}]
  %s2 = inlined_call_operand.hbm [shape: f32[1,64], index: 2, kind: input, shape index: {}]
  %s3 = inlined_call_operand.hbm [shape: bf16[64,32], index: 3, kind: input, shape index: {}]
  %s4 = inlined_call_operand.hbm [shape: f32[1,32], index: 4, kind: input, shape index: {}]
  %s5 = inlined_call_operand.hbm [shape: f32[1,32], index: 5, kind: input, shape index: {}]
  %s6 = inlined_call_operand.hbm [shape: f32[1,32], index: 6, kind: input, shape index: {}]
  %s7 = inlined_call_operand.hbm [shape: bf16[128,32], index: 7, kind: output, shape index: {}]
  %s8 = sld [smem:[#allocation0]]
  $region74: #{transformer_encoder.11} parent=0
    _
  %s10 = ssub.s32 1, %s8
  %s11 = scalar_select 0, %s10, %s8
  $region1: #{transformer_encoder.11} parent=0
    #allocation3 [shape = 'u8[32768]{0}', space=vmem, size = 0x8000, scoped, tag = 'input window, operand 0, single buffered']
    #allocation4 [shape = 's32[1]{0}', space=sflag, size = 0x4, scoped, tag = 'scoped memory for transformer_encoder.11']
    #allocation5 [shape = 's32[1]{0}', space=sflag, size = 0x4, scoped, tag = 'scoped memory for transformer_encoder.11']
    #allocation6 [shape = 'u8[8192]{0}', space=vmem, size = 0x2000, scoped, tag = 'input window, operand 1, single buffered']
    #allocation7 [shape = 's32[1]{0}', space=sflag, size = 0x4, scoped, tag = 'scoped memory for transformer_encoder.11']
    #allocation8 [shape = 'u8[512]{0}', space=vmem, size = 0x400, scoped, tag = 'input window, operand 2, single buffered']
    #allocation9 [shape = 'u8[16384]{0}', space=vmem, size = 0x4000, scoped, tag = 'input window, operand 3, single buffered']
    #allocation10 [shape = 's32[1]{0}', space=sflag, size = 0x4, scoped, tag = 'scoped memory for transformer_encoder.11']
    #allocation11 [shape = 'u8[512]{0}', space=vmem, size = 0x400, scoped, tag = 'input window, operand 4, single buffered']
    #allocation12 [shape = 'u8[512]{0}', space=vmem, size = 0x400, scoped, tag = 'input window, operand 5, single buffered']
    #allocation13 [shape = 's32[1]{0}', space=sflag, size = 0x4, scoped, tag = 'scoped memory for transformer_encoder.11']
    #allocation14 [shape = 'u8[512]{0}', space=vmem, size = 0x400, scoped, tag = 'input window, operand 6, single buffered']
    #allocation15 [shape = 'u8[32768]{0}', space=vmem, size = 0x8000, scoped, tag = 'output window, operand 0, single buffered']
    %12 = vsyncpa [#allocation4], 0
    %13 = vsyncpa [#allocation7], 0
    %14 = vsyncpa [#allocation10], 0
    %15 = vsyncpa [#allocation13], 0
    %16 = vsyncpa [#allocation5], 0
    // Predicated region
    $region2: #{transformer_encoder.11} parent=1 // pred_check
      _
    $region3: #{transformer_encoder.11} parent=1 // pred_check_branch
      %18 = sbr.rel (0) target = $region5
    $region4: #{transformer_encoder.11} parent=1 // pred_region
      %s20 = ssub.s32 1024, 1024
      %21 = vsyncadd [#allocation4], %s20
      %s22 = sshll.u32 [#allocation3], 4
      %s23 = int_to_ptr.vmem [resolvable:$true] %s22
      %28 = dma.hbm_to_vmem [thread:$0]  %s0, 1024, %s23, [#allocation4], 64, 64, 4
    $region5: #{transformer_encoder.11} parent=1 // pred_fallthru
      _
    // Predicated region
    $region6: #{transformer_encoder.11} parent=1 // pred_check
      _
    $region7: #{transformer_encoder.11} parent=1 // pred_check_branch
      %30 = sbr.rel (0) target = $region9
    $region8: #{transformer_encoder.11} parent=1 // pred_region
      %s32 = ssub.s32 256, 256
      %33 = vsyncadd [#allocation7], %s32
      %s34 = sshll.u32 [#allocation6], 4
      %s35 = int_to_ptr.vmem [resolvable:$true] %s34
      %40 = dma.hbm_to_vmem [thread:$0]  %s1, 256, %s35, [#allocation7], 64, 64, 4
    $region9: #{transformer_encoder.11} parent=1 // pred_fallthru
      _
    // Predicated region
    $region10: #{transformer_encoder.11} parent=1 // pred_check
      _
    $region11: #{transformer_encoder.11} parent=1 // pred_check_branch
      %42 = sbr.rel (0) target = $region13
    $region12: #{transformer_encoder.11} parent=1 // pred_region
      %s44 = ssub.s32 16, 16
      %45 = vsyncadd [#allocation7], %s44
      %s47 = sshll.u32 [#allocation8], 4
      %s48 = int_to_ptr.vmem [resolvable:$true] %s47
      %50 = dma.hbm_to_vmem [thread:$0]  %s2, 16, %s48, [#allocation7]
    $region13: #{transformer_encoder.11} parent=1 // pred_fallthru
      _
    // Predicated region
    $region14: #{transformer_encoder.11} parent=1 // pred_check
      _
    $region15: #{transformer_encoder.11} parent=1 // pred_check_branch
      %52 = sbr.rel (0) target = $region17
    $region16: #{transformer_encoder.11} parent=1 // pred_region
      %s54 = ssub.s32 512, 512
      %55 = vsyncadd [#allocation10], %s54
      %s56 = sshll.u32 [#allocation9], 4
      %s57 = int_to_ptr.vmem [resolvable:$true] %s56
      %62 = dma.hbm_to_vmem [thread:$0]  %s3, 512, %s57, [#allocation10], 64, 64, 4
    $region17: #{transformer_encoder.11} parent=1 // pred_fallthru
      _
    // Predicated region
    $region18: #{transformer_encoder.11} parent=1 // pred_check
      _
    $region19: #{transformer_encoder.11} parent=1 // pred_check_branch
      %64 = sbr.rel (0) target = $region21
    $region20: #{transformer_encoder.11} parent=1 // pred_region
      %s66 = ssub.s32 16, 16
      %67 = vsyncadd [#allocation10], %s66
      %s69 = sshll.u32 [#allocation11], 4
      %s70 = int_to_ptr.vmem [resolvable:$true] %s69
      %72 = dma.hbm_to_vmem [thread:$0]  %s4, 16, %s70, [#allocation10]
    $region21: #{transformer_encoder.11} parent=1 // pred_fallthru
      _
    // Predicated region
    $region22: #{transformer_encoder.11} parent=1 // pred_check
      _
    $region23: #{transformer_encoder.11} parent=1 // pred_check_branch
      %74 = sbr.rel (0) target = $region25
    $region24: #{transformer_encoder.11} parent=1 // pred_region
      %s76 = ssub.s32 16, 16
      %77 = vsyncadd [#allocation13], %s76
      %s79 = sshll.u32 [#allocation12], 4
      %s80 = int_to_ptr.vmem [resolvable:$true] %s79
      %82 = dma.hbm_to_vmem [thread:$0]  %s5, 16, %s80, [#allocation13]
    $region25: #{transformer_encoder.11} parent=1 // pred_fallthru
      _
    // Predicated region
    $region26: #{transformer_encoder.11} parent=1 // pred_check
      _
    $region27: #{transformer_encoder.11} parent=1 // pred_check_branch
      %84 = sbr.rel (0) target = $region29
    $region28: #{transformer_encoder.11} parent=1 // pred_region
      %s86 = ssub.s32 16, 16
      %87 = vsyncadd [#allocation13], %s86
      %s89 = sshll.u32 [#allocation14], 4
      %s90 = int_to_ptr.vmem [resolvable:$true] %s89
      %92 = dma.hbm_to_vmem [thread:$0]  %s6, 16, %s90, [#allocation13]
    $region29: #{transformer_encoder.11} parent=1 // pred_fallthru
      _
    // Predicated region
    $region30: #{transformer_encoder.11} parent=1 // pred_check
      _
    $region31: #{transformer_encoder.11} parent=1 // pred_check_branch
      %94 = sbr.rel (0) target = $region33
    $region32: #{transformer_encoder.11} parent=1 // pred_region
      %95 = dma.done [#allocation4], 1024
    $region33: #{transformer_encoder.11} parent=1 // pred_fallthru
      _
    // Predicated region
    $region34: #{transformer_encoder.11} parent=1 // pred_check
      _
    $region35: #{transformer_encoder.11} parent=1 // pred_check_branch
      %97 = sbr.rel (0) target = $region37
    $region36: #{transformer_encoder.11} parent=1 // pred_region
      %98 = dma.done [#allocation7], 256
    $region37: #{transformer_encoder.11} parent=1 // pred_fallthru
      _
    // Predicated region
    $region38: #{transformer_encoder.11} parent=1 // pred_check
      _
    $region39: #{transformer_encoder.11} parent=1 // pred_check_branch
      %100 = sbr.rel (0) target = $region41
    $region40: #{transformer_encoder.11} parent=1 // pred_region
      %101 = dma.done [#allocation7], 16
    $region41: #{transformer_encoder.11} parent=1 // pred_fallthru
      _
    // Predicated region
    $region42: #{transformer_encoder.11} parent=1 // pred_check
      _
    $region43: #{transformer_encoder.11} parent=1 // pred_check_branch
      %103 = sbr.rel (0) target = $region45
    $region44: #{transformer_encoder.11} parent=1 // pred_region
      %104 = dma.done [#allocation10], 512
    $region45: #{transformer_encoder.11} parent=1 // pred_fallthru
      _
    // Predicated region
    $region46: #{transformer_encoder.11} parent=1 // pred_check
      _
    $region47: #{transformer_encoder.11} parent=1 // pred_check_branch
      %106 = sbr.rel (0) target = $region49
    $region48: #{transformer_encoder.11} parent=1 // pred_region
      %107 = dma.done [#allocation10], 16
    $region49: #{transformer_encoder.11} parent=1 // pred_fallthru
      _
    // Predicated region
    $region50: #{transformer_encoder.11} parent=1 // pred_check
      _
    $region51: #{transformer_encoder.11} parent=1 // pred_check_branch
      %109 = sbr.rel (0) target = $region53
    $region52: #{transformer_encoder.11} parent=1 // pred_region
      %110 = dma.done [#allocation13], 16
    $region53: #{transformer_encoder.11} parent=1 // pred_fallthru
      _
    // Predicated region
    $region54: #{transformer_encoder.11} parent=1 // pred_check
      _
    $region55: #{transformer_encoder.11} parent=1 // pred_check_branch
      %112 = sbr.rel (0) target = $region57
    $region56: #{transformer_encoder.11} parent=1 // pred_region
      %113 = dma.done [#allocation13], 16
    $region57: #{transformer_encoder.11} parent=1 // pred_fallthru
      _
    %p115 = scmp.eq.s32.totalorder 0, 0
    // Predicated region
    $region58: #{transformer_encoder.11} parent=1 // pred_check
      %p116 = pneg %p115
    $region59: #{transformer_encoder.11} parent=1 // pred_check_branch
      %118 = sbr.rel (%p116) target = $region61
    $region60: #{transformer_encoder.11} parent=1 // pred_region
      %vm119 = vcmask 261120
      %120 = vst.msk [vmem:[#allocation2] sm:$0xff] %vm119, 0.0
      %121 = vst.msk [vmem:[#allocation2 + $0x8] sm:$0xff] %vm119, 0.0
      %122 = vst.msk [vmem:[#allocation2 + $0x10] sm:$0xff] %vm119, 0.0
      %123 = vst.msk [vmem:[#allocation2 + $0x18] sm:$0xff] %vm119, 0.0
      %124 = vst.msk [vmem:[#allocation2 + $0x20] sm:$0xff] %vm119, 0.0
      %125 = vst.msk [vmem:[#allocation2 + $0x28] sm:$0xff] %vm119, 0.0
      %126 = vst.msk [vmem:[#allocation2 + $0x30] sm:$0xff] %vm119, 0.0
      %127 = vst.msk [vmem:[#allocation2 + $0x38] sm:$0xff] %vm119, 0.0
      %128 = vst.msk [vmem:[#allocation2 + $0x40] sm:$0xff] %vm119, 0.0
      %129 = vst.msk [vmem:[#allocation2 + $0x48] sm:$0xff] %vm119, 0.0
      %130 = vst.msk [vmem:[#allocation2 + $0x50] sm:$0xff] %vm119, 0.0
      %131 = vst.msk [vmem:[#allocation2 + $0x58] sm:$0xff] %vm119, 0.0
      %132 = vst.msk [vmem:[#allocation2 + $0x60] sm:$0xff] %vm119, 0.0
      %133 = vst.msk [vmem:[#allocation2 + $0x68] sm:$0xff] %vm119, 0.0
      %134 = vst.msk [vmem:[#allocation2 + $0x70] sm:$0xff] %vm119, 0.0
      %135 = vst.msk [vmem:[#allocation2 + $0x78] sm:$0xff] %vm119, 0.0
    $region61: #{transformer_encoder.11} parent=1 // pred_fallthru
      _
    %v136 = vld [vmem:[#allocation3] sm:$0xf]
    %v137 = vld [vmem:[#allocation3 + $0x4] sm:$0xf]
    %v138 = vld [vmem:[#allocation3 + $0x8] sm:$0xf]
    %v139 = vld [vmem:[#allocation3 + $0xc] sm:$0xf]
    %v140 = vld [vmem:[#allocation3 + $0x10] sm:$0xf]
    %v141 = vld [vmem:[#allocation3 + $0x14] sm:$0xf]
    %v142 = vld [vmem:[#allocation3 + $0x18] sm:$0xf]
    %v143 = vld [vmem:[#allocation3 + $0x1c] sm:$0xf]
    %v144 = vld [vmem:[#allocation3 + $0x20] sm:$0xf]
    %v145 = vld [vmem:[#allocation3 + $0x24] sm:$0xf]
    %v146 = vld [vmem:[#allocation3 + $0x28] sm:$0xf]
    %v147 = vld [vmem:[#allocation3 + $0x2c] sm:$0xf]
    %v148 = vld [vmem:[#allocation3 + $0x30] sm:$0xf]
    %v149 = vld [vmem:[#allocation3 + $0x34] sm:$0xf]
    %v150 = vld [vmem:[#allocation3 + $0x38] sm:$0xf]
    %v151 = vld [vmem:[#allocation3 + $0x3c] sm:$0xf]
    %v152 = vld [vmem:[#allocation6] sm:$0xf]
    %v153 = vld [vmem:[#allocation6 + $0x4] sm:$0xf]
    %v154 = vld [vmem:[#allocation6 + $0x8] sm:$0xf]
    %v155 = vld [vmem:[#allocation6 + $0xc] sm:$0xf]
    %v156 = vld [vmem:[#allocation8] sm:$0x1]
    %v158 = vlaneseq
    %v159 = vshrl.u32 %v158, 7
    %v160 = vsub.s32 0, %v159
    %v161 = vrot.slane %v156, %v160
    %v179 = vunpack.c.l.b16 %v136
    %v180 = vunpack.c.l.b16 %v137
    %v181 = vunpack.c.l.b16 %v138
    %v182 = vunpack.c.l.b16 %v139
    %v183 = vunpack.c.l.b16 %v140
    %v184 = vunpack.c.l.b16 %v141
    %v185 = vunpack.c.l.b16 %v142
    %v186 = vunpack.c.l.b16 %v143
    %v187 = vunpack.c.l.b16 %v144
    %v188 = vunpack.c.l.b16 %v145
    %v189 = vunpack.c.l.b16 %v146
    %v190 = vunpack.c.l.b16 %v147
    %v191 = vunpack.c.l.b16 %v148
    %v192 = vunpack.c.l.b16 %v149
    %v193 = vunpack.c.l.b16 %v150
    %v194 = vunpack.c.l.b16 %v151
    %v195 = vpack.c.b16 %v180, %v179
    %v196 = vpack.c.b16 %v182, %v181
    %v197 = vpack.c.b16 %v184, %v183
    %v198 = vpack.c.b16 %v186, %v185
    %v199 = vpack.c.b16 %v188, %v187
    %v200 = vpack.c.b16 %v190, %v189
    %v201 = vpack.c.b16 %v192, %v191
    %v202 = vpack.c.b16 %v194, %v193
    %v207 = vunpack.c.l.b16 %v152
    %v208 = vunpack.c.l.b16 %v153
    %v209 = vunpack.c.l.b16 %v154
    %v210 = vunpack.c.l.b16 %v155
    %v211 = vpack.c.b16 %v208, %v207
    %v212 = vpack.c.b16 %v210, %v209
    %vm215 = vcmask 261120
    %v217 = vsel %vm215, %v195, 0
    %v220 = vsel %vm215, %v196, 0
    %v223 = vsel %vm215, %v197, 0
    %v226 = vsel %vm215, %v198, 0
    %v229 = vsel %vm215, %v199, 0
    %v232 = vsel %vm215, %v200, 0
    %v235 = vsel %vm215, %v201, 0
    %v238 = vsel %vm215, %v202, 0
    %240 = vmatprep.subr.bf16.mxu0 0
    %241 = vmatpush1.bf16.msra.mxu0 %v211
    %242 = vmatprep.subr.bf16.mxu0 0
    %243 = vmatpush1.bf16.msra.mxu0 %v212
    %244 = vmatprep.subr.bf16.mxu0 0
    %245 = vmatpush1.bf16.msra.mxu0 0
    %246 = vmatprep.subr.bf16.mxu0 0
    %247 = vmatpush1.bf16.msra.mxu0 0
    %248 = vmatprep.subr.bf16.mxu0 0
    %249 = vmatpush1.bf16.msra.mxu0 0
    %250 = vmatprep.subr.bf16.mxu0 0
    %251 = vmatpush1.bf16.msra.mxu0 0
    %252 = vmatprep.subr.bf16.mxu0 0
    %253 = vmatpush1.bf16.msra.mxu0 0
    %254 = vmatprep.subr.bf16.mxu0 0
    %255 = vmatpush1.bf16.msra.mxu0 0
    %256 = vmatprep.subr.bf16.mxu0 0
    %257 = vmatpush1.bf16.msra.mxu0 0
    %258 = vmatprep.subr.bf16.mxu0 0
    %259 = vmatpush1.bf16.msra.mxu0 0
    %260 = vmatprep.subr.bf16.mxu0 0
    %261 = vmatpush1.bf16.msra.mxu0 0
    %262 = vmatprep.subr.bf16.mxu0 0
    %263 = vmatpush1.bf16.msra.mxu0 0
    %264 = vmatprep.subr.bf16.mxu0 0
    %265 = vmatpush1.bf16.msra.mxu0 0
    %266 = vmatprep.subr.bf16.mxu0 0
    %267 = vmatpush1.bf16.msra.mxu0 0
    %268 = vmatprep.subr.bf16.mxu0 0
    %269 = vmatpush1.bf16.msra.mxu0 0
    %270 = vmatprep.subr.bf16.mxu0 0
    %271 = vmatpush1.bf16.msra.mxu0 0
    %272 = vmatprep.mubr.bf16.mxu0 0
    %273 = vmatmul.mubr.bf16.gmra.mrb[0].mxu0 %v217
    %v274 = vpop.f32.mrb[0].mxu0
    %v275 = vadd.f32 %v161, %v274
    %v276 = vpop.f32.mrb[0].mxu0
    %v277 = vpop.f32.mrb[0].mxu0
    %v278 = vadd.f32 %v161, %v277
    %v279 = vpop.f32.mrb[0].mxu0
    %280 = vmatprep.mubr.bf16.mxu0 0
    %281 = vmatmul.mubr.bf16.gmra.mrb[0].mxu0 %v220
    %v282 = vpop.f32.mrb[0].mxu0
    %v283 = vadd.f32 %v161, %v282
    %v284 = vpop.f32.mrb[0].mxu0
    %v285 = vpop.f32.mrb[0].mxu0
    %v286 = vadd.f32 %v161, %v285
    %v287 = vpop.f32.mrb[0].mxu0
    %288 = vmatprep.mubr.bf16.mxu0 0
    %289 = vmatmul.mubr.bf16.gmra.mrb[0].mxu0 %v223
    %v290 = vpop.f32.mrb[0].mxu0
    %v291 = vadd.f32 %v161, %v290
    %v292 = vpop.f32.mrb[0].mxu0
    %v293 = vpop.f32.mrb[0].mxu0
    %v294 = vadd.f32 %v161, %v293
    %v295 = vpop.f32.mrb[0].mxu0
    %296 = vmatprep.mubr.bf16.mxu0 0
    %297 = vmatmul.mubr.bf16.gmra.mrb[0].mxu0 %v226
    %v298 = vpop.f32.mrb[0].mxu0
    %v299 = vadd.f32 %v161, %v298
    %v300 = vpop.f32.mrb[0].mxu0
    %v301 = vpop.f32.mrb[0].mxu0
    %v302 = vadd.f32 %v161, %v301
    %v303 = vpop.f32.mrb[0].mxu0
    %304 = vmatprep.mubr.bf16.mxu0 0
    %305 = vmatmul.mubr.bf16.gmra.mrb[0].mxu0 %v229
    %v306 = vpop.f32.mrb[0].mxu0
    %v307 = vadd.f32 %v161, %v306
    %v308 = vpop.f32.mrb[0].mxu0
    %v309 = vpop.f32.mrb[0].mxu0
    %v310 = vadd.f32 %v161, %v309
    %v311 = vpop.f32.mrb[0].mxu0
    %312 = vmatprep.mubr.bf16.mxu0 0
    %313 = vmatmul.mubr.bf16.gmra.mrb[0].mxu0 %v232
    %v314 = vpop.f32.mrb[0].mxu0
    %v315 = vadd.f32 %v161, %v314
    %v316 = vpop.f32.mrb[0].mxu0
    %v317 = vpop.f32.mrb[0].mxu0
    %v318 = vadd.f32 %v161, %v317
    %v319 = vpop.f32.mrb[0].mxu0
    %320 = vmatprep.mubr.bf16.mxu0 0
    %321 = vmatmul.mubr.bf16.gmra.mrb[0].mxu0 %v235
    %v322 = vpop.f32.mrb[0].mxu0
    %v323 = vadd.f32 %v161, %v322
    %v324 = vpop.f32.mrb[0].mxu0
    %v325 = vpop.f32.mrb[0].mxu0
    %v326 = vadd.f32 %v161, %v325
    %v327 = vpop.f32.mrb[0].mxu0
    %328 = vmatprep.mubr.bf16.mxu0 0
    %329 = vmatmul.mubr.bf16.gmra.mrb[0].mxu0 %v238
    %v330 = vpop.f32.mrb[0].mxu0
    %v331 = vadd.f32 %v161, %v330
    %v332 = vpop.f32.mrb[0].mxu0
    %v333 = vpop.f32.mrb[0].mxu0
    %v334 = vadd.f32 %v161, %v333
    %v335 = vpop.f32.mrb[0].mxu0
    %336 = vdwg.mxu0
    %v337 = vmax.f32 %v275, 0.0
    %v338 = vmax.f32 %v278, 0.0
    %v339 = vmax.f32 %v283, 0.0
    %v340 = vmax.f32 %v286, 0.0
    %v341 = vmax.f32 %v291, 0.0
    %v342 = vmax.f32 %v294, 0.0
    %v343 = vmax.f32 %v299, 0.0
    %v344 = vmax.f32 %v302, 0.0
    %v345 = vmax.f32 %v307, 0.0
    %v346 = vmax.f32 %v310, 0.0
    %v347 = vmax.f32 %v315, 0.0
    %v348 = vmax.f32 %v318, 0.0
    %v349 = vmax.f32 %v323, 0.0
    %v350 = vmax.f32 %v326, 0.0
    %v351 = vmax.f32 %v331, 0.0
    %v352 = vmax.f32 %v334, 0.0
    %v353 = vld [vmem:[#allocation2] sm:$0xff]
    %v354 = vld [vmem:[#allocation2 + $0x8] sm:$0xff]
    %v355 = vld [vmem:[#allocation2 + $0x10] sm:$0xff]
    %v356 = vld [vmem:[#allocation2 + $0x18] sm:$0xff]
    %v357 = vld [vmem:[#allocation2 + $0x20] sm:$0xff]
    %v358 = vld [vmem:[#allocation2 + $0x28] sm:$0xff]
    %v359 = vld [vmem:[#allocation2 + $0x30] sm:$0xff]
    %v360 = vld [vmem:[#allocation2 + $0x38] sm:$0xff]
    %v361 = vld [vmem:[#allocation2 + $0x40] sm:$0xff]
    %v362 = vld [vmem:[#allocation2 + $0x48] sm:$0xff]
    %v363 = vld [vmem:[#allocation2 + $0x50] sm:$0xff]
    %v364 = vld [vmem:[#allocation2 + $0x58] sm:$0xff]
    %v365 = vld [vmem:[#allocation2 + $0x60] sm:$0xff]
    %v366 = vld [vmem:[#allocation2 + $0x68] sm:$0xff]
    %v367 = vld [vmem:[#allocation2 + $0x70] sm:$0xff]
    %v368 = vld [vmem:[#allocation2 + $0x78] sm:$0xff]
    %v369 = vpack.c.bf16 %v338, %v337
    %v370 = vpack.c.bf16 %v340, %v339
    %v371 = vpack.c.bf16 %v342, %v341
    %v372 = vpack.c.bf16 %v344, %v343
    %v373 = vpack.c.bf16 %v346, %v345
    %v374 = vpack.c.bf16 %v348, %v347
    %v375 = vpack.c.bf16 %v350, %v349
    %v376 = vpack.c.bf16 %v352, %v351
    %v377 = vld [vmem:[#allocation9] sm:$0xf]
    %v378 = vld [vmem:[#allocation9 + $0x4] sm:$0xf]
    %v379 = vld [vmem:[#allocation9 + $0x8] sm:$0xf]
    %v380 = vld [vmem:[#allocation9 + $0xc] sm:$0xf]
    %v381 = vld [vmem:[#allocation9 + $0x10] sm:$0xf]
    %v382 = vld [vmem:[#allocation9 + $0x14] sm:$0xf]
    %v383 = vld [vmem:[#allocation9 + $0x18] sm:$0xf]
    %v384 = vld [vmem:[#allocation9 + $0x1c] sm:$0xf]
    %v393 = vunpack.c.l.b16 %v377
    %v394 = vunpack.c.l.b16 %v378
    %v395 = vunpack.c.l.b16 %v379
    %v396 = vunpack.c.l.b16 %v380
    %v397 = vunpack.c.l.b16 %v381
    %v398 = vunpack.c.l.b16 %v382
    %v399 = vunpack.c.l.b16 %v383
    %v400 = vunpack.c.l.b16 %v384
    %v401 = vpack.c.b16 %v394, %v393
    %v402 = vpack.c.b16 %v396, %v395
    %v403 = vpack.c.b16 %v398, %v397
    %v404 = vpack.c.b16 %v400, %v399
    %vm409 = vcmask 523264
    %v411 = vsel %vm409, %v369, 0
    %v414 = vsel %vm409, %v370, 0
    %v417 = vsel %vm409, %v371, 0
    %v420 = vsel %vm409, %v372, 0
    %v423 = vsel %vm409, %v373, 0
    %v426 = vsel %vm409, %v374, 0
    %v429 = vsel %vm409, %v375, 0
    %v432 = vsel %vm409, %v376, 0
    %434 = vmatprep.subr.bf16.mxu0 0
    %435 = vmatpush1.bf16.msra.mxu0 %v401
    %436 = vmatprep.subr.bf16.mxu0 0
    %437 = vmatpush1.bf16.msra.mxu0 %v402
    %438 = vmatprep.subr.bf16.mxu0 0
    %439 = vmatpush1.bf16.msra.mxu0 %v403
    %440 = vmatprep.subr.bf16.mxu0 0
    %441 = vmatpush1.bf16.msra.mxu0 %v404
    %442 = vmatprep.subr.bf16.mxu0 0
    %443 = vmatpush1.bf16.msra.mxu0 0
    %444 = vmatprep.subr.bf16.mxu0 0
    %445 = vmatpush1.bf16.msra.mxu0 0
    %446 = vmatprep.subr.bf16.mxu0 0
    %447 = vmatpush1.bf16.msra.mxu0 0
    %448 = vmatprep.subr.bf16.mxu0 0
    %449 = vmatpush1.bf16.msra.mxu0 0
    %450 = vmatprep.subr.bf16.mxu0 0
    %451 = vmatpush1.bf16.msra.mxu0 0
    %452 = vmatprep.subr.bf16.mxu0 0
    %453 = vmatpush1.bf16.msra.mxu0 0
    %454 = vmatprep.subr.bf16.mxu0 0
    %455 = vmatpush1.bf16.msra.mxu0 0
    %456 = vmatprep.subr.bf16.mxu0 0
    %457 = vmatpush1.bf16.msra.mxu0 0
    %458 = vmatprep.subr.bf16.mxu0 0
    %459 = vmatpush1.bf16.msra.mxu0 0
    %460 = vmatprep.subr.bf16.mxu0 0
    %461 = vmatpush1.bf16.msra.mxu0 0
    %462 = vmatprep.subr.bf16.mxu0 0
    %463 = vmatpush1.bf16.msra.mxu0 0
    %464 = vmatprep.subr.bf16.mxu0 0
    %465 = vmatpush1.bf16.msra.mxu0 0
    %466 = vmatprep.mubr.bf16.mxu0 0
    %467 = vmatmul.mubr.bf16.gmra.mrb[0].mxu0 %v411
    %v468 = vpop.f32.mrb[0].mxu0
    %v469 = vadd.f32 0.0, %v468
    %v470 = vpop.f32.mrb[0].mxu0
    %v471 = vpop.f32.mrb[0].mxu0
    %v472 = vadd.f32 0.0, %v471
    %v473 = vpop.f32.mrb[0].mxu0
    %474 = vmatprep.mubr.bf16.mxu0 0
    %475 = vmatmul.mubr.bf16.gmra.mrb[0].mxu0 %v414
    %v476 = vpop.f32.mrb[0].mxu0
    %v477 = vadd.f32 0.0, %v476
    %v478 = vpop.f32.mrb[0].mxu0
    %v479 = vpop.f32.mrb[0].mxu0
    %v480 = vadd.f32 0.0, %v479
    %v481 = vpop.f32.mrb[0].mxu0
    %482 = vmatprep.mubr.bf16.mxu0 0
    %483 = vmatmul.mubr.bf16.gmra.mrb[0].mxu0 %v417
    %v484 = vpop.f32.mrb[0].mxu0
    %v485 = vadd.f32 0.0, %v484
    %v486 = vpop.f32.mrb[0].mxu0
    %v487 = vpop.f32.mrb[0].mxu0
    %v488 = vadd.f32 0.0, %v487
    %v489 = vpop.f32.mrb[0].mxu0
    %490 = vmatprep.mubr.bf16.mxu0 0
    %491 = vmatmul.mubr.bf16.gmra.mrb[0].mxu0 %v420
    %v492 = vpop.f32.mrb[0].mxu0
    %v493 = vadd.f32 0.0, %v492
    %v494 = vpop.f32.mrb[0].mxu0
    %v495 = vpop.f32.mrb[0].mxu0
    %v496 = vadd.f32 0.0, %v495
    %v497 = vpop.f32.mrb[0].mxu0
    %498 = vmatprep.mubr.bf16.mxu0 0
    %499 = vmatmul.mubr.bf16.gmra.mrb[0].mxu0 %v423
    %v500 = vpop.f32.mrb[0].mxu0
    %v501 = vadd.f32 0.0, %v500
    %v502 = vpop.f32.mrb[0].mxu0
    %v503 = vpop.f32.mrb[0].mxu0
    %v504 = vadd.f32 0.0, %v503
    %v505 = vpop.f32.mrb[0].mxu0
    %506 = vmatprep.mubr.bf16.mxu0 0
    %507 = vmatmul.mubr.bf16.gmra.mrb[0].mxu0 %v426
    %v508 = vpop.f32.mrb[0].mxu0
    %v509 = vadd.f32 0.0, %v508
    %v510 = vpop.f32.mrb[0].mxu0
    %v511 = vpop.f32.mrb[0].mxu0
    %v512 = vadd.f32 0.0, %v511
    %v513 = vpop.f32.mrb[0].mxu0
    %514 = vmatprep.mubr.bf16.mxu0 0
    %515 = vmatmul.mubr.bf16.gmra.mrb[0].mxu0 %v429
    %v516 = vpop.f32.mrb[0].mxu0
    %v517 = vadd.f32 0.0, %v516
    %v518 = vpop.f32.mrb[0].mxu0
    %v519 = vpop.f32.mrb[0].mxu0
    %v520 = vadd.f32 0.0, %v519
    %v521 = vpop.f32.mrb[0].mxu0
    %522 = vmatprep.mubr.bf16.mxu0 0
    %523 = vmatmul.mubr.bf16.gmra.mrb[0].mxu0 %v432
    %v524 = vpop.f32.mrb[0].mxu0
    %v525 = vadd.f32 0.0, %v524
    %v526 = vpop.f32.mrb[0].mxu0
    %v527 = vpop.f32.mrb[0].mxu0
    %v528 = vadd.f32 0.0, %v527
    %v529 = vpop.f32.mrb[0].mxu0
    %530 = vdwg.mxu0
    %v531 = vadd.f32 %v353, %v469
    %v532 = vadd.f32 %v354, %v472
    %v533 = vadd.f32 %v355, %v477
    %v534 = vadd.f32 %v356, %v480
    %v535 = vadd.f32 %v357, %v485
    %v536 = vadd.f32 %v358, %v488
    %v537 = vadd.f32 %v359, %v493
    %v538 = vadd.f32 %v360, %v496
    %v539 = vadd.f32 %v361, %v501
    %v540 = vadd.f32 %v362, %v504
    %v541 = vadd.f32 %v363, %v509
    %v542 = vadd.f32 %v364, %v512
    %v543 = vadd.f32 %v365, %v517
    %v544 = vadd.f32 %v366, %v520
    %v545 = vadd.f32 %v367, %v525
    %v546 = vadd.f32 %v368, %v528
    %547 = vst.msk [vmem:[#allocation2] sm:$0xff] %vm215, %v531
    %548 = vst.msk [vmem:[#allocation2 + $0x8] sm:$0xff] %vm215, %v532
    %549 = vst.msk [vmem:[#allocation2 + $0x10] sm:$0xff] %vm215, %v533
    %550 = vst.msk [vmem:[#allocation2 + $0x18] sm:$0xff] %vm215, %v534
    %551 = vst.msk [vmem:[#allocation2 + $0x20] sm:$0xff] %vm215, %v535
    %552 = vst.msk [vmem:[#allocation2 + $0x28] sm:$0xff] %vm215, %v536
    %553 = vst.msk [vmem:[#allocation2 + $0x30] sm:$0xff] %vm215, %v537
    %554 = vst.msk [vmem:[#allocation2 + $0x38] sm:$0xff] %vm215, %v538
    %555 = vst.msk [vmem:[#allocation2 + $0x40] sm:$0xff] %vm215, %v539
    %556 = vst.msk [vmem:[#allocation2 + $0x48] sm:$0xff] %vm215, %v540
    %557 = vst.msk [vmem:[#allocation2 + $0x50] sm:$0xff] %vm215, %v541
    %558 = vst.msk [vmem:[#allocation2 + $0x58] sm:$0xff] %vm215, %v542
    %559 = vst.msk [vmem:[#allocation2 + $0x60] sm:$0xff] %vm215, %v543
    %560 = vst.msk [vmem:[#allocation2 + $0x68] sm:$0xff] %vm215, %v544
    %561 = vst.msk [vmem:[#allocation2 + $0x70] sm:$0xff] %vm215, %v545
    %562 = vst.msk [vmem:[#allocation2 + $0x78] sm:$0xff] %vm215, %v546
    // Predicated region
    $region62: #{transformer_encoder.11} parent=1 // pred_check
      %p563 = pneg %p115
    $region63: #{transformer_encoder.11} parent=1 // pred_check_branch
      %565 = sbr.rel (%p563) target = $region65
    $region64: #{transformer_encoder.11} parent=1 // pred_region
      %v566 = vld [vmem:[#allocation2] sm:$0xff]
      %v567 = vld [vmem:[#allocation2 + $0x8] sm:$0xff]
      %v568 = vld [vmem:[#allocation2 + $0x10] sm:$0xff]
      %v569 = vld [vmem:[#allocation2 + $0x18] sm:$0xff]
      %v570 = vld [vmem:[#allocation2 + $0x20] sm:$0xff]
      %v571 = vld [vmem:[#allocation2 + $0x28] sm:$0xff]
      %v572 = vld [vmem:[#allocation2 + $0x30] sm:$0xff]
      %v573 = vld [vmem:[#allocation2 + $0x38] sm:$0xff]
      %v574 = vld [vmem:[#allocation2 + $0x40] sm:$0xff]
      %v575 = vld [vmem:[#allocation2 + $0x48] sm:$0xff]
      %v576 = vld [vmem:[#allocation2 + $0x50] sm:$0xff]
      %v577 = vld [vmem:[#allocation2 + $0x58] sm:$0xff]
      %v578 = vld [vmem:[#allocation2 + $0x60] sm:$0xff]
      %v579 = vld [vmem:[#allocation2 + $0x68] sm:$0xff]
      %v580 = vld [vmem:[#allocation2 + $0x70] sm:$0xff]
      %v581 = vld [vmem:[#allocation2 + $0x78] sm:$0xff]
      %v582 = vld [vmem:[#allocation11] sm:$0x1]
      %v584 = vlaneseq
      %v585 = vshrl.u32 %v584, 7
      %v586 = vsub.s32 0, %v585
      %v587 = vrot.slane %v582, %v586
      %v589 = vadd.f32 %v566, %v587
      %v590 = vadd.f32 %v567, %v587
      %v591 = vadd.f32 %v568, %v587
      %v592 = vadd.f32 %v569, %v587
      %v593 = vadd.f32 %v570, %v587
      %v594 = vadd.f32 %v571, %v587
      %v595 = vadd.f32 %v572, %v587
      %v596 = vadd.f32 %v573, %v587
      %v597 = vadd.f32 %v574, %v587
      %v598 = vadd.f32 %v575, %v587
      %v599 = vadd.f32 %v576, %v587
      %v600 = vadd.f32 %v577, %v587
      %v601 = vadd.f32 %v578, %v587
      %v602 = vadd.f32 %v579, %v587
      %v603 = vadd.f32 %v580, %v587
      %v604 = vadd.f32 %v581, %v587
      %v605 = vld [vmem:[#allocation3] sm:$0xf]
      %v606 = vld [vmem:[#allocation3 + $0x4] sm:$0xf]
      %v607 = vld [vmem:[#allocation3 + $0x8] sm:$0xf]
      %v608 = vld [vmem:[#allocation3 + $0xc] sm:$0xf]
      %v609 = vld [vmem:[#allocation3 + $0x10] sm:$0xf]
      %v610 = vld [vmem:[#allocation3 + $0x14] sm:$0xf]
      %v611 = vld [vmem:[#allocation3 + $0x18] sm:$0xf]
      %v612 = vld [vmem:[#allocation3 + $0x1c] sm:$0xf]
      %v613 = vld [vmem:[#allocation3 + $0x20] sm:$0xf]
      %v614 = vld [vmem:[#allocation3 + $0x24] sm:$0xf]
      %v615 = vld [vmem:[#allocation3 + $0x28] sm:$0xf]
      %v616 = vld [vmem:[#allocation3 + $0x2c] sm:$0xf]
      %v617 = vld [vmem:[#allocation3 + $0x30] sm:$0xf]
      %v618 = vld [vmem:[#allocation3 + $0x34] sm:$0xf]
      %v619 = vld [vmem:[#allocation3 + $0x38] sm:$0xf]
      %v620 = vld [vmem:[#allocation3 + $0x3c] sm:$0xf]
      %v621 = vunpack.c.l.bf16 %v605
      %v622 = vunpack.c.l.bf16 %v606
      %v623 = vunpack.c.l.bf16 %v607
      %v624 = vunpack.c.l.bf16 %v608
      %v625 = vunpack.c.l.bf16 %v609
      %v626 = vunpack.c.l.bf16 %v610
      %v627 = vunpack.c.l.bf16 %v611
      %v628 = vunpack.c.l.bf16 %v612
      %v629 = vunpack.c.l.bf16 %v613
      %v630 = vunpack.c.l.bf16 %v614
      %v631 = vunpack.c.l.bf16 %v615
      %v632 = vunpack.c.l.bf16 %v616
      %v633 = vunpack.c.l.bf16 %v617
      %v634 = vunpack.c.l.bf16 %v618
      %v635 = vunpack.c.l.bf16 %v619
      %v636 = vunpack.c.l.bf16 %v620
      %v637 = vadd.f32 %v589, %v621
      %v638 = vadd.f32 %v590, %v622
      %v639 = vadd.f32 %v591, %v623
      %v640 = vadd.f32 %v592, %v624
      %v641 = vadd.f32 %v593, %v625
      %v642 = vadd.f32 %v594, %v626
      %v643 = vadd.f32 %v595, %v627
      %v644 = vadd.f32 %v596, %v628
      %v645 = vadd.f32 %v597, %v629
      %v646 = vadd.f32 %v598, %v630
      %v647 = vadd.f32 %v599, %v631
      %v648 = vadd.f32 %v600, %v632
      %v649 = vadd.f32 %v601, %v633
      %v650 = vadd.f32 %v602, %v634
      %v651 = vadd.f32 %v603, %v635
      %v652 = vadd.f32 %v604, %v636
      %v653 = vsel %vm215, %v637, 0.0
      %654 = vadd.xlane.f32.xlu0 %v653
      %v655 = vpop.xlane.xlu0 %654
      %v656 = vsel %vm215, %v638, 0.0
      %657 = vadd.xlane.f32.xlu0 %v656
      %v658 = vpop.xlane.xlu0 %657
      %v659 = vsel %vm215, %v639, 0.0
      %660 = vadd.xlane.f32.xlu0 %v659
      %v661 = vpop.xlane.xlu0 %660
      %v662 = vsel %vm215, %v640, 0.0
      %663 = vadd.xlane.f32.xlu0 %v662
      %v664 = vpop.xlane.xlu0 %663
      %v665 = vsel %vm215, %v641, 0.0
      %666 = vadd.xlane.f32.xlu0 %v665
      %v667 = vpop.xlane.xlu0 %666
      %v668 = vsel %vm215, %v642, 0.0
      %669 = vadd.xlane.f32.xlu0 %v668
      %v670 = vpop.xlane.xlu0 %669
      %v671 = vsel %vm215, %v643, 0.0
      %672 = vadd.xlane.f32.xlu0 %v671
      %v673 = vpop.xlane.xlu0 %672
      %v674 = vsel %vm215, %v644, 0.0
      %675 = vadd.xlane.f32.xlu0 %v674
      %v676 = vpop.xlane.xlu0 %675
      %v677 = vsel %vm215, %v645, 0.0
      %678 = vadd.xlane.f32.xlu0 %v677
      %v679 = vpop.xlane.xlu0 %678
      %v680 = vsel %vm215, %v646, 0.0
      %681 = vadd.xlane.f32.xlu0 %v680
      %v682 = vpop.xlane.xlu0 %681
      %v683 = vsel %vm215, %v647, 0.0
      %684 = vadd.xlane.f32.xlu0 %v683
      %v685 = vpop.xlane.xlu0 %684
      %v686 = vsel %vm215, %v648, 0.0
      %687 = vadd.xlane.f32.xlu0 %v686
      %v688 = vpop.xlane.xlu0 %687
      %v689 = vsel %vm215, %v649, 0.0
      %690 = vadd.xlane.f32.xlu0 %v689
      %v691 = vpop.xlane.xlu0 %690
      %v692 = vsel %vm215, %v650, 0.0
      %693 = vadd.xlane.f32.xlu0 %v692
      %v694 = vpop.xlane.xlu0 %693
      %v695 = vsel %vm215, %v651, 0.0
      %696 = vadd.xlane.f32.xlu0 %v695
      %v697 = vpop.xlane.xlu0 %696
      %v698 = vsel %vm215, %v652, 0.0
      %699 = vadd.xlane.f32.xlu0 %v698
      %v700 = vpop.xlane.xlu0 %699
      %v701 = vmul.f32 %v655, 0.03125
      %v702 = vmul.f32 %v658, 0.03125
      %v703 = vmul.f32 %v661, 0.03125
      %v704 = vmul.f32 %v664, 0.03125
      %v705 = vmul.f32 %v667, 0.03125
      %v706 = vmul.f32 %v670, 0.03125
      %v707 = vmul.f32 %v673, 0.03125
      %v708 = vmul.f32 %v676, 0.03125
      %v709 = vmul.f32 %v679, 0.03125
      %v710 = vmul.f32 %v682, 0.03125
      %v711 = vmul.f32 %v685, 0.03125
      %v712 = vmul.f32 %v688, 0.03125
      %v713 = vmul.f32 %v691, 0.03125
      %v714 = vmul.f32 %v694, 0.03125
      %v715 = vmul.f32 %v697, 0.03125
      %v716 = vmul.f32 %v700, 0.03125
      %v717 = vmul.f32 %v637, %v637
      %v718 = vmul.f32 %v638, %v638
      %v719 = vmul.f32 %v639, %v639
      %v720 = vmul.f32 %v640, %v640
      %v721 = vmul.f32 %v641, %v641
      %v722 = vmul.f32 %v642, %v642
      %v723 = vmul.f32 %v643, %v643
      %v724 = vmul.f32 %v644, %v644
      %v725 = vmul.f32 %v645, %v645
      %v726 = vmul.f32 %v646, %v646
      %v727 = vmul.f32 %v647, %v647
      %v728 = vmul.f32 %v648, %v648
      %v729 = vmul.f32 %v649, %v649
      %v730 = vmul.f32 %v650, %v650
      %v731 = vmul.f32 %v651, %v651
      %v732 = vmul.f32 %v652, %v652
      %v733 = vsel %vm215, %v717, 0.0
      %734 = vadd.xlane.f32.xlu0 %v733
      %v735 = vpop.xlane.xlu0 %734
      %v736 = vsel %vm215, %v718, 0.0
      %737 = vadd.xlane.f32.xlu0 %v736
      %v738 = vpop.xlane.xlu0 %737
      %v739 = vsel %vm215, %v719, 0.0
      %740 = vadd.xlane.f32.xlu0 %v739
      %v741 = vpop.xlane.xlu0 %740
      %v742 = vsel %vm215, %v720, 0.0
      %743 = vadd.xlane.f32.xlu0 %v742
      %v744 = vpop.xlane.xlu0 %743
      %v745 = vsel %vm215, %v721, 0.0
      %746 = vadd.xlane.f32.xlu0 %v745
      %v747 = vpop.xlane.xlu0 %746
      %v748 = vsel %vm215, %v722, 0.0
      %749 = vadd.xlane.f32.xlu0 %v748
      %v750 = vpop.xlane.xlu0 %749
      %v751 = vsel %vm215, %v723, 0.0
      %752 = vadd.xlane.f32.xlu0 %v751
      %v753 = vpop.xlane.xlu0 %752
      %v754 = vsel %vm215, %v724, 0.0
      %755 = vadd.xlane.f32.xlu0 %v754
      %v756 = vpop.xlane.xlu0 %755
      %v757 = vsel %vm215, %v725, 0.0
      %758 = vadd.xlane.f32.xlu0 %v757
      %v759 = vpop.xlane.xlu0 %758
      %v760 = vsel %vm215, %v726, 0.0
      %761 = vadd.xlane.f32.xlu0 %v760
      %v762 = vpop.xlane.xlu0 %761
      %v763 = vsel %vm215, %v727, 0.0
      %764 = vadd.xlane.f32.xlu0 %v763
      %v765 = vpop.xlane.xlu0 %764
      %v766 = vsel %vm215, %v728, 0.0
      %767 = vadd.xlane.f32.xlu0 %v766
      %v768 = vpop.xlane.xlu0 %767
      %v769 = vsel %vm215, %v729, 0.0
      %770 = vadd.xlane.f32.xlu0 %v769
      %v771 = vpop.xlane.xlu0 %770
      %v772 = vsel %vm215, %v730, 0.0
      %773 = vadd.xlane.f32.xlu0 %v772
      %v774 = vpop.xlane.xlu0 %773
      %v775 = vsel %vm215, %v731, 0.0
      %776 = vadd.xlane.f32.xlu0 %v775
      %v777 = vpop.xlane.xlu0 %776
      %v778 = vsel %vm215, %v732, 0.0
      %779 = vadd.xlane.f32.xlu0 %v778
      %v780 = vpop.xlane.xlu0 %779
      %v781 = vmul.f32 %v735, 0.03125
      %v782 = vmul.f32 %v738, 0.03125
      %v783 = vmul.f32 %v741, 0.03125
      %v784 = vmul.f32 %v744, 0.03125
      %v785 = vmul.f32 %v747, 0.03125
      %v786 = vmul.f32 %v750, 0.03125
      %v787 = vmul.f32 %v753, 0.03125
      %v788 = vmul.f32 %v756, 0.03125
      %v789 = vmul.f32 %v759, 0.03125
      %v790 = vmul.f32 %v762, 0.03125
      %v791 = vmul.f32 %v765, 0.03125
      %v792 = vmul.f32 %v768, 0.03125
      %v793 = vmul.f32 %v771, 0.03125
      %v794 = vmul.f32 %v774, 0.03125
      %v795 = vmul.f32 %v777, 0.03125
      %v796 = vmul.f32 %v780, 0.03125
      %v797 = vmul.f32 %v701, %v701
      %v798 = vmul.f32 %v702, %v702
      %v799 = vmul.f32 %v703, %v703
      %v800 = vmul.f32 %v704, %v704
      %v801 = vmul.f32 %v705, %v705
      %v802 = vmul.f32 %v706, %v706
      %v803 = vmul.f32 %v707, %v707
      %v804 = vmul.f32 %v708, %v708
      %v805 = vmul.f32 %v709, %v709
      %v806 = vmul.f32 %v710, %v710
      %v807 = vmul.f32 %v711, %v711
      %v808 = vmul.f32 %v712, %v712
      %v809 = vmul.f32 %v713, %v713
      %v810 = vmul.f32 %v714, %v714
      %v811 = vmul.f32 %v715, %v715
      %v812 = vmul.f32 %v716, %v716
      %v813 = vsub.f32 %v781, %v797
      %v814 = vsub.f32 %v782, %v798
      %v815 = vsub.f32 %v783, %v799
      %v816 = vsub.f32 %v784, %v800
      %v817 = vsub.f32 %v785, %v801
      %v818 = vsub.f32 %v786, %v802
      %v819 = vsub.f32 %v787, %v803
      %v820 = vsub.f32 %v788, %v804
      %v821 = vsub.f32 %v789, %v805
      %v822 = vsub.f32 %v790, %v806
      %v823 = vsub.f32 %v791, %v807
      %v824 = vsub.f32 %v792, %v808
      %v825 = vsub.f32 %v793, %v809
      %v826 = vsub.f32 %v794, %v810
      %v827 = vsub.f32 %v795, %v811
      %v828 = vsub.f32 %v796, %v812
      %v829 = vsub.f32 %v637, %v701
      %v830 = vsub.f32 %v638, %v702
      %v831 = vsub.f32 %v639, %v703
      %v832 = vsub.f32 %v640, %v704
      %v833 = vsub.f32 %v641, %v705
      %v834 = vsub.f32 %v642, %v706
      %v835 = vsub.f32 %v643, %v707
      %v836 = vsub.f32 %v644, %v708
      %v837 = vsub.f32 %v645, %v709
      %v838 = vsub.f32 %v646, %v710
      %v839 = vsub.f32 %v647, %v711
      %v840 = vsub.f32 %v648, %v712
      %v841 = vsub.f32 %v649, %v713
      %v842 = vsub.f32 %v650, %v714
      %v843 = vsub.f32 %v651, %v715
      %v844 = vsub.f32 %v652, %v716
      %v845 = vadd.f32 %v813, 1e-05
      %v846 = vadd.f32 %v814, 1e-05
      %v847 = vadd.f32 %v815, 1e-05
      %v848 = vadd.f32 %v816, 1e-05
      %v849 = vadd.f32 %v817, 1e-05
      %v850 = vadd.f32 %v818, 1e-05
      %v851 = vadd.f32 %v819, 1e-05
      %v852 = vadd.f32 %v820, 1e-05
      %v853 = vadd.f32 %v821, 1e-05
      %v854 = vadd.f32 %v822, 1e-05
      %v855 = vadd.f32 %v823, 1e-05
      %v856 = vadd.f32 %v824, 1e-05
      %v857 = vadd.f32 %v825, 1e-05
      %v858 = vadd.f32 %v826, 1e-05
      %v859 = vadd.f32 %v827, 1e-05
      %v860 = vadd.f32 %v828, 1e-05
      %v861 = vrsqrt.pop %v845
      %v862 = vrsqrt.pop %v846
      %v863 = vrsqrt.pop %v847
      %v864 = vrsqrt.pop %v848
      %v865 = vrsqrt.pop %v849
      %v866 = vrsqrt.pop %v850
      %v867 = vrsqrt.pop %v851
      %v868 = vrsqrt.pop %v852
      %v869 = vrsqrt.pop %v853
      %v870 = vrsqrt.pop %v854
      %v871 = vrsqrt.pop %v855
      %v872 = vrsqrt.pop %v856
      %v873 = vrsqrt.pop %v857
      %v874 = vrsqrt.pop %v858
      %v875 = vrsqrt.pop %v859
      %v876 = vrsqrt.pop %v860
      %v877 = vmul.f32 %v829, %v861
      %v878 = vmul.f32 %v830, %v862
      %v879 = vmul.f32 %v831, %v863
      %v880 = vmul.f32 %v832, %v864
      %v881 = vmul.f32 %v833, %v865
      %v882 = vmul.f32 %v834, %v866
      %v883 = vmul.f32 %v835, %v867
      %v884 = vmul.f32 %v836, %v868
      %v885 = vmul.f32 %v837, %v869
      %v886 = vmul.f32 %v838, %v870
      %v887 = vmul.f32 %v839, %v871
      %v888 = vmul.f32 %v840, %v872
      %v889 = vmul.f32 %v841, %v873
      %v890 = vmul.f32 %v842, %v874
      %v891 = vmul.f32 %v843, %v875
      %v892 = vmul.f32 %v844, %v876
      %v893 = vld [vmem:[#allocation12] sm:$0x1]
      %v895 = vlaneseq
      %v896 = vshrl.u32 %v895, 7
      %v897 = vsub.s32 0, %v896
      %v898 = vrot.slane %v893, %v897
      %v900 = vmul.f32 %v877, %v898
      %v901 = vmul.f32 %v878, %v898
      %v902 = vmul.f32 %v879, %v898
      %v903 = vmul.f32 %v880, %v898
      %v904 = vmul.f32 %v881, %v898
      %v905 = vmul.f32 %v882, %v898
      %v906 = vmul.f32 %v883, %v898
      %v907 = vmul.f32 %v884, %v898
      %v908 = vmul.f32 %v885, %v898
      %v909 = vmul.f32 %v886, %v898
      %v910 = vmul.f32 %v887, %v898
      %v911 = vmul.f32 %v888, %v898
      %v912 = vmul.f32 %v889, %v898
      %v913 = vmul.f32 %v890, %v898
      %v914 = vmul.f32 %v891, %v898
      %v915 = vmul.f32 %v892, %v898
      %v916 = vld [vmem:[#allocation14] sm:$0x1]
      %v918 = vlaneseq
      %v919 = vshrl.u32 %v918, 7
      %v920 = vsub.s32 0, %v919
      %v921 = vrot.slane %v916, %v920
      %v923 = vadd.f32 %v900, %v921
      %v924 = vadd.f32 %v901, %v921
      %v925 = vadd.f32 %v902, %v921
      %v926 = vadd.f32 %v903, %v921
      %v927 = vadd.f32 %v904, %v921
      %v928 = vadd.f32 %v905, %v921
      %v929 = vadd.f32 %v906, %v921
      %v930 = vadd.f32 %v907, %v921
      %v931 = vadd.f32 %v908, %v921
      %v932 = vadd.f32 %v909, %v921
      %v933 = vadd.f32 %v910, %v921
      %v934 = vadd.f32 %v911, %v921
      %v935 = vadd.f32 %v912, %v921
      %v936 = vadd.f32 %v913, %v921
      %v937 = vadd.f32 %v914, %v921
      %v938 = vadd.f32 %v915, %v921
      %v939 = vpack.c.bf16 %v924, %v923
      %v940 = vpack.c.bf16 %v926, %v925
      %v941 = vpack.c.bf16 %v928, %v927
      %v942 = vpack.c.bf16 %v930, %v929
      %v943 = vpack.c.bf16 %v932, %v931
      %v944 = vpack.c.bf16 %v934, %v933
      %v945 = vpack.c.bf16 %v936, %v935
      %v946 = vpack.c.bf16 %v938, %v937
      %v955 = vunpack.c.l.b16 %v939
      %v956 = vunpack.c.h.b16 %v939
      %v957 = vunpack.c.l.b16 %v940
      %v958 = vunpack.c.h.b16 %v940
      %v959 = vunpack.c.l.b16 %v941
      %v960 = vunpack.c.h.b16 %v941
      %v961 = vunpack.c.l.b16 %v942
      %v962 = vunpack.c.h.b16 %v942
      %v963 = vunpack.c.l.b16 %v943
      %v964 = vunpack.c.h.b16 %v943
      %v965 = vunpack.c.l.b16 %v944
      %v966 = vunpack.c.h.b16 %v944
      %v967 = vunpack.c.l.b16 %v945
      %v968 = vunpack.c.h.b16 %v945
      %v969 = vunpack.c.l.b16 %v946
      %v970 = vunpack.c.h.b16 %v946
      %v971 = vpack.c.b16 %v955, %v955
      %v972 = vpack.c.b16 %v956, %v956
      %v973 = vpack.c.b16 %v957, %v957
      %v974 = vpack.c.b16 %v958, %v958
      %v975 = vpack.c.b16 %v959, %v959
      %v976 = vpack.c.b16 %v960, %v960
      %v977 = vpack.c.b16 %v961, %v961
      %v978 = vpack.c.b16 %v962, %v962
      %v979 = vpack.c.b16 %v963, %v963
      %v980 = vpack.c.b16 %v964, %v964
      %v981 = vpack.c.b16 %v965, %v965
      %v982 = vpack.c.b16 %v966, %v966
      %v983 = vpack.c.b16 %v967, %v967
      %v984 = vpack.c.b16 %v968, %v968
      %v985 = vpack.c.b16 %v969, %v969
      %v986 = vpack.c.b16 %v970, %v970
      %vm1003 = vcmask 257024
      %1004 = vst.msk [vmem:[#allocation15] sm:$0xf] %vm1003, %v971
      %1005 = vst.msk [vmem:[#allocation15 + $0x4] sm:$0xf] %vm1003, %v972
      %1006 = vst.msk [vmem:[#allocation15 + $0x8] sm:$0xf] %vm1003, %v973
      %1007 = vst.msk [vmem:[#allocation15 + $0xc] sm:$0xf] %vm1003, %v974
      %1008 = vst.msk [vmem:[#allocation15 + $0x10] sm:$0xf] %vm1003, %v975
      %1009 = vst.msk [vmem:[#allocation15 + $0x14] sm:$0xf] %vm1003, %v976
      %1010 = vst.msk [vmem:[#allocation15 + $0x18] sm:$0xf] %vm1003, %v977
      %1011 = vst.msk [vmem:[#allocation15 + $0x1c] sm:$0xf] %vm1003, %v978
      %1012 = vst.msk [vmem:[#allocation15 + $0x20] sm:$0xf] %vm1003, %v979
      %1013 = vst.msk [vmem:[#allocation15 + $0x24] sm:$0xf] %vm1003, %v980
      %1014 = vst.msk [vmem:[#allocation15 + $0x28] sm:$0xf] %vm1003, %v981
      %1015 = vst.msk [vmem:[#allocation15 + $0x2c] sm:$0xf] %vm1003, %v982
      %1016 = vst.msk [vmem:[#allocation15 + $0x30] sm:$0xf] %vm1003, %v983
      %1017 = vst.msk [vmem:[#allocation15 + $0x34] sm:$0xf] %vm1003, %v984
      %1018 = vst.msk [vmem:[#allocation15 + $0x38] sm:$0xf] %vm1003, %v985
      %1019 = vst.msk [vmem:[#allocation15 + $0x3c] sm:$0xf] %vm1003, %v986
    $region65: #{transformer_encoder.11} parent=1 // pred_fallthru
      _
    // Predicated region
    $region66: #{transformer_encoder.11} parent=1 // pred_check
      _
    $region67: #{transformer_encoder.11} parent=1 // pred_check_branch
      %1021 = sbr.rel (0) target = $region69
    $region68: #{transformer_encoder.11} parent=1 // pred_region
      %s1023 = ssub.s32 1024, 1024
      %1024 = vsyncadd [#allocation5], %s1023
      %s1025 = sshll.u32 [#allocation15], 4
      %s1026 = int_to_ptr.vmem [resolvable:$true] %s1025
      %1031 = dma.vmem_to_hbm [thread:$0]  %s1026, 1024, %s7, [#allocation5], 64, 64, 4
    $region69: #{transformer_encoder.11} parent=1 // pred_fallthru
      _
    // Predicated region
    $region70: #{transformer_encoder.11} parent=1 // pred_check
      _
    $region71: #{transformer_encoder.11} parent=1 // pred_check_branch
      %1033 = sbr.rel (0) target = $region73
    $region72: #{transformer_encoder.11} parent=1 // pred_region
      %1034 = dma.done [#allocation5], 1024
    $region73: #{transformer_encoder.11} parent=1 // pred_fallthru
      _
    %1035 = vsyncpa [#allocation4], 1
    %1036 = vsyncpa [#allocation7], 1
    %1037 = vsyncpa [#allocation10], 1
    %1038 = vsyncpa [#allocation13], 1
    %1039 = vsyncpa [#allocation5], 1

// kernel: transformer_encoder.9
$region0: #{transformer_encoder.9}
  #allocation0 [shape = 'u32[]', space=smem, size = 0x4, offset = 0x4, fixed_abs, tag = 'smem constant byte address 0x4 - core index']
  #allocation1 [shape = 'u32[144,128]{1,0:T(1,128)}', space=vmem, size = 0x12000, scoped, tag = 'internal scratch']
  #allocation2 [shape = 'f32[8,64,1]{2,1,0:T(8,128)}', space=vmem, size = 0x40000, scoped, tag = 'scratch operand']
  #allocation3 [shape = 'f32[8,64,1]{2,1,0:T(8,128)}', space=vmem, size = 0x40000, scoped, tag = 'scratch operand']
  #allocation4 [shape = 'f32[8,64,8]{2,1,0:T(8,128)}', space=vmem, size = 0x40000, scoped, tag = 'scratch operand']
  %s0 = inlined_call_operand.hbm [shape: bf16[3,8,64,8], index: 0, kind: input, shape index: {}, may-alias: {0,1,2}]
  %s1 = inlined_call_operand.hbm [shape: bf16[3,8,64,8], index: 1, kind: input, shape index: {}, may-alias: {0,1,2}]
  %s2 = inlined_call_operand.hbm [shape: bf16[3,8,64,8], index: 2, kind: input, shape index: {}, may-alias: {0,1,2}]
  %s3 = inlined_call_operand.hbm [shape: bf16[8,64,8], index: 3, kind: output, shape index: {}]
  %s4 = sld [smem:[#allocation0]]
  $region42: #{transformer_encoder.9} parent=0
    _
  %s6 = ssub.s32 1, %s4
  %s7 = scalar_select 0, %s6, %s4
  $region1: #{transformer_encoder.9} parent=0
    #allocation5 [shape = 'u8[131072]{0}', space=vmem, size = 0x20000, scoped, tag = 'input window, operand 0, single buffered']
    #allocation6 [shape = 's32[1]{0}', space=sflag, size = 0x4, scoped, tag = 'scoped memory for transformer_encoder.9']
    #allocation7 [shape = 's32[1]{0}', space=sflag, size = 0x4, scoped, tag = 'scoped memory for transformer_encoder.9']
    #allocation8 [shape = 'u8[131072]{0}', space=vmem, size = 0x20000, scoped, tag = 'input window, operand 1, single buffered']
    #allocation9 [shape = 's32[1]{0}', space=sflag, size = 0x4, scoped, tag = 'scoped memory for transformer_encoder.9']
    #allocation10 [shape = 'u8[131072]{0}', space=vmem, size = 0x20000, scoped, tag = 'input window, operand 2, single buffered']
    #allocation11 [shape = 'u8[131072]{0}', space=vmem, size = 0x20000, scoped, tag = 'output window, operand 0, single buffered']
    %8 = vsyncpa [#allocation6], 0
    %9 = vsyncpa [#allocation9], 0
    %10 = vsyncpa [#allocation7], 0
    // Predicated region
    $region2: #{transformer_encoder.9} parent=1 // pred_check
      _
    $region3: #{transformer_encoder.9} parent=1 // pred_check_branch
      %12 = sbr.rel (0) target = $region5
    $region4: #{transformer_encoder.9} parent=1 // pred_region
      %s14 = ssub.s32 4096, 4096
      %15 = vsyncadd [#allocation6], %s14
      %s16 = sshll.u32 [#allocation5], 4
      %s17 = int_to_ptr.vmem [resolvable:$true] %s16
      %22 = dma.hbm_to_vmem [thread:$0]  %s0, 4096, %s17, [#allocation6], 64, 64, 4
    $region5: #{transformer_encoder.9} parent=1 // pred_fallthru
      _
    // Predicated region
    $region6: #{transformer_encoder.9} parent=1 // pred_check
      _
    $region7: #{transformer_encoder.9} parent=1 // pred_check_branch
      %24 = sbr.rel (0) target = $region9
    $region8: #{transformer_encoder.9} parent=1 // pred_region
      %s26 = ssub.s32 4096, 4096
      %27 = vsyncadd [#allocation9], %s26
      %s28 = scalar_lea.hbm %s1, 4096
      %s29 = sshll.u32 [#allocation8], 4
      %s30 = int_to_ptr.vmem [resolvable:$true] %s29
      %35 = dma.hbm_to_vmem [thread:$0]  %s28, 4096, %s30, [#allocation9], 64, 64, 4
    $region9: #{transformer_encoder.9} parent=1 // pred_fallthru
      _
    // Predicated region
    $region10: #{transformer_encoder.9} parent=1 // pred_check
      _
    $region11: #{transformer_encoder.9} parent=1 // pred_check_branch
      %37 = sbr.rel (0) target = $region13
    $region12: #{transformer_encoder.9} parent=1 // pred_region
      %s39 = ssub.s32 4096, 4096
      %40 = vsyncadd [#allocation9], %s39
      %s41 = scalar_lea.hbm %s2, 8192
      %s42 = sshll.u32 [#allocation10], 4
      %s43 = int_to_ptr.vmem [resolvable:$true] %s42
      %48 = dma.hbm_to_vmem [thread:$0]  %s41, 4096, %s43, [#allocation9], 64, 64, 4
    $region13: #{transformer_encoder.9} parent=1 // pred_fallthru
      _
    // Predicated region
    $region14: #{transformer_encoder.9} parent=1 // pred_check
      _
    $region15: #{transformer_encoder.9} parent=1 // pred_check_branch
      %50 = sbr.rel (0) target = $region17
    $region16: #{transformer_encoder.9} parent=1 // pred_region
      %51 = dma.done [#allocation6], 4096
    $region17: #{transformer_encoder.9} parent=1 // pred_fallthru
      _
    // Predicated region
    $region18: #{transformer_encoder.9} parent=1 // pred_check
      _
    $region19: #{transformer_encoder.9} parent=1 // pred_check_branch
      %53 = sbr.rel (0) target = $region21
    $region20: #{transformer_encoder.9} parent=1 // pred_region
      %54 = dma.done [#allocation9], 4096
    $region21: #{transformer_encoder.9} parent=1 // pred_fallthru
      _
    // Predicated region
    $region22: #{transformer_encoder.9} parent=1 // pred_check
      _
    $region23: #{transformer_encoder.9} parent=1 // pred_check_branch
      %56 = sbr.rel (0) target = $region25
    $region24: #{transformer_encoder.9} parent=1 // pred_region
      %57 = dma.done [#allocation9], 4096
    $region25: #{transformer_encoder.9} parent=1 // pred_fallthru
      _
    %p59 = scmp.eq.s32.totalorder 0, 0
    // Predicated region
    $region26: #{transformer_encoder.9} parent=1 // pred_check
      %p60 = pneg %p59
    $region27: #{transformer_encoder.9} parent=1 // pred_check_branch
      %62 = sbr.rel (%p60) target = $region29
    $region28: #{transformer_encoder.9} parent=1 // pred_region
      %vm63 = vcmask 7168
      %64 = vst.msk [vmem:[#allocation2] sm:$0xff] %vm63, -inf
      %65 = vst.msk [vmem:[#allocation2 + $0x8] sm:$0xff] %vm63, -inf
      %66 = vst.msk [vmem:[#allocation2 + $0x10] sm:$0xff] %vm63, -inf
      %67 = vst.msk [vmem:[#allocation2 + $0x18] sm:$0xff] %vm63, -inf
      %68 = vst.msk [vmem:[#allocation2 + $0x20] sm:$0xff] %vm63, -inf
      %69 = vst.msk [vmem:[#allocation2 + $0x28] sm:$0xff] %vm63, -inf
      %70 = vst.msk [vmem:[#allocation2 + $0x30] sm:$0xff] %vm63, -inf
      %71 = vst.msk [vmem:[#allocation2 + $0x38] sm:$0xff] %vm63, -inf
      %72 = vst.msk [vmem:[#allocation2 + $0x40] sm:$0xff] %vm63, -inf
      %73 = vst.msk [vmem:[#allocation2 + $0x48] sm:$0xff] %vm63, -inf
      %74 = vst.msk [vmem:[#allocation2 + $0x50] sm:$0xff] %vm63, -inf
      %75 = vst.msk [vmem:[#allocation2 + $0x58] sm:$0xff] %vm63, -inf
      %76 = vst.msk [vmem:[#allocation2 + $0x60] sm:$0xff] %vm63, -inf
      %77 = vst.msk [vmem:[#allocation2 + $0x68] sm:$0xff] %vm63, -inf
      %78 = vst.msk [vmem:[#allocation2 + $0x70] sm:$0xff] %vm63, -inf
      %79 = vst.msk [vmem:[#allocation2 + $0x78] sm:$0xff] %vm63, -inf
      %80 = vst.msk [vmem:[#allocation2 + $0x80] sm:$0xff] %vm63, -inf
      %81 = vst.msk [vmem:[#allocation2 + $0x88] sm:$0xff] %vm63, -inf
      %82 = vst.msk [vmem:[#allocation2 + $0x90] sm:$0xff] %vm63, -inf
      %83 = vst.msk [vmem:[#allocation2 + $0x98] sm:$0xff] %vm63, -inf
      %84 = vst.msk [vmem:[#allocation2 + $0xa0] sm:$0xff] %vm63, -inf
      %85 = vst.msk [vmem:[#allocation2 + $0xa8] sm:$0xff] %vm63, -inf
      %86 = vst.msk [vmem:[#allocation2 + $0xb0] sm:$0xff] %vm63, -inf
      %87 = vst.msk [vmem:[#allocation2 + $0xb8] sm:$0xff] %vm63, -inf
      %88 = vst.msk [vmem:[#allocation2 + $0xc0] sm:$0xff] %vm63, -inf
      %89 = vst.msk [vmem:[#allocation2 + $0xc8] sm:$0xff] %vm63, -inf
      %90 = vst.msk [vmem:[#allocation2 + $0xd0] sm:$0xff] %vm63, -inf
      %91 = vst.msk [vmem:[#allocation2 + $0xd8] sm:$0xff] %vm63, -inf
      %92 = vst.msk [vmem:[#allocation2 + $0xe0] sm:$0xff] %vm63, -inf
      %93 = vst.msk [vmem:[#allocation2 + $0xe8] sm:$0xff] %vm63, -inf
      %94 = vst.msk [vmem:[#allocation2 + $0xf0] sm:$0xff] %vm63, -inf
      %95 = vst.msk [vmem:[#allocation2 + $0xf8] sm:$0xff] %vm63, -inf
      %96 = vst.msk [vmem:[#allocation2 + $0x100] sm:$0xff] %vm63, -inf
      %97 = vst.msk [vmem:[#allocation2 + $0x108] sm:$0xff] %vm63, -inf
      %98 = vst.msk [vmem:[#allocation2 + $0x110] sm:$0xff] %vm63, -inf
      %99 = vst.msk [vmem:[#allocation2 + $0x118] sm:$0xff] %vm63, -inf
      %100 = vst.msk [vmem:[#allocation2 + $0x120] sm:$0xff] %vm63, -inf
      %101 = vst.msk [vmem:[#allocation2 + $0x128] sm:$0xff] %vm63, -inf
      %102 = vst.msk [vmem:[#allocation2 + $0x130] sm:$0xff] %vm63, -inf
      %103 = vst.msk [vmem:[#allocation2 + $0x138] sm:$0xff] %vm63, -inf
      %104 = vst.msk [vmem:[#allocation2 + $0x140] sm:$0xff] %vm63, -inf
      %105 = vst.msk [vmem:[#allocation2 + $0x148] sm:$0xff] %vm63, -inf
      %106 = vst.msk [vmem:[#allocation2 + $0x150] sm:$0xff] %vm63, -inf
      %107 = vst.msk [vmem:[#allocation2 + $0x158] sm:$0xff] %vm63, -inf
      %108 = vst.msk [vmem:[#allocation2 + $0x160] sm:$0xff] %vm63, -inf
      %109 = vst.msk [vmem:[#allocation2 + $0x168] sm:$0xff] %vm63, -inf
      %110 = vst.msk [vmem:[#allocation2 + $0x170] sm:$0xff] %vm63, -inf
      %111 = vst.msk [vmem:[#allocation2 + $0x178] sm:$0xff] %vm63, -inf
      %112 = vst.msk [vmem:[#allocation2 + $0x180] sm:$0xff] %vm63, -inf
      %113 = vst.msk [vmem:[#allocation2 + $0x188] sm:$0xff] %vm63, -inf
      %114 = vst.msk [vmem:[#allocation2 + $0x190] sm:$0xff] %vm63, -inf
      %115 = vst.msk [vmem:[#allocation2 + $0x198] sm:$0xff] %vm63, -inf
      %116 = vst.msk [vmem:[#allocation2 + $0x1a0] sm:$0xff] %vm63, -inf
      %117 = vst.msk [vmem:[#allocation2 + $0x1a8] sm:$0xff] %vm63, -inf
      %118 = vst.msk [vmem:[#allocation2 + $0x1b0] sm:$0xff] %vm63, -inf
      %119 = vst.msk [vmem:[#allocation2 + $0x1b8] sm:$0xff] %vm63, -inf
      %120 = vst.msk [vmem:[#allocation2 + $0x1c0] sm:$0xff] %vm63, -inf
      %121 = vst.msk [vmem:[#allocation2 + $0x1c8] sm:$0xff] %vm63, -inf
      %122 = vst.msk [vmem:[#allocation2 + $0x1d0] sm:$0xff] %vm63, -inf
      %123 = vst.msk [vmem:[#allocation2 + $0x1d8] sm:$0xff] %vm63, -inf
      %124 = vst.msk [vmem:[#allocation2 + $0x1e0] sm:$0xff] %vm63, -inf
      %125 = vst.msk [vmem:[#allocation2 + $0x1e8] sm:$0xff] %vm63, -inf
      %126 = vst.msk [vmem:[#allocation2 + $0x1f0] sm:$0xff] %vm63, -inf
      %127 = vst.msk [vmem:[#allocation2 + $0x1f8] sm:$0xff] %vm63, -inf
      %128 = vst.msk [vmem:[#allocation3] sm:$0xff] %vm63, 0.0
      %129 = vst.msk [vmem:[#allocation3 + $0x8] sm:$0xff] %vm63, 0.0
      %130 = vst.msk [vmem:[#allocation3 + $0x10] sm:$0xff] %vm63, 0.0
      %131 = vst.msk [vmem:[#allocation3 + $0x18] sm:$0xff] %vm63, 0.0
      %132 = vst.msk [vmem:[#allocation3 + $0x20] sm:$0xff] %vm63, 0.0
      %133 = vst.msk [vmem:[#allocation3 + $0x28] sm:$0xff] %vm63, 0.0
      %134 = vst.msk [vmem:[#allocation3 + $0x30] sm:$0xff] %vm63, 0.0
      %135 = vst.msk [vmem:[#allocation3 + $0x38] sm:$0xff] %vm63, 0.0
      %136 = vst.msk [vmem:[#allocation3 + $0x40] sm:$0xff] %vm63, 0.0
      %137 = vst.msk [vmem:[#allocation3 + $0x48] sm:$0xff] %vm63, 0.0
      %138 = vst.msk [vmem:[#allocation3 + $0x50] sm:$0xff] %vm63, 0.0
      %139 = vst.msk [vmem:[#allocation3 + $0x58] sm:$0xff] %vm63, 0.0
      %140 = vst.msk [vmem:[#allocation3 + $0x60] sm:$0xff] %vm63, 0.0
      %141 = vst.msk [vmem:[#allocation3 + $0x68] sm:$0xff] %vm63, 0.0
      %142 = vst.msk [vmem:[#allocation3 + $0x70] sm:$0xff] %vm63, 0.0
      %143 = vst.msk [vmem:[#allocation3 + $0x78] sm:$0xff] %vm63, 0.0
      %144 = vst.msk [vmem:[#allocation3 + $0x80] sm:$0xff] %vm63, 0.0
      %145 = vst.msk [vmem:[#allocation3 + $0x88] sm:$0xff] %vm63, 0.0
      %146 = vst.msk [vmem:[#allocation3 + $0x90] sm:$0xff] %vm63, 0.0
      %147 = vst.msk [vmem:[#allocation3 + $0x98] sm:$0xff] %vm63, 0.0
      %148 = vst.msk [vmem:[#allocation3 + $0xa0] sm:$0xff] %vm63, 0.0
      %149 = vst.msk [vmem:[#allocation3 + $0xa8] sm:$0xff] %vm63, 0.0
      %150 = vst.msk [vmem:[#allocation3 + $0xb0] sm:$0xff] %vm63, 0.0
      %151 = vst.msk [vmem:[#allocation3 + $0xb8] sm:$0xff] %vm63, 0.0
      %152 = vst.msk [vmem:[#allocation3 + $0xc0] sm:$0xff] %vm63, 0.0
      %153 = vst.msk [vmem:[#allocation3 + $0xc8] sm:$0xff] %vm63, 0.0
      %154 = vst.msk [vmem:[#allocation3 + $0xd0] sm:$0xff] %vm63, 0.0
      %155 = vst.msk [vmem:[#allocation3 + $0xd8] sm:$0xff] %vm63, 0.0
      %156 = vst.msk [vmem:[#allocation3 + $0xe0] sm:$0xff] %vm63, 0.0
      %157 = vst.msk [vmem:[#allocation3 + $0xe8] sm:$0xff] %vm63, 0.0
      %158 = vst.msk [vmem:[#allocation3 + $0xf0] sm:$0xff] %vm63, 0.0
      %159 = vst.msk [vmem:[#allocation3 + $0xf8] sm:$0xff] %vm63, 0.0
      %160 = vst.msk [vmem:[#allocation3 + $0x100] sm:$0xff] %vm63, 0.0
      %161 = vst.msk [vmem:[#allocation3 + $0x108] sm:$0xff] %vm63, 0.0
      %162 = vst.msk [vmem:[#allocation3 + $0x110] sm:$0xff] %vm63, 0.0
      %163 = vst.msk [vmem:[#allocation3 + $0x118] sm:$0xff] %vm63, 0.0
      %164 = vst.msk [vmem:[#allocation3 + $0x120] sm:$0xff] %vm63, 0.0
      %165 = vst.msk [vmem:[#allocation3 + $0x128] sm:$0xff] %vm63, 0.0
      %166 = vst.msk [vmem:[#allocation3 + $0x130] sm:$0xff] %vm63, 0.0
      %167 = vst.msk [vmem:[#allocation3 + $0x138] sm:$0xff] %vm63, 0.0
      %168 = vst.msk [vmem:[#allocation3 + $0x140] sm:$0xff] %vm63, 0.0
      %169 = vst.msk [vmem:[#allocation3 + $0x148] sm:$0xff] %vm63, 0.0
      %170 = vst.msk [vmem:[#allocation3 + $0x150] sm:$0xff] %vm63, 0.0
      %171 = vst.msk [vmem:[#allocation3 + $0x158] sm:$0xff] %vm63, 0.0
      %172 = vst.msk [vmem:[#allocation3 + $0x160] sm:$0xff] %vm63, 0.0
      %173 = vst.msk [vmem:[#allocation3 + $0x168] sm:$0xff] %vm63, 0.0
      %174 = vst.msk [vmem:[#allocation3 + $0x170] sm:$0xff] %vm63, 0.0
      %175 = vst.msk [vmem:[#allocation3 + $0x178] sm:$0xff] %vm63, 0.0
      %176 = vst.msk [vmem:[#allocation3 + $0x180] sm:$0xff] %vm63, 0.0
      %177 = vst.msk [vmem:[#allocation3 + $0x188] sm:$0xff] %vm63, 0.0
      %178 = vst.msk [vmem:[#allocation3 + $0x190] sm:$0xff] %vm63, 0.0
      %179 = vst.msk [vmem:[#allocation3 + $0x198] sm:$0xff] %vm63, 0.0
      %180 = vst.msk [vmem:[#allocation3 + $0x1a0] sm:$0xff] %vm63, 0.0
      %181 = vst.msk [vmem:[#allocation3 + $0x1a8] sm:$0xff] %vm63, 0.0
      %182 = vst.msk [vmem:[#allocation3 + $0x1b0] sm:$0xff] %vm63, 0.0
      %183 = vst.msk [vmem:[#allocation3 + $0x1b8] sm:$0xff] %vm63, 0.0
      %184 = vst.msk [vmem:[#allocation3 + $0x1c0] sm:$0xff] %vm63, 0.0
      %185 = vst.msk [vmem:[#allocation3 + $0x1c8] sm:$0xff] %vm63, 0.0
      %186 = vst.msk [vmem:[#allocation3 + $0x1d0] sm:$0xff] %vm63, 0.0
      %187 = vst.msk [vmem:[#allocation3 + $0x1d8] sm:$0xff] %vm63, 0.0
      %188 = vst.msk [vmem:[#allocation3 + $0x1e0] sm:$0xff] %vm63, 0.0
      %189 = vst.msk [vmem:[#allocation3 + $0x1e8] sm:$0xff] %vm63, 0.0
      %190 = vst.msk [vmem:[#allocation3 + $0x1f0] sm:$0xff] %vm63, 0.0
      %191 = vst.msk [vmem:[#allocation3 + $0x1f8] sm:$0xff] %vm63, 0.0
      %vm192 = vcmask 64512
      %193 = vst.msk [vmem:[#allocation4] sm:$0xff] %vm192, 0.0
      %194 = vst.msk [vmem:[#allocation4 + $0x8] sm:$0xff] %vm192, 0.0
      %195 = vst.msk [vmem:[#allocation4 + $0x10] sm:$0xff] %vm192, 0.0
      %196 = vst.msk [vmem:[#allocation4 + $0x18] sm:$0xff] %vm192, 0.0
      %197 = vst.msk [vmem:[#allocation4 + $0x20] sm:$0xff] %vm192, 0.0
      %198 = vst.msk [vmem:[#allocation4 + $0x28] sm:$0xff] %vm192, 0.0
      %199 = vst.msk [vmem:[#allocation4 + $0x30] sm:$0xff] %vm192, 0.0
      %200 = vst.msk [vmem:[#allocation4 + $0x38] sm:$0xff] %vm192, 0.0
      %201 = vst.msk [vmem:[#allocation4 + $0x40] sm:$0xff] %vm192, 0.0
      %202 = vst.msk [vmem:[#allocation4 + $0x48] sm:$0xff] %vm192, 0.0
      %203 = vst.msk [vmem:[#allocation4 + $0x50] sm:$0xff] %vm192, 0.0
      %204 = vst.msk [vmem:[#allocation4 + $0x58] sm:$0xff] %vm192, 0.0
      %205 = vst.msk [vmem:[#allocation4 + $0x60] sm:$0xff] %vm192, 0.0
      %206 = vst.msk [vmem:[#allocation4 + $0x68] sm:$0xff] %vm192, 0.0
      %207 = vst.msk [vmem:[#allocation4 + $0x70] sm:$0xff] %vm192, 0.0
      %208 = vst.msk [vmem:[#allocation4 + $0x78] sm:$0xff] %vm192, 0.0
      %209 = vst.msk [vmem:[#allocation4 + $0x80] sm:$0xff] %vm192, 0.0
      %210 = vst.msk [vmem:[#allocation4 + $0x88] sm:$0xff] %vm192, 0.0
      %211 = vst.msk [vmem:[#allocation4 + $0x90] sm:$0xff] %vm192, 0.0
      %212 = vst.msk [vmem:[#allocation4 + $0x98] sm:$0xff] %vm192, 0.0
      %213 = vst.msk [vmem:[#allocation4 + $0xa0] sm:$0xff] %vm192, 0.0
      %214 = vst.msk [vmem:[#allocation4 + $0xa8] sm:$0xff] %vm192, 0.0
      %215 = vst.msk [vmem:[#allocation4 + $0xb0] sm:$0xff] %vm192, 0.0
      %216 = vst.msk [vmem:[#allocation4 + $0xb8] sm:$0xff] %vm192, 0.0
      %217 = vst.msk [vmem:[#allocation4 + $0xc0] sm:$0xff] %vm192, 0.0
      %218 = vst.msk [vmem:[#allocation4 + $0xc8] sm:$0xff] %vm192, 0.0
      %219 = vst.msk [vmem:[#allocation4 + $0xd0] sm:$0xff] %vm192, 0.0
      %220 = vst.msk [vmem:[#allocation4 + $0xd8] sm:$0xff] %vm192, 0.0
      %221 = vst.msk [vmem:[#allocation4 + $0xe0] sm:$0xff] %vm192, 0.0
      %222 = vst.msk [vmem:[#allocation4 + $0xe8] sm:$0xff] %vm192, 0.0
      %223 = vst.msk [vmem:[#allocation4 + $0xf0] sm:$0xff] %vm192, 0.0
      %224 = vst.msk [vmem:[#allocation4 + $0xf8] sm:$0xff] %vm192, 0.0
      %225 = vst.msk [vmem:[#allocation4 + $0x100] sm:$0xff] %vm192, 0.0
      %226 = vst.msk [vmem:[#allocation4 + $0x108] sm:$0xff] %vm192, 0.0
      %227 = vst.msk [vmem:[#allocation4 + $0x110] sm:$0xff] %vm192, 0.0
      %228 = vst.msk [vmem:[#allocation4 + $0x118] sm:$0xff] %vm192, 0.0
      %229 = vst.msk [vmem:[#allocation4 + $0x120] sm:$0xff] %vm192, 0.0
      %230 = vst.msk [vmem:[#allocation4 + $0x128] sm:$0xff] %vm192, 0.0
      %231 = vst.msk [vmem:[#allocation4 + $0x130] sm:$0xff] %vm192, 0.0
      %232 = vst.msk [vmem:[#allocation4 + $0x138] sm:$0xff] %vm192, 0.0
      %233 = vst.msk [vmem:[#allocation4 + $0x140] sm:$0xff] %vm192, 0.0
      %234 = vst.msk [vmem:[#allocation4 + $0x148] sm:$0xff] %vm192, 0.0
      %235 = vst.msk [vmem:[#allocation4 + $0x150] sm:$0xff] %vm192, 0.0
      %236 = vst.msk [vmem:[#allocation4 + $0x158] sm:$0xff] %vm192, 0.0
      %237 = vst.msk [vmem:[#allocation4 + $0x160] sm:$0xff] %vm192, 0.0
      %238 = vst.msk [vmem:[#allocation4 + $0x168] sm:$0xff] %vm192, 0.0
      %239 = vst.msk [vmem:[#allocation4 + $0x170] sm:$0xff] %vm192, 0.0
      %240 = vst.msk [vmem:[#allocation4 + $0x178] sm:$0xff] %vm192, 0.0
      %241 = vst.msk [vmem:[#allocation4 + $0x180] sm:$0xff] %vm192, 0.0
      %242 = vst.msk [vmem:[#allocation4 + $0x188] sm:$0xff] %vm192, 0.0
      %243 = vst.msk [vmem:[#allocation4 + $0x190] sm:$0xff] %vm192, 0.0
      %244 = vst.msk [vmem:[#allocation4 + $0x198] sm:$0xff] %vm192, 0.0
      %245 = vst.msk [vmem:[#allocation4 + $0x1a0] sm:$0xff] %vm192, 0.0
      %246 = vst.msk [vmem:[#allocation4 + $0x1a8] sm:$0xff] %vm192, 0.0
      %247 = vst.msk [vmem:[#allocation4 + $0x1b0] sm:$0xff] %vm192, 0.0
      %248 = vst.msk [vmem:[#allocation4 + $0x1b8] sm:$0xff] %vm192, 0.0
      %249 = vst.msk [vmem:[#allocation4 + $0x1c0] sm:$0xff] %vm192, 0.0
      %250 = vst.msk [vmem:[#allocation4 + $0x1c8] sm:$0xff] %vm192, 0.0
      %251 = vst.msk [vmem:[#allocation4 + $0x1d0] sm:$0xff] %vm192, 0.0
      %252 = vst.msk [vmem:[#allocation4 + $0x1d8] sm:$0xff] %vm192, 0.0
      %253 = vst.msk [vmem:[#allocation4 + $0x1e0] sm:$0xff] %vm192, 0.0
      %254 = vst.msk [vmem:[#allocation4 + $0x1e8] sm:$0xff] %vm192, 0.0
      %255 = vst.msk [vmem:[#allocation4 + $0x1f0] sm:$0xff] %vm192, 0.0
      %256 = vst.msk [vmem:[#allocation4 + $0x1f8] sm:$0xff] %vm192, 0.0
    $region29: #{transformer_encoder.9} parent=1 // pred_fallthru
      _
    %v257 = vld [vmem:[#allocation5] sm:$0xf]
    %v258 = vld [vmem:[#allocation5 + $0x4] sm:$0xf]
    %v259 = vld [vmem:[#allocation5 + $0x8] sm:$0xf]
    %v260 = vld [vmem:[#allocation5 + $0xc] sm:$0xf]
    %v261 = vld [vmem:[#allocation5 + $0x10] sm:$0xf]
    %v262 = vld [vmem:[#allocation5 + $0x14] sm:$0xf]
    %v263 = vld [vmem:[#allocation5 + $0x18] sm:$0xf]
    %v264 = vld [vmem:[#allocation5 + $0x1c] sm:$0xf]
    %v265 = vld [vmem:[#allocation5 + $0x20] sm:$0xf]
    %v266 = vld [vmem:[#allocation5 + $0x24] sm:$0xf]
    %v267 = vld [vmem:[#allocation5 + $0x28] sm:$0xf]
    %v268 = vld [vmem:[#allocation5 + $0x2c] sm:$0xf]
    %v269 = vld [vmem:[#allocation5 + $0x30] sm:$0xf]
    %v270 = vld [vmem:[#allocation5 + $0x34] sm:$0xf]
    %v271 = vld [vmem:[#allocation5 + $0x38] sm:$0xf]
    %v272 = vld [vmem:[#allocation5 + $0x3c] sm:$0xf]
    %v273 = vld [vmem:[#allocation5 + $0x40] sm:$0xf]
    %v274 = vld [vmem:[#allocation5 + $0x44] sm:$0xf]
    %v275 = vld [vmem:[#allocation5 + $0x48] sm:$0xf]
    %v276 = vld [vmem:[#allocation5 + $0x4c] sm:$0xf]
    %v277 = vld [vmem:[#allocation5 + $0x50] sm:$0xf]
    %v278 = vld [vmem:[#allocation5 + $0x54] sm:$0xf]
    %v279 = vld [vmem:[#allocation5 + $0x58] sm:$0xf]
    %v280 = vld [vmem:[#allocation5 + $0x5c] sm:$0xf]
    %v281 = vld [vmem:[#allocation5 + $0x60] sm:$0xf]
    %v282 = vld [vmem:[#allocation5 + $0x64] sm:$0xf]
    %v283 = vld [vmem:[#allocation5 + $0x68] sm:$0xf]
    %v284 = vld [vmem:[#allocation5 + $0x6c] sm:$0xf]
    %v285 = vld [vmem:[#allocation5 + $0x70] sm:$0xf]
    %v286 = vld [vmem:[#allocation5 + $0x74] sm:$0xf]
    %v287 = vld [vmem:[#allocation5 + $0x78] sm:$0xf]
    %v288 = vld [vmem:[#allocation5 + $0x7c] sm:$0xf]
    %v289 = vld [vmem:[#allocation5 + $0x80] sm:$0xf]
    %v290 = vld [vmem:[#allocation5 + $0x84] sm:$0xf]
    %v291 = vld [vmem:[#allocation5 + $0x88] sm:$0xf]
    %v292 = vld [vmem:[#allocation5 + $0x8c] sm:$0xf]
    %v293 = vld [vmem:[#allocation5 + $0x90] sm:$0xf]
    %v294 = vld [vmem:[#allocation5 + $0x94] sm:$0xf]
    %v295 = vld [vmem:[#allocation5 + $0x98] sm:$0xf]
    %v296 = vld [vmem:[#allocation5 + $0x9c] sm:$0xf]
    %v297 = vld [vmem:[#allocation5 + $0xa0] sm:$0xf]
    %v298 = vld [vmem:[#allocation5 + $0xa4] sm:$0xf]
    %v299 = vld [vmem:[#allocation5 + $0xa8] sm:$0xf]
    %v300 = vld [vmem:[#allocation5 + $0xac] sm:$0xf]
    %v301 = vld [vmem:[#allocation5 + $0xb0] sm:$0xf]
    %v302 = vld [vmem:[#allocation5 + $0xb4] sm:$0xf]
    %v303 = vld [vmem:[#allocation5 + $0xb8] sm:$0xf]
    %v304 = vld [vmem:[#allocation5 + $0xbc] sm:$0xf]
    %v305 = vld [vmem:[#allocation5 + $0xc0] sm:$0xf]
    %v306 = vld [vmem:[#allocation5 + $0xc4] sm:$0xf]
    %v307 = vld [vmem:[#allocation5 + $0xc8] sm:$0xf]
    %v308 = vld [vmem:[#allocation5 + $0xcc] sm:$0xf]
    %v309 = vld [vmem:[#allocation5 + $0xd0] sm:$0xf]
    %v310 = vld [vmem:[#allocation5 + $0xd4] sm:$0xf]
    %v311 = vld [vmem:[#allocation5 + $0xd8] sm:$0xf]
    %v312 = vld [vmem:[#allocation5 + $0xdc] sm:$0xf]
    %v313 = vld [vmem:[#allocation5 + $0xe0] sm:$0xf]
    %v314 = vld [vmem:[#allocation5 + $0xe4] sm:$0xf]
    %v315 = vld [vmem:[#allocation5 + $0xe8] sm:$0xf]
    %v316 = vld [vmem:[#allocation5 + $0xec] sm:$0xf]
    %v317 = vld [vmem:[#allocation5 + $0xf0] sm:$0xf]
    %v318 = vld [vmem:[#allocation5 + $0xf4] sm:$0xf]
    %v319 = vld [vmem:[#allocation5 + $0xf8] sm:$0xf]
    %v320 = vld [vmem:[#allocation5 + $0xfc] sm:$0xf]
    %v321 = vld [vmem:[#allocation8] sm:$0xf]
    %v322 = vld [vmem:[#allocation8 + $0x4] sm:$0xf]
    %v323 = vld [vmem:[#allocation8 + $0x8] sm:$0xf]
    %v324 = vld [vmem:[#allocation8 + $0xc] sm:$0xf]
    %v325 = vld [vmem:[#allocation8 + $0x10] sm:$0xf]
    %v326 = vld [vmem:[#allocation8 + $0x14] sm:$0xf]
    %v327 = vld [vmem:[#allocation8 + $0x18] sm:$0xf]
    %v328 = vld [vmem:[#allocation8 + $0x1c] sm:$0xf]
    %v329 = vld [vmem:[#allocation8 + $0x20] sm:$0xf]
    %v330 = vld [vmem:[#allocation8 + $0x24] sm:$0xf]
    %v331 = vld [vmem:[#allocation8 + $0x28] sm:$0xf]
    %v332 = vld [vmem:[#allocation8 + $0x2c] sm:$0xf]
    %v333 = vld [vmem:[#allocation8 + $0x30] sm:$0xf]
    %v334 = vld [vmem:[#allocation8 + $0x34] sm:$0xf]
    %v335 = vld [vmem:[#allocation8 + $0x38] sm:$0xf]
    %v336 = vld [vmem:[#allocation8 + $0x3c] sm:$0xf]
    %v337 = vld [vmem:[#allocation8 + $0x40] sm:$0xf]
    %v338 = vld [vmem:[#allocation8 + $0x44] sm:$0xf]
    %v339 = vld [vmem:[#allocation8 + $0x48] sm:$0xf]
    %v340 = vld [vmem:[#allocation8 + $0x4c] sm:$0xf]
    %v341 = vld [vmem:[#allocation8 + $0x50] sm:$0xf]
    %v342 = vld [vmem:[#allocation8 + $0x54] sm:$0xf]
    %v343 = vld [vmem:[#allocation8 + $0x58] sm:$0xf]
    %v344 = vld [vmem:[#allocation8 + $0x5c] sm:$0xf]
    %v345 = vld [vmem:[#allocation8 + $0x60] sm:$0xf]
    %v346 = vld [vmem:[#allocation8 + $0x64] sm:$0xf]
    %v347 = vld [vmem:[#allocation8 + $0x68] sm:$0xf]
    %v348 = vld [vmem:[#allocation8 + $0x6c] sm:$0xf]
    %v349 = vld [vmem:[#allocation8 + $0x70] sm:$0xf]
    %v350 = vld [vmem:[#allocation8 + $0x74] sm:$0xf]
    %v351 = vld [vmem:[#allocation8 + $0x78] sm:$0xf]
    %v352 = vld [vmem:[#allocation8 + $0x7c] sm:$0xf]
    %v353 = vld [vmem:[#allocation8 + $0x80] sm:$0xf]
    %v354 = vld [vmem:[#allocation8 + $0x84] sm:$0xf]
    %v355 = vld [vmem:[#allocation8 + $0x88] sm:$0xf]
    %v356 = vld [vmem:[#allocation8 + $0x8c] sm:$0xf]
    %v357 = vld [vmem:[#allocation8 + $0x90] sm:$0xf]
    %v358 = vld [vmem:[#allocation8 + $0x94] sm:$0xf]
    %v359 = vld [vmem:[#allocation8 + $0x98] sm:$0xf]
    %v360 = vld [vmem:[#allocation8 + $0x9c] sm:$0xf]
    %v361 = vld [vmem:[#allocation8 + $0xa0] sm:$0xf]
    %v362 = vld [vmem:[#allocation8 + $0xa4] sm:$0xf]
    %v363 = vld [vmem:[#allocation8 + $0xa8] sm:$0xf]
    %v364 = vld [vmem:[#allocation8 + $0xac] sm:$0xf]
    %v365 = vld [vmem:[#allocation8 + $0xb0] sm:$0xf]
    %v366 = vld [vmem:[#allocation8 + $0xb4] sm:$0xf]
    %v367 = vld [vmem:[#allocation8 + $0xb8] sm:$0xf]
    %v368 = vld [vmem:[#allocation8 + $0xbc] sm:$0xf]
    %v369 = vld [vmem:[#allocation8 + $0xc0] sm:$0xf]
    %v370 = vld [vmem:[#allocation8 + $0xc4] sm:$0xf]
    %v371 = vld [vmem:[#allocation8 + $0xc8] sm:$0xf]
    %v372 = vld [vmem:[#allocation8 + $0xcc] sm:$0xf]
    %v373 = vld [vmem:[#allocation8 + $0xd0] sm:$0xf]
    %v374 = vld [vmem:[#allocation8 + $0xd4] sm:$0xf]
    %v375 = vld [vmem:[#allocation8 + $0xd8] sm:$0xf]
    %v376 = vld [vmem:[#allocation8 + $0xdc] sm:$0xf]
    %v377 = vld [vmem:[#allocation8 + $0xe0] sm:$0xf]
    %v378 = vld [vmem:[#allocation8 + $0xe4] sm:$0xf]
    %v379 = vld [vmem:[#allocation8 + $0xe8] sm:$0xf]
    %v380 = vld [vmem:[#allocation8 + $0xec] sm:$0xf]
    %v381 = vld [vmem:[#allocation8 + $0xf0] sm:$0xf]
    %v382 = vld [vmem:[#allocation8 + $0xf4] sm:$0xf]
    %v383 = vld [vmem:[#allocation8 + $0xf8] sm:$0xf]
    %v384 = vld [vmem:[#allocation8 + $0xfc] sm:$0xf]
    %v385 = vld [vmem:[#allocation10] sm:$0xf]
    %v386 = vld [vmem:[#allocation10 + $0x4] sm:$0xf]
    %v387 = vld [vmem:[#allocation10 + $0x8] sm:$0xf]
    %v388 = vld [vmem:[#allocation10 + $0xc] sm:$0xf]
    %v389 = vld [vmem:[#allocation10 + $0x10] sm:$0xf]
    %v390 = vld [vmem:[#allocation10 + $0x14] sm:$0xf]
    %v391 = vld [vmem:[#allocation10 + $0x18] sm:$0xf]
    %v392 = vld [vmem:[#allocation10 + $0x1c] sm:$0xf]
    %v393 = vld [vmem:[#allocation10 + $0x20] sm:$0xf]
    %v394 = vld [vmem:[#allocation10 + $0x24] sm:$0xf]
    %v395 = vld [vmem:[#allocation10 + $0x28] sm:$0xf]
    %v396 = vld [vmem:[#allocation10 + $0x2c] sm:$0xf]
    %v397 = vld [vmem:[#allocation10 + $0x30] sm:$0xf]
    %v398 = vld [vmem:[#allocation10 + $0x34] sm:$0xf]
    %v399 = vld [vmem:[#allocation10 + $0x38] sm:$0xf]
    %v400 = vld [vmem:[#allocation10 + $0x3c] sm:$0xf]
    %v401 = vld [vmem:[#allocation10 + $0x40] sm:$0xf]
    %v402 = vld [vmem:[#allocation10 + $0x44] sm:$0xf]
    %v403 = vld [vmem:[#allocation10 + $0x48] sm:$0xf]
    %v404 = vld [vmem:[#allocation10 + $0x4c] sm:$0xf]
    %v405 = vld [vmem:[#allocation10 + $0x50] sm:$0xf]
    %v406 = vld [vmem:[#allocation10 + $0x54] sm:$0xf]
    %v407 = vld [vmem:[#allocation10 + $0x58] sm:$0xf]
    %v408 = vld [vmem:[#allocation10 + $0x5c] sm:$0xf]
    %v409 = vld [vmem:[#allocation10 + $0x60] sm:$0xf]
    %v410 = vld [vmem:[#allocation10 + $0x64] sm:$0xf]
    %v411 = vld [vmem:[#allocation10 + $0x68] sm:$0xf]
    %v412 = vld [vmem:[#allocation10 + $0x6c] sm:$0xf]
    %v413 = vld [vmem:[#allocation10 + $0x70] sm:$0xf]
    %v414 = vld [vmem:[#allocation10 + $0x74] sm:$0xf]
    %v415 = vld [vmem:[#allocation10 + $0x78] sm:$0xf]
    %v416 = vld [vmem:[#allocation10 + $0x7c] sm:$0xf]
    %v417 = vld [vmem:[#allocation10 + $0x80] sm:$0xf]
    %v418 = vld [vmem:[#allocation10 + $0x84] sm:$0xf]
    %v419 = vld [vmem:[#allocation10 + $0x88] sm:$0xf]
    %v420 = vld [vmem:[#allocation10 + $0x8c] sm:$0xf]
    %v421 = vld [vmem:[#allocation10 + $0x90] sm:$0xf]
    %v422 = vld [vmem:[#allocation10 + $0x94] sm:$0xf]
    %v423 = vld [vmem:[#allocation10 + $0x98] sm:$0xf]
    %v424 = vld [vmem:[#allocation10 + $0x9c] sm:$0xf]
    %v425 = vld [vmem:[#allocation10 + $0xa0] sm:$0xf]
    %v426 = vld [vmem:[#allocation10 + $0xa4] sm:$0xf]
    %v427 = vld [vmem:[#allocation10 + $0xa8] sm:$0xf]
    %v428 = vld [vmem:[#allocation10 + $0xac] sm:$0xf]
    %v429 = vld [vmem:[#allocation10 + $0xb0] sm:$0xf]
    %v430 = vld [vmem:[#allocation10 + $0xb4] sm:$0xf]
    %v431 = vld [vmem:[#allocation10 + $0xb8] sm:$0xf]
    %v432 = vld [vmem:[#allocation10 + $0xbc] sm:$0xf]
    %v433 = vld [vmem:[#allocation10 + $0xc0] sm:$0xf]
    %v434 = vld [vmem:[#allocation10 + $0xc4] sm:$0xf]
    %v435 = vld [vmem:[#allocation10 + $0xc8] sm:$0xf]
    %v436 = vld [vmem:[#allocation10 + $0xcc] sm:$0xf]
    %v437 = vld [vmem:[#allocation10 + $0xd0] sm:$0xf]
    %v438 = vld [vmem:[#allocation10 + $0xd4] sm:$0xf]
    %v439 = vld [vmem:[#allocation10 + $0xd8] sm:$0xf]
    %v440 = vld [vmem:[#allocation10 + $0xdc] sm:$0xf]
    %v441 = vld [vmem:[#allocation10 + $0xe0] sm:$0xf]
    %v442 = vld [vmem:[#allocation10 + $0xe4] sm:$0xf]
    %v443 = vld [vmem:[#allocation10 + $0xe8] sm:$0xf]
    %v444 = vld [vmem:[#allocation10 + $0xec] sm:$0xf]
    %v445 = vld [vmem:[#allocation10 + $0xf0] sm:$0xf]
    %v446 = vld [vmem:[#allocation10 + $0xf4] sm:$0xf]
    %v447 = vld [vmem:[#allocation10 + $0xf8] sm:$0xf]
    %v448 = vld [vmem:[#allocation10 + $0xfc] sm:$0xf]
    %v457 = vunpack.c.l.b16 %v257
    %v458 = vunpack.c.l.b16 %v258
    %v459 = vunpack.c.l.b16 %v259
    %v460 = vunpack.c.l.b16 %v260
    %v461 = vunpack.c.l.b16 %v261
    %v462 = vunpack.c.l.b16 %v262
    %v463 = vunpack.c.l.b16 %v263
    %v464 = vunpack.c.l.b16 %v264
    %v465 = vpack.c.b16 %v458, %v457
    %v466 = vpack.c.b16 %v460, %v459
    %v467 = vpack.c.b16 %v462, %v461
    %v468 = vpack.c.b16 %v464, %v463
    %v477 = vunpack.c.l.b16 %v321
    %v478 = vunpack.c.l.b16 %v322
    %v479 = vunpack.c.l.b16 %v323
    %v480 = vunpack.c.l.b16 %v324
    %v481 = vunpack.c.l.b16 %v325
    %v482 = vunpack.c.l.b16 %v326
    %v483 = vunpack.c.l.b16 %v327
    %v484 = vunpack.c.l.b16 %v328
    %v485 = vpack.c.b16 %v478, %v477
    %v486 = vpack.c.b16 %v480, %v479
    %v487 = vpack.c.b16 %v482, %v481
    %v488 = vpack.c.b16 %v484, %v483
    %vm489 = vcmask 64512
    %v491 = vsel %vm489, %v465, 0
    %v494 = vsel %vm489, %v466, 0
    %v497 = vsel %vm489, %v467, 0
    %v500 = vsel %vm489, %v468, 0
    %v503 = vsel %vm489, %v485, 0
    %v506 = vsel %vm489, %v486, 0
    %v509 = vsel %vm489, %v487, 0
    %v512 = vsel %vm489, %v488, 0
    %514 = vmatprep.subr.bf16.mxu0 0
    %515 = vmatpush1.bf16.xpose.msra.mxu0 %v503
    %516 = vmatprep.subr.bf16.mxu0 0
    %517 = vmatpush1.bf16.xpose.msra.mxu0 %v506
    %518 = vmatprep.subr.bf16.mxu0 0
    %519 = vmatpush1.bf16.xpose.msra.mxu0 %v509
    %520 = vmatprep.subr.bf16.mxu0 0
    %521 = vmatpush1.bf16.xpose.msra.mxu0 %v512
    %522 = vmatprep.subr.bf16.mxu0 0
    %523 = vmatpush1.bf16.xpose.msra.mxu0 0
    %524 = vmatprep.subr.bf16.mxu0 0
    %525 = vmatpush1.bf16.xpose.msra.mxu0 0
    %526 = vmatprep.subr.bf16.mxu0 0
    %527 = vmatpush1.bf16.xpose.msra.mxu0 0
    %528 = vmatprep.subr.bf16.mxu0 0
    %529 = vmatpush1.bf16.xpose.msra.mxu0 0
    %530 = vmatprep.subr.bf16.mxu0 0
    %531 = vmatpush1.bf16.xpose.msra.mxu0 0
    %532 = vmatprep.subr.bf16.mxu0 0
    %533 = vmatpush1.bf16.xpose.msra.mxu0 0
    %534 = vmatprep.subr.bf16.mxu0 0
    %535 = vmatpush1.bf16.xpose.msra.mxu0 0
    %536 = vmatprep.subr.bf16.mxu0 0
    %537 = vmatpush1.bf16.xpose.msra.mxu0 0
    %538 = vmatprep.subr.bf16.mxu0 0
    %539 = vmatpush1.bf16.xpose.msra.mxu0 0
    %540 = vmatprep.subr.bf16.mxu0 0
    %541 = vmatpush1.bf16.xpose.msra.mxu0 0
    %542 = vmatprep.subr.bf16.mxu0 0
    %543 = vmatpush1.bf16.xpose.msra.mxu0 0
    %544 = vmatprep.subr.bf16.mxu0 0
    %545 = vmatpush1.bf16.xpose.msra.mxu0 0
    %546 = vmatprep.mubr.bf16.mxu0 0
    %547 = vmatmul.mubr.bf16.gmra.mrb[0].mxu0 %v491
    %v548 = vpop.f32.mrb[0].mxu0
    %v549 = vadd.f32 0.0, %v548
    %v550 = vpop.f32.mrb[0].mxu0
    %v551 = vpop.f32.mrb[0].mxu0
    %v552 = vadd.f32 0.0, %v551
    %v553 = vpop.f32.mrb[0].mxu0
    %554 = vmatprep.mubr.bf16.mxu0 0
    %555 = vmatmul.mubr.bf16.gmra.mrb[0].mxu0 %v494
    %v556 = vpop.f32.mrb[0].mxu0
    %v557 = vadd.f32 0.0, %v556
    %v558 = vpop.f32.mrb[0].mxu0
    %v559 = vpop.f32.mrb[0].mxu0
    %v560 = vadd.f32 0.0, %v559
    %v561 = vpop.f32.mrb[0].mxu0
    %562 = vmatprep.mubr.bf16.mxu0 0
    %563 = vmatmul.mubr.bf16.gmra.mrb[0].mxu0 %v497
    %v564 = vpop.f32.mrb[0].mxu0
    %v565 = vadd.f32 0.0, %v564
    %v566 = vpop.f32.mrb[0].mxu0
    %v567 = vpop.f32.mrb[0].mxu0
    %v568 = vadd.f32 0.0, %v567
    %v569 = vpop.f32.mrb[0].mxu0
    %570 = vmatprep.mubr.bf16.mxu0 0
    %571 = vmatmul.mubr.bf16.gmra.mrb[0].mxu0 %v500
    %v572 = vpop.f32.mrb[0].mxu0
    %v573 = vadd.f32 0.0, %v572
    %v574 = vpop.f32.mrb[0].mxu0
    %v575 = vpop.f32.mrb[0].mxu0
    %v576 = vadd.f32 0.0, %v575
    %v577 = vpop.f32.mrb[0].mxu0
    %578 = vdwg.mxu0
    %v587 = vunpack.c.l.b16 %v265
    %v588 = vunpack.c.l.b16 %v266
    %v589 = vunpack.c.l.b16 %v267
    %v590 = vunpack.c.l.b16 %v268
    %v591 = vunpack.c.l.b16 %v269
    %v592 = vunpack.c.l.b16 %v270
    %v593 = vunpack.c.l.b16 %v271
    %v594 = vunpack.c.l.b16 %v272
    %v595 = vpack.c.b16 %v588, %v587
    %v596 = vpack.c.b16 %v590, %v589
    %v597 = vpack.c.b16 %v592, %v591
    %v598 = vpack.c.b16 %v594, %v593
    %v607 = vunpack.c.l.b16 %v329
    %v608 = vunpack.c.l.b16 %v330
    %v609 = vunpack.c.l.b16 %v331
    %v610 = vunpack.c.l.b16 %v332
    %v611 = vunpack.c.l.b16 %v333
    %v612 = vunpack.c.l.b16 %v334
    %v613 = vunpack.c.l.b16 %v335
    %v614 = vunpack.c.l.b16 %v336
    %v615 = vpack.c.b16 %v608, %v607
    %v616 = vpack.c.b16 %v610, %v609
    %v617 = vpack.c.b16 %v612, %v611
    %v618 = vpack.c.b16 %v614, %v613
    %v620 = vsel %vm489, %v595, 0
    %v623 = vsel %vm489, %v596, 0
    %v626 = vsel %vm489, %v597, 0
    %v629 = vsel %vm489, %v598, 0
    %v632 = vsel %vm489, %v615, 0
    %v635 = vsel %vm489, %v616, 0
    %v638 = vsel %vm489, %v617, 0
    %v641 = vsel %vm489, %v618, 0
    %643 = vmatprep.subr.bf16.mxu0 0
    %644 = vmatpush1.bf16.xpose.msra.mxu0 %v632
    %645 = vmatprep.subr.bf16.mxu0 0
    %646 = vmatpush1.bf16.xpose.msra.mxu0 %v635
    %647 = vmatprep.subr.bf16.mxu0 0
    %648 = vmatpush1.bf16.xpose.msra.mxu0 %v638
    %649 = vmatprep.subr.bf16.mxu0 0
    %650 = vmatpush1.bf16.xpose.msra.mxu0 %v641
    %651 = vmatprep.subr.bf16.mxu0 0
    %652 = vmatpush1.bf16.xpose.msra.mxu0 0
    %653 = vmatprep.subr.bf16.mxu0 0
    %654 = vmatpush1.bf16.xpose.msra.mxu0 0
    %655 = vmatprep.subr.bf16.mxu0 0
    %656 = vmatpush1.bf16.xpose.msra.mxu0 0
    %657 = vmatprep.subr.bf16.mxu0 0
    %658 = vmatpush1.bf16.xpose.msra.mxu0 0
    %659 = vmatprep.subr.bf16.mxu0 0
    %660 = vmatpush1.bf16.xpose.msra.mxu0 0
    %661 = vmatprep.subr.bf16.mxu0 0
    %662 = vmatpush1.bf16.xpose.msra.mxu0 0
    %663 = vmatprep.subr.bf16.mxu0 0
    %664 = vmatpush1.bf16.xpose.msra.mxu0 0
    %665 = vmatprep.subr.bf16.mxu0 0
    %666 = vmatpush1.bf16.xpose.msra.mxu0 0
    %667 = vmatprep.subr.bf16.mxu0 0
    %668 = vmatpush1.bf16.xpose.msra.mxu0 0
    %669 = vmatprep.subr.bf16.mxu0 0
    %670 = vmatpush1.bf16.xpose.msra.mxu0 0
    %671 = vmatprep.subr.bf16.mxu0 0
    %672 = vmatpush1.bf16.xpose.msra.mxu0 0
    %673 = vmatprep.subr.bf16.mxu0 0
    %674 = vmatpush1.bf16.xpose.msra.mxu0 0
    %675 = vmatprep.mubr.bf16.mxu0 0
    %676 = vmatmul.mubr.bf16.gmra.mrb[0].mxu0 %v620
    %v677 = vpop.f32.mrb[0].mxu0
    %v678 = vadd.f32 0.0, %v677
    %v679 = vpop.f32.mrb[0].mxu0
    %v680 = vpop.f32.mrb[0].mxu0
    %v681 = vadd.f32 0.0, %v680
    %v682 = vpop.f32.mrb[0].mxu0
    %683 = vmatprep.mubr.bf16.mxu0 0
    %684 = vmatmul.mubr.bf16.gmra.mrb[0].mxu0 %v623
    %v685 = vpop.f32.mrb[0].mxu0
    %v686 = vadd.f32 0.0, %v685
    %v687 = vpop.f32.mrb[0].mxu0
    %v688 = vpop.f32.mrb[0].mxu0
    %v689 = vadd.f32 0.0, %v688
    %v690 = vpop.f32.mrb[0].mxu0
    %691 = vmatprep.mubr.bf16.mxu0 0
    %692 = vmatmul.mubr.bf16.gmra.mrb[0].mxu0 %v626
    %v693 = vpop.f32.mrb[0].mxu0
    %v694 = vadd.f32 0.0, %v693
    %v695 = vpop.f32.mrb[0].mxu0
    %v696 = vpop.f32.mrb[0].mxu0
    %v697 = vadd.f32 0.0, %v696
    %v698 = vpop.f32.mrb[0].mxu0
    %699 = vmatprep.mubr.bf16.mxu0 0
    %700 = vmatmul.mubr.bf16.gmra.mrb[0].mxu0 %v629
    %v701 = vpop.f32.mrb[0].mxu0
    %v702 = vadd.f32 0.0, %v701
    %v703 = vpop.f32.mrb[0].mxu0
    %v704 = vpop.f32.mrb[0].mxu0
    %v705 = vadd.f32 0.0, %v704
    %v706 = vpop.f32.mrb[0].mxu0
    %707 = vdwg.mxu0
    %v716 = vunpack.c.l.b16 %v273
    %v717 = vunpack.c.l.b16 %v274
    %v718 = vunpack.c.l.b16 %v275
    %v719 = vunpack.c.l.b16 %v276
    %v720 = vunpack.c.l.b16 %v277
    %v721 = vunpack.c.l.b16 %v278
    %v722 = vunpack.c.l.b16 %v279
    %v723 = vunpack.c.l.b16 %v280
    %v724 = vpack.c.b16 %v717, %v716
    %v725 = vpack.c.b16 %v719, %v718
    %v726 = vpack.c.b16 %v721, %v720
    %v727 = vpack.c.b16 %v723, %v722
    %v736 = vunpack.c.l.b16 %v337
    %v737 = vunpack.c.l.b16 %v338
    %v738 = vunpack.c.l.b16 %v339
    %v739 = vunpack.c.l.b16 %v340
    %v740 = vunpack.c.l.b16 %v341
    %v741 = vunpack.c.l.b16 %v342
    %v742 = vunpack.c.l.b16 %v343
    %v743 = vunpack.c.l.b16 %v344
    %v744 = vpack.c.b16 %v737, %v736
    %v745 = vpack.c.b16 %v739, %v738
    %v746 = vpack.c.b16 %v741, %v740
    %v747 = vpack.c.b16 %v743, %v742
    %v749 = vsel %vm489, %v724, 0
    %v752 = vsel %vm489, %v725, 0
    %v755 = vsel %vm489, %v726, 0
    %v758 = vsel %vm489, %v727, 0
    %v761 = vsel %vm489, %v744, 0
    %v764 = vsel %vm489, %v745, 0
    %v767 = vsel %vm489, %v746, 0
    %v770 = vsel %vm489, %v747, 0
    %772 = vmatprep.subr.bf16.mxu0 0
    %773 = vmatpush1.bf16.xpose.msra.mxu0 %v761
    %774 = vmatprep.subr.bf16.mxu0 0
    %775 = vmatpush1.bf16.xpose.msra.mxu0 %v764
    %776 = vmatprep.subr.bf16.mxu0 0
    %777 = vmatpush1.bf16.xpose.msra.mxu0 %v767
    %778 = vmatprep.subr.bf16.mxu0 0
    %779 = vmatpush1.bf16.xpose.msra.mxu0 %v770
    %780 = vmatprep.subr.bf16.mxu0 0
    %781 = vmatpush1.bf16.xpose.msra.mxu0 0
    %782 = vmatprep.subr.bf16.mxu0 0
    %783 = vmatpush1.bf16.xpose.msra.mxu0 0
    %784 = vmatprep.subr.bf16.mxu0 0
    %785 = vmatpush1.bf16.xpose.msra.mxu0 0
    %786 = vmatprep.subr.bf16.mxu0 0
    %787 = vmatpush1.bf16.xpose.msra.mxu0 0
    %788 = vmatprep.subr.bf16.mxu0 0
    %789 = vmatpush1.bf16.xpose.msra.mxu0 0
    %790 = vmatprep.subr.bf16.mxu0 0
    %791 = vmatpush1.bf16.xpose.msra.mxu0 0
    %792 = vmatprep.subr.bf16.mxu0 0
    %793 = vmatpush1.bf16.xpose.msra.mxu0 0
    %794 = vmatprep.subr.bf16.mxu0 0
    %795 = vmatpush1.bf16.xpose.msra.mxu0 0
    %796 = vmatprep.subr.bf16.mxu0 0
    %797 = vmatpush1.bf16.xpose.msra.mxu0 0
    %798 = vmatprep.subr.bf16.mxu0 0
    %799 = vmatpush1.bf16.xpose.msra.mxu0 0
    %800 = vmatprep.subr.bf16.mxu0 0
    %801 = vmatpush1.bf16.xpose.msra.mxu0 0
    %802 = vmatprep.subr.bf16.mxu0 0
    %803 = vmatpush1.bf16.xpose.msra.mxu0 0
    %804 = vmatprep.mubr.bf16.mxu0 0
    %805 = vmatmul.mubr.bf16.gmra.mrb[0].mxu0 %v749
    %v806 = vpop.f32.mrb[0].mxu0
    %v807 = vadd.f32 0.0, %v806
    %v808 = vpop.f32.mrb[0].mxu0
    %v809 = vpop.f32.mrb[0].mxu0
    %v810 = vadd.f32 0.0, %v809
    %v811 = vpop.f32.mrb[0].mxu0
    %812 = vmatprep.mubr.bf16.mxu0 0
    %813 = vmatmul.mubr.bf16.gmra.mrb[0].mxu0 %v752
    %v814 = vpop.f32.mrb[0].mxu0
    %v815 = vadd.f32 0.0, %v814
    %v816 = vpop.f32.mrb[0].mxu0
    %v817 = vpop.f32.mrb[0].mxu0
    %v818 = vadd.f32 0.0, %v817
    %v819 = vpop.f32.mrb[0].mxu0
    %820 = vmatprep.mubr.bf16.mxu0 0
    %821 = vmatmul.mubr.bf16.gmra.mrb[0].mxu0 %v755
    %v822 = vpop.f32.mrb[0].mxu0
    %v823 = vadd.f32 0.0, %v822
    %v824 = vpop.f32.mrb[0].mxu0
    %v825 = vpop.f32.mrb[0].mxu0
    %v826 = vadd.f32 0.0, %v825
    %v827 = vpop.f32.mrb[0].mxu0
    %828 = vmatprep.mubr.bf16.mxu0 0
    %829 = vmatmul.mubr.bf16.gmra.mrb[0].mxu0 %v758
    %v830 = vpop.f32.mrb[0].mxu0
    %v831 = vadd.f32 0.0, %v830
    %v832 = vpop.f32.mrb[0].mxu0
    %v833 = vpop.f32.mrb[0].mxu0
    %v834 = vadd.f32 0.0, %v833
    %v835 = vpop.f32.mrb[0].mxu0
    %836 = vdwg.mxu0
    %v845 = vunpack.c.l.b16 %v281
    %v846 = vunpack.c.l.b16 %v282
    %v847 = vunpack.c.l.b16 %v283
    %v848 = vunpack.c.l.b16 %v284
    %v849 = vunpack.c.l.b16 %v285
    %v850 = vunpack.c.l.b16 %v286
    %v851 = vunpack.c.l.b16 %v287
    %v852 = vunpack.c.l.b16 %v288
    %v853 = vpack.c.b16 %v846, %v845
    %v854 = vpack.c.b16 %v848, %v847
    %v855 = vpack.c.b16 %v850, %v849
    %v856 = vpack.c.b16 %v852, %v851
    %v865 = vunpack.c.l.b16 %v345
    %v866 = vunpack.c.l.b16 %v346
    %v867 = vunpack.c.l.b16 %v347
    %v868 = vunpack.c.l.b16 %v348
    %v869 = vunpack.c.l.b16 %v349
    %v870 = vunpack.c.l.b16 %v350
    %v871 = vunpack.c.l.b16 %v351
    %v872 = vunpack.c.l.b16 %v352
    %v873 = vpack.c.b16 %v866, %v865
    %v874 = vpack.c.b16 %v868, %v867
    %v875 = vpack.c.b16 %v870, %v869
    %v876 = vpack.c.b16 %v872, %v871
    %v878 = vsel %vm489, %v853, 0
    %v881 = vsel %vm489, %v854, 0
    %v884 = vsel %vm489, %v855, 0
    %v887 = vsel %vm489, %v856, 0
    %v890 = vsel %vm489, %v873, 0
    %v893 = vsel %vm489, %v874, 0
    %v896 = vsel %vm489, %v875, 0
    %v899 = vsel %vm489, %v876, 0
    %901 = vmatprep.subr.bf16.mxu0 0
    %902 = vmatpush1.bf16.xpose.msra.mxu0 %v890
    %903 = vmatprep.subr.bf16.mxu0 0
    %904 = vmatpush1.bf16.xpose.msra.mxu0 %v893
    %905 = vmatprep.subr.bf16.mxu0 0
    %906 = vmatpush1.bf16.xpose.msra.mxu0 %v896
    %907 = vmatprep.subr.bf16.mxu0 0
    %908 = vmatpush1.bf16.xpose.msra.mxu0 %v899
    %909 = vmatprep.subr.bf16.mxu0 0
    %910 = vmatpush1.bf16.xpose.msra.mxu0 0
    %911 = vmatprep.subr.bf16.mxu0 0
    %912 = vmatpush1.bf16.xpose.msra.mxu0 0
    %913 = vmatprep.subr.bf16.mxu0 0
    %914 = vmatpush1.bf16.xpose.msra.mxu0 0
    %915 = vmatprep.subr.bf16.mxu0 0
    %916 = vmatpush1.bf16.xpose.msra.mxu0 0
    %917 = vmatprep.subr.bf16.mxu0 0
    %918 = vmatpush1.bf16.xpose.msra.mxu0 0
    %919 = vmatprep.subr.bf16.mxu0 0
    %920 = vmatpush1.bf16.xpose.msra.mxu0 0
    %921 = vmatprep.subr.bf16.mxu0 0
    %922 = vmatpush1.bf16.xpose.msra.mxu0 0
    %923 = vmatprep.subr.bf16.mxu0 0
    %924 = vmatpush1.bf16.xpose.msra.mxu0 0
    %925 = vmatprep.subr.bf16.mxu0 0
    %926 = vmatpush1.bf16.xpose.msra.mxu0 0
    %927 = vmatprep.subr.bf16.mxu0 0
    %928 = vmatpush1.bf16.xpose.msra.mxu0 0
    %929 = vmatprep.subr.bf16.mxu0 0
    %930 = vmatpush1.bf16.xpose.msra.mxu0 0
    %931 = vmatprep.subr.bf16.mxu0 0
    %932 = vmatpush1.bf16.xpose.msra.mxu0 0
    %933 = vmatprep.mubr.bf16.mxu0 0
    %934 = vmatmul.mubr.bf16.gmra.mrb[0].mxu0 %v878
    %v935 = vpop.f32.mrb[0].mxu0
    %v936 = vadd.f32 0.0, %v935
    %v937 = vpop.f32.mrb[0].mxu0
    %v938 = vpop.f32.mrb[0].mxu0
    %v939 = vadd.f32 0.0, %v938
    %v940 = vpop.f32.mrb[0].mxu0
    %941 = vmatprep.mubr.bf16.mxu0 0
    %942 = vmatmul.mubr.bf16.gmra.mrb[0].mxu0 %v881
    %v943 = vpop.f32.mrb[0].mxu0
    %v944 = vadd.f32 0.0, %v943
    %v945 = vpop.f32.mrb[0].mxu0
    %v946 = vpop.f32.mrb[0].mxu0
    %v947 = vadd.f32 0.0, %v946
    %v948 = vpop.f32.mrb[0].mxu0
    %949 = vmatprep.mubr.bf16.mxu0 0
    %950 = vmatmul.mubr.bf16.gmra.mrb[0].mxu0 %v884
    %v951 = vpop.f32.mrb[0].mxu0
    %v952 = vadd.f32 0.0, %v951
    %v953 = vpop.f32.mrb[0].mxu0
    %v954 = vpop.f32.mrb[0].mxu0
    %v955 = vadd.f32 0.0, %v954
    %v956 = vpop.f32.mrb[0].mxu0
    %957 = vmatprep.mubr.bf16.mxu0 0
    %958 = vmatmul.mubr.bf16.gmra.mrb[0].mxu0 %v887
    %v959 = vpop.f32.mrb[0].mxu0
    %v960 = vadd.f32 0.0, %v959
    %v961 = vpop.f32.mrb[0].mxu0
    %v962 = vpop.f32.mrb[0].mxu0
    %v963 = vadd.f32 0.0, %v962
    %v964 = vpop.f32.mrb[0].mxu0
    %965 = vdwg.mxu0
    %v974 = vunpack.c.l.b16 %v289
    %v975 = vunpack.c.l.b16 %v290
    %v976 = vunpack.c.l.b16 %v291
    %v977 = vunpack.c.l.b16 %v292
    %v978 = vunpack.c.l.b16 %v293
    %v979 = vunpack.c.l.b16 %v294
    %v980 = vunpack.c.l.b16 %v295
    %v981 = vunpack.c.l.b16 %v296
    %v982 = vpack.c.b16 %v975, %v974
    %v983 = vpack.c.b16 %v977, %v976
    %v984 = vpack.c.b16 %v979, %v978
    %v985 = vpack.c.b16 %v981, %v980
    %v994 = vunpack.c.l.b16 %v353
    %v995 = vunpack.c.l.b16 %v354
    %v996 = vunpack.c.l.b16 %v355
    %v997 = vunpack.c.l.b16 %v356
    %v998 = vunpack.c.l.b16 %v357
    %v999 = vunpack.c.l.b16 %v358
    %v1000 = vunpack.c.l.b16 %v359
    %v1001 = vunpack.c.l.b16 %v360
    %v1002 = vpack.c.b16 %v995, %v994
    %v1003 = vpack.c.b16 %v997, %v996
    %v1004 = vpack.c.b16 %v999, %v998
    %v1005 = vpack.c.b16 %v1001, %v1000
    %v1007 = vsel %vm489, %v982, 0
    %v1010 = vsel %vm489, %v983, 0
    %v1013 = vsel %vm489, %v984, 0
    %v1016 = vsel %vm489, %v985, 0
    %v1019 = vsel %vm489, %v1002, 0
    %v1022 = vsel %vm489, %v1003, 0
    %v1025 = vsel %vm489, %v1004, 0
    %v1028 = vsel %vm489, %v1005, 0
    %1030 = vmatprep.subr.bf16.mxu0 0
    %1031 = vmatpush1.bf16.xpose.msra.mxu0 %v1019
    %1032 = vmatprep.subr.bf16.mxu0 0
    %1033 = vmatpush1.bf16.xpose.msra.mxu0 %v1022
    %1034 = vmatprep.subr.bf16.mxu0 0
    %1035 = vmatpush1.bf16.xpose.msra.mxu0 %v1025
    %1036 = vmatprep.subr.bf16.mxu0 0
    %1037 = vmatpush1.bf16.xpose.msra.mxu0 %v1028
    %1038 = vmatprep.subr.bf16.mxu0 0
    %1039 = vmatpush1.bf16.xpose.msra.mxu0 0
    %1040 = vmatprep.subr.bf16.mxu0 0
    %1041 = vmatpush1.bf16.xpose.msra.mxu0 0
    %1042 = vmatprep.subr.bf16.mxu0 0
    %1043 = vmatpush1.bf16.xpose.msra.mxu0 0
    %1044 = vmatprep.subr.bf16.mxu0 0
    %1045 = vmatpush1.bf16.xpose.msra.mxu0 0
    %1046 = vmatprep.subr.bf16.mxu0 0
    %1047 = vmatpush1.bf16.xpose.msra.mxu0 0
    %1048 = vmatprep.subr.bf16.mxu0 0
    %1049 = vmatpush1.bf16.xpose.msra.mxu0 0
    %1050 = vmatprep.subr.bf16.mxu0 0
    %1051 = vmatpush1.bf16.xpose.msra.mxu0 0
    %1052 = vmatprep.subr.bf16.mxu0 0
    %1053 = vmatpush1.bf16.xpose.msra.mxu0 0
    %1054 = vmatprep.subr.bf16.mxu0 0
    %1055 = vmatpush1.bf16.xpose.msra.mxu0 0
    %1056 = vmatprep.subr.bf16.mxu0 0
    %1057 = vmatpush1.bf16.xpose.msra.mxu0 0
    %1058 = vmatprep.subr.bf16.mxu0 0
    %1059 = vmatpush1.bf16.xpose.msra.mxu0 0
    %1060 = vmatprep.subr.bf16.mxu0 0
    %1061 = vmatpush1.bf16.xpose.msra.mxu0 0
    %1062 = vmatprep.mubr.bf16.mxu0 0
    %1063 = vmatmul.mubr.bf16.gmra.mrb[0].mxu0 %v1007
    %v1064 = vpop.f32.mrb[0].mxu0
    %v1065 = vadd.f32 0.0, %v1064
    %v1066 = vpop.f32.mrb[0].mxu0
    %v1067 = vpop.f32.mrb[0].mxu0
    %v1068 = vadd.f32 0.0, %v1067
    %v1069 = vpop.f32.mrb[0].mxu0
    %1070 = vmatprep.mubr.bf16.mxu0 0
    %1071 = vmatmul.mubr.bf16.gmra.mrb[0].mxu0 %v1010
    %v1072 = vpop.f32.mrb[0].mxu0
    %v1073 = vadd.f32 0.0, %v1072
    %v1074 = vpop.f32.mrb[0].mxu0
    %v1075 = vpop.f32.mrb[0].mxu0
    %v1076 = vadd.f32 0.0, %v1075
    %v1077 = vpop.f32.mrb[0].mxu0
    %1078 = vmatprep.mubr.bf16.mxu0 0
    %1079 = vmatmul.mubr.bf16.gmra.mrb[0].mxu0 %v1013
    %v1080 = vpop.f32.mrb[0].mxu0
    %v1081 = vadd.f32 0.0, %v1080
    %v1082 = vpop.f32.mrb[0].mxu0
    %v1083 = vpop.f32.mrb[0].mxu0
    %v1084 = vadd.f32 0.0, %v1083
    %v1085 = vpop.f32.mrb[0].mxu0
    %1086 = vmatprep.mubr.bf16.mxu0 0
    %1087 = vmatmul.mubr.bf16.gmra.mrb[0].mxu0 %v1016
    %v1088 = vpop.f32.mrb[0].mxu0
    %v1089 = vadd.f32 0.0, %v1088
    %v1090 = vpop.f32.mrb[0].mxu0
    %v1091 = vpop.f32.mrb[0].mxu0
    %v1092 = vadd.f32 0.0, %v1091
    %v1093 = vpop.f32.mrb[0].mxu0
    %1094 = vdwg.mxu0
    %v1103 = vunpack.c.l.b16 %v297
    %v1104 = vunpack.c.l.b16 %v298
    %v1105 = vunpack.c.l.b16 %v299
    %v1106 = vunpack.c.l.b16 %v300
    %v1107 = vunpack.c.l.b16 %v301
    %v1108 = vunpack.c.l.b16 %v302
    %v1109 = vunpack.c.l.b16 %v303
    %v1110 = vunpack.c.l.b16 %v304
    %v1111 = vpack.c.b16 %v1104, %v1103
    %v1112 = vpack.c.b16 %v1106, %v1105
    %v1113 = vpack.c.b16 %v1108, %v1107
    %v1114 = vpack.c.b16 %v1110, %v1109
    %v1123 = vunpack.c.l.b16 %v361
    %v1124 = vunpack.c.l.b16 %v362
    %v1125 = vunpack.c.l.b16 %v363
    %v1126 = vunpack.c.l.b16 %v364
    %v1127 = vunpack.c.l.b16 %v365
    %v1128 = vunpack.c.l.b16 %v366
    %v1129 = vunpack.c.l.b16 %v367
    %v1130 = vunpack.c.l.b16 %v368
    %v1131 = vpack.c.b16 %v1124, %v1123
    %v1132 = vpack.c.b16 %v1126, %v1125
    %v1133 = vpack.c.b16 %v1128, %v1127
    %v1134 = vpack.c.b16 %v1130, %v1129
    %v1136 = vsel %vm489, %v1111, 0
    %v1139 = vsel %vm489, %v1112, 0
    %v1142 = vsel %vm489, %v1113, 0
    %v1145 = vsel %vm489, %v1114, 0
    %v1148 = vsel %vm489, %v1131, 0
    %v1151 = vsel %vm489, %v1132, 0
    %v1154 = vsel %vm489, %v1133, 0
    %v1157 = vsel %vm489, %v1134, 0
    %1159 = vmatprep.subr.bf16.mxu0 0
    %1160 = vmatpush1.bf16.xpose.msra.mxu0 %v1148
    %1161 = vmatprep.subr.bf16.mxu0 0
    %1162 = vmatpush1.bf16.xpose.msra.mxu0 %v1151
    %1163 = vmatprep.subr.bf16.mxu0 0
    %1164 = vmatpush1.bf16.xpose.msra.mxu0 %v1154
    %1165 = vmatprep.subr.bf16.mxu0 0
    %1166 = vmatpush1.bf16.xpose.msra.mxu0 %v1157
    %1167 = vmatprep.subr.bf16.mxu0 0
    %1168 = vmatpush1.bf16.xpose.msra.mxu0 0
    %1169 = vmatprep.subr.bf16.mxu0 0
    %1170 = vmatpush1.bf16.xpose.msra.mxu0 0
    %1171 = vmatprep.subr.bf16.mxu0 0
    %1172 = vmatpush1.bf16.xpose.msra.mxu0 0
    %1173 = vmatprep.subr.bf16.mxu0 0
    %1174 = vmatpush1.bf16.xpose.msra.mxu0 0
    %1175 = vmatprep.subr.bf16.mxu0 0
    %1176 = vmatpush1.bf16.xpose.msra.mxu0 0
    %1177 = vmatprep.subr.bf16.mxu0 0
    %1178 = vmatpush1.bf16.xpose.msra.mxu0 0
    %1179 = vmatprep.subr.bf16.mxu0 0
    %1180 = vmatpush1.bf16.xpose.msra.mxu0 0
    %1181 = vmatprep.subr.bf16.mxu0 0
    %1182 = vmatpush1.bf16.xpose.msra.mxu0 0
    %1183 = vmatprep.subr.bf16.mxu0 0
    %1184 = vmatpush1.bf16.xpose.msra.mxu0 0
    %1185 = vmatprep.subr.bf16.mxu0 0
    %1186 = vmatpush1.bf16.xpose.msra.mxu0 0
    %1187 = vmatprep.subr.bf16.mxu0 0
    %1188 = vmatpush1.bf16.xpose.msra.mxu0 0
    %1189 = vmatprep.subr.bf16.mxu0 0
    %1190 = vmatpush1.bf16.xpose.msra.mxu0 0
    %1191 = vmatprep.mubr.bf16.mxu0 0
    %1192 = vmatmul.mubr.bf16.gmra.mrb[0].mxu0 %v1136
    %v1193 = vpop.f32.mrb[0].mxu0
    %v1194 = vadd.f32 0.0, %v1193
    %v1195 = vpop.f32.mrb[0].mxu0
    %v1196 = vpop.f32.mrb[0].mxu0
    %v1197 = vadd.f32 0.0, %v1196
    %v1198 = vpop.f32.mrb[0].mxu0
    %1199 = vmatprep.mubr.bf16.mxu0 0
    %1200 = vmatmul.mubr.bf16.gmra.mrb[0].mxu0 %v1139
    %v1201 = vpop.f32.mrb[0].mxu0
    %v1202 = vadd.f32 0.0, %v1201
    %v1203 = vpop.f32.mrb[0].mxu0
    %v1204 = vpop.f32.mrb[0].mxu0
    %v1205 = vadd.f32 0.0, %v1204
    %v1206 = vpop.f32.mrb[0].mxu0
    %1207 = vmatprep.mubr.bf16.mxu0 0
    %1208 = vmatmul.mubr.bf16.gmra.mrb[0].mxu0 %v1142
    %v1209 = vpop.f32.mrb[0].mxu0
    %v1210 = vadd.f32 0.0, %v1209
    %v1211 = vpop.f32.mrb[0].mxu0
    %v1212 = vpop.f32.mrb[0].mxu0
    %v1213 = vadd.f32 0.0, %v1212
    %v1214 = vpop.f32.mrb[0].mxu0
    %1215 = vmatprep.mubr.bf16.mxu0 0
    %1216 = vmatmul.mubr.bf16.gmra.mrb[0].mxu0 %v1145
    %v1217 = vpop.f32.mrb[0].mxu0
    %v1218 = vadd.f32 0.0, %v1217
    %v1219 = vpop.f32.mrb[0].mxu0
    %v1220 = vpop.f32.mrb[0].mxu0
    %v1221 = vadd.f32 0.0, %v1220
    %v1222 = vpop.f32.mrb[0].mxu0
    %1223 = vdwg.mxu0
    %v1232 = vunpack.c.l.b16 %v305
    %v1233 = vunpack.c.l.b16 %v306
    %v1234 = vunpack.c.l.b16 %v307
    %v1235 = vunpack.c.l.b16 %v308
    %v1236 = vunpack.c.l.b16 %v309
    %v1237 = vunpack.c.l.b16 %v310
    %v1238 = vunpack.c.l.b16 %v311
    %v1239 = vunpack.c.l.b16 %v312
    %v1240 = vpack.c.b16 %v1233, %v1232
    %v1241 = vpack.c.b16 %v1235, %v1234
    %v1242 = vpack.c.b16 %v1237, %v1236
    %v1243 = vpack.c.b16 %v1239, %v1238
    %v1252 = vunpack.c.l.b16 %v369
    %v1253 = vunpack.c.l.b16 %v370
    %v1254 = vunpack.c.l.b16 %v371
    %v1255 = vunpack.c.l.b16 %v372
    %v1256 = vunpack.c.l.b16 %v373
    %v1257 = vunpack.c.l.b16 %v374
    %v1258 = vunpack.c.l.b16 %v375
    %v1259 = vunpack.c.l.b16 %v376
    %v1260 = vpack.c.b16 %v1253, %v1252
    %v1261 = vpack.c.b16 %v1255, %v1254
    %v1262 = vpack.c.b16 %v1257, %v1256
    %v1263 = vpack.c.b16 %v1259, %v1258
    %v1265 = vsel %vm489, %v1240, 0
    %v1268 = vsel %vm489, %v1241, 0
    %v1271 = vsel %vm489, %v1242, 0
    %v1274 = vsel %vm489, %v1243, 0
    %v1277 = vsel %vm489, %v1260, 0
    %v1280 = vsel %vm489, %v1261, 0
    %v1283 = vsel %vm489, %v1262, 0
    %v1286 = vsel %vm489, %v1263, 0
    %1288 = vmatprep.subr.bf16.mxu0 0
    %1289 = vmatpush1.bf16.xpose.msra.mxu0 %v1277
    %1290 = vmatprep.subr.bf16.mxu0 0
    %1291 = vmatpush1.bf16.xpose.msra.mxu0 %v1280
    %1292 = vmatprep.subr.bf16.mxu0 0
    %1293 = vmatpush1.bf16.xpose.msra.mxu0 %v1283
    %1294 = vmatprep.subr.bf16.mxu0 0
    %1295 = vmatpush1.bf16.xpose.msra.mxu0 %v1286
    %1296 = vmatprep.subr.bf16.mxu0 0
    %1297 = vmatpush1.bf16.xpose.msra.mxu0 0
    %1298 = vmatprep.subr.bf16.mxu0 0
    %1299 = vmatpush1.bf16.xpose.msra.mxu0 0
    %1300 = vmatprep.subr.bf16.mxu0 0
    %1301 = vmatpush1.bf16.xpose.msra.mxu0 0
    %1302 = vmatprep.subr.bf16.mxu0 0
    %1303 = vmatpush1.bf16.xpose.msra.mxu0 0
    %1304 = vmatprep.subr.bf16.mxu0 0
    %1305 = vmatpush1.bf16.xpose.msra.mxu0 0
    %1306 = vmatprep.subr.bf16.mxu0 0
    %1307 = vmatpush1.bf16.xpose.msra.mxu0 0
    %1308 = vmatprep.subr.bf16.mxu0 0
    %1309 = vmatpush1.bf16.xpose.msra.mxu0 0
    %1310 = vmatprep.subr.bf16.mxu0 0
    %1311 = vmatpush1.bf16.xpose.msra.mxu0 0
    %1312 = vmatprep.subr.bf16.mxu0 0
    %1313 = vmatpush1.bf16.xpose.msra.mxu0 0
    %1314 = vmatprep.subr.bf16.mxu0 0
    %1315 = vmatpush1.bf16.xpose.msra.mxu0 0
    %1316 = vmatprep.subr.bf16.mxu0 0
    %1317 = vmatpush1.bf16.xpose.msra.mxu0 0
    %1318 = vmatprep.subr.bf16.mxu0 0
    %1319 = vmatpush1.bf16.xpose.msra.mxu0 0
    %1320 = vmatprep.mubr.bf16.mxu0 0
    %1321 = vmatmul.mubr.bf16.gmra.mrb[0].mxu0 %v1265
    %v1322 = vpop.f32.mrb[0].mxu0
    %v1323 = vadd.f32 0.0, %v1322
    %v1324 = vpop.f32.mrb[0].mxu0
    %v1325 = vpop.f32.mrb[0].mxu0
    %v1326 = vadd.f32 0.0, %v1325
    %v1327 = vpop.f32.mrb[0].mxu0
    %1328 = vmatprep.mubr.bf16.mxu0 0
    %1329 = vmatmul.mubr.bf16.gmra.mrb[0].mxu0 %v1268
    %v1330 = vpop.f32.mrb[0].mxu0
    %v1331 = vadd.f32 0.0, %v1330
    %v1332 = vpop.f32.mrb[0].mxu0
    %v1333 = vpop.f32.mrb[0].mxu0
    %v1334 = vadd.f32 0.0, %v1333
    %v1335 = vpop.f32.mrb[0].mxu0
    %1336 = vmatprep.mubr.bf16.mxu0 0
    %1337 = vmatmul.mubr.bf16.gmra.mrb[0].mxu0 %v1271
    %v1338 = vpop.f32.mrb[0].mxu0
    %v1339 = vadd.f32 0.0, %v1338
    %v1340 = vpop.f32.mrb[0].mxu0
    %v1341 = vpop.f32.mrb[0].mxu0
    %v1342 = vadd.f32 0.0, %v1341
    %v1343 = vpop.f32.mrb[0].mxu0
    %1344 = vmatprep.mubr.bf16.mxu0 0
    %1345 = vmatmul.mubr.bf16.gmra.mrb[0].mxu0 %v1274
    %v1346 = vpop.f32.mrb[0].mxu0
    %v1347 = vadd.f32 0.0, %v1346
    %v1348 = vpop.f32.mrb[0].mxu0
    %v1349 = vpop.f32.mrb[0].mxu0
    %v1350 = vadd.f32 0.0, %v1349
    %v1351 = vpop.f32.mrb[0].mxu0
    %1352 = vdwg.mxu0
    %v1361 = vunpack.c.l.b16 %v313
    %v1362 = vunpack.c.l.b16 %v314
    %v1363 = vunpack.c.l.b16 %v315
    %v1364 = vunpack.c.l.b16 %v316
    %v1365 = vunpack.c.l.b16 %v317
    %v1366 = vunpack.c.l.b16 %v318
    %v1367 = vunpack.c.l.b16 %v319
    %v1368 = vunpack.c.l.b16 %v320
    %v1369 = vpack.c.b16 %v1362, %v1361
    %v1370 = vpack.c.b16 %v1364, %v1363
    %v1371 = vpack.c.b16 %v1366, %v1365
    %v1372 = vpack.c.b16 %v1368, %v1367
    %v1381 = vunpack.c.l.b16 %v377
    %v1382 = vunpack.c.l.b16 %v378
    %v1383 = vunpack.c.l.b16 %v379
    %v1384 = vunpack.c.l.b16 %v380
    %v1385 = vunpack.c.l.b16 %v381
    %v1386 = vunpack.c.l.b16 %v382
    %v1387 = vunpack.c.l.b16 %v383
    %v1388 = vunpack.c.l.b16 %v384
    %v1389 = vpack.c.b16 %v1382, %v1381
    %v1390 = vpack.c.b16 %v1384, %v1383
    %v1391 = vpack.c.b16 %v1386, %v1385
    %v1392 = vpack.c.b16 %v1388, %v1387
    %v1394 = vsel %vm489, %v1369, 0
    %v1397 = vsel %vm489, %v1370, 0
    %v1400 = vsel %vm489, %v1371, 0
    %v1403 = vsel %vm489, %v1372, 0
    %v1406 = vsel %vm489, %v1389, 0
    %v1409 = vsel %vm489, %v1390, 0
    %v1412 = vsel %vm489, %v1391, 0
    %v1415 = vsel %vm489, %v1392, 0
    %1417 = vmatprep.subr.bf16.mxu0 0
    %1418 = vmatpush1.bf16.xpose.msra.mxu0 %v1406
    %1419 = vmatprep.subr.bf16.mxu0 0
    %1420 = vmatpush1.bf16.xpose.msra.mxu0 %v1409
    %1421 = vmatprep.subr.bf16.mxu0 0
    %1422 = vmatpush1.bf16.xpose.msra.mxu0 %v1412
    %1423 = vmatprep.subr.bf16.mxu0 0
    %1424 = vmatpush1.bf16.xpose.msra.mxu0 %v1415
    %1425 = vmatprep.subr.bf16.mxu0 0
    %1426 = vmatpush1.bf16.xpose.msra.mxu0 0
    %1427 = vmatprep.subr.bf16.mxu0 0
    %1428 = vmatpush1.bf16.xpose.msra.mxu0 0
    %1429 = vmatprep.subr.bf16.mxu0 0
    %1430 = vmatpush1.bf16.xpose.msra.mxu0 0
    %1431 = vmatprep.subr.bf16.mxu0 0
    %1432 = vmatpush1.bf16.xpose.msra.mxu0 0
    %1433 = vmatprep.subr.bf16.mxu0 0
    %1434 = vmatpush1.bf16.xpose.msra.mxu0 0
    %1435 = vmatprep.subr.bf16.mxu0 0
    %1436 = vmatpush1.bf16.xpose.msra.mxu0 0
    %1437 = vmatprep.subr.bf16.mxu0 0
    %1438 = vmatpush1.bf16.xpose.msra.mxu0 0
    %1439 = vmatprep.subr.bf16.mxu0 0
    %1440 = vmatpush1.bf16.xpose.msra.mxu0 0
    %1441 = vmatprep.subr.bf16.mxu0 0
    %1442 = vmatpush1.bf16.xpose.msra.mxu0 0
    %1443 = vmatprep.subr.bf16.mxu0 0
    %1444 = vmatpush1.bf16.xpose.msra.mxu0 0
    %1445 = vmatprep.subr.bf16.mxu0 0
    %1446 = vmatpush1.bf16.xpose.msra.mxu0 0
    %1447 = vmatprep.subr.bf16.mxu0 0
    %1448 = vmatpush1.bf16.xpose.msra.mxu0 0
    %1449 = vmatprep.mubr.bf16.mxu0 0
    %1450 = vmatmul.mubr.bf16.gmra.mrb[0].mxu0 %v1394
    %v1451 = vpop.f32.mrb[0].mxu0
    %v1452 = vadd.f32 0.0, %v1451
    %v1453 = vpop.f32.mrb[0].mxu0
    %v1454 = vpop.f32.mrb[0].mxu0
    %v1455 = vadd.f32 0.0, %v1454
    %v1456 = vpop.f32.mrb[0].mxu0
    %1457 = vmatprep.mubr.bf16.mxu0 0
    %1458 = vmatmul.mubr.bf16.gmra.mrb[0].mxu0 %v1397
    %v1459 = vpop.f32.mrb[0].mxu0
    %v1460 = vadd.f32 0.0, %v1459
    %v1461 = vpop.f32.mrb[0].mxu0
    %v1462 = vpop.f32.mrb[0].mxu0
    %v1463 = vadd.f32 0.0, %v1462
    %v1464 = vpop.f32.mrb[0].mxu0
    %1465 = vmatprep.mubr.bf16.mxu0 0
    %1466 = vmatmul.mubr.bf16.gmra.mrb[0].mxu0 %v1400
    %v1467 = vpop.f32.mrb[0].mxu0
    %v1468 = vadd.f32 0.0, %v1467
    %v1469 = vpop.f32.mrb[0].mxu0
    %v1470 = vpop.f32.mrb[0].mxu0
    %v1471 = vadd.f32 0.0, %v1470
    %v1472 = vpop.f32.mrb[0].mxu0
    %1473 = vmatprep.mubr.bf16.mxu0 0
    %1474 = vmatmul.mubr.bf16.gmra.mrb[0].mxu0 %v1403
    %v1475 = vpop.f32.mrb[0].mxu0
    %v1476 = vadd.f32 0.0, %v1475
    %v1477 = vpop.f32.mrb[0].mxu0
    %v1478 = vpop.f32.mrb[0].mxu0
    %v1479 = vadd.f32 0.0, %v1478
    %v1480 = vpop.f32.mrb[0].mxu0
    %1481 = vdwg.mxu0
    %v1482 = vlaneseq
    %v1483 = vand.u32 %v1482, 127
    %s1484 = smul.u32 0, 64
    %v1485 = vstv %s1484
    %v1486 = vadd.s32 %v1483, %v1485
    %vm1487 = vcmp.lt.s32.totalorder %v1486, 8
    %v1488 = vsel %vm1487, %v549, -1e+30
    %v1489 = vsel %vm1487, %v552, -1e+30
    %v1490 = vsel %vm1487, %v557, -1e+30
    %v1491 = vsel %vm1487, %v560, -1e+30
    %v1492 = vsel %vm1487, %v565, -1e+30
    %v1493 = vsel %vm1487, %v568, -1e+30
    %v1494 = vsel %vm1487, %v573, -1e+30
    %v1495 = vsel %vm1487, %v576, -1e+30
    %v1496 = vsel %vm1487, %v678, -1e+30
    %v1497 = vsel %vm1487, %v681, -1e+30
    %v1498 = vsel %vm1487, %v686, -1e+30
    %v1499 = vsel %vm1487, %v689, -1e+30
    %v1500 = vsel %vm1487, %v694, -1e+30
    %v1501 = vsel %vm1487, %v697, -1e+30
    %v1502 = vsel %vm1487, %v702, -1e+30
    %v1503 = vsel %vm1487, %v705, -1e+30
    %v1504 = vsel %vm1487, %v807, -1e+30
    %v1505 = vsel %vm1487, %v810, -1e+30
    %v1506 = vsel %vm1487, %v815, -1e+30
    %v1507 = vsel %vm1487, %v818, -1e+30
    %v1508 = vsel %vm1487, %v823, -1e+30
    %v1509 = vsel %vm1487, %v826, -1e+30
    %v1510 = vsel %vm1487, %v831, -1e+30
    %v1511 = vsel %vm1487, %v834, -1e+30
    %v1512 = vsel %vm1487, %v936, -1e+30
    %v1513 = vsel %vm1487, %v939, -1e+30
    %v1514 = vsel %vm1487, %v944, -1e+30
    %v1515 = vsel %vm1487, %v947, -1e+30
    %v1516 = vsel %vm1487, %v952, -1e+30
    %v1517 = vsel %vm1487, %v955, -1e+30
    %v1518 = vsel %vm1487, %v960, -1e+30
    %v1519 = vsel %vm1487, %v963, -1e+30
    %v1520 = vsel %vm1487, %v1065, -1e+30
    %v1521 = vsel %vm1487, %v1068, -1e+30
    %v1522 = vsel %vm1487, %v1073, -1e+30
    %v1523 = vsel %vm1487, %v1076, -1e+30
    %v1524 = vsel %vm1487, %v1081, -1e+30
    %v1525 = vsel %vm1487, %v1084, -1e+30
    %v1526 = vsel %vm1487, %v1089, -1e+30
    %v1527 = vsel %vm1487, %v1092, -1e+30
    %v1528 = vsel %vm1487, %v1194, -1e+30
    %v1529 = vsel %vm1487, %v1197, -1e+30
    %v1530 = vsel %vm1487, %v1202, -1e+30
    %v1531 = vsel %vm1487, %v1205, -1e+30
    %v1532 = vsel %vm1487, %v1210, -1e+30
    %v1533 = vsel %vm1487, %v1213, -1e+30
    %v1534 = vsel %vm1487, %v1218, -1e+30
    %v1535 = vsel %vm1487, %v1221, -1e+30
    %v1536 = vsel %vm1487, %v1323, -1e+30
    %v1537 = vsel %vm1487, %v1326, -1e+30
    %v1538 = vsel %vm1487, %v1331, -1e+30
    %v1539 = vsel %vm1487, %v1334, -1e+30
    %v1540 = vsel %vm1487, %v1339, -1e+30
    %v1541 = vsel %vm1487, %v1342, -1e+30
    %v1542 = vsel %vm1487, %v1347, -1e+30
    %v1543 = vsel %vm1487, %v1350, -1e+30
    %v1544 = vsel %vm1487, %v1452, -1e+30
    %v1545 = vsel %vm1487, %v1455, -1e+30
    %v1546 = vsel %vm1487, %v1460, -1e+30
    %v1547 = vsel %vm1487, %v1463, -1e+30
    %v1548 = vsel %vm1487, %v1468, -1e+30
    %v1549 = vsel %vm1487, %v1471, -1e+30
    %v1550 = vsel %vm1487, %v1476, -1e+30
    %v1551 = vsel %vm1487, %v1479, -1e+30
    %v1552 = vld [vmem:[#allocation2] sm:$0xff]
    %v1553 = vld [vmem:[#allocation2 + $0x8] sm:$0xff]
    %v1554 = vld [vmem:[#allocation2 + $0x10] sm:$0xff]
    %v1555 = vld [vmem:[#allocation2 + $0x18] sm:$0xff]
    %v1556 = vld [vmem:[#allocation2 + $0x20] sm:$0xff]
    %v1557 = vld [vmem:[#allocation2 + $0x28] sm:$0xff]
    %v1558 = vld [vmem:[#allocation2 + $0x30] sm:$0xff]
    %v1559 = vld [vmem:[#allocation2 + $0x38] sm:$0xff]
    %v1560 = vld [vmem:[#allocation2 + $0x40] sm:$0xff]
    %v1561 = vld [vmem:[#allocation2 + $0x48] sm:$0xff]
    %v1562 = vld [vmem:[#allocation2 + $0x50] sm:$0xff]
    %v1563 = vld [vmem:[#allocation2 + $0x58] sm:$0xff]
    %v1564 = vld [vmem:[#allocation2 + $0x60] sm:$0xff]
    %v1565 = vld [vmem:[#allocation2 + $0x68] sm:$0xff]
    %v1566 = vld [vmem:[#allocation2 + $0x70] sm:$0xff]
    %v1567 = vld [vmem:[#allocation2 + $0x78] sm:$0xff]
    %v1568 = vld [vmem:[#allocation2 + $0x80] sm:$0xff]
    %v1569 = vld [vmem:[#allocation2 + $0x88] sm:$0xff]
    %v1570 = vld [vmem:[#allocation2 + $0x90] sm:$0xff]
    %v1571 = vld [vmem:[#allocation2 + $0x98] sm:$0xff]
    %v1572 = vld [vmem:[#allocation2 + $0xa0] sm:$0xff]
    %v1573 = vld [vmem:[#allocation2 + $0xa8] sm:$0xff]
    %v1574 = vld [vmem:[#allocation2 + $0xb0] sm:$0xff]
    %v1575 = vld [vmem:[#allocation2 + $0xb8] sm:$0xff]
    %v1576 = vld [vmem:[#allocation2 + $0xc0] sm:$0xff]
    %v1577 = vld [vmem:[#allocation2 + $0xc8] sm:$0xff]
    %v1578 = vld [vmem:[#allocation2 + $0xd0] sm:$0xff]
    %v1579 = vld [vmem:[#allocation2 + $0xd8] sm:$0xff]
    %v1580 = vld [vmem:[#allocation2 + $0xe0] sm:$0xff]
    %v1581 = vld [vmem:[#allocation2 + $0xe8] sm:$0xff]
    %v1582 = vld [vmem:[#allocation2 + $0xf0] sm:$0xff]
    %v1583 = vld [vmem:[#allocation2 + $0xf8] sm:$0xff]
    %v1584 = vld [vmem:[#allocation2 + $0x100] sm:$0xff]
    %v1585 = vld [vmem:[#allocation2 + $0x108] sm:$0xff]
    %v1586 = vld [vmem:[#allocation2 + $0x110] sm:$0xff]
    %v1587 = vld [vmem:[#allocation2 + $0x118] sm:$0xff]
    %v1588 = vld [vmem:[#allocation2 + $0x120] sm:$0xff]
    %v1589 = vld [vmem:[#allocation2 + $0x128] sm:$0xff]
    %v1590 = vld [vmem:[#allocation2 + $0x130] sm:$0xff]
    %v1591 = vld [vmem:[#allocation2 + $0x138] sm:$0xff]
    %v1592 = vld [vmem:[#allocation2 + $0x140] sm:$0xff]
    %v1593 = vld [vmem:[#allocation2 + $0x148] sm:$0xff]
    %v1594 = vld [vmem:[#allocation2 + $0x150] sm:$0xff]
    %v1595 = vld [vmem:[#allocation2 + $0x158] sm:$0xff]
    %v1596 = vld [vmem:[#allocation2 + $0x160] sm:$0xff]
    %v1597 = vld [vmem:[#allocation2 + $0x168] sm:$0xff]
    %v1598 = vld [vmem:[#allocation2 + $0x170] sm:$0xff]
    %v1599 = vld [vmem:[#allocation2 + $0x178] sm:$0xff]
    %v1600 = vld [vmem:[#allocation2 + $0x180] sm:$0xff]
    %v1601 = vld [vmem:[#allocation2 + $0x188] sm:$0xff]
    %v1602 = vld [vmem:[#allocation2 + $0x190] sm:$0xff]
    %v1603 = vld [vmem:[#allocation2 + $0x198] sm:$0xff]
    %v1604 = vld [vmem:[#allocation2 + $0x1a0] sm:$0xff]
    %v1605 = vld [vmem:[#allocation2 + $0x1a8] sm:$0xff]
    %v1606 = vld [vmem:[#allocation2 + $0x1b0] sm:$0xff]
    %v1607 = vld [vmem:[#allocation2 + $0x1b8] sm:$0xff]
    %v1608 = vld [vmem:[#allocation2 + $0x1c0] sm:$0xff]
    %v1609 = vld [vmem:[#allocation2 + $0x1c8] sm:$0xff]
    %v1610 = vld [vmem:[#allocation2 + $0x1d0] sm:$0xff]
    %v1611 = vld [vmem:[#allocation2 + $0x1d8] sm:$0xff]
    %v1612 = vld [vmem:[#allocation2 + $0x1e0] sm:$0xff]
    %v1613 = vld [vmem:[#allocation2 + $0x1e8] sm:$0xff]
    %v1614 = vld [vmem:[#allocation2 + $0x1f0] sm:$0xff]
    %v1615 = vld [vmem:[#allocation2 + $0x1f8] sm:$0xff]
    %vm1616 = vcmask 523264
    %v1617 = vsel %vm1616, %v1488, -inf
    %1618 = vmax.xlane.f32.xlu0 %v1617
    %v1619 = vpop.xlane.xlu0 %1618
    %v1620 = vsel %vm1616, %v1489, -inf
    %1621 = vmax.xlane.f32.xlu0 %v1620
    %v1622 = vpop.xlane.xlu0 %1621
    %v1623 = vsel %vm1616, %v1490, -inf
    %1624 = vmax.xlane.f32.xlu0 %v1623
    %v1625 = vpop.xlane.xlu0 %1624
    %v1626 = vsel %vm1616, %v1491, -inf
    %1627 = vmax.xlane.f32.xlu0 %v1626
    %v1628 = vpop.xlane.xlu0 %1627
    %v1629 = vsel %vm1616, %v1492, -inf
    %1630 = vmax.xlane.f32.xlu0 %v1629
    %v1631 = vpop.xlane.xlu0 %1630
    %v1632 = vsel %vm1616, %v1493, -inf
    %1633 = vmax.xlane.f32.xlu0 %v1632
    %v1634 = vpop.xlane.xlu0 %1633
    %v1635 = vsel %vm1616, %v1494, -inf
    %1636 = vmax.xlane.f32.xlu0 %v1635
    %v1637 = vpop.xlane.xlu0 %1636
    %v1638 = vsel %vm1616, %v1495, -inf
    %1639 = vmax.xlane.f32.xlu0 %v1638
    %v1640 = vpop.xlane.xlu0 %1639
    %v1641 = vsel %vm1616, %v1496, -inf
    %1642 = vmax.xlane.f32.xlu0 %v1641
    %v1643 = vpop.xlane.xlu0 %1642
    %v1644 = vsel %vm1616, %v1497, -inf
    %1645 = vmax.xlane.f32.xlu0 %v1644
    %v1646 = vpop.xlane.xlu0 %1645
    %v1647 = vsel %vm1616, %v1498, -inf
    %1648 = vmax.xlane.f32.xlu0 %v1647
    %v1649 = vpop.xlane.xlu0 %1648
    %v1650 = vsel %vm1616, %v1499, -inf
    %1651 = vmax.xlane.f32.xlu0 %v1650
    %v1652 = vpop.xlane.xlu0 %1651
    %v1653 = vsel %vm1616, %v1500, -inf
    %1654 = vmax.xlane.f32.xlu0 %v1653
    %v1655 = vpop.xlane.xlu0 %1654
    %v1656 = vsel %vm1616, %v1501, -inf
    %1657 = vmax.xlane.f32.xlu0 %v1656
    %v1658 = vpop.xlane.xlu0 %1657
    %v1659 = vsel %vm1616, %v1502, -inf
    %1660 = vmax.xlane.f32.xlu0 %v1659
    %v1661 = vpop.xlane.xlu0 %1660
    %v1662 = vsel %vm1616, %v1503, -inf
    %1663 = vmax.xlane.f32.xlu0 %v1662
    %v1664 = vpop.xlane.xlu0 %1663
    %v1665 = vsel %vm1616, %v1504, -inf
    %1666 = vmax.xlane.f32.xlu0 %v1665
    %v1667 = vpop.xlane.xlu0 %1666
    %v1668 = vsel %vm1616, %v1505, -inf
    %1669 = vmax.xlane.f32.xlu0 %v1668
    %v1670 = vpop.xlane.xlu0 %1669
    %v1671 = vsel %vm1616, %v1506, -inf
    %1672 = vmax.xlane.f32.xlu0 %v1671
    %v1673 = vpop.xlane.xlu0 %1672
    %v1674 = vsel %vm1616, %v1507, -inf
    %1675 = vmax.xlane.f32.xlu0 %v1674
    %v1676 = vpop.xlane.xlu0 %1675
    %v1677 = vsel %vm1616, %v1508, -inf
    %1678 = vmax.xlane.f32.xlu0 %v1677
    %v1679 = vpop.xlane.xlu0 %1678
    %v1680 = vsel %vm1616, %v1509, -inf
    %1681 = vmax.xlane.f32.xlu0 %v1680
    %v1682 = vpop.xlane.xlu0 %1681
    %v1683 = vsel %vm1616, %v1510, -inf
    %1684 = vmax.xlane.f32.xlu0 %v1683
    %v1685 = vpop.xlane.xlu0 %1684
    %v1686 = vsel %vm1616, %v1511, -inf
    %1687 = vmax.xlane.f32.xlu0 %v1686
    %v1688 = vpop.xlane.xlu0 %1687
    %v1689 = vsel %vm1616, %v1512, -inf
    %1690 = vmax.xlane.f32.xlu0 %v1689
    %v1691 = vpop.xlane.xlu0 %1690
    %v1692 = vsel %vm1616, %v1513, -inf
    %1693 = vmax.xlane.f32.xlu0 %v1692
    %v1694 = vpop.xlane.xlu0 %1693
    %v1695 = vsel %vm1616, %v1514, -inf
    %1696 = vmax.xlane.f32.xlu0 %v1695
    %v1697 = vpop.xlane.xlu0 %1696
    %v1698 = vsel %vm1616, %v1515, -inf
    %1699 = vmax.xlane.f32.xlu0 %v1698
    %v1700 = vpop.xlane.xlu0 %1699
    %v1701 = vsel %vm1616, %v1516, -inf
    %1702 = vmax.xlane.f32.xlu0 %v1701
    %v1703 = vpop.xlane.xlu0 %1702
    %v1704 = vsel %vm1616, %v1517, -inf
    %1705 = vmax.xlane.f32.xlu0 %v1704
    %v1706 = vpop.xlane.xlu0 %1705
    %v1707 = vsel %vm1616, %v1518, -inf
    %1708 = vmax.xlane.f32.xlu0 %v1707
    %v1709 = vpop.xlane.xlu0 %1708
    %v1710 = vsel %vm1616, %v1519, -inf
    %1711 = vmax.xlane.f32.xlu0 %v1710
    %v1712 = vpop.xlane.xlu0 %1711
    %v1713 = vsel %vm1616, %v1520, -inf
    %1714 = vmax.xlane.f32.xlu0 %v1713
    %v1715 = vpop.xlane.xlu0 %1714
    %v1716 = vsel %vm1616, %v1521, -inf
    %1717 = vmax.xlane.f32.xlu0 %v1716
    %v1718 = vpop.xlane.xlu0 %1717
    %v1719 = vsel %vm1616, %v1522, -inf
    %1720 = vmax.xlane.f32.xlu0 %v1719
    %v1721 = vpop.xlane.xlu0 %1720
    %v1722 = vsel %vm1616, %v1523, -inf
    %1723 = vmax.xlane.f32.xlu0 %v1722
    %v1724 = vpop.xlane.xlu0 %1723
    %v1725 = vsel %vm1616, %v1524, -inf
    %1726 = vmax.xlane.f32.xlu0 %v1725
    %v1727 = vpop.xlane.xlu0 %1726
    %v1728 = vsel %vm1616, %v1525, -inf
    %1729 = vmax.xlane.f32.xlu0 %v1728
    %v1730 = vpop.xlane.xlu0 %1729
    %v1731 = vsel %vm1616, %v1526, -inf
    %1732 = vmax.xlane.f32.xlu0 %v1731
    %v1733 = vpop.xlane.xlu0 %1732
    %v1734 = vsel %vm1616, %v1527, -inf
    %1735 = vmax.xlane.f32.xlu0 %v1734
    %v1736 = vpop.xlane.xlu0 %1735
    %v1737 = vsel %vm1616, %v1528, -inf
    %1738 = vmax.xlane.f32.xlu0 %v1737
    %v1739 = vpop.xlane.xlu0 %1738
    %v1740 = vsel %vm1616, %v1529, -inf
    %1741 = vmax.xlane.f32.xlu0 %v1740
    %v1742 = vpop.xlane.xlu0 %1741
    %v1743 = vsel %vm1616, %v1530, -inf
    %1744 = vmax.xlane.f32.xlu0 %v1743
    %v1745 = vpop.xlane.xlu0 %1744
    %v1746 = vsel %vm1616, %v1531, -inf
    %1747 = vmax.xlane.f32.xlu0 %v1746
    %v1748 = vpop.xlane.xlu0 %1747
    %v1749 = vsel %vm1616, %v1532, -inf
    %1750 = vmax.xlane.f32.xlu0 %v1749
    %v1751 = vpop.xlane.xlu0 %1750
    %v1752 = vsel %vm1616, %v1533, -inf
    %1753 = vmax.xlane.f32.xlu0 %v1752
    %v1754 = vpop.xlane.xlu0 %1753
    %v1755 = vsel %vm1616, %v1534, -inf
    %1756 = vmax.xlane.f32.xlu0 %v1755
    %v1757 = vpop.xlane.xlu0 %1756
    %v1758 = vsel %vm1616, %v1535, -inf
    %1759 = vmax.xlane.f32.xlu0 %v1758
    %v1760 = vpop.xlane.xlu0 %1759
    %v1761 = vsel %vm1616, %v1536, -inf
    %1762 = vmax.xlane.f32.xlu0 %v1761
    %v1763 = vpop.xlane.xlu0 %1762
    %v1764 = vsel %vm1616, %v1537, -inf
    %1765 = vmax.xlane.f32.xlu0 %v1764
    %v1766 = vpop.xlane.xlu0 %1765
    %v1767 = vsel %vm1616, %v1538, -inf
    %1768 = vmax.xlane.f32.xlu0 %v1767
    %v1769 = vpop.xlane.xlu0 %1768
    %v1770 = vsel %vm1616, %v1539, -inf
    %1771 = vmax.xlane.f32.xlu0 %v1770
    %v1772 = vpop.xlane.xlu0 %1771
    %v1773 = vsel %vm1616, %v1540, -inf
    %1774 = vmax.xlane.f32.xlu0 %v1773
    %v1775 = vpop.xlane.xlu0 %1774
    %v1776 = vsel %vm1616, %v1541, -inf
    %1777 = vmax.xlane.f32.xlu0 %v1776
    %v1778 = vpop.xlane.xlu0 %1777
    %v1779 = vsel %vm1616, %v1542, -inf
    %1780 = vmax.xlane.f32.xlu0 %v1779
    %v1781 = vpop.xlane.xlu0 %1780
    %v1782 = vsel %vm1616, %v1543, -inf
    %1783 = vmax.xlane.f32.xlu0 %v1782
    %v1784 = vpop.xlane.xlu0 %1783
    %v1785 = vsel %vm1616, %v1544, -inf
    %1786 = vmax.xlane.f32.xlu0 %v1785
    %v1787 = vpop.xlane.xlu0 %1786
    %v1788 = vsel %vm1616, %v1545, -inf
    %1789 = vmax.xlane.f32.xlu0 %v1788
    %v1790 = vpop.xlane.xlu0 %1789
    %v1791 = vsel %vm1616, %v1546, -inf
    %1792 = vmax.xlane.f32.xlu0 %v1791
    %v1793 = vpop.xlane.xlu0 %1792
    %v1794 = vsel %vm1616, %v1547, -inf
    %1795 = vmax.xlane.f32.xlu0 %v1794
    %v1796 = vpop.xlane.xlu0 %1795
    %v1797 = vsel %vm1616, %v1548, -inf
    %1798 = vmax.xlane.f32.xlu0 %v1797
    %v1799 = vpop.xlane.xlu0 %1798
    %v1800 = vsel %vm1616, %v1549, -inf
    %1801 = vmax.xlane.f32.xlu0 %v1800
    %v1802 = vpop.xlane.xlu0 %1801
    %v1803 = vsel %vm1616, %v1550, -inf
    %1804 = vmax.xlane.f32.xlu0 %v1803
    %v1805 = vpop.xlane.xlu0 %1804
    %v1806 = vsel %vm1616, %v1551, -inf
    %1807 = vmax.xlane.f32.xlu0 %v1806
    %v1808 = vpop.xlane.xlu0 %1807
    %v1809 = vmax.f32 %v1552, %v1619
    %v1810 = vmax.f32 %v1553, %v1622
    %v1811 = vmax.f32 %v1554, %v1625
    %v1812 = vmax.f32 %v1555, %v1628
    %v1813 = vmax.f32 %v1556, %v1631
    %v1814 = vmax.f32 %v1557, %v1634
    %v1815 = vmax.f32 %v1558, %v1637
    %v1816 = vmax.f32 %v1559, %v1640
    %v1817 = vmax.f32 %v1560, %v1643
    %v1818 = vmax.f32 %v1561, %v1646
    %v1819 = vmax.f32 %v1562, %v1649
    %v1820 = vmax.f32 %v1563, %v1652
    %v1821 = vmax.f32 %v1564, %v1655
    %v1822 = vmax.f32 %v1565, %v1658
    %v1823 = vmax.f32 %v1566, %v1661
    %v1824 = vmax.f32 %v1567, %v1664
    %v1825 = vmax.f32 %v1568, %v1667
    %v1826 = vmax.f32 %v1569, %v1670
    %v1827 = vmax.f32 %v1570, %v1673
    %v1828 = vmax.f32 %v1571, %v1676
    %v1829 = vmax.f32 %v1572, %v1679
    %v1830 = vmax.f32 %v1573, %v1682
    %v1831 = vmax.f32 %v1574, %v1685
    %v1832 = vmax.f32 %v1575, %v1688
    %v1833 = vmax.f32 %v1576, %v1691
    %v1834 = vmax.f32 %v1577, %v1694
    %v1835 = vmax.f32 %v1578, %v1697
    %v1836 = vmax.f32 %v1579, %v1700
    %v1837 = vmax.f32 %v1580, %v1703
    %v1838 = vmax.f32 %v1581, %v1706
    %v1839 = vmax.f32 %v1582, %v1709
    %v1840 = vmax.f32 %v1583, %v1712
    %v1841 = vmax.f32 %v1584, %v1715
    %v1842 = vmax.f32 %v1585, %v1718
    %v1843 = vmax.f32 %v1586, %v1721
    %v1844 = vmax.f32 %v1587, %v1724
    %v1845 = vmax.f32 %v1588, %v1727
    %v1846 = vmax.f32 %v1589, %v1730
    %v1847 = vmax.f32 %v1590, %v1733
    %v1848 = vmax.f32 %v1591, %v1736
    %v1849 = vmax.f32 %v1592, %v1739
    %v1850 = vmax.f32 %v1593, %v1742
    %v1851 = vmax.f32 %v1594, %v1745
    %v1852 = vmax.f32 %v1595, %v1748
    %v1853 = vmax.f32 %v1596, %v1751
    %v1854 = vmax.f32 %v1597, %v1754
    %v1855 = vmax.f32 %v1598, %v1757
    %v1856 = vmax.f32 %v1599, %v1760
    %v1857 = vmax.f32 %v1600, %v1763
    %v1858 = vmax.f32 %v1601, %v1766
    %v1859 = vmax.f32 %v1602, %v1769
    %v1860 = vmax.f32 %v1603, %v1772
    %v1861 = vmax.f32 %v1604, %v1775
    %v1862 = vmax.f32 %v1605, %v1778
    %v1863 = vmax.f32 %v1606, %v1781
    %v1864 = vmax.f32 %v1607, %v1784
    %v1865 = vmax.f32 %v1608, %v1787
    %v1866 = vmax.f32 %v1609, %v1790
    %v1867 = vmax.f32 %v1610, %v1793
    %v1868 = vmax.f32 %v1611, %v1796
    %v1869 = vmax.f32 %v1612, %v1799
    %v1870 = vmax.f32 %v1613, %v1802
    %v1871 = vmax.f32 %v1614, %v1805
    %v1872 = vmax.f32 %v1615, %v1808
    %v1873 = vsub.f32 %v1552, %v1809
    %v1874 = vsub.f32 %v1553, %v1810
    %v1875 = vsub.f32 %v1554, %v1811
    %v1876 = vsub.f32 %v1555, %v1812
    %v1877 = vsub.f32 %v1556, %v1813
    %v1878 = vsub.f32 %v1557, %v1814
    %v1879 = vsub.f32 %v1558, %v1815
    %v1880 = vsub.f32 %v1559, %v1816
    %v1881 = vsub.f32 %v1560, %v1817
    %v1882 = vsub.f32 %v1561, %v1818
    %v1883 = vsub.f32 %v1562, %v1819
    %v1884 = vsub.f32 %v1563, %v1820
    %v1885 = vsub.f32 %v1564, %v1821
    %v1886 = vsub.f32 %v1565, %v1822
    %v1887 = vsub.f32 %v1566, %v1823
    %v1888 = vsub.f32 %v1567, %v1824
    %v1889 = vsub.f32 %v1568, %v1825
    %v1890 = vsub.f32 %v1569, %v1826
    %v1891 = vsub.f32 %v1570, %v1827
    %v1892 = vsub.f32 %v1571, %v1828
    %v1893 = vsub.f32 %v1572, %v1829
    %v1894 = vsub.f32 %v1573, %v1830
    %v1895 = vsub.f32 %v1574, %v1831
    %v1896 = vsub.f32 %v1575, %v1832
    %v1897 = vsub.f32 %v1576, %v1833
    %v1898 = vsub.f32 %v1577, %v1834
    %v1899 = vsub.f32 %v1578, %v1835
    %v1900 = vsub.f32 %v1579, %v1836
    %v1901 = vsub.f32 %v1580, %v1837
    %v1902 = vsub.f32 %v1581, %v1838
    %v1903 = vsub.f32 %v1582, %v1839
    %v1904 = vsub.f32 %v1583, %v1840
    %v1905 = vsub.f32 %v1584, %v1841
    %v1906 = vsub.f32 %v1585, %v1842
    %v1907 = vsub.f32 %v1586, %v1843
    %v1908 = vsub.f32 %v1587, %v1844
    %v1909 = vsub.f32 %v1588, %v1845
    %v1910 = vsub.f32 %v1589, %v1846
    %v1911 = vsub.f32 %v1590, %v1847
    %v1912 = vsub.f32 %v1591, %v1848
    %v1913 = vsub.f32 %v1592, %v1849
    %v1914 = vsub.f32 %v1593, %v1850
    %v1915 = vsub.f32 %v1594, %v1851
    %v1916 = vsub.f32 %v1595, %v1852
    %v1917 = vsub.f32 %v1596, %v1853
    %v1918 = vsub.f32 %v1597, %v1854
    %v1919 = vsub.f32 %v1598, %v1855
    %v1920 = vsub.f32 %v1599, %v1856
    %v1921 = vsub.f32 %v1600, %v1857
    %v1922 = vsub.f32 %v1601, %v1858
    %v1923 = vsub.f32 %v1602, %v1859
    %v1924 = vsub.f32 %v1603, %v1860
    %v1925 = vsub.f32 %v1604, %v1861
    %v1926 = vsub.f32 %v1605, %v1862
    %v1927 = vsub.f32 %v1606, %v1863
    %v1928 = vsub.f32 %v1607, %v1864
    %v1929 = vsub.f32 %v1608, %v1865
    %v1930 = vsub.f32 %v1609, %v1866
    %v1931 = vsub.f32 %v1610, %v1867
    %v1932 = vsub.f32 %v1611, %v1868
    %v1933 = vsub.f32 %v1612, %v1869
    %v1934 = vsub.f32 %v1613, %v1870
    %v1935 = vsub.f32 %v1614, %v1871
    %v1936 = vsub.f32 %v1615, %v1872
    %v1937 = vmul.f32 %v1873, 1.442695
    %v1938 = vpow.pop %v1937
    %v1939 = vmul.f32 %v1874, 1.442695
    %v1940 = vpow.pop %v1939
    %v1941 = vmul.f32 %v1875, 1.442695
    %v1942 = vpow.pop %v1941
    %v1943 = vmul.f32 %v1876, 1.442695
    %v1944 = vpow.pop %v1943
    %v1945 = vmul.f32 %v1877, 1.442695
    %v1946 = vpow.pop %v1945
    %v1947 = vmul.f32 %v1878, 1.442695
    %v1948 = vpow.pop %v1947
    %v1949 = vmul.f32 %v1879, 1.442695
    %v1950 = vpow.pop %v1949
    %v1951 = vmul.f32 %v1880, 1.442695
    %v1952 = vpow.pop %v1951
    %v1953 = vmul.f32 %v1881, 1.442695
    %v1954 = vpow.pop %v1953
    %v1955 = vmul.f32 %v1882, 1.442695
    %v1956 = vpow.pop %v1955
    %v1957 = vmul.f32 %v1883, 1.442695
    %v1958 = vpow.pop %v1957
    %v1959 = vmul.f32 %v1884, 1.442695
    %v1960 = vpow.pop %v1959
    %v1961 = vmul.f32 %v1885, 1.442695
    %v1962 = vpow.pop %v1961
    %v1963 = vmul.f32 %v1886, 1.442695
    %v1964 = vpow.pop %v1963
    %v1965 = vmul.f32 %v1887, 1.442695
    %v1966 = vpow.pop %v1965
    %v1967 = vmul.f32 %v1888, 1.442695
    %v1968 = vpow.pop %v1967
    %v1969 = vmul.f32 %v1889, 1.442695
    %v1970 = vpow.pop %v1969
    %v1971 = vmul.f32 %v1890, 1.442695
    %v1972 = vpow.pop %v1971
    %v1973 = vmul.f32 %v1891, 1.442695
    %v1974 = vpow.pop %v1973
    %v1975 = vmul.f32 %v1892, 1.442695
    %v1976 = vpow.pop %v1975
    %v1977 = vmul.f32 %v1893, 1.442695
    %v1978 = vpow.pop %v1977
    %v1979 = vmul.f32 %v1894, 1.442695
    %v1980 = vpow.pop %v1979
    %v1981 = vmul.f32 %v1895, 1.442695
    %v1982 = vpow.pop %v1981
    %v1983 = vmul.f32 %v1896, 1.442695
    %v1984 = vpow.pop %v1983
    %v1985 = vmul.f32 %v1897, 1.442695
    %v1986 = vpow.pop %v1985
    %v1987 = vmul.f32 %v1898, 1.442695
    %v1988 = vpow.pop %v1987
    %v1989 = vmul.f32 %v1899, 1.442695
    %v1990 = vpow.pop %v1989
    %v1991 = vmul.f32 %v1900, 1.442695
    %v1992 = vpow.pop %v1991
    %v1993 = vmul.f32 %v1901, 1.442695
    %v1994 = vpow.pop %v1993
    %v1995 = vmul.f32 %v1902, 1.442695
    %v1996 = vpow.pop %v1995
    %v1997 = vmul.f32 %v1903, 1.442695
    %v1998 = vpow.pop %v1997
    %v1999 = vmul.f32 %v1904, 1.442695
    %v2000 = vpow.pop %v1999
    %v2001 = vmul.f32 %v1905, 1.442695
    %v2002 = vpow.pop %v2001
    %v2003 = vmul.f32 %v1906, 1.442695
    %v2004 = vpow.pop %v2003
    %v2005 = vmul.f32 %v1907, 1.442695
    %v2006 = vpow.pop %v2005
    %v2007 = vmul.f32 %v1908, 1.442695
    %v2008 = vpow.pop %v2007
    %v2009 = vmul.f32 %v1909, 1.442695
    %v2010 = vpow.pop %v2009
    %v2011 = vmul.f32 %v1910, 1.442695
    %v2012 = vpow.pop %v2011
    %v2013 = vmul.f32 %v1911, 1.442695
    %v2014 = vpow.pop %v2013
    %v2015 = vmul.f32 %v1912, 1.442695
    %v2016 = vpow.pop %v2015
    %v2017 = vmul.f32 %v1913, 1.442695
    %v2018 = vpow.pop %v2017
    %v2019 = vmul.f32 %v1914, 1.442695
    %v2020 = vpow.pop %v2019
    %v2021 = vmul.f32 %v1915, 1.442695
    %v2022 = vpow.pop %v2021
    %v2023 = vmul.f32 %v1916, 1.442695
    %v2024 = vpow.pop %v2023
    %v2025 = vmul.f32 %v1917, 1.442695
    %v2026 = vpow.pop %v2025
    %v2027 = vmul.f32 %v1918, 1.442695
    %v2028 = vpow.pop %v2027
    %v2029 = vmul.f32 %v1919, 1.442695
    %v2030 = vpow.pop %v2029
    %v2031 = vmul.f32 %v1920, 1.442695
    %v2032 = vpow.pop %v2031
    %v2033 = vmul.f32 %v1921, 1.442695
    %v2034 = vpow.pop %v2033
    %v2035 = vmul.f32 %v1922, 1.442695
    %v2036 = vpow.pop %v2035
    %v2037 = vmul.f32 %v1923, 1.442695
    %v2038 = vpow.pop %v2037
    %v2039 = vmul.f32 %v1924, 1.442695
    %v2040 = vpow.pop %v2039
    %v2041 = vmul.f32 %v1925, 1.442695
    %v2042 = vpow.pop %v2041
    %v2043 = vmul.f32 %v1926, 1.442695
    %v2044 = vpow.pop %v2043
    %v2045 = vmul.f32 %v1927, 1.442695
    %v2046 = vpow.pop %v2045
    %v2047 = vmul.f32 %v1928, 1.442695
    %v2048 = vpow.pop %v2047
    %v2049 = vmul.f32 %v1929, 1.442695
    %v2050 = vpow.pop %v2049
    %v2051 = vmul.f32 %v1930, 1.442695
    %v2052 = vpow.pop %v2051
    %v2053 = vmul.f32 %v1931, 1.442695
    %v2054 = vpow.pop %v2053
    %v2055 = vmul.f32 %v1932, 1.442695
    %v2056 = vpow.pop %v2055
    %v2057 = vmul.f32 %v1933, 1.442695
    %v2058 = vpow.pop %v2057
    %v2059 = vmul.f32 %v1934, 1.442695
    %v2060 = vpow.pop %v2059
    %v2061 = vmul.f32 %v1935, 1.442695
    %v2062 = vpow.pop %v2061
    %v2063 = vmul.f32 %v1936, 1.442695
    %v2064 = vpow.pop %v2063
    %2066 = vset.pattern.permute.xlu0 0
    %2067 = vperm.xlu0 %2066, %v1809
    %v2068 = vpop.permute.xlu0 %2067
    %2071 = vset.pattern.permute.xlu0 0
    %2072 = vperm.xlu0 %2071, %v1810
    %v2073 = vpop.permute.xlu0 %2072
    %2076 = vset.pattern.permute.xlu0 0
    %2077 = vperm.xlu0 %2076, %v1811
    %v2078 = vpop.permute.xlu0 %2077
    %2081 = vset.pattern.permute.xlu0 0
    %2082 = vperm.xlu0 %2081, %v1812
    %v2083 = vpop.permute.xlu0 %2082
    %2086 = vset.pattern.permute.xlu0 0
    %2087 = vperm.xlu0 %2086, %v1813
    %v2088 = vpop.permute.xlu0 %2087
    %2091 = vset.pattern.permute.xlu0 0
    %2092 = vperm.xlu0 %2091, %v1814
    %v2093 = vpop.permute.xlu0 %2092
    %2096 = vset.pattern.permute.xlu0 0
    %2097 = vperm.xlu0 %2096, %v1815
    %v2098 = vpop.permute.xlu0 %2097
    %2101 = vset.pattern.permute.xlu0 0
    %2102 = vperm.xlu0 %2101, %v1816
    %v2103 = vpop.permute.xlu0 %2102
    %2106 = vset.pattern.permute.xlu0 0
    %2107 = vperm.xlu0 %2106, %v1817
    %v2108 = vpop.permute.xlu0 %2107
    %2111 = vset.pattern.permute.xlu0 0
    %2112 = vperm.xlu0 %2111, %v1818
    %v2113 = vpop.permute.xlu0 %2112
    %2116 = vset.pattern.permute.xlu0 0
    %2117 = vperm.xlu0 %2116, %v1819
    %v2118 = vpop.permute.xlu0 %2117
    %2121 = vset.pattern.permute.xlu0 0
    %2122 = vperm.xlu0 %2121, %v1820
    %v2123 = vpop.permute.xlu0 %2122
    %2126 = vset.pattern.permute.xlu0 0
    %2127 = vperm.xlu0 %2126, %v1821
    %v2128 = vpop.permute.xlu0 %2127
    %2131 = vset.pattern.permute.xlu0 0
    %2132 = vperm.xlu0 %2131, %v1822
    %v2133 = vpop.permute.xlu0 %2132
    %2136 = vset.pattern.permute.xlu0 0
    %2137 = vperm.xlu0 %2136, %v1823
    %v2138 = vpop.permute.xlu0 %2137
    %2141 = vset.pattern.permute.xlu0 0
    %2142 = vperm.xlu0 %2141, %v1824
    %v2143 = vpop.permute.xlu0 %2142
    %2146 = vset.pattern.permute.xlu0 0
    %2147 = vperm.xlu0 %2146, %v1825
    %v2148 = vpop.permute.xlu0 %2147
    %2151 = vset.pattern.permute.xlu0 0
    %2152 = vperm.xlu0 %2151, %v1826
    %v2153 = vpop.permute.xlu0 %2152
    %2156 = vset.pattern.permute.xlu0 0
    %2157 = vperm.xlu0 %2156, %v1827
    %v2158 = vpop.permute.xlu0 %2157
    %2161 = vset.pattern.permute.xlu0 0
    %2162 = vperm.xlu0 %2161, %v1828
    %v2163 = vpop.permute.xlu0 %2162
    %2166 = vset.pattern.permute.xlu0 0
    %2167 = vperm.xlu0 %2166, %v1829
    %v2168 = vpop.permute.xlu0 %2167
    %2171 = vset.pattern.permute.xlu0 0
    %2172 = vperm.xlu0 %2171, %v1830
    %v2173 = vpop.permute.xlu0 %2172
    %2176 = vset.pattern.permute.xlu0 0
    %2177 = vperm.xlu0 %2176, %v1831
    %v2178 = vpop.permute.xlu0 %2177
    %2181 = vset.pattern.permute.xlu0 0
    %2182 = vperm.xlu0 %2181, %v1832
    %v2183 = vpop.permute.xlu0 %2182
    %2186 = vset.pattern.permute.xlu0 0
    %2187 = vperm.xlu0 %2186, %v1833
    %v2188 = vpop.permute.xlu0 %2187
    %2191 = vset.pattern.permute.xlu0 0
    %2192 = vperm.xlu0 %2191, %v1834
    %v2193 = vpop.permute.xlu0 %2192
    %2196 = vset.pattern.permute.xlu0 0
    %2197 = vperm.xlu0 %2196, %v1835
    %v2198 = vpop.permute.xlu0 %2197
    %2201 = vset.pattern.permute.xlu0 0
    %2202 = vperm.xlu0 %2201, %v1836
    %v2203 = vpop.permute.xlu0 %2202
    %2206 = vset.pattern.permute.xlu0 0
    %2207 = vperm.xlu0 %2206, %v1837
    %v2208 = vpop.permute.xlu0 %2207
    %2211 = vset.pattern.permute.xlu0 0
    %2212 = vperm.xlu0 %2211, %v1838
    %v2213 = vpop.permute.xlu0 %2212
    %2216 = vset.pattern.permute.xlu0 0
    %2217 = vperm.xlu0 %2216, %v1839
    %v2218 = vpop.permute.xlu0 %2217
    %2221 = vset.pattern.permute.xlu0 0
    %2222 = vperm.xlu0 %2221, %v1840
    %v2223 = vpop.permute.xlu0 %2222
    %2226 = vset.pattern.permute.xlu0 0
    %2227 = vperm.xlu0 %2226, %v1841
    %v2228 = vpop.permute.xlu0 %2227
    %2231 = vset.pattern.permute.xlu0 0
    %2232 = vperm.xlu0 %2231, %v1842
    %v2233 = vpop.permute.xlu0 %2232
    %2236 = vset.pattern.permute.xlu0 0
    %2237 = vperm.xlu0 %2236, %v1843
    %v2238 = vpop.permute.xlu0 %2237
    %2241 = vset.pattern.permute.xlu0 0
    %2242 = vperm.xlu0 %2241, %v1844
    %v2243 = vpop.permute.xlu0 %2242
    %2246 = vset.pattern.permute.xlu0 0
    %2247 = vperm.xlu0 %2246, %v1845
    %v2248 = vpop.permute.xlu0 %2247
    %2251 = vset.pattern.permute.xlu0 0
    %2252 = vperm.xlu0 %2251, %v1846
    %v2253 = vpop.permute.xlu0 %2252
    %2256 = vset.pattern.permute.xlu0 0
    %2257 = vperm.xlu0 %2256, %v1847
    %v2258 = vpop.permute.xlu0 %2257
    %2261 = vset.pattern.permute.xlu0 0
    %2262 = vperm.xlu0 %2261, %v1848
    %v2263 = vpop.permute.xlu0 %2262
    %2266 = vset.pattern.permute.xlu0 0
    %2267 = vperm.xlu0 %2266, %v1849
    %v2268 = vpop.permute.xlu0 %2267
    %2271 = vset.pattern.permute.xlu0 0
    %2272 = vperm.xlu0 %2271, %v1850
    %v2273 = vpop.permute.xlu0 %2272
    %2276 = vset.pattern.permute.xlu0 0
    %2277 = vperm.xlu0 %2276, %v1851
    %v2278 = vpop.permute.xlu0 %2277
    %2281 = vset.pattern.permute.xlu0 0
    %2282 = vperm.xlu0 %2281, %v1852
    %v2283 = vpop.permute.xlu0 %2282
    %2286 = vset.pattern.permute.xlu0 0
    %2287 = vperm.xlu0 %2286, %v1853
    %v2288 = vpop.permute.xlu0 %2287
    %2291 = vset.pattern.permute.xlu0 0
    %2292 = vperm.xlu0 %2291, %v1854
    %v2293 = vpop.permute.xlu0 %2292
    %2296 = vset.pattern.permute.xlu0 0
    %2297 = vperm.xlu0 %2296, %v1855
    %v2298 = vpop.permute.xlu0 %2297
    %2301 = vset.pattern.permute.xlu0 0
    %2302 = vperm.xlu0 %2301, %v1856
    %v2303 = vpop.permute.xlu0 %2302
    %2306 = vset.pattern.permute.xlu0 0
    %2307 = vperm.xlu0 %2306, %v1857
    %v2308 = vpop.permute.xlu0 %2307
    %2311 = vset.pattern.permute.xlu0 0
    %2312 = vperm.xlu0 %2311, %v1858
    %v2313 = vpop.permute.xlu0 %2312
    %2316 = vset.pattern.permute.xlu0 0
    %2317 = vperm.xlu0 %2316, %v1859
    %v2318 = vpop.permute.xlu0 %2317
    %2321 = vset.pattern.permute.xlu0 0
    %2322 = vperm.xlu0 %2321, %v1860
    %v2323 = vpop.permute.xlu0 %2322
    %2326 = vset.pattern.permute.xlu0 0
    %2327 = vperm.xlu0 %2326, %v1861
    %v2328 = vpop.permute.xlu0 %2327
    %2331 = vset.pattern.permute.xlu0 0
    %2332 = vperm.xlu0 %2331, %v1862
    %v2333 = vpop.permute.xlu0 %2332
    %2336 = vset.pattern.permute.xlu0 0
    %2337 = vperm.xlu0 %2336, %v1863
    %v2338 = vpop.permute.xlu0 %2337
    %2341 = vset.pattern.permute.xlu0 0
    %2342 = vperm.xlu0 %2341, %v1864
    %v2343 = vpop.permute.xlu0 %2342
    %2346 = vset.pattern.permute.xlu0 0
    %2347 = vperm.xlu0 %2346, %v1865
    %v2348 = vpop.permute.xlu0 %2347
    %2351 = vset.pattern.permute.xlu0 0
    %2352 = vperm.xlu0 %2351, %v1866
    %v2353 = vpop.permute.xlu0 %2352
    %2356 = vset.pattern.permute.xlu0 0
    %2357 = vperm.xlu0 %2356, %v1867
    %v2358 = vpop.permute.xlu0 %2357
    %2361 = vset.pattern.permute.xlu0 0
    %2362 = vperm.xlu0 %2361, %v1868
    %v2363 = vpop.permute.xlu0 %2362
    %2366 = vset.pattern.permute.xlu0 0
    %2367 = vperm.xlu0 %2366, %v1869
    %v2368 = vpop.permute.xlu0 %2367
    %2371 = vset.pattern.permute.xlu0 0
    %2372 = vperm.xlu0 %2371, %v1870
    %v2373 = vpop.permute.xlu0 %2372
    %2376 = vset.pattern.permute.xlu0 0
    %2377 = vperm.xlu0 %2376, %v1871
    %v2378 = vpop.permute.xlu0 %2377
    %2381 = vset.pattern.permute.xlu0 0
    %2382 = vperm.xlu0 %2381, %v1872
    %v2383 = vpop.permute.xlu0 %2382
    %v2385 = vsub.f32 %v1488, %v2068
    %v2386 = vsub.f32 %v1489, %v2073
    %v2387 = vsub.f32 %v1490, %v2078
    %v2388 = vsub.f32 %v1491, %v2083
    %v2389 = vsub.f32 %v1492, %v2088
    %v2390 = vsub.f32 %v1493, %v2093
    %v2391 = vsub.f32 %v1494, %v2098
    %v2392 = vsub.f32 %v1495, %v2103
    %v2393 = vsub.f32 %v1496, %v2108
    %v2394 = vsub.f32 %v1497, %v2113
    %v2395 = vsub.f32 %v1498, %v2118
    %v2396 = vsub.f32 %v1499, %v2123
    %v2397 = vsub.f32 %v1500, %v2128
    %v2398 = vsub.f32 %v1501, %v2133
    %v2399 = vsub.f32 %v1502, %v2138
    %v2400 = vsub.f32 %v1503, %v2143
    %v2401 = vsub.f32 %v1504, %v2148
    %v2402 = vsub.f32 %v1505, %v2153
    %v2403 = vsub.f32 %v1506, %v2158
    %v2404 = vsub.f32 %v1507, %v2163
    %v2405 = vsub.f32 %v1508, %v2168
    %v2406 = vsub.f32 %v1509, %v2173
    %v2407 = vsub.f32 %v1510, %v2178
    %v2408 = vsub.f32 %v1511, %v2183
    %v2409 = vsub.f32 %v1512, %v2188
    %v2410 = vsub.f32 %v1513, %v2193
    %v2411 = vsub.f32 %v1514, %v2198
    %v2412 = vsub.f32 %v1515, %v2203
    %v2413 = vsub.f32 %v1516, %v2208
    %v2414 = vsub.f32 %v1517, %v2213
    %v2415 = vsub.f32 %v1518, %v2218
    %v2416 = vsub.f32 %v1519, %v2223
    %v2417 = vsub.f32 %v1520, %v2228
    %v2418 = vsub.f32 %v1521, %v2233
    %v2419 = vsub.f32 %v1522, %v2238
    %v2420 = vsub.f32 %v1523, %v2243
    %v2421 = vsub.f32 %v1524, %v2248
    %v2422 = vsub.f32 %v1525, %v2253
    %v2423 = vsub.f32 %v1526, %v2258
    %v2424 = vsub.f32 %v1527, %v2263
    %v2425 = vsub.f32 %v1528, %v2268
    %v2426 = vsub.f32 %v1529, %v2273
    %v2427 = vsub.f32 %v1530, %v2278
    %v2428 = vsub.f32 %v1531, %v2283
    %v2429 = vsub.f32 %v1532, %v2288
    %v2430 = vsub.f32 %v1533, %v2293
    %v2431 = vsub.f32 %v1534, %v2298
    %v2432 = vsub.f32 %v1535, %v2303
    %v2433 = vsub.f32 %v1536, %v2308
    %v2434 = vsub.f32 %v1537, %v2313
    %v2435 = vsub.f32 %v1538, %v2318
    %v2436 = vsub.f32 %v1539, %v2323
    %v2437 = vsub.f32 %v1540, %v2328
    %v2438 = vsub.f32 %v1541, %v2333
    %v2439 = vsub.f32 %v1542, %v2338
    %v2440 = vsub.f32 %v1543, %v2343
    %v2441 = vsub.f32 %v1544, %v2348
    %v2442 = vsub.f32 %v1545, %v2353
    %v2443 = vsub.f32 %v1546, %v2358
    %v2444 = vsub.f32 %v1547, %v2363
    %v2445 = vsub.f32 %v1548, %v2368
    %v2446 = vsub.f32 %v1549, %v2373
    %v2447 = vsub.f32 %v1550, %v2378
    %v2448 = vsub.f32 %v1551, %v2383
    %v2449 = vmul.f32 %v2385, 1.442695
    %v2450 = vpow.pop %v2449
    %v2451 = vmul.f32 %v2386, 1.442695
    %v2452 = vpow.pop %v2451
    %v2453 = vmul.f32 %v2387, 1.442695
    %v2454 = vpow.pop %v2453
    %v2455 = vmul.f32 %v2388, 1.442695
    %v2456 = vpow.pop %v2455
    %v2457 = vmul.f32 %v2389, 1.442695
    %v2458 = vpow.pop %v2457
    %v2459 = vmul.f32 %v2390, 1.442695
    %v2460 = vpow.pop %v2459
    %v2461 = vmul.f32 %v2391, 1.442695
    %v2462 = vpow.pop %v2461
    %v2463 = vmul.f32 %v2392, 1.442695
    %v2464 = vpow.pop %v2463
    %v2465 = vmul.f32 %v2393, 1.442695
    %v2466 = vpow.pop %v2465
    %v2467 = vmul.f32 %v2394, 1.442695
    %v2468 = vpow.pop %v2467
    %v2469 = vmul.f32 %v2395, 1.442695
    %v2470 = vpow.pop %v2469
    %v2471 = vmul.f32 %v2396, 1.442695
    %v2472 = vpow.pop %v2471
    %v2473 = vmul.f32 %v2397, 1.442695
    %v2474 = vpow.pop %v2473
    %v2475 = vmul.f32 %v2398, 1.442695
    %v2476 = vpow.pop %v2475
    %v2477 = vmul.f32 %v2399, 1.442695
    %v2478 = vpow.pop %v2477
    %v2479 = vmul.f32 %v2400, 1.442695
    %v2480 = vpow.pop %v2479
    %v2481 = vmul.f32 %v2401, 1.442695
    %v2482 = vpow.pop %v2481
    %v2483 = vmul.f32 %v2402, 1.442695
    %v2484 = vpow.pop %v2483
    %v2485 = vmul.f32 %v2403, 1.442695
    %v2486 = vpow.pop %v2485
    %v2487 = vmul.f32 %v2404, 1.442695
    %v2488 = vpow.pop %v2487
    %v2489 = vmul.f32 %v2405, 1.442695
    %v2490 = vpow.pop %v2489
    %v2491 = vmul.f32 %v2406, 1.442695
    %v2492 = vpow.pop %v2491
    %v2493 = vmul.f32 %v2407, 1.442695
    %v2494 = vpow.pop %v2493
    %v2495 = vmul.f32 %v2408, 1.442695
    %v2496 = vpow.pop %v2495
    %v2497 = vmul.f32 %v2409, 1.442695
    %v2498 = vpow.pop %v2497
    %v2499 = vmul.f32 %v2410, 1.442695
    %v2500 = vpow.pop %v2499
    %v2501 = vmul.f32 %v2411, 1.442695
    %v2502 = vpow.pop %v2501
    %v2503 = vmul.f32 %v2412, 1.442695
    %v2504 = vpow.pop %v2503
    %v2505 = vmul.f32 %v2413, 1.442695
    %v2506 = vpow.pop %v2505
    %v2507 = vmul.f32 %v2414, 1.442695
    %v2508 = vpow.pop %v2507
    %v2509 = vmul.f32 %v2415, 1.442695
    %v2510 = vpow.pop %v2509
    %v2511 = vmul.f32 %v2416, 1.442695
    %v2512 = vpow.pop %v2511
    %v2513 = vmul.f32 %v2417, 1.442695
    %v2514 = vpow.pop %v2513
    %v2515 = vmul.f32 %v2418, 1.442695
    %v2516 = vpow.pop %v2515
    %v2517 = vmul.f32 %v2419, 1.442695
    %v2518 = vpow.pop %v2517
    %v2519 = vmul.f32 %v2420, 1.442695
    %v2520 = vpow.pop %v2519
    %v2521 = vmul.f32 %v2421, 1.442695
    %v2522 = vpow.pop %v2521
    %v2523 = vmul.f32 %v2422, 1.442695
    %v2524 = vpow.pop %v2523
    %v2525 = vmul.f32 %v2423, 1.442695
    %v2526 = vpow.pop %v2525
    %v2527 = vmul.f32 %v2424, 1.442695
    %v2528 = vpow.pop %v2527
    %v2529 = vmul.f32 %v2425, 1.442695
    %v2530 = vpow.pop %v2529
    %v2531 = vmul.f32 %v2426, 1.442695
    %v2532 = vpow.pop %v2531
    %v2533 = vmul.f32 %v2427, 1.442695
    %v2534 = vpow.pop %v2533
    %v2535 = vmul.f32 %v2428, 1.442695
    %v2536 = vpow.pop %v2535
    %v2537 = vmul.f32 %v2429, 1.442695
    %v2538 = vpow.pop %v2537
    %v2539 = vmul.f32 %v2430, 1.442695
    %v2540 = vpow.pop %v2539
    %v2541 = vmul.f32 %v2431, 1.442695
    %v2542 = vpow.pop %v2541
    %v2543 = vmul.f32 %v2432, 1.442695
    %v2544 = vpow.pop %v2543
    %v2545 = vmul.f32 %v2433, 1.442695
    %v2546 = vpow.pop %v2545
    %v2547 = vmul.f32 %v2434, 1.442695
    %v2548 = vpow.pop %v2547
    %v2549 = vmul.f32 %v2435, 1.442695
    %v2550 = vpow.pop %v2549
    %v2551 = vmul.f32 %v2436, 1.442695
    %v2552 = vpow.pop %v2551
    %v2553 = vmul.f32 %v2437, 1.442695
    %v2554 = vpow.pop %v2553
    %v2555 = vmul.f32 %v2438, 1.442695
    %v2556 = vpow.pop %v2555
    %v2557 = vmul.f32 %v2439, 1.442695
    %v2558 = vpow.pop %v2557
    %v2559 = vmul.f32 %v2440, 1.442695
    %v2560 = vpow.pop %v2559
    %v2561 = vmul.f32 %v2441, 1.442695
    %v2562 = vpow.pop %v2561
    %v2563 = vmul.f32 %v2442, 1.442695
    %v2564 = vpow.pop %v2563
    %v2565 = vmul.f32 %v2443, 1.442695
    %v2566 = vpow.pop %v2565
    %v2567 = vmul.f32 %v2444, 1.442695
    %v2568 = vpow.pop %v2567
    %v2569 = vmul.f32 %v2445, 1.442695
    %v2570 = vpow.pop %v2569
    %v2571 = vmul.f32 %v2446, 1.442695
    %v2572 = vpow.pop %v2571
    %v2573 = vmul.f32 %v2447, 1.442695
    %v2574 = vpow.pop %v2573
    %v2575 = vmul.f32 %v2448, 1.442695
    %v2576 = vpow.pop %v2575
    %v2577 = vld [vmem:[#allocation3] sm:$0xff]
    %v2578 = vld [vmem:[#allocation3 + $0x8] sm:$0xff]
    %v2579 = vld [vmem:[#allocation3 + $0x10] sm:$0xff]
    %v2580 = vld [vmem:[#allocation3 + $0x18] sm:$0xff]
    %v2581 = vld [vmem:[#allocation3 + $0x20] sm:$0xff]
    %v2582 = vld [vmem:[#allocation3 + $0x28] sm:$0xff]
    %v2583 = vld [vmem:[#allocation3 + $0x30] sm:$0xff]
    %v2584 = vld [vmem:[#allocation3 + $0x38] sm:$0xff]
    %v2585 = vld [vmem:[#allocation3 + $0x40] sm:$0xff]
    %v2586 = vld [vmem:[#allocation3 + $0x48] sm:$0xff]
    %v2587 = vld [vmem:[#allocation3 + $0x50] sm:$0xff]
    %v2588 = vld [vmem:[#allocation3 + $0x58] sm:$0xff]
    %v2589 = vld [vmem:[#allocation3 + $0x60] sm:$0xff]
    %v2590 = vld [vmem:[#allocation3 + $0x68] sm:$0xff]
    %v2591 = vld [vmem:[#allocation3 + $0x70] sm:$0xff]
    %v2592 = vld [vmem:[#allocation3 + $0x78] sm:$0xff]
    %v2593 = vld [vmem:[#allocation3 + $0x80] sm:$0xff]
    %v2594 = vld [vmem:[#allocation3 + $0x88] sm:$0xff]
    %v2595 = vld [vmem:[#allocation3 + $0x90] sm:$0xff]
    %v2596 = vld [vmem:[#allocation3 + $0x98] sm:$0xff]
    %v2597 = vld [vmem:[#allocation3 + $0xa0] sm:$0xff]
    %v2598 = vld [vmem:[#allocation3 + $0xa8] sm:$0xff]
    %v2599 = vld [vmem:[#allocation3 + $0xb0] sm:$0xff]
    %v2600 = vld [vmem:[#allocation3 + $0xb8] sm:$0xff]
    %v2601 = vld [vmem:[#allocation3 + $0xc0] sm:$0xff]
    %v2602 = vld [vmem:[#allocation3 + $0xc8] sm:$0xff]
    %v2603 = vld [vmem:[#allocation3 + $0xd0] sm:$0xff]
    %v2604 = vld [vmem:[#allocation3 + $0xd8] sm:$0xff]
    %v2605 = vld [vmem:[#allocation3 + $0xe0] sm:$0xff]
    %v2606 = vld [vmem:[#allocation3 + $0xe8] sm:$0xff]
    %v2607 = vld [vmem:[#allocation3 + $0xf0] sm:$0xff]
    %v2608 = vld [vmem:[#allocation3 + $0xf8] sm:$0xff]
    %v2609 = vld [vmem:[#allocation3 + $0x100] sm:$0xff]
    %v2610 = vld [vmem:[#allocation3 + $0x108] sm:$0xff]
    %v2611 = vld [vmem:[#allocation3 + $0x110] sm:$0xff]
    %v2612 = vld [vmem:[#allocation3 + $0x118] sm:$0xff]
    %v2613 = vld [vmem:[#allocation3 + $0x120] sm:$0xff]
    %v2614 = vld [vmem:[#allocation3 + $0x128] sm:$0xff]
    %v2615 = vld [vmem:[#allocation3 + $0x130] sm:$0xff]
    %v2616 = vld [vmem:[#allocation3 + $0x138] sm:$0xff]
    %v2617 = vld [vmem:[#allocation3 + $0x140] sm:$0xff]
    %v2618 = vld [vmem:[#allocation3 + $0x148] sm:$0xff]
    %v2619 = vld [vmem:[#allocation3 + $0x150] sm:$0xff]
    %v2620 = vld [vmem:[#allocation3 + $0x158] sm:$0xff]
    %v2621 = vld [vmem:[#allocation3 + $0x160] sm:$0xff]
    %v2622 = vld [vmem:[#allocation3 + $0x168] sm:$0xff]
    %v2623 = vld [vmem:[#allocation3 + $0x170] sm:$0xff]
    %v2624 = vld [vmem:[#allocation3 + $0x178] sm:$0xff]
    %v2625 = vld [vmem:[#allocation3 + $0x180] sm:$0xff]
    %v2626 = vld [vmem:[#allocation3 + $0x188] sm:$0xff]
    %v2627 = vld [vmem:[#allocation3 + $0x190] sm:$0xff]
    %v2628 = vld [vmem:[#allocation3 + $0x198] sm:$0xff]
    %v2629 = vld [vmem:[#allocation3 + $0x1a0] sm:$0xff]
    %v2630 = vld [vmem:[#allocation3 + $0x1a8] sm:$0xff]
    %v2631 = vld [vmem:[#allocation3 + $0x1b0] sm:$0xff]
    %v2632 = vld [vmem:[#allocation3 + $0x1b8] sm:$0xff]
    %v2633 = vld [vmem:[#allocation3 + $0x1c0] sm:$0xff]
    %v2634 = vld [vmem:[#allocation3 + $0x1c8] sm:$0xff]
    %v2635 = vld [vmem:[#allocation3 + $0x1d0] sm:$0xff]
    %v2636 = vld [vmem:[#allocation3 + $0x1d8] sm:$0xff]
    %v2637 = vld [vmem:[#allocation3 + $0x1e0] sm:$0xff]
    %v2638 = vld [vmem:[#allocation3 + $0x1e8] sm:$0xff]
    %v2639 = vld [vmem:[#allocation3 + $0x1f0] sm:$0xff]
    %v2640 = vld [vmem:[#allocation3 + $0x1f8] sm:$0xff]
    %v2641 = vmul.f32 %v1938, %v2577
    %v2642 = vmul.f32 %v1940, %v2578
    %v2643 = vmul.f32 %v1942, %v2579
    %v2644 = vmul.f32 %v1944, %v2580
    %v2645 = vmul.f32 %v1946, %v2581
    %v2646 = vmul.f32 %v1948, %v2582
    %v2647 = vmul.f32 %v1950, %v2583
    %v2648 = vmul.f32 %v1952, %v2584
    %v2649 = vmul.f32 %v1954, %v2585
    %v2650 = vmul.f32 %v1956, %v2586
    %v2651 = vmul.f32 %v1958, %v2587
    %v2652 = vmul.f32 %v1960, %v2588
    %v2653 = vmul.f32 %v1962, %v2589
    %v2654 = vmul.f32 %v1964, %v2590
    %v2655 = vmul.f32 %v1966, %v2591
    %v2656 = vmul.f32 %v1968, %v2592
    %v2657 = vmul.f32 %v1970, %v2593
    %v2658 = vmul.f32 %v1972, %v2594
    %v2659 = vmul.f32 %v1974, %v2595
    %v2660 = vmul.f32 %v1976, %v2596
    %v2661 = vmul.f32 %v1978, %v2597
    %v2662 = vmul.f32 %v1980, %v2598
    %v2663 = vmul.f32 %v1982, %v2599
    %v2664 = vmul.f32 %v1984, %v2600
    %v2665 = vmul.f32 %v1986, %v2601
    %v2666 = vmul.f32 %v1988, %v2602
    %v2667 = vmul.f32 %v1990, %v2603
    %v2668 = vmul.f32 %v1992, %v2604
    %v2669 = vmul.f32 %v1994, %v2605
    %v2670 = vmul.f32 %v1996, %v2606
    %v2671 = vmul.f32 %v1998, %v2607
    %v2672 = vmul.f32 %v2000, %v2608
    %v2673 = vmul.f32 %v2002, %v2609
    %v2674 = vmul.f32 %v2004, %v2610
    %v2675 = vmul.f32 %v2006, %v2611
    %v2676 = vmul.f32 %v2008, %v2612
    %v2677 = vmul.f32 %v2010, %v2613
    %v2678 = vmul.f32 %v2012, %v2614
    %v2679 = vmul.f32 %v2014, %v2615
    %v2680 = vmul.f32 %v2016, %v2616
    %v2681 = vmul.f32 %v2018, %v2617
    %v2682 = vmul.f32 %v2020, %v2618
    %v2683 = vmul.f32 %v2022, %v2619
    %v2684 = vmul.f32 %v2024, %v2620
    %v2685 = vmul.f32 %v2026, %v2621
    %v2686 = vmul.f32 %v2028, %v2622
    %v2687 = vmul.f32 %v2030, %v2623
    %v2688 = vmul.f32 %v2032, %v2624
    %v2689 = vmul.f32 %v2034, %v2625
    %v2690 = vmul.f32 %v2036, %v2626
    %v2691 = vmul.f32 %v2038, %v2627
    %v2692 = vmul.f32 %v2040, %v2628
    %v2693 = vmul.f32 %v2042, %v2629
    %v2694 = vmul.f32 %v2044, %v2630
    %v2695 = vmul.f32 %v2046, %v2631
    %v2696 = vmul.f32 %v2048, %v2632
    %v2697 = vmul.f32 %v2050, %v2633
    %v2698 = vmul.f32 %v2052, %v2634
    %v2699 = vmul.f32 %v2054, %v2635
    %v2700 = vmul.f32 %v2056, %v2636
    %v2701 = vmul.f32 %v2058, %v2637
    %v2702 = vmul.f32 %v2060, %v2638
    %v2703 = vmul.f32 %v2062, %v2639
    %v2704 = vmul.f32 %v2064, %v2640
    %v2705 = vsel %vm1616, %v2450, 0.0
    %2706 = vadd.xlane.f32.xlu0 %v2705
    %v2707 = vpop.xlane.xlu0 %2706
    %v2708 = vsel %vm1616, %v2452, 0.0
    %2709 = vadd.xlane.f32.xlu0 %v2708
    %v2710 = vpop.xlane.xlu0 %2709
    %v2711 = vsel %vm1616, %v2454, 0.0
    %2712 = vadd.xlane.f32.xlu0 %v2711
    %v2713 = vpop.xlane.xlu0 %2712
    %v2714 = vsel %vm1616, %v2456, 0.0
    %2715 = vadd.xlane.f32.xlu0 %v2714
    %v2716 = vpop.xlane.xlu0 %2715
    %v2717 = vsel %vm1616, %v2458, 0.0
    %2718 = vadd.xlane.f32.xlu0 %v2717
    %v2719 = vpop.xlane.xlu0 %2718
    %v2720 = vsel %vm1616, %v2460, 0.0
    %2721 = vadd.xlane.f32.xlu0 %v2720
    %v2722 = vpop.xlane.xlu0 %2721
    %v2723 = vsel %vm1616, %v2462, 0.0
    %2724 = vadd.xlane.f32.xlu0 %v2723
    %v2725 = vpop.xlane.xlu0 %2724
    %v2726 = vsel %vm1616, %v2464, 0.0
    %2727 = vadd.xlane.f32.xlu0 %v2726
    %v2728 = vpop.xlane.xlu0 %2727
    %v2729 = vsel %vm1616, %v2466, 0.0
    %2730 = vadd.xlane.f32.xlu0 %v2729
    %v2731 = vpop.xlane.xlu0 %2730
    %v2732 = vsel %vm1616, %v2468, 0.0
    %2733 = vadd.xlane.f32.xlu0 %v2732
    %v2734 = vpop.xlane.xlu0 %2733
    %v2735 = vsel %vm1616, %v2470, 0.0
    %2736 = vadd.xlane.f32.xlu0 %v2735
    %v2737 = vpop.xlane.xlu0 %2736
    %v2738 = vsel %vm1616, %v2472, 0.0
    %2739 = vadd.xlane.f32.xlu0 %v2738
    %v2740 = vpop.xlane.xlu0 %2739
    %v2741 = vsel %vm1616, %v2474, 0.0
    %2742 = vadd.xlane.f32.xlu0 %v2741
    %v2743 = vpop.xlane.xlu0 %2742
    %v2744 = vsel %vm1616, %v2476, 0.0
    %2745 = vadd.xlane.f32.xlu0 %v2744
    %v2746 = vpop.xlane.xlu0 %2745
    %v2747 = vsel %vm1616, %v2478, 0.0
    %2748 = vadd.xlane.f32.xlu0 %v2747
    %v2749 = vpop.xlane.xlu0 %2748
    %v2750 = vsel %vm1616, %v2480, 0.0
    %2751 = vadd.xlane.f32.xlu0 %v2750
    %v2752 = vpop.xlane.xlu0 %2751
    %v2753 = vsel %vm1616, %v2482, 0.0
    %2754 = vadd.xlane.f32.xlu0 %v2753
    %v2755 = vpop.xlane.xlu0 %2754
    %v2756 = vsel %vm1616, %v2484, 0.0
    %2757 = vadd.xlane.f32.xlu0 %v2756
    %v2758 = vpop.xlane.xlu0 %2757
    %v2759 = vsel %vm1616, %v2486, 0.0
    %2760 = vadd.xlane.f32.xlu0 %v2759
    %v2761 = vpop.xlane.xlu0 %2760
    %v2762 = vsel %vm1616, %v2488, 0.0
    %2763 = vadd.xlane.f32.xlu0 %v2762
    %v2764 = vpop.xlane.xlu0 %2763
    %v2765 = vsel %vm1616, %v2490, 0.0
    %2766 = vadd.xlane.f32.xlu0 %v2765
    %v2767 = vpop.xlane.xlu0 %2766
    %v2768 = vsel %vm1616, %v2492, 0.0
    %2769 = vadd.xlane.f32.xlu0 %v2768
    %v2770 = vpop.xlane.xlu0 %2769
    %v2771 = vsel %vm1616, %v2494, 0.0
    %2772 = vadd.xlane.f32.xlu0 %v2771
    %v2773 = vpop.xlane.xlu0 %2772
    %v2774 = vsel %vm1616, %v2496, 0.0
    %2775 = vadd.xlane.f32.xlu0 %v2774
    %v2776 = vpop.xlane.xlu0 %2775
    %v2777 = vsel %vm1616, %v2498, 0.0
    %2778 = vadd.xlane.f32.xlu0 %v2777
    %v2779 = vpop.xlane.xlu0 %2778
    %v2780 = vsel %vm1616, %v2500, 0.0
    %2781 = vadd.xlane.f32.xlu0 %v2780
    %v2782 = vpop.xlane.xlu0 %2781
    %v2783 = vsel %vm1616, %v2502, 0.0
    %2784 = vadd.xlane.f32.xlu0 %v2783
    %v2785 = vpop.xlane.xlu0 %2784
    %v2786 = vsel %vm1616, %v2504, 0.0
    %2787 = vadd.xlane.f32.xlu0 %v2786
    %v2788 = vpop.xlane.xlu0 %2787
    %v2789 = vsel %vm1616, %v2506, 0.0
    %2790 = vadd.xlane.f32.xlu0 %v2789
    %v2791 = vpop.xlane.xlu0 %2790
    %v2792 = vsel %vm1616, %v2508, 0.0
    %2793 = vadd.xlane.f32.xlu0 %v2792
    %v2794 = vpop.xlane.xlu0 %2793
    %v2795 = vsel %vm1616, %v2510, 0.0
    %2796 = vadd.xlane.f32.xlu0 %v2795
    %v2797 = vpop.xlane.xlu0 %2796
    %v2798 = vsel %vm1616, %v2512, 0.0
    %2799 = vadd.xlane.f32.xlu0 %v2798
    %v2800 = vpop.xlane.xlu0 %2799
    %v2801 = vsel %vm1616, %v2514, 0.0
    %2802 = vadd.xlane.f32.xlu0 %v2801
    %v2803 = vpop.xlane.xlu0 %2802
    %v2804 = vsel %vm1616, %v2516, 0.0
    %2805 = vadd.xlane.f32.xlu0 %v2804
    %v2806 = vpop.xlane.xlu0 %2805
    %v2807 = vsel %vm1616, %v2518, 0.0
    %2808 = vadd.xlane.f32.xlu0 %v2807
    %v2809 = vpop.xlane.xlu0 %2808
    %v2810 = vsel %vm1616, %v2520, 0.0
    %2811 = vadd.xlane.f32.xlu0 %v2810
    %v2812 = vpop.xlane.xlu0 %2811
    %v2813 = vsel %vm1616, %v2522, 0.0
    %2814 = vadd.xlane.f32.xlu0 %v2813
    %v2815 = vpop.xlane.xlu0 %2814
    %v2816 = vsel %vm1616, %v2524, 0.0
    %2817 = vadd.xlane.f32.xlu0 %v2816
    %v2818 = vpop.xlane.xlu0 %2817
    %v2819 = vsel %vm1616, %v2526, 0.0
    %2820 = vadd.xlane.f32.xlu0 %v2819
    %v2821 = vpop.xlane.xlu0 %2820
    %v2822 = vsel %vm1616, %v2528, 0.0
    %2823 = vadd.xlane.f32.xlu0 %v2822
    %v2824 = vpop.xlane.xlu0 %2823
    %v2825 = vsel %vm1616, %v2530, 0.0
    %2826 = vadd.xlane.f32.xlu0 %v2825
    %v2827 = vpop.xlane.xlu0 %2826
    %v2828 = vsel %vm1616, %v2532, 0.0
    %2829 = vadd.xlane.f32.xlu0 %v2828
    %v2830 = vpop.xlane.xlu0 %2829
    %v2831 = vsel %vm1616, %v2534, 0.0
    %2832 = vadd.xlane.f32.xlu0 %v2831
    %v2833 = vpop.xlane.xlu0 %2832
    %v2834 = vsel %vm1616, %v2536, 0.0
    %2835 = vadd.xlane.f32.xlu0 %v2834
    %v2836 = vpop.xlane.xlu0 %2835
    %v2837 = vsel %vm1616, %v2538, 0.0
    %2838 = vadd.xlane.f32.xlu0 %v2837
    %v2839 = vpop.xlane.xlu0 %2838
    %v2840 = vsel %vm1616, %v2540, 0.0
    %2841 = vadd.xlane.f32.xlu0 %v2840
    %v2842 = vpop.xlane.xlu0 %2841
    %v2843 = vsel %vm1616, %v2542, 0.0
    %2844 = vadd.xlane.f32.xlu0 %v2843
    %v2845 = vpop.xlane.xlu0 %2844
    %v2846 = vsel %vm1616, %v2544, 0.0
    %2847 = vadd.xlane.f32.xlu0 %v2846
    %v2848 = vpop.xlane.xlu0 %2847
    %v2849 = vsel %vm1616, %v2546, 0.0
    %2850 = vadd.xlane.f32.xlu0 %v2849
    %v2851 = vpop.xlane.xlu0 %2850
    %v2852 = vsel %vm1616, %v2548, 0.0
    %2853 = vadd.xlane.f32.xlu0 %v2852
    %v2854 = vpop.xlane.xlu0 %2853
    %v2855 = vsel %vm1616, %v2550, 0.0
    %2856 = vadd.xlane.f32.xlu0 %v2855
    %v2857 = vpop.xlane.xlu0 %2856
    %v2858 = vsel %vm1616, %v2552, 0.0
    %2859 = vadd.xlane.f32.xlu0 %v2858
    %v2860 = vpop.xlane.xlu0 %2859
    %v2861 = vsel %vm1616, %v2554, 0.0
    %2862 = vadd.xlane.f32.xlu0 %v2861
    %v2863 = vpop.xlane.xlu0 %2862
    %v2864 = vsel %vm1616, %v2556, 0.0
    %2865 = vadd.xlane.f32.xlu0 %v2864
    %v2866 = vpop.xlane.xlu0 %2865
    %v2867 = vsel %vm1616, %v2558, 0.0
    %2868 = vadd.xlane.f32.xlu0 %v2867
    %v2869 = vpop.xlane.xlu0 %2868
    %v2870 = vsel %vm1616, %v2560, 0.0
    %2871 = vadd.xlane.f32.xlu0 %v2870
    %v2872 = vpop.xlane.xlu0 %2871
    %v2873 = vsel %vm1616, %v2562, 0.0
    %2874 = vadd.xlane.f32.xlu0 %v2873
    %v2875 = vpop.xlane.xlu0 %2874
    %v2876 = vsel %vm1616, %v2564, 0.0
    %2877 = vadd.xlane.f32.xlu0 %v2876
    %v2878 = vpop.xlane.xlu0 %2877
    %v2879 = vsel %vm1616, %v2566, 0.0
    %2880 = vadd.xlane.f32.xlu0 %v2879
    %v2881 = vpop.xlane.xlu0 %2880
    %v2882 = vsel %vm1616, %v2568, 0.0
    %2883 = vadd.xlane.f32.xlu0 %v2882
    %v2884 = vpop.xlane.xlu0 %2883
    %v2885 = vsel %vm1616, %v2570, 0.0
    %2886 = vadd.xlane.f32.xlu0 %v2885
    %v2887 = vpop.xlane.xlu0 %2886
    %v2888 = vsel %vm1616, %v2572, 0.0
    %2889 = vadd.xlane.f32.xlu0 %v2888
    %v2890 = vpop.xlane.xlu0 %2889
    %v2891 = vsel %vm1616, %v2574, 0.0
    %2892 = vadd.xlane.f32.xlu0 %v2891
    %v2893 = vpop.xlane.xlu0 %2892
    %v2894 = vsel %vm1616, %v2576, 0.0
    %2895 = vadd.xlane.f32.xlu0 %v2894
    %v2896 = vpop.xlane.xlu0 %2895
    %v2897 = vadd.f32 %v2641, %v2707
    %v2898 = vadd.f32 %v2642, %v2710
    %v2899 = vadd.f32 %v2643, %v2713
    %v2900 = vadd.f32 %v2644, %v2716
    %v2901 = vadd.f32 %v2645, %v2719
    %v2902 = vadd.f32 %v2646, %v2722
    %v2903 = vadd.f32 %v2647, %v2725
    %v2904 = vadd.f32 %v2648, %v2728
    %v2905 = vadd.f32 %v2649, %v2731
    %v2906 = vadd.f32 %v2650, %v2734
    %v2907 = vadd.f32 %v2651, %v2737
    %v2908 = vadd.f32 %v2652, %v2740
    %v2909 = vadd.f32 %v2653, %v2743
    %v2910 = vadd.f32 %v2654, %v2746
    %v2911 = vadd.f32 %v2655, %v2749
    %v2912 = vadd.f32 %v2656, %v2752
    %v2913 = vadd.f32 %v2657, %v2755
    %v2914 = vadd.f32 %v2658, %v2758
    %v2915 = vadd.f32 %v2659, %v2761
    %v2916 = vadd.f32 %v2660, %v2764
    %v2917 = vadd.f32 %v2661, %v2767
    %v2918 = vadd.f32 %v2662, %v2770
    %v2919 = vadd.f32 %v2663, %v2773
    %v2920 = vadd.f32 %v2664, %v2776
    %v2921 = vadd.f32 %v2665, %v2779
    %v2922 = vadd.f32 %v2666, %v2782
    %v2923 = vadd.f32 %v2667, %v2785
    %v2924 = vadd.f32 %v2668, %v2788
    %v2925 = vadd.f32 %v2669, %v2791
    %v2926 = vadd.f32 %v2670, %v2794
    %v2927 = vadd.f32 %v2671, %v2797
    %v2928 = vadd.f32 %v2672, %v2800
    %v2929 = vadd.f32 %v2673, %v2803
    %v2930 = vadd.f32 %v2674, %v2806
    %v2931 = vadd.f32 %v2675, %v2809
    %v2932 = vadd.f32 %v2676, %v2812
    %v2933 = vadd.f32 %v2677, %v2815
    %v2934 = vadd.f32 %v2678, %v2818
    %v2935 = vadd.f32 %v2679, %v2821
    %v2936 = vadd.f32 %v2680, %v2824
    %v2937 = vadd.f32 %v2681, %v2827
    %v2938 = vadd.f32 %v2682, %v2830
    %v2939 = vadd.f32 %v2683, %v2833
    %v2940 = vadd.f32 %v2684, %v2836
    %v2941 = vadd.f32 %v2685, %v2839
    %v2942 = vadd.f32 %v2686, %v2842
    %v2943 = vadd.f32 %v2687, %v2845
    %v2944 = vadd.f32 %v2688, %v2848
    %v2945 = vadd.f32 %v2689, %v2851
    %v2946 = vadd.f32 %v2690, %v2854
    %v2947 = vadd.f32 %v2691, %v2857
    %v2948 = vadd.f32 %v2692, %v2860
    %v2949 = vadd.f32 %v2693, %v2863
    %v2950 = vadd.f32 %v2694, %v2866
    %v2951 = vadd.f32 %v2695, %v2869
    %v2952 = vadd.f32 %v2696, %v2872
    %v2953 = vadd.f32 %v2697, %v2875
    %v2954 = vadd.f32 %v2698, %v2878
    %v2955 = vadd.f32 %v2699, %v2881
    %v2956 = vadd.f32 %v2700, %v2884
    %v2957 = vadd.f32 %v2701, %v2887
    %v2958 = vadd.f32 %v2702, %v2890
    %v2959 = vadd.f32 %v2703, %v2893
    %v2960 = vadd.f32 %v2704, %v2896
    %vm2961 = vcmask 7168
    %2962 = vst.msk [vmem:[#allocation3] sm:$0xff] %vm2961, %v2897
    %2963 = vst.msk [vmem:[#allocation3 + $0x8] sm:$0xff] %vm2961, %v2898
    %2964 = vst.msk [vmem:[#allocation3 + $0x10] sm:$0xff] %vm2961, %v2899
    %2965 = vst.msk [vmem:[#allocation3 + $0x18] sm:$0xff] %vm2961, %v2900
    %2966 = vst.msk [vmem:[#allocation3 + $0x20] sm:$0xff] %vm2961, %v2901
    %2967 = vst.msk [vmem:[#allocation3 + $0x28] sm:$0xff] %vm2961, %v2902
    %2968 = vst.msk [vmem:[#allocation3 + $0x30] sm:$0xff] %vm2961, %v2903
    %2969 = vst.msk [vmem:[#allocation3 + $0x38] sm:$0xff] %vm2961, %v2904
    %2970 = vst.msk [vmem:[#allocation3 + $0x40] sm:$0xff] %vm2961, %v2905
    %2971 = vst.msk [vmem:[#allocation3 + $0x48] sm:$0xff] %vm2961, %v2906
    %2972 = vst.msk [vmem:[#allocation3 + $0x50] sm:$0xff] %vm2961, %v2907
    %2973 = vst.msk [vmem:[#allocation3 + $0x58] sm:$0xff] %vm2961, %v2908
    %2974 = vst.msk [vmem:[#allocation3 + $0x60] sm:$0xff] %vm2961, %v2909
    %2975 = vst.msk [vmem:[#allocation3 + $0x68] sm:$0xff] %vm2961, %v2910
    %2976 = vst.msk [vmem:[#allocation3 + $0x70] sm:$0xff] %vm2961, %v2911
    %2977 = vst.msk [vmem:[#allocation3 + $0x78] sm:$0xff] %vm2961, %v2912
    %2978 = vst.msk [vmem:[#allocation3 + $0x80] sm:$0xff] %vm2961, %v2913
    %2979 = vst.msk [vmem:[#allocation3 + $0x88] sm:$0xff] %vm2961, %v2914
    %2980 = vst.msk [vmem:[#allocation3 + $0x90] sm:$0xff] %vm2961, %v2915
    %2981 = vst.msk [vmem:[#allocation3 + $0x98] sm:$0xff] %vm2961, %v2916
    %2982 = vst.msk [vmem:[#allocation3 + $0xa0] sm:$0xff] %vm2961, %v2917
    %2983 = vst.msk [vmem:[#allocation3 + $0xa8] sm:$0xff] %vm2961, %v2918
    %2984 = vst.msk [vmem:[#allocation3 + $0xb0] sm:$0xff] %vm2961, %v2919
    %2985 = vst.msk [vmem:[#allocation3 + $0xb8] sm:$0xff] %vm2961, %v2920
    %2986 = vst.msk [vmem:[#allocation3 + $0xc0] sm:$0xff] %vm2961, %v2921
    %2987 = vst.msk [vmem:[#allocation3 + $0xc8] sm:$0xff] %vm2961, %v2922
    %2988 = vst.msk [vmem:[#allocation3 + $0xd0] sm:$0xff] %vm2961, %v2923
    %2989 = vst.msk [vmem:[#allocation3 + $0xd8] sm:$0xff] %vm2961, %v2924
    %2990 = vst.msk [vmem:[#allocation3 + $0xe0] sm:$0xff] %vm2961, %v2925
    %2991 = vst.msk [vmem:[#allocation3 + $0xe8] sm:$0xff] %vm2961, %v2926
    %2992 = vst.msk [vmem:[#allocation3 + $0xf0] sm:$0xff] %vm2961, %v2927
    %2993 = vst.msk [vmem:[#allocation3 + $0xf8] sm:$0xff] %vm2961, %v2928
    %2994 = vst.msk [vmem:[#allocation3 + $0x100] sm:$0xff] %vm2961, %v2929
    %2995 = vst.msk [vmem:[#allocation3 + $0x108] sm:$0xff] %vm2961, %v2930
    %2996 = vst.msk [vmem:[#allocation3 + $0x110] sm:$0xff] %vm2961, %v2931
    %2997 = vst.msk [vmem:[#allocation3 + $0x118] sm:$0xff] %vm2961, %v2932
    %2998 = vst.msk [vmem:[#allocation3 + $0x120] sm:$0xff] %vm2961, %v2933
    %2999 = vst.msk [vmem:[#allocation3 + $0x128] sm:$0xff] %vm2961, %v2934
    %3000 = vst.msk [vmem:[#allocation3 + $0x130] sm:$0xff] %vm2961, %v2935
    %3001 = vst.msk [vmem:[#allocation3 + $0x138] sm:$0xff] %vm2961, %v2936
    %3002 = vst.msk [vmem:[#allocation3 + $0x140] sm:$0xff] %vm2961, %v2937
    %3003 = vst.msk [vmem:[#allocation3 + $0x148] sm:$0xff] %vm2961, %v2938
    %3004 = vst.msk [vmem:[#allocation3 + $0x150] sm:$0xff] %vm2961, %v2939
    %3005 = vst.msk [vmem:[#allocation3 + $0x158] sm:$0xff] %vm2961, %v2940
    %3006 = vst.msk [vmem:[#allocation3 + $0x160] sm:$0xff] %vm2961, %v2941
    %3007 = vst.msk [vmem:[#allocation3 + $0x168] sm:$0xff] %vm2961, %v2942
    %3008 = vst.msk [vmem:[#allocation3 + $0x170] sm:$0xff] %vm2961, %v2943
    %3009 = vst.msk [vmem:[#allocation3 + $0x178] sm:$0xff] %vm2961, %v2944
    %3010 = vst.msk [vmem:[#allocation3 + $0x180] sm:$0xff] %vm2961, %v2945
    %3011 = vst.msk [vmem:[#allocation3 + $0x188] sm:$0xff] %vm2961, %v2946
    %3012 = vst.msk [vmem:[#allocation3 + $0x190] sm:$0xff] %vm2961, %v2947
    %3013 = vst.msk [vmem:[#allocation3 + $0x198] sm:$0xff] %vm2961, %v2948
    %3014 = vst.msk [vmem:[#allocation3 + $0x1a0] sm:$0xff] %vm2961, %v2949
    %3015 = vst.msk [vmem:[#allocation3 + $0x1a8] sm:$0xff] %vm2961, %v2950
    %3016 = vst.msk [vmem:[#allocation3 + $0x1b0] sm:$0xff] %vm2961, %v2951
    %3017 = vst.msk [vmem:[#allocation3 + $0x1b8] sm:$0xff] %vm2961, %v2952
    %3018 = vst.msk [vmem:[#allocation3 + $0x1c0] sm:$0xff] %vm2961, %v2953
    %3019 = vst.msk [vmem:[#allocation3 + $0x1c8] sm:$0xff] %vm2961, %v2954
    %3020 = vst.msk [vmem:[#allocation3 + $0x1d0] sm:$0xff] %vm2961, %v2955
    %3021 = vst.msk [vmem:[#allocation3 + $0x1d8] sm:$0xff] %vm2961, %v2956
    %3022 = vst.msk [vmem:[#allocation3 + $0x1e0] sm:$0xff] %vm2961, %v2957
    %3023 = vst.msk [vmem:[#allocation3 + $0x1e8] sm:$0xff] %vm2961, %v2958
    %3024 = vst.msk [vmem:[#allocation3 + $0x1f0] sm:$0xff] %vm2961, %v2959
    %3025 = vst.msk [vmem:[#allocation3 + $0x1f8] sm:$0xff] %vm2961, %v2960
    %v3026 = vld [vmem:[#allocation4] sm:$0xff]
    %v3027 = vld [vmem:[#allocation4 + $0x8] sm:$0xff]
    %v3028 = vld [vmem:[#allocation4 + $0x10] sm:$0xff]
    %v3029 = vld [vmem:[#allocation4 + $0x18] sm:$0xff]
    %v3030 = vld [vmem:[#allocation4 + $0x20] sm:$0xff]
    %v3031 = vld [vmem:[#allocation4 + $0x28] sm:$0xff]
    %v3032 = vld [vmem:[#allocation4 + $0x30] sm:$0xff]
    %v3033 = vld [vmem:[#allocation4 + $0x38] sm:$0xff]
    %v3034 = vld [vmem:[#allocation4 + $0x40] sm:$0xff]
    %v3035 = vld [vmem:[#allocation4 + $0x48] sm:$0xff]
    %v3036 = vld [vmem:[#allocation4 + $0x50] sm:$0xff]
    %v3037 = vld [vmem:[#allocation4 + $0x58] sm:$0xff]
    %v3038 = vld [vmem:[#allocation4 + $0x60] sm:$0xff]
    %v3039 = vld [vmem:[#allocation4 + $0x68] sm:$0xff]
    %v3040 = vld [vmem:[#allocation4 + $0x70] sm:$0xff]
    %v3041 = vld [vmem:[#allocation4 + $0x78] sm:$0xff]
    %v3042 = vld [vmem:[#allocation4 + $0x80] sm:$0xff]
    %v3043 = vld [vmem:[#allocation4 + $0x88] sm:$0xff]
    %v3044 = vld [vmem:[#allocation4 + $0x90] sm:$0xff]
    %v3045 = vld [vmem:[#allocation4 + $0x98] sm:$0xff]
    %v3046 = vld [vmem:[#allocation4 + $0xa0] sm:$0xff]
    %v3047 = vld [vmem:[#allocation4 + $0xa8] sm:$0xff]
    %v3048 = vld [vmem:[#allocation4 + $0xb0] sm:$0xff]
    %v3049 = vld [vmem:[#allocation4 + $0xb8] sm:$0xff]
    %v3050 = vld [vmem:[#allocation4 + $0xc0] sm:$0xff]
    %v3051 = vld [vmem:[#allocation4 + $0xc8] sm:$0xff]
    %v3052 = vld [vmem:[#allocation4 + $0xd0] sm:$0xff]
    %v3053 = vld [vmem:[#allocation4 + $0xd8] sm:$0xff]
    %v3054 = vld [vmem:[#allocation4 + $0xe0] sm:$0xff]
    %v3055 = vld [vmem:[#allocation4 + $0xe8] sm:$0xff]
    %v3056 = vld [vmem:[#allocation4 + $0xf0] sm:$0xff]
    %v3057 = vld [vmem:[#allocation4 + $0xf8] sm:$0xff]
    %v3058 = vld [vmem:[#allocation4 + $0x100] sm:$0xff]
    %v3059 = vld [vmem:[#allocation4 + $0x108] sm:$0xff]
    %v3060 = vld [vmem:[#allocation4 + $0x110] sm:$0xff]
    %v3061 = vld [vmem:[#allocation4 + $0x118] sm:$0xff]
    %v3062 = vld [vmem:[#allocation4 + $0x120] sm:$0xff]
    %v3063 = vld [vmem:[#allocation4 + $0x128] sm:$0xff]
    %v3064 = vld [vmem:[#allocation4 + $0x130] sm:$0xff]
    %v3065 = vld [vmem:[#allocation4 + $0x138] sm:$0xff]
    %v3066 = vld [vmem:[#allocation4 + $0x140] sm:$0xff]
    %v3067 = vld [vmem:[#allocation4 + $0x148] sm:$0xff]
    %v3068 = vld [vmem:[#allocation4 + $0x150] sm:$0xff]
    %v3069 = vld [vmem:[#allocation4 + $0x158] sm:$0xff]
    %v3070 = vld [vmem:[#allocation4 + $0x160] sm:$0xff]
    %v3071 = vld [vmem:[#allocation4 + $0x168] sm:$0xff]
    %v3072 = vld [vmem:[#allocation4 + $0x170] sm:$0xff]
    %v3073 = vld [vmem:[#allocation4 + $0x178] sm:$0xff]
    %v3074 = vld [vmem:[#allocation4 + $0x180] sm:$0xff]
    %v3075 = vld [vmem:[#allocation4 + $0x188] sm:$0xff]
    %v3076 = vld [vmem:[#allocation4 + $0x190] sm:$0xff]
    %v3077 = vld [vmem:[#allocation4 + $0x198] sm:$0xff]
    %v3078 = vld [vmem:[#allocation4 + $0x1a0] sm:$0xff]
    %v3079 = vld [vmem:[#allocation4 + $0x1a8] sm:$0xff]
    %v3080 = vld [vmem:[#allocation4 + $0x1b0] sm:$0xff]
    %v3081 = vld [vmem:[#allocation4 + $0x1b8] sm:$0xff]
    %v3082 = vld [vmem:[#allocation4 + $0x1c0] sm:$0xff]
    %v3083 = vld [vmem:[#allocation4 + $0x1c8] sm:$0xff]
    %v3084 = vld [vmem:[#allocation4 + $0x1d0] sm:$0xff]
    %v3085 = vld [vmem:[#allocation4 + $0x1d8] sm:$0xff]
    %v3086 = vld [vmem:[#allocation4 + $0x1e0] sm:$0xff]
    %v3087 = vld [vmem:[#allocation4 + $0x1e8] sm:$0xff]
    %v3088 = vld [vmem:[#allocation4 + $0x1f0] sm:$0xff]
    %v3089 = vld [vmem:[#allocation4 + $0x1f8] sm:$0xff]
    %3091 = vset.pattern.permute.xlu0 0
    %3092 = vperm.xlu0 %3091, %v1938
    %v3093 = vpop.permute.xlu0 %3092
    %3096 = vset.pattern.permute.xlu0 0
    %3097 = vperm.xlu0 %3096, %v1940
    %v3098 = vpop.permute.xlu0 %3097
    %3101 = vset.pattern.permute.xlu0 0
    %3102 = vperm.xlu0 %3101, %v1942
    %v3103 = vpop.permute.xlu0 %3102
    %3106 = vset.pattern.permute.xlu0 0
    %3107 = vperm.xlu0 %3106, %v1944
    %v3108 = vpop.permute.xlu0 %3107
    %3111 = vset.pattern.permute.xlu0 0
    %3112 = vperm.xlu0 %3111, %v1946
    %v3113 = vpop.permute.xlu0 %3112
    %3116 = vset.pattern.permute.xlu0 0
    %3117 = vperm.xlu0 %3116, %v1948
    %v3118 = vpop.permute.xlu0 %3117
    %3121 = vset.pattern.permute.xlu0 0
    %3122 = vperm.xlu0 %3121, %v1950
    %v3123 = vpop.permute.xlu0 %3122
    %3126 = vset.pattern.permute.xlu0 0
    %3127 = vperm.xlu0 %3126, %v1952
    %v3128 = vpop.permute.xlu0 %3127
    %3131 = vset.pattern.permute.xlu0 0
    %3132 = vperm.xlu0 %3131, %v1954
    %v3133 = vpop.permute.xlu0 %3132
    %3136 = vset.pattern.permute.xlu0 0
    %3137 = vperm.xlu0 %3136, %v1956
    %v3138 = vpop.permute.xlu0 %3137
    %3141 = vset.pattern.permute.xlu0 0
    %3142 = vperm.xlu0 %3141, %v1958
    %v3143 = vpop.permute.xlu0 %3142
    %3146 = vset.pattern.permute.xlu0 0
    %3147 = vperm.xlu0 %3146, %v1960
    %v3148 = vpop.permute.xlu0 %3147
    %3151 = vset.pattern.permute.xlu0 0
    %3152 = vperm.xlu0 %3151, %v1962
    %v3153 = vpop.permute.xlu0 %3152
    %3156 = vset.pattern.permute.xlu0 0
    %3157 = vperm.xlu0 %3156, %v1964
    %v3158 = vpop.permute.xlu0 %3157
    %3161 = vset.pattern.permute.xlu0 0
    %3162 = vperm.xlu0 %3161, %v1966
    %v3163 = vpop.permute.xlu0 %3162
    %3166 = vset.pattern.permute.xlu0 0
    %3167 = vperm.xlu0 %3166, %v1968
    %v3168 = vpop.permute.xlu0 %3167
    %3171 = vset.pattern.permute.xlu0 0
    %3172 = vperm.xlu0 %3171, %v1970
    %v3173 = vpop.permute.xlu0 %3172
    %3176 = vset.pattern.permute.xlu0 0
    %3177 = vperm.xlu0 %3176, %v1972
    %v3178 = vpop.permute.xlu0 %3177
    %3181 = vset.pattern.permute.xlu0 0
    %3182 = vperm.xlu0 %3181, %v1974
    %v3183 = vpop.permute.xlu0 %3182
    %3186 = vset.pattern.permute.xlu0 0
    %3187 = vperm.xlu0 %3186, %v1976
    %v3188 = vpop.permute.xlu0 %3187
    %3191 = vset.pattern.permute.xlu0 0
    %3192 = vperm.xlu0 %3191, %v1978
    %v3193 = vpop.permute.xlu0 %3192
    %3196 = vset.pattern.permute.xlu0 0
    %3197 = vperm.xlu0 %3196, %v1980
    %v3198 = vpop.permute.xlu0 %3197
    %3201 = vset.pattern.permute.xlu0 0
    %3202 = vperm.xlu0 %3201, %v1982
    %v3203 = vpop.permute.xlu0 %3202
    %3206 = vset.pattern.permute.xlu0 0
    %3207 = vperm.xlu0 %3206, %v1984
    %v3208 = vpop.permute.xlu0 %3207
    %3211 = vset.pattern.permute.xlu0 0
    %3212 = vperm.xlu0 %3211, %v1986
    %v3213 = vpop.permute.xlu0 %3212
    %3216 = vset.pattern.permute.xlu0 0
    %3217 = vperm.xlu0 %3216, %v1988
    %v3218 = vpop.permute.xlu0 %3217
    %3221 = vset.pattern.permute.xlu0 0
    %3222 = vperm.xlu0 %3221, %v1990
    %v3223 = vpop.permute.xlu0 %3222
    %3226 = vset.pattern.permute.xlu0 0
    %3227 = vperm.xlu0 %3226, %v1992
    %v3228 = vpop.permute.xlu0 %3227
    %3231 = vset.pattern.permute.xlu0 0
    %3232 = vperm.xlu0 %3231, %v1994
    %v3233 = vpop.permute.xlu0 %3232
    %3236 = vset.pattern.permute.xlu0 0
    %3237 = vperm.xlu0 %3236, %v1996
    %v3238 = vpop.permute.xlu0 %3237
    %3241 = vset.pattern.permute.xlu0 0
    %3242 = vperm.xlu0 %3241, %v1998
    %v3243 = vpop.permute.xlu0 %3242
    %3246 = vset.pattern.permute.xlu0 0
    %3247 = vperm.xlu0 %3246, %v2000
    %v3248 = vpop.permute.xlu0 %3247
    %3251 = vset.pattern.permute.xlu0 0
    %3252 = vperm.xlu0 %3251, %v2002
    %v3253 = vpop.permute.xlu0 %3252
    %3256 = vset.pattern.permute.xlu0 0
    %3257 = vperm.xlu0 %3256, %v2004
    %v3258 = vpop.permute.xlu0 %3257
    %3261 = vset.pattern.permute.xlu0 0
    %3262 = vperm.xlu0 %3261, %v2006
    %v3263 = vpop.permute.xlu0 %3262
    %3266 = vset.pattern.permute.xlu0 0
    %3267 = vperm.xlu0 %3266, %v2008
    %v3268 = vpop.permute.xlu0 %3267
    %3271 = vset.pattern.permute.xlu0 0
    %3272 = vperm.xlu0 %3271, %v2010
    %v3273 = vpop.permute.xlu0 %3272
    %3276 = vset.pattern.permute.xlu0 0
    %3277 = vperm.xlu0 %3276, %v2012
    %v3278 = vpop.permute.xlu0 %3277
    %3281 = vset.pattern.permute.xlu0 0
    %3282 = vperm.xlu0 %3281, %v2014
    %v3283 = vpop.permute.xlu0 %3282
    %3286 = vset.pattern.permute.xlu0 0
    %3287 = vperm.xlu0 %3286, %v2016
    %v3288 = vpop.permute.xlu0 %3287
    %3291 = vset.pattern.permute.xlu0 0
    %3292 = vperm.xlu0 %3291, %v2018
    %v3293 = vpop.permute.xlu0 %3292
    %3296 = vset.pattern.permute.xlu0 0
    %3297 = vperm.xlu0 %3296, %v2020
    %v3298 = vpop.permute.xlu0 %3297
    %3301 = vset.pattern.permute.xlu0 0
    %3302 = vperm.xlu0 %3301, %v2022
    %v3303 = vpop.permute.xlu0 %3302
    %3306 = vset.pattern.permute.xlu0 0
    %3307 = vperm.xlu0 %3306, %v2024
    %v3308 = vpop.permute.xlu0 %3307
    %3311 = vset.pattern.permute.xlu0 0
    %3312 = vperm.xlu0 %3311, %v2026
    %v3313 = vpop.permute.xlu0 %3312
    %3316 = vset.pattern.permute.xlu0 0
    %3317 = vperm.xlu0 %3316, %v2028
    %v3318 = vpop.permute.xlu0 %3317
    %3321 = vset.pattern.permute.xlu0 0
    %3322 = vperm.xlu0 %3321, %v2030
    %v3323 = vpop.permute.xlu0 %3322
    %3326 = vset.pattern.permute.xlu0 0
    %3327 = vperm.xlu0 %3326, %v2032
    %v3328 = vpop.permute.xlu0 %3327
    %3331 = vset.pattern.permute.xlu0 0
    %3332 = vperm.xlu0 %3331, %v2034
    %v3333 = vpop.permute.xlu0 %3332
    %3336 = vset.pattern.permute.xlu0 0
    %3337 = vperm.xlu0 %3336, %v2036
    %v3338 = vpop.permute.xlu0 %3337
    %3341 = vset.pattern.permute.xlu0 0
    %3342 = vperm.xlu0 %3341, %v2038
    %v3343 = vpop.permute.xlu0 %3342
    %3346 = vset.pattern.permute.xlu0 0
    %3347 = vperm.xlu0 %3346, %v2040
    %v3348 = vpop.permute.xlu0 %3347
    %3351 = vset.pattern.permute.xlu0 0
    %3352 = vperm.xlu0 %3351, %v2042
    %v3353 = vpop.permute.xlu0 %3352
    %3356 = vset.pattern.permute.xlu0 0
    %3357 = vperm.xlu0 %3356, %v2044
    %v3358 = vpop.permute.xlu0 %3357
    %3361 = vset.pattern.permute.xlu0 0
    %3362 = vperm.xlu0 %3361, %v2046
    %v3363 = vpop.permute.xlu0 %3362
    %3366 = vset.pattern.permute.xlu0 0
    %3367 = vperm.xlu0 %3366, %v2048
    %v3368 = vpop.permute.xlu0 %3367
    %3371 = vset.pattern.permute.xlu0 0
    %3372 = vperm.xlu0 %3371, %v2050
    %v3373 = vpop.permute.xlu0 %3372
    %3376 = vset.pattern.permute.xlu0 0
    %3377 = vperm.xlu0 %3376, %v2052
    %v3378 = vpop.permute.xlu0 %3377
    %3381 = vset.pattern.permute.xlu0 0
    %3382 = vperm.xlu0 %3381, %v2054
    %v3383 = vpop.permute.xlu0 %3382
    %3386 = vset.pattern.permute.xlu0 0
    %3387 = vperm.xlu0 %3386, %v2056
    %v3388 = vpop.permute.xlu0 %3387
    %3391 = vset.pattern.permute.xlu0 0
    %3392 = vperm.xlu0 %3391, %v2058
    %v3393 = vpop.permute.xlu0 %3392
    %3396 = vset.pattern.permute.xlu0 0
    %3397 = vperm.xlu0 %3396, %v2060
    %v3398 = vpop.permute.xlu0 %3397
    %3401 = vset.pattern.permute.xlu0 0
    %3402 = vperm.xlu0 %3401, %v2062
    %v3403 = vpop.permute.xlu0 %3402
    %3406 = vset.pattern.permute.xlu0 0
    %3407 = vperm.xlu0 %3406, %v2064
    %v3408 = vpop.permute.xlu0 %3407
    %v3410 = vmul.f32 %v3093, %v3026
    %v3411 = vmul.f32 %v3098, %v3027
    %v3412 = vmul.f32 %v3103, %v3028
    %v3413 = vmul.f32 %v3108, %v3029
    %v3414 = vmul.f32 %v3113, %v3030
    %v3415 = vmul.f32 %v3118, %v3031
    %v3416 = vmul.f32 %v3123, %v3032
    %v3417 = vmul.f32 %v3128, %v3033
    %v3418 = vmul.f32 %v3133, %v3034
    %v3419 = vmul.f32 %v3138, %v3035
    %v3420 = vmul.f32 %v3143, %v3036
    %v3421 = vmul.f32 %v3148, %v3037
    %v3422 = vmul.f32 %v3153, %v3038
    %v3423 = vmul.f32 %v3158, %v3039
    %v3424 = vmul.f32 %v3163, %v3040
    %v3425 = vmul.f32 %v3168, %v3041
    %v3426 = vmul.f32 %v3173, %v3042
    %v3427 = vmul.f32 %v3178, %v3043
    %v3428 = vmul.f32 %v3183, %v3044
    %v3429 = vmul.f32 %v3188, %v3045
    %v3430 = vmul.f32 %v3193, %v3046
    %v3431 = vmul.f32 %v3198, %v3047
    %v3432 = vmul.f32 %v3203, %v3048
    %v3433 = vmul.f32 %v3208, %v3049
    %v3434 = vmul.f32 %v3213, %v3050
    %v3435 = vmul.f32 %v3218, %v3051
    %v3436 = vmul.f32 %v3223, %v3052
    %v3437 = vmul.f32 %v3228, %v3053
    %v3438 = vmul.f32 %v3233, %v3054
    %v3439 = vmul.f32 %v3238, %v3055
    %v3440 = vmul.f32 %v3243, %v3056
    %v3441 = vmul.f32 %v3248, %v3057
    %v3442 = vmul.f32 %v3253, %v3058
    %v3443 = vmul.f32 %v3258, %v3059
    %v3444 = vmul.f32 %v3263, %v3060
    %v3445 = vmul.f32 %v3268, %v3061
    %v3446 = vmul.f32 %v3273, %v3062
    %v3447 = vmul.f32 %v3278, %v3063
    %v3448 = vmul.f32 %v3283, %v3064
    %v3449 = vmul.f32 %v3288, %v3065
    %v3450 = vmul.f32 %v3293, %v3066
    %v3451 = vmul.f32 %v3298, %v3067
    %v3452 = vmul.f32 %v3303, %v3068
    %v3453 = vmul.f32 %v3308, %v3069
    %v3454 = vmul.f32 %v3313, %v3070
    %v3455 = vmul.f32 %v3318, %v3071
    %v3456 = vmul.f32 %v3323, %v3072
    %v3457 = vmul.f32 %v3328, %v3073
    %v3458 = vmul.f32 %v3333, %v3074
    %v3459 = vmul.f32 %v3338, %v3075
    %v3460 = vmul.f32 %v3343, %v3076
    %v3461 = vmul.f32 %v3348, %v3077
    %v3462 = vmul.f32 %v3353, %v3078
    %v3463 = vmul.f32 %v3358, %v3079
    %v3464 = vmul.f32 %v3363, %v3080
    %v3465 = vmul.f32 %v3368, %v3081
    %v3466 = vmul.f32 %v3373, %v3082
    %v3467 = vmul.f32 %v3378, %v3083
    %v3468 = vmul.f32 %v3383, %v3084
    %v3469 = vmul.f32 %v3388, %v3085
    %v3470 = vmul.f32 %v3393, %v3086
    %v3471 = vmul.f32 %v3398, %v3087
    %v3472 = vmul.f32 %v3403, %v3088
    %v3473 = vmul.f32 %v3408, %v3089
    %v3474 = vpack.c.bf16 %v2452, %v2450
    %v3475 = vpack.c.bf16 %v2456, %v2454
    %v3476 = vpack.c.bf16 %v2460, %v2458
    %v3477 = vpack.c.bf16 %v2464, %v2462
    %v3478 = vpack.c.bf16 %v2468, %v2466
    %v3479 = vpack.c.bf16 %v2472, %v2470
    %v3480 = vpack.c.bf16 %v2476, %v2474
    %v3481 = vpack.c.bf16 %v2480, %v2478
    %v3482 = vpack.c.bf16 %v2484, %v2482
    %v3483 = vpack.c.bf16 %v2488, %v2486
    %v3484 = vpack.c.bf16 %v2492, %v2490
    %v3485 = vpack.c.bf16 %v2496, %v2494
    %v3486 = vpack.c.bf16 %v2500, %v2498
    %v3487 = vpack.c.bf16 %v2504, %v2502
    %v3488 = vpack.c.bf16 %v2508, %v2506
    %v3489 = vpack.c.bf16 %v2512, %v2510
    %v3490 = vpack.c.bf16 %v2516, %v2514
    %v3491 = vpack.c.bf16 %v2520, %v2518
    %v3492 = vpack.c.bf16 %v2524, %v2522
    %v3493 = vpack.c.bf16 %v2528, %v2526
    %v3494 = vpack.c.bf16 %v2532, %v2530
    %v3495 = vpack.c.bf16 %v2536, %v2534
    %v3496 = vpack.c.bf16 %v2540, %v2538
    %v3497 = vpack.c.bf16 %v2544, %v2542
    %v3498 = vpack.c.bf16 %v2548, %v2546
    %v3499 = vpack.c.bf16 %v2552, %v2550
    %v3500 = vpack.c.bf16 %v2556, %v2554
    %v3501 = vpack.c.bf16 %v2560, %v2558
    %v3502 = vpack.c.bf16 %v2564, %v2562
    %v3503 = vpack.c.bf16 %v2568, %v2566
    %v3504 = vpack.c.bf16 %v2572, %v2570
    %v3505 = vpack.c.bf16 %v2576, %v2574
    %v3514 = vunpack.c.l.b16 %v385
    %v3515 = vunpack.c.l.b16 %v386
    %v3516 = vunpack.c.l.b16 %v387
    %v3517 = vunpack.c.l.b16 %v388
    %v3518 = vunpack.c.l.b16 %v389
    %v3519 = vunpack.c.l.b16 %v390
    %v3520 = vunpack.c.l.b16 %v391
    %v3521 = vunpack.c.l.b16 %v392
    %v3522 = vpack.c.b16 %v3515, %v3514
    %v3523 = vpack.c.b16 %v3517, %v3516
    %v3524 = vpack.c.b16 %v3519, %v3518
    %v3525 = vpack.c.b16 %v3521, %v3520
    %v3531 = vsel %vm1616, %v3474, 0
    %v3534 = vsel %vm1616, %v3475, 0
    %v3537 = vsel %vm1616, %v3476, 0
    %v3540 = vsel %vm1616, %v3477, 0
    %3542 = vmatprep.subr.bf16.mxu0 0
    %3543 = vmatpush1.bf16.msra.mxu0 %v3522
    %3544 = vmatprep.subr.bf16.mxu0 0
    %3545 = vmatpush1.bf16.msra.mxu0 %v3523
    %3546 = vmatprep.subr.bf16.mxu0 0
    %3547 = vmatpush1.bf16.msra.mxu0 %v3524
    %3548 = vmatprep.subr.bf16.mxu0 0
    %3549 = vmatpush1.bf16.msra.mxu0 %v3525
    %3550 = vmatprep.subr.bf16.mxu0 0
    %3551 = vmatpush1.bf16.msra.mxu0 0
    %3552 = vmatprep.subr.bf16.mxu0 0
    %3553 = vmatpush1.bf16.msra.mxu0 0
    %3554 = vmatprep.subr.bf16.mxu0 0
    %3555 = vmatpush1.bf16.msra.mxu0 0
    %3556 = vmatprep.subr.bf16.mxu0 0
    %3557 = vmatpush1.bf16.msra.mxu0 0
    %3558 = vmatprep.subr.bf16.mxu0 0
    %3559 = vmatpush1.bf16.msra.mxu0 0
    %3560 = vmatprep.subr.bf16.mxu0 0
    %3561 = vmatpush1.bf16.msra.mxu0 0
    %3562 = vmatprep.subr.bf16.mxu0 0
    %3563 = vmatpush1.bf16.msra.mxu0 0
    %3564 = vmatprep.subr.bf16.mxu0 0
    %3565 = vmatpush1.bf16.msra.mxu0 0
    %3566 = vmatprep.subr.bf16.mxu0 0
    %3567 = vmatpush1.bf16.msra.mxu0 0
    %3568 = vmatprep.subr.bf16.mxu0 0
    %3569 = vmatpush1.bf16.msra.mxu0 0
    %3570 = vmatprep.subr.bf16.mxu0 0
    %3571 = vmatpush1.bf16.msra.mxu0 0
    %3572 = vmatprep.subr.bf16.mxu0 0
    %3573 = vmatpush1.bf16.msra.mxu0 0
    %3574 = vmatprep.mubr.bf16.mxu0 0
    %3575 = vmatmul.mubr.bf16.gmra.mrb[0].mxu0 %v3531
    %v3576 = vpop.f32.mrb[0].mxu0
    %v3577 = vadd.f32 0.0, %v3576
    %v3578 = vpop.f32.mrb[0].mxu0
    %v3579 = vpop.f32.mrb[0].mxu0
    %v3580 = vadd.f32 0.0, %v3579
    %v3581 = vpop.f32.mrb[0].mxu0
    %3582 = vmatprep.mubr.bf16.mxu0 0
    %3583 = vmatmul.mubr.bf16.gmra.mrb[0].mxu0 %v3534
    %v3584 = vpop.f32.mrb[0].mxu0
    %v3585 = vadd.f32 0.0, %v3584
    %v3586 = vpop.f32.mrb[0].mxu0
    %v3587 = vpop.f32.mrb[0].mxu0
    %v3588 = vadd.f32 0.0, %v3587
    %v3589 = vpop.f32.mrb[0].mxu0
    %3590 = vmatprep.mubr.bf16.mxu0 0
    %3591 = vmatmul.mubr.bf16.gmra.mrb[0].mxu0 %v3537
    %v3592 = vpop.f32.mrb[0].mxu0
    %v3593 = vadd.f32 0.0, %v3592
    %v3594 = vpop.f32.mrb[0].mxu0
    %v3595 = vpop.f32.mrb[0].mxu0
    %v3596 = vadd.f32 0.0, %v3595
    %v3597 = vpop.f32.mrb[0].mxu0
    %3598 = vmatprep.mubr.bf16.mxu0 0
    %3599 = vmatmul.mubr.bf16.gmra.mrb[0].mxu0 %v3540
    %v3600 = vpop.f32.mrb[0].mxu0
    %v3601 = vadd.f32 0.0, %v3600
    %v3602 = vpop.f32.mrb[0].mxu0
    %v3603 = vpop.f32.mrb[0].mxu0
    %v3604 = vadd.f32 0.0, %v3603
    %v3605 = vpop.f32.mrb[0].mxu0
    %3606 = vdwg.mxu0
    %v3615 = vunpack.c.l.b16 %v393
    %v3616 = vunpack.c.l.b16 %v394
    %v3617 = vunpack.c.l.b16 %v395
    %v3618 = vunpack.c.l.b16 %v396
    %v3619 = vunpack.c.l.b16 %v397
    %v3620 = vunpack.c.l.b16 %v398
    %v3621 = vunpack.c.l.b16 %v399
    %v3622 = vunpack.c.l.b16 %v400
    %v3623 = vpack.c.b16 %v3616, %v3615
    %v3624 = vpack.c.b16 %v3618, %v3617
    %v3625 = vpack.c.b16 %v3620, %v3619
    %v3626 = vpack.c.b16 %v3622, %v3621
    %v3632 = vsel %vm1616, %v3478, 0
    %v3635 = vsel %vm1616, %v3479, 0
    %v3638 = vsel %vm1616, %v3480, 0
    %v3641 = vsel %vm1616, %v3481, 0
    %3643 = vmatprep.subr.bf16.mxu0 0
    %3644 = vmatpush1.bf16.msra.mxu0 %v3623
    %3645 = vmatprep.subr.bf16.mxu0 0
    %3646 = vmatpush1.bf16.msra.mxu0 %v3624
    %3647 = vmatprep.subr.bf16.mxu0 0
    %3648 = vmatpush1.bf16.msra.mxu0 %v3625
    %3649 = vmatprep.subr.bf16.mxu0 0
    %3650 = vmatpush1.bf16.msra.mxu0 %v3626
    %3651 = vmatprep.subr.bf16.mxu0 0
    %3652 = vmatpush1.bf16.msra.mxu0 0
    %3653 = vmatprep.subr.bf16.mxu0 0
    %3654 = vmatpush1.bf16.msra.mxu0 0
    %3655 = vmatprep.subr.bf16.mxu0 0
    %3656 = vmatpush1.bf16.msra.mxu0 0
    %3657 = vmatprep.subr.bf16.mxu0 0
    %3658 = vmatpush1.bf16.msra.mxu0 0
    %3659 = vmatprep.subr.bf16.mxu0 0
    %3660 = vmatpush1.bf16.msra.mxu0 0
    %3661 = vmatprep.subr.bf16.mxu0 0
    %3662 = vmatpush1.bf16.msra.mxu0 0
    %3663 = vmatprep.subr.bf16.mxu0 0
    %3664 = vmatpush1.bf16.msra.mxu0 0
    %3665 = vmatprep.subr.bf16.mxu0 0
    %3666 = vmatpush1.bf16.msra.mxu0 0
    %3667 = vmatprep.subr.bf16.mxu0 0
    %3668 = vmatpush1.bf16.msra.mxu0 0
    %3669 = vmatprep.subr.bf16.mxu0 0
    %3670 = vmatpush1.bf16.msra.mxu0 0
    %3671 = vmatprep.subr.bf16.mxu0 0
    %3672 = vmatpush1.bf16.msra.mxu0 0
    %3673 = vmatprep.subr.bf16.mxu0 0
    %3674 = vmatpush1.bf16.msra.mxu0 0
    %3675 = vmatprep.mubr.bf16.mxu0 0
    %3676 = vmatmul.mubr.bf16.gmra.mrb[0].mxu0 %v3632
    %v3677 = vpop.f32.mrb[0].mxu0
    %v3678 = vadd.f32 0.0, %v3677
    %v3679 = vpop.f32.mrb[0].mxu0
    %v3680 = vpop.f32.mrb[0].mxu0
    %v3681 = vadd.f32 0.0, %v3680
    %v3682 = vpop.f32.mrb[0].mxu0
    %3683 = vmatprep.mubr.bf16.mxu0 0
    %3684 = vmatmul.mubr.bf16.gmra.mrb[0].mxu0 %v3635
    %v3685 = vpop.f32.mrb[0].mxu0
    %v3686 = vadd.f32 0.0, %v3685
    %v3687 = vpop.f32.mrb[0].mxu0
    %v3688 = vpop.f32.mrb[0].mxu0
    %v3689 = vadd.f32 0.0, %v3688
    %v3690 = vpop.f32.mrb[0].mxu0
    %3691 = vmatprep.mubr.bf16.mxu0 0
    %3692 = vmatmul.mubr.bf16.gmra.mrb[0].mxu0 %v3638
    %v3693 = vpop.f32.mrb[0].mxu0
    %v3694 = vadd.f32 0.0, %v3693
    %v3695 = vpop.f32.mrb[0].mxu0
    %v3696 = vpop.f32.mrb[0].mxu0
    %v3697 = vadd.f32 0.0, %v3696
    %v3698 = vpop.f32.mrb[0].mxu0
    %3699 = vmatprep.mubr.bf16.mxu0 0
    %3700 = vmatmul.mubr.bf16.gmra.mrb[0].mxu0 %v3641
    %v3701 = vpop.f32.mrb[0].mxu0
    %v3702 = vadd.f32 0.0, %v3701
    %v3703 = vpop.f32.mrb[0].mxu0
    %v3704 = vpop.f32.mrb[0].mxu0
    %v3705 = vadd.f32 0.0, %v3704
    %v3706 = vpop.f32.mrb[0].mxu0
    %3707 = vdwg.mxu0
    %v3716 = vunpack.c.l.b16 %v401
    %v3717 = vunpack.c.l.b16 %v402
    %v3718 = vunpack.c.l.b16 %v403
    %v3719 = vunpack.c.l.b16 %v404
    %v3720 = vunpack.c.l.b16 %v405
    %v3721 = vunpack.c.l.b16 %v406
    %v3722 = vunpack.c.l.b16 %v407
    %v3723 = vunpack.c.l.b16 %v408
    %v3724 = vpack.c.b16 %v3717, %v3716
    %v3725 = vpack.c.b16 %v3719, %v3718
    %v3726 = vpack.c.b16 %v3721, %v3720
    %v3727 = vpack.c.b16 %v3723, %v3722
    %v3733 = vsel %vm1616, %v3482, 0
    %v3736 = vsel %vm1616, %v3483, 0
    %v3739 = vsel %vm1616, %v3484, 0
    %v3742 = vsel %vm1616, %v3485, 0
    %3744 = vmatprep.subr.bf16.mxu0 0
    %3745 = vmatpush1.bf16.msra.mxu0 %v3724
    %3746 = vmatprep.subr.bf16.mxu0 0
    %3747 = vmatpush1.bf16.msra.mxu0 %v3725
    %3748 = vmatprep.subr.bf16.mxu0 0
    %3749 = vmatpush1.bf16.msra.mxu0 %v3726
    %3750 = vmatprep.subr.bf16.mxu0 0
    %3751 = vmatpush1.bf16.msra.mxu0 %v3727
    %3752 = vmatprep.subr.bf16.mxu0 0
    %3753 = vmatpush1.bf16.msra.mxu0 0
    %3754 = vmatprep.subr.bf16.mxu0 0
    %3755 = vmatpush1.bf16.msra.mxu0 0
    %3756 = vmatprep.subr.bf16.mxu0 0
    %3757 = vmatpush1.bf16.msra.mxu0 0
    %3758 = vmatprep.subr.bf16.mxu0 0
    %3759 = vmatpush1.bf16.msra.mxu0 0
    %3760 = vmatprep.subr.bf16.mxu0 0
    %3761 = vmatpush1.bf16.msra.mxu0 0
    %3762 = vmatprep.subr.bf16.mxu0 0
    %3763 = vmatpush1.bf16.msra.mxu0 0
    %3764 = vmatprep.subr.bf16.mxu0 0
    %3765 = vmatpush1.bf16.msra.mxu0 0
    %3766 = vmatprep.subr.bf16.mxu0 0
    %3767 = vmatpush1.bf16.msra.mxu0 0
    %3768 = vmatprep.subr.bf16.mxu0 0
    %3769 = vmatpush1.bf16.msra.mxu0 0
    %3770 = vmatprep.subr.bf16.mxu0 0
    %3771 = vmatpush1.bf16.msra.mxu0 0
    %3772 = vmatprep.subr.bf16.mxu0 0
    %3773 = vmatpush1.bf16.msra.mxu0 0
    %3774 = vmatprep.subr.bf16.mxu0 0
    %3775 = vmatpush1.bf16.msra.mxu0 0
    %3776 = vmatprep.mubr.bf16.mxu0 0
    %3777 = vmatmul.mubr.bf16.gmra.mrb[0].mxu0 %v3733
    %v3778 = vpop.f32.mrb[0].mxu0
    %v3779 = vadd.f32 0.0, %v3778
    %v3780 = vpop.f32.mrb[0].mxu0
    %v3781 = vpop.f32.mrb[0].mxu0
    %v3782 = vadd.f32 0.0, %v3781
    %v3783 = vpop.f32.mrb[0].mxu0
    %3784 = vmatprep.mubr.bf16.mxu0 0
    %3785 = vmatmul.mubr.bf16.gmra.mrb[0].mxu0 %v3736
    %v3786 = vpop.f32.mrb[0].mxu0
    %v3787 = vadd.f32 0.0, %v3786
    %v3788 = vpop.f32.mrb[0].mxu0
    %v3789 = vpop.f32.mrb[0].mxu0
    %v3790 = vadd.f32 0.0, %v3789
    %v3791 = vpop.f32.mrb[0].mxu0
    %3792 = vmatprep.mubr.bf16.mxu0 0
    %3793 = vmatmul.mubr.bf16.gmra.mrb[0].mxu0 %v3739
    %v3794 = vpop.f32.mrb[0].mxu0
    %v3795 = vadd.f32 0.0, %v3794
    %v3796 = vpop.f32.mrb[0].mxu0
    %v3797 = vpop.f32.mrb[0].mxu0
    %v3798 = vadd.f32 0.0, %v3797
    %v3799 = vpop.f32.mrb[0].mxu0
    %3800 = vmatprep.mubr.bf16.mxu0 0
    %3801 = vmatmul.mubr.bf16.gmra.mrb[0].mxu0 %v3742
    %v3802 = vpop.f32.mrb[0].mxu0
    %v3803 = vadd.f32 0.0, %v3802
    %v3804 = vpop.f32.mrb[0].mxu0
    %v3805 = vpop.f32.mrb[0].mxu0
    %v3806 = vadd.f32 0.0, %v3805
    %v3807 = vpop.f32.mrb[0].mxu0
    %3808 = vdwg.mxu0
    %v3817 = vunpack.c.l.b16 %v409
    %v3818 = vunpack.c.l.b16 %v410
    %v3819 = vunpack.c.l.b16 %v411
    %v3820 = vunpack.c.l.b16 %v412
    %v3821 = vunpack.c.l.b16 %v413
    %v3822 = vunpack.c.l.b16 %v414
    %v3823 = vunpack.c.l.b16 %v415
    %v3824 = vunpack.c.l.b16 %v416
    %v3825 = vpack.c.b16 %v3818, %v3817
    %v3826 = vpack.c.b16 %v3820, %v3819
    %v3827 = vpack.c.b16 %v3822, %v3821
    %v3828 = vpack.c.b16 %v3824, %v3823
    %v3834 = vsel %vm1616, %v3486, 0
    %v3837 = vsel %vm1616, %v3487, 0
    %v3840 = vsel %vm1616, %v3488, 0
    %v3843 = vsel %vm1616, %v3489, 0
    %3845 = vmatprep.subr.bf16.mxu0 0
    %3846 = vmatpush1.bf16.msra.mxu0 %v3825
    %3847 = vmatprep.subr.bf16.mxu0 0
    %3848 = vmatpush1.bf16.msra.mxu0 %v3826
    %3849 = vmatprep.subr.bf16.mxu0 0
    %3850 = vmatpush1.bf16.msra.mxu0 %v3827
    %3851 = vmatprep.subr.bf16.mxu0 0
    %3852 = vmatpush1.bf16.msra.mxu0 %v3828
    %3853 = vmatprep.subr.bf16.mxu0 0
    %3854 = vmatpush1.bf16.msra.mxu0 0
    %3855 = vmatprep.subr.bf16.mxu0 0
    %3856 = vmatpush1.bf16.msra.mxu0 0
    %3857 = vmatprep.subr.bf16.mxu0 0
    %3858 = vmatpush1.bf16.msra.mxu0 0
    %3859 = vmatprep.subr.bf16.mxu0 0
    %3860 = vmatpush1.bf16.msra.mxu0 0
    %3861 = vmatprep.subr.bf16.mxu0 0
    %3862 = vmatpush1.bf16.msra.mxu0 0
    %3863 = vmatprep.subr.bf16.mxu0 0
    %3864 = vmatpush1.bf16.msra.mxu0 0
    %3865 = vmatprep.subr.bf16.mxu0 0
    %3866 = vmatpush1.bf16.msra.mxu0 0
    %3867 = vmatprep.subr.bf16.mxu0 0
    %3868 = vmatpush1.bf16.msra.mxu0 0
    %3869 = vmatprep.subr.bf16.mxu0 0
    %3870 = vmatpush1.bf16.msra.mxu0 0
    %3871 = vmatprep.subr.bf16.mxu0 0
    %3872 = vmatpush1.bf16.msra.mxu0 0
    %3873 = vmatprep.subr.bf16.mxu0 0
    %3874 = vmatpush1.bf16.msra.mxu0 0
    %3875 = vmatprep.subr.bf16.mxu0 0
    %3876 = vmatpush1.bf16.msra.mxu0 0
    %3877 = vmatprep.mubr.bf16.mxu0 0
    %3878 = vmatmul.mubr.bf16.gmra.mrb[0].mxu0 %v3834
    %v3879 = vpop.f32.mrb[0].mxu0
    %v3880 = vadd.f32 0.0, %v3879
    %v3881 = vpop.f32.mrb[0].mxu0
    %v3882 = vpop.f32.mrb[0].mxu0
    %v3883 = vadd.f32 0.0, %v3882
    %v3884 = vpop.f32.mrb[0].mxu0
    %3885 = vmatprep.mubr.bf16.mxu0 0
    %3886 = vmatmul.mubr.bf16.gmra.mrb[0].mxu0 %v3837
    %v3887 = vpop.f32.mrb[0].mxu0
    %v3888 = vadd.f32 0.0, %v3887
    %v3889 = vpop.f32.mrb[0].mxu0
    %v3890 = vpop.f32.mrb[0].mxu0
    %v3891 = vadd.f32 0.0, %v3890
    %v3892 = vpop.f32.mrb[0].mxu0
    %3893 = vmatprep.mubr.bf16.mxu0 0
    %3894 = vmatmul.mubr.bf16.gmra.mrb[0].mxu0 %v3840
    %v3895 = vpop.f32.mrb[0].mxu0
    %v3896 = vadd.f32 0.0, %v3895
    %v3897 = vpop.f32.mrb[0].mxu0
    %v3898 = vpop.f32.mrb[0].mxu0
    %v3899 = vadd.f32 0.0, %v3898
    %v3900 = vpop.f32.mrb[0].mxu0
    %3901 = vmatprep.mubr.bf16.mxu0 0
    %3902 = vmatmul.mubr.bf16.gmra.mrb[0].mxu0 %v3843
    %v3903 = vpop.f32.mrb[0].mxu0
    %v3904 = vadd.f32 0.0, %v3903
    %v3905 = vpop.f32.mrb[0].mxu0
    %v3906 = vpop.f32.mrb[0].mxu0
    %v3907 = vadd.f32 0.0, %v3906
    %v3908 = vpop.f32.mrb[0].mxu0
    %3909 = vdwg.mxu0
    %v3918 = vunpack.c.l.b16 %v417
    %v3919 = vunpack.c.l.b16 %v418
    %v3920 = vunpack.c.l.b16 %v419
    %v3921 = vunpack.c.l.b16 %v420
    %v3922 = vunpack.c.l.b16 %v421
    %v3923 = vunpack.c.l.b16 %v422
    %v3924 = vunpack.c.l.b16 %v423
    %v3925 = vunpack.c.l.b16 %v424
    %v3926 = vpack.c.b16 %v3919, %v3918
    %v3927 = vpack.c.b16 %v3921, %v3920
    %v3928 = vpack.c.b16 %v3923, %v3922
    %v3929 = vpack.c.b16 %v3925, %v3924
    %v3935 = vsel %vm1616, %v3490, 0
    %v3938 = vsel %vm1616, %v3491, 0
    %v3941 = vsel %vm1616, %v3492, 0
    %v3944 = vsel %vm1616, %v3493, 0
    %3946 = vmatprep.subr.bf16.mxu0 0
    %3947 = vmatpush1.bf16.msra.mxu0 %v3926
    %3948 = vmatprep.subr.bf16.mxu0 0
    %3949 = vmatpush1.bf16.msra.mxu0 %v3927
    %3950 = vmatprep.subr.bf16.mxu0 0
    %3951 = vmatpush1.bf16.msra.mxu0 %v3928
    %3952 = vmatprep.subr.bf16.mxu0 0
    %3953 = vmatpush1.bf16.msra.mxu0 %v3929
    %3954 = vmatprep.subr.bf16.mxu0 0
    %3955 = vmatpush1.bf16.msra.mxu0 0
    %3956 = vmatprep.subr.bf16.mxu0 0
    %3957 = vmatpush1.bf16.msra.mxu0 0
    %3958 = vmatprep.subr.bf16.mxu0 0
    %3959 = vmatpush1.bf16.msra.mxu0 0
    %3960 = vmatprep.subr.bf16.mxu0 0
    %3961 = vmatpush1.bf16.msra.mxu0 0
    %3962 = vmatprep.subr.bf16.mxu0 0
    %3963 = vmatpush1.bf16.msra.mxu0 0
    %3964 = vmatprep.subr.bf16.mxu0 0
    %3965 = vmatpush1.bf16.msra.mxu0 0
    %3966 = vmatprep.subr.bf16.mxu0 0
    %3967 = vmatpush1.bf16.msra.mxu0 0
    %3968 = vmatprep.subr.bf16.mxu0 0
    %3969 = vmatpush1.bf16.msra.mxu0 0
    %3970 = vmatprep.subr.bf16.mxu0 0
    %3971 = vmatpush1.bf16.msra.mxu0 0
    %3972 = vmatprep.subr.bf16.mxu0 0
    %3973 = vmatpush1.bf16.msra.mxu0 0
    %3974 = vmatprep.subr.bf16.mxu0 0
    %3975 = vmatpush1.bf16.msra.mxu0 0
    %3976 = vmatprep.subr.bf16.mxu0 0
    %3977 = vmatpush1.bf16.msra.mxu0 0
    %3978 = vmatprep.mubr.bf16.mxu0 0
    %3979 = vmatmul.mubr.bf16.gmra.mrb[0].mxu0 %v3935
    %v3980 = vpop.f32.mrb[0].mxu0
    %v3981 = vadd.f32 0.0, %v3980
    %v3982 = vpop.f32.mrb[0].mxu0
    %v3983 = vpop.f32.mrb[0].mxu0
    %v3984 = vadd.f32 0.0, %v3983
    %v3985 = vpop.f32.mrb[0].mxu0
    %3986 = vmatprep.mubr.bf16.mxu0 0
    %3987 = vmatmul.mubr.bf16.gmra.mrb[0].mxu0 %v3938
    %v3988 = vpop.f32.mrb[0].mxu0
    %v3989 = vadd.f32 0.0, %v3988
    %v3990 = vpop.f32.mrb[0].mxu0
    %v3991 = vpop.f32.mrb[0].mxu0
    %v3992 = vadd.f32 0.0, %v3991
    %v3993 = vpop.f32.mrb[0].mxu0
    %3994 = vmatprep.mubr.bf16.mxu0 0
    %3995 = vmatmul.mubr.bf16.gmra.mrb[0].mxu0 %v3941
    %v3996 = vpop.f32.mrb[0].mxu0
    %v3997 = vadd.f32 0.0, %v3996
    %v3998 = vpop.f32.mrb[0].mxu0
    %v3999 = vpop.f32.mrb[0].mxu0
    %v4000 = vadd.f32 0.0, %v3999
    %v4001 = vpop.f32.mrb[0].mxu0
    %4002 = vmatprep.mubr.bf16.mxu0 0
    %4003 = vmatmul.mubr.bf16.gmra.mrb[0].mxu0 %v3944
    %v4004 = vpop.f32.mrb[0].mxu0
    %v4005 = vadd.f32 0.0, %v4004
    %v4006 = vpop.f32.mrb[0].mxu0
    %v4007 = vpop.f32.mrb[0].mxu0
    %v4008 = vadd.f32 0.0, %v4007
    %v4009 = vpop.f32.mrb[0].mxu0
    %4010 = vdwg.mxu0
    %v4019 = vunpack.c.l.b16 %v425
    %v4020 = vunpack.c.l.b16 %v426
    %v4021 = vunpack.c.l.b16 %v427
    %v4022 = vunpack.c.l.b16 %v428
    %v4023 = vunpack.c.l.b16 %v429
    %v4024 = vunpack.c.l.b16 %v430
    %v4025 = vunpack.c.l.b16 %v431
    %v4026 = vunpack.c.l.b16 %v432
    %v4027 = vpack.c.b16 %v4020, %v4019
    %v4028 = vpack.c.b16 %v4022, %v4021
    %v4029 = vpack.c.b16 %v4024, %v4023
    %v4030 = vpack.c.b16 %v4026, %v4025
    %v4036 = vsel %vm1616, %v3494, 0
    %v4039 = vsel %vm1616, %v3495, 0
    %v4042 = vsel %vm1616, %v3496, 0
    %v4045 = vsel %vm1616, %v3497, 0
    %4047 = vmatprep.subr.bf16.mxu0 0
    %4048 = vmatpush1.bf16.msra.mxu0 %v4027
    %4049 = vmatprep.subr.bf16.mxu0 0
    %4050 = vmatpush1.bf16.msra.mxu0 %v4028
    %4051 = vmatprep.subr.bf16.mxu0 0
    %4052 = vmatpush1.bf16.msra.mxu0 %v4029
    %4053 = vmatprep.subr.bf16.mxu0 0
    %4054 = vmatpush1.bf16.msra.mxu0 %v4030
    %4055 = vmatprep.subr.bf16.mxu0 0
    %4056 = vmatpush1.bf16.msra.mxu0 0
    %4057 = vmatprep.subr.bf16.mxu0 0
    %4058 = vmatpush1.bf16.msra.mxu0 0
    %4059 = vmatprep.subr.bf16.mxu0 0
    %4060 = vmatpush1.bf16.msra.mxu0 0
    %4061 = vmatprep.subr.bf16.mxu0 0
    %4062 = vmatpush1.bf16.msra.mxu0 0
    %4063 = vmatprep.subr.bf16.mxu0 0
    %4064 = vmatpush1.bf16.msra.mxu0 0
    %4065 = vmatprep.subr.bf16.mxu0 0
    %4066 = vmatpush1.bf16.msra.mxu0 0
    %4067 = vmatprep.subr.bf16.mxu0 0
    %4068 = vmatpush1.bf16.msra.mxu0 0
    %4069 = vmatprep.subr.bf16.mxu0 0
    %4070 = vmatpush1.bf16.msra.mxu0 0
    %4071 = vmatprep.subr.bf16.mxu0 0
    %4072 = vmatpush1.bf16.msra.mxu0 0
    %4073 = vmatprep.subr.bf16.mxu0 0
    %4074 = vmatpush1.bf16.msra.mxu0 0
    %4075 = vmatprep.subr.bf16.mxu0 0
    %4076 = vmatpush1.bf16.msra.mxu0 0
    %4077 = vmatprep.subr.bf16.mxu0 0
    %4078 = vmatpush1.bf16.msra.mxu0 0
    %4079 = vmatprep.mubr.bf16.mxu0 0
    %4080 = vmatmul.mubr.bf16.gmra.mrb[0].mxu0 %v4036
    %v4081 = vpop.f32.mrb[0].mxu0
    %v4082 = vadd.f32 0.0, %v4081
    %v4083 = vpop.f32.mrb[0].mxu0
    %v4084 = vpop.f32.mrb[0].mxu0
    %v4085 = vadd.f32 0.0, %v4084
    %v4086 = vpop.f32.mrb[0].mxu0
    %4087 = vmatprep.mubr.bf16.mxu0 0
    %4088 = vmatmul.mubr.bf16.gmra.mrb[0].mxu0 %v4039
    %v4089 = vpop.f32.mrb[0].mxu0
    %v4090 = vadd.f32 0.0, %v4089
    %v4091 = vpop.f32.mrb[0].mxu0
    %v4092 = vpop.f32.mrb[0].mxu0
    %v4093 = vadd.f32 0.0, %v4092
    %v4094 = vpop.f32.mrb[0].mxu0
    %4095 = vmatprep.mubr.bf16.mxu0 0
    %4096 = vmatmul.mubr.bf16.gmra.mrb[0].mxu0 %v4042
    %v4097 = vpop.f32.mrb[0].mxu0
    %v4098 = vadd.f32 0.0, %v4097
    %v4099 = vpop.f32.mrb[0].mxu0
    %v4100 = vpop.f32.mrb[0].mxu0
    %v4101 = vadd.f32 0.0, %v4100
    %v4102 = vpop.f32.mrb[0].mxu0
    %4103 = vmatprep.mubr.bf16.mxu0 0
    %4104 = vmatmul.mubr.bf16.gmra.mrb[0].mxu0 %v4045
    %v4105 = vpop.f32.mrb[0].mxu0
    %v4106 = vadd.f32 0.0, %v4105
    %v4107 = vpop.f32.mrb[0].mxu0
    %v4108 = vpop.f32.mrb[0].mxu0
    %v4109 = vadd.f32 0.0, %v4108
    %v4110 = vpop.f32.mrb[0].mxu0
    %4111 = vdwg.mxu0
    %v4120 = vunpack.c.l.b16 %v433
    %v4121 = vunpack.c.l.b16 %v434
    %v4122 = vunpack.c.l.b16 %v435
    %v4123 = vunpack.c.l.b16 %v436
    %v4124 = vunpack.c.l.b16 %v437
    %v4125 = vunpack.c.l.b16 %v438
    %v4126 = vunpack.c.l.b16 %v439
    %v4127 = vunpack.c.l.b16 %v440
    %v4128 = vpack.c.b16 %v4121, %v4120
    %v4129 = vpack.c.b16 %v4123, %v4122
    %v4130 = vpack.c.b16 %v4125, %v4124
    %v4131 = vpack.c.b16 %v4127, %v4126
    %v4137 = vsel %vm1616, %v3498, 0
    %v4140 = vsel %vm1616, %v3499, 0
    %v4143 = vsel %vm1616, %v3500, 0
    %v4146 = vsel %vm1616, %v3501, 0
    %4148 = vmatprep.subr.bf16.mxu0 0
    %4149 = vmatpush1.bf16.msra.mxu0 %v4128
    %4150 = vmatprep.subr.bf16.mxu0 0
    %4151 = vmatpush1.bf16.msra.mxu0 %v4129
    %4152 = vmatprep.subr.bf16.mxu0 0
    %4153 = vmatpush1.bf16.msra.mxu0 %v4130
    %4154 = vmatprep.subr.bf16.mxu0 0
    %4155 = vmatpush1.bf16.msra.mxu0 %v4131
    %4156 = vmatprep.subr.bf16.mxu0 0
    %4157 = vmatpush1.bf16.msra.mxu0 0
    %4158 = vmatprep.subr.bf16.mxu0 0
    %4159 = vmatpush1.bf16.msra.mxu0 0
    %4160 = vmatprep.subr.bf16.mxu0 0
    %4161 = vmatpush1.bf16.msra.mxu0 0
    %4162 = vmatprep.subr.bf16.mxu0 0
    %4163 = vmatpush1.bf16.msra.mxu0 0
    %4164 = vmatprep.subr.bf16.mxu0 0
    %4165 = vmatpush1.bf16.msra.mxu0 0
    %4166 = vmatprep.subr.bf16.mxu0 0
    %4167 = vmatpush1.bf16.msra.mxu0 0
    %4168 = vmatprep.subr.bf16.mxu0 0
    %4169 = vmatpush1.bf16.msra.mxu0 0
    %4170 = vmatprep.subr.bf16.mxu0 0
    %4171 = vmatpush1.bf16.msra.mxu0 0
    %4172 = vmatprep.subr.bf16.mxu0 0
    %4173 = vmatpush1.bf16.msra.mxu0 0
    %4174 = vmatprep.subr.bf16.mxu0 0
    %4175 = vmatpush1.bf16.msra.mxu0 0
    %4176 = vmatprep.subr.bf16.mxu0 0
    %4177 = vmatpush1.bf16.msra.mxu0 0
    %4178 = vmatprep.subr.bf16.mxu0 0
    %4179 = vmatpush1.bf16.msra.mxu0 0
    %4180 = vmatprep.mubr.bf16.mxu0 0
    %4181 = vmatmul.mubr.bf16.gmra.mrb[0].mxu0 %v4137
    %v4182 = vpop.f32.mrb[0].mxu0
    %v4183 = vadd.f32 0.0, %v4182
    %v4184 = vpop.f32.mrb[0].mxu0
    %v4185 = vpop.f32.mrb[0].mxu0
    %v4186 = vadd.f32 0.0, %v4185
    %v4187 = vpop.f32.mrb[0].mxu0
    %4188 = vmatprep.mubr.bf16.mxu0 0
    %4189 = vmatmul.mubr.bf16.gmra.mrb[0].mxu0 %v4140
    %v4190 = vpop.f32.mrb[0].mxu0
    %v4191 = vadd.f32 0.0, %v4190
    %v4192 = vpop.f32.mrb[0].mxu0
    %v4193 = vpop.f32.mrb[0].mxu0
    %v4194 = vadd.f32 0.0, %v4193
    %v4195 = vpop.f32.mrb[0].mxu0
    %4196 = vmatprep.mubr.bf16.mxu0 0
    %4197 = vmatmul.mubr.bf16.gmra.mrb[0].mxu0 %v4143
    %v4198 = vpop.f32.mrb[0].mxu0
    %v4199 = vadd.f32 0.0, %v4198
    %v4200 = vpop.f32.mrb[0].mxu0
    %v4201 = vpop.f32.mrb[0].mxu0
    %v4202 = vadd.f32 0.0, %v4201
    %v4203 = vpop.f32.mrb[0].mxu0
    %4204 = vmatprep.mubr.bf16.mxu0 0
    %4205 = vmatmul.mubr.bf16.gmra.mrb[0].mxu0 %v4146
    %v4206 = vpop.f32.mrb[0].mxu0
    %v4207 = vadd.f32 0.0, %v4206
    %v4208 = vpop.f32.mrb[0].mxu0
    %v4209 = vpop.f32.mrb[0].mxu0
    %v4210 = vadd.f32 0.0, %v4209
    %v4211 = vpop.f32.mrb[0].mxu0
    %4212 = vdwg.mxu0
    %v4221 = vunpack.c.l.b16 %v441
    %v4222 = vunpack.c.l.b16 %v442
    %v4223 = vunpack.c.l.b16 %v443
    %v4224 = vunpack.c.l.b16 %v444
    %v4225 = vunpack.c.l.b16 %v445
    %v4226 = vunpack.c.l.b16 %v446
    %v4227 = vunpack.c.l.b16 %v447
    %v4228 = vunpack.c.l.b16 %v448
    %v4229 = vpack.c.b16 %v4222, %v4221
    %v4230 = vpack.c.b16 %v4224, %v4223
    %v4231 = vpack.c.b16 %v4226, %v4225
    %v4232 = vpack.c.b16 %v4228, %v4227
    %v4238 = vsel %vm1616, %v3502, 0
    %v4241 = vsel %vm1616, %v3503, 0
    %v4244 = vsel %vm1616, %v3504, 0
    %v4247 = vsel %vm1616, %v3505, 0
    %4249 = vmatprep.subr.bf16.mxu0 0
    %4250 = vmatpush1.bf16.msra.mxu0 %v4229
    %4251 = vmatprep.subr.bf16.mxu0 0
    %4252 = vmatpush1.bf16.msra.mxu0 %v4230
    %4253 = vmatprep.subr.bf16.mxu0 0
    %4254 = vmatpush1.bf16.msra.mxu0 %v4231
    %4255 = vmatprep.subr.bf16.mxu0 0
    %4256 = vmatpush1.bf16.msra.mxu0 %v4232
    %4257 = vmatprep.subr.bf16.mxu0 0
    %4258 = vmatpush1.bf16.msra.mxu0 0
    %4259 = vmatprep.subr.bf16.mxu0 0
    %4260 = vmatpush1.bf16.msra.mxu0 0
    %4261 = vmatprep.subr.bf16.mxu0 0
    %4262 = vmatpush1.bf16.msra.mxu0 0
    %4263 = vmatprep.subr.bf16.mxu0 0
    %4264 = vmatpush1.bf16.msra.mxu0 0
    %4265 = vmatprep.subr.bf16.mxu0 0
    %4266 = vmatpush1.bf16.msra.mxu0 0
    %4267 = vmatprep.subr.bf16.mxu0 0
    %4268 = vmatpush1.bf16.msra.mxu0 0
    %4269 = vmatprep.subr.bf16.mxu0 0
    %4270 = vmatpush1.bf16.msra.mxu0 0
    %4271 = vmatprep.subr.bf16.mxu0 0
    %4272 = vmatpush1.bf16.msra.mxu0 0
    %4273 = vmatprep.subr.bf16.mxu0 0
    %4274 = vmatpush1.bf16.msra.mxu0 0
    %4275 = vmatprep.subr.bf16.mxu0 0
    %4276 = vmatpush1.bf16.msra.mxu0 0
    %4277 = vmatprep.subr.bf16.mxu0 0
    %4278 = vmatpush1.bf16.msra.mxu0 0
    %4279 = vmatprep.subr.bf16.mxu0 0
    %4280 = vmatpush1.bf16.msra.mxu0 0
    %4281 = vmatprep.mubr.bf16.mxu0 0
    %4282 = vmatmul.mubr.bf16.gmra.mrb[0].mxu0 %v4238
    %v4283 = vpop.f32.mrb[0].mxu0
    %v4284 = vadd.f32 0.0, %v4283
    %v4285 = vpop.f32.mrb[0].mxu0
    %v4286 = vpop.f32.mrb[0].mxu0
    %v4287 = vadd.f32 0.0, %v4286
    %v4288 = vpop.f32.mrb[0].mxu0
    %4289 = vmatprep.mubr.bf16.mxu0 0
    %4290 = vmatmul.mubr.bf16.gmra.mrb[0].mxu0 %v4241
    %v4291 = vpop.f32.mrb[0].mxu0
    %v4292 = vadd.f32 0.0, %v4291
    %v4293 = vpop.f32.mrb[0].mxu0
    %v4294 = vpop.f32.mrb[0].mxu0
    %v4295 = vadd.f32 0.0, %v4294
    %v4296 = vpop.f32.mrb[0].mxu0
    %4297 = vmatprep.mubr.bf16.mxu0 0
    %4298 = vmatmul.mubr.bf16.gmra.mrb[0].mxu0 %v4244
    %v4299 = vpop.f32.mrb[0].mxu0
    %v4300 = vadd.f32 0.0, %v4299
    %v4301 = vpop.f32.mrb[0].mxu0
    %v4302 = vpop.f32.mrb[0].mxu0
    %v4303 = vadd.f32 0.0, %v4302
    %v4304 = vpop.f32.mrb[0].mxu0
    %4305 = vmatprep.mubr.bf16.mxu0 0
    %4306 = vmatmul.mubr.bf16.gmra.mrb[0].mxu0 %v4247
    %v4307 = vpop.f32.mrb[0].mxu0
    %v4308 = vadd.f32 0.0, %v4307
    %v4309 = vpop.f32.mrb[0].mxu0
    %v4310 = vpop.f32.mrb[0].mxu0
    %v4311 = vadd.f32 0.0, %v4310
    %v4312 = vpop.f32.mrb[0].mxu0
    %4313 = vdwg.mxu0
    %v4314 = vadd.f32 %v3410, %v3577
    %v4315 = vadd.f32 %v3411, %v3580
    %v4316 = vadd.f32 %v3412, %v3585
    %v4317 = vadd.f32 %v3413, %v3588
    %v4318 = vadd.f32 %v3414, %v3593
    %v4319 = vadd.f32 %v3415, %v3596
    %v4320 = vadd.f32 %v3416, %v3601
    %v4321 = vadd.f32 %v3417, %v3604
    %v4322 = vadd.f32 %v3418, %v3678
    %v4323 = vadd.f32 %v3419, %v3681
    %v4324 = vadd.f32 %v3420, %v3686
    %v4325 = vadd.f32 %v3421, %v3689
    %v4326 = vadd.f32 %v3422, %v3694
    %v4327 = vadd.f32 %v3423, %v3697
    %v4328 = vadd.f32 %v3424, %v3702
    %v4329 = vadd.f32 %v3425, %v3705
    %v4330 = vadd.f32 %v3426, %v3779
    %v4331 = vadd.f32 %v3427, %v3782
    %v4332 = vadd.f32 %v3428, %v3787
    %v4333 = vadd.f32 %v3429, %v3790
    %v4334 = vadd.f32 %v3430, %v3795
    %v4335 = vadd.f32 %v3431, %v3798
    %v4336 = vadd.f32 %v3432, %v3803
    %v4337 = vadd.f32 %v3433, %v3806
    %v4338 = vadd.f32 %v3434, %v3880
    %v4339 = vadd.f32 %v3435, %v3883
    %v4340 = vadd.f32 %v3436, %v3888
    %v4341 = vadd.f32 %v3437, %v3891
    %v4342 = vadd.f32 %v3438, %v3896
    %v4343 = vadd.f32 %v3439, %v3899
    %v4344 = vadd.f32 %v3440, %v3904
    %v4345 = vadd.f32 %v3441, %v3907
    %v4346 = vadd.f32 %v3442, %v3981
    %v4347 = vadd.f32 %v3443, %v3984
    %v4348 = vadd.f32 %v3444, %v3989
    %v4349 = vadd.f32 %v3445, %v3992
    %v4350 = vadd.f32 %v3446, %v3997
    %v4351 = vadd.f32 %v3447, %v4000
    %v4352 = vadd.f32 %v3448, %v4005
    %v4353 = vadd.f32 %v3449, %v4008
    %v4354 = vadd.f32 %v3450, %v4082
    %v4355 = vadd.f32 %v3451, %v4085
    %v4356 = vadd.f32 %v3452, %v4090
    %v4357 = vadd.f32 %v3453, %v4093
    %v4358 = vadd.f32 %v3454, %v4098
    %v4359 = vadd.f32 %v3455, %v4101
    %v4360 = vadd.f32 %v3456, %v4106
    %v4361 = vadd.f32 %v3457, %v4109
    %v4362 = vadd.f32 %v3458, %v4183
    %v4363 = vadd.f32 %v3459, %v4186
    %v4364 = vadd.f32 %v3460, %v4191
    %v4365 = vadd.f32 %v3461, %v4194
    %v4366 = vadd.f32 %v3462, %v4199
    %v4367 = vadd.f32 %v3463, %v4202
    %v4368 = vadd.f32 %v3464, %v4207
    %v4369 = vadd.f32 %v3465, %v4210
    %v4370 = vadd.f32 %v3466, %v4284
    %v4371 = vadd.f32 %v3467, %v4287
    %v4372 = vadd.f32 %v3468, %v4292
    %v4373 = vadd.f32 %v3469, %v4295
    %v4374 = vadd.f32 %v3470, %v4300
    %v4375 = vadd.f32 %v3471, %v4303
    %v4376 = vadd.f32 %v3472, %v4308
    %v4377 = vadd.f32 %v3473, %v4311
    %4378 = vst.msk [vmem:[#allocation4] sm:$0xff] %vm489, %v4314
    %4379 = vst.msk [vmem:[#allocation4 + $0x8] sm:$0xff] %vm489, %v4315
    %4380 = vst.msk [vmem:[#allocation4 + $0x10] sm:$0xff] %vm489, %v4316
    %4381 = vst.msk [vmem:[#allocation4 + $0x18] sm:$0xff] %vm489, %v4317
    %4382 = vst.msk [vmem:[#allocation4 + $0x20] sm:$0xff] %vm489, %v4318
    %4383 = vst.msk [vmem:[#allocation4 + $0x28] sm:$0xff] %vm489, %v4319
    %4384 = vst.msk [vmem:[#allocation4 + $0x30] sm:$0xff] %vm489, %v4320
    %4385 = vst.msk [vmem:[#allocation4 + $0x38] sm:$0xff] %vm489, %v4321
    %4386 = vst.msk [vmem:[#allocation4 + $0x40] sm:$0xff] %vm489, %v4322
    %4387 = vst.msk [vmem:[#allocation4 + $0x48] sm:$0xff] %vm489, %v4323
    %4388 = vst.msk [vmem:[#allocation4 + $0x50] sm:$0xff] %vm489, %v4324
    %4389 = vst.msk [vmem:[#allocation4 + $0x58] sm:$0xff] %vm489, %v4325
    %4390 = vst.msk [vmem:[#allocation4 + $0x60] sm:$0xff] %vm489, %v4326
    %4391 = vst.msk [vmem:[#allocation4 + $0x68] sm:$0xff] %vm489, %v4327
    %4392 = vst.msk [vmem:[#allocation4 + $0x70] sm:$0xff] %vm489, %v4328
    %4393 = vst.msk [vmem:[#allocation4 + $0x78] sm:$0xff] %vm489, %v4329
    %4394 = vst.msk [vmem:[#allocation4 + $0x80] sm:$0xff] %vm489, %v4330
    %4395 = vst.msk [vmem:[#allocation4 + $0x88] sm:$0xff] %vm489, %v4331
    %4396 = vst.msk [vmem:[#allocation4 + $0x90] sm:$0xff] %vm489, %v4332
    %4397 = vst.msk [vmem:[#allocation4 + $0x98] sm:$0xff] %vm489, %v4333
    %4398 = vst.msk [vmem:[#allocation4 + $0xa0] sm:$0xff] %vm489, %v4334
    %4399 = vst.msk [vmem:[#allocation4 + $0xa8] sm:$0xff] %vm489, %v4335
    %4400 = vst.msk [vmem:[#allocation4 + $0xb0] sm:$0xff] %vm489, %v4336
    %4401 = vst.msk [vmem:[#allocation4 + $0xb8] sm:$0xff] %vm489, %v4337
    %4402 = vst.msk [vmem:[#allocation4 + $0xc0] sm:$0xff] %vm489, %v4338
    %4403 = vst.msk [vmem:[#allocation4 + $0xc8] sm:$0xff] %vm489, %v4339
    %4404 = vst.msk [vmem:[#allocation4 + $0xd0] sm:$0xff] %vm489, %v4340
    %4405 = vst.msk [vmem:[#allocation4 + $0xd8] sm:$0xff] %vm489, %v4341
    %4406 = vst.msk [vmem:[#allocation4 + $0xe0] sm:$0xff] %vm489, %v4342
    %4407 = vst.msk [vmem:[#allocation4 + $0xe8] sm:$0xff] %vm489, %v4343
    %4408 = vst.msk [vmem:[#allocation4 + $0xf0] sm:$0xff] %vm489, %v4344
    %4409 = vst.msk [vmem:[#allocation4 + $0xf8] sm:$0xff] %vm489, %v4345
    %4410 = vst.msk [vmem:[#allocation4 + $0x100] sm:$0xff] %vm489, %v4346
    %4411 = vst.msk [vmem:[#allocation4 + $0x108] sm:$0xff] %vm489, %v4347
    %4412 = vst.msk [vmem:[#allocation4 + $0x110] sm:$0xff] %vm489, %v4348
    %4413 = vst.msk [vmem:[#allocation4 + $0x118] sm:$0xff] %vm489, %v4349
    %4414 = vst.msk [vmem:[#allocation4 + $0x120] sm:$0xff] %vm489, %v4350
    %4415 = vst.msk [vmem:[#allocation4 + $0x128] sm:$0xff] %vm489, %v4351
    %4416 = vst.msk [vmem:[#allocation4 + $0x130] sm:$0xff] %vm489, %v4352
    %4417 = vst.msk [vmem:[#allocation4 + $0x138] sm:$0xff] %vm489, %v4353
    %4418 = vst.msk [vmem:[#allocation4 + $0x140] sm:$0xff] %vm489, %v4354
    %4419 = vst.msk [vmem:[#allocation4 + $0x148] sm:$0xff] %vm489, %v4355
    %4420 = vst.msk [vmem:[#allocation4 + $0x150] sm:$0xff] %vm489, %v4356
    %4421 = vst.msk [vmem:[#allocation4 + $0x158] sm:$0xff] %vm489, %v4357
    %4422 = vst.msk [vmem:[#allocation4 + $0x160] sm:$0xff] %vm489, %v4358
    %4423 = vst.msk [vmem:[#allocation4 + $0x168] sm:$0xff] %vm489, %v4359
    %4424 = vst.msk [vmem:[#allocation4 + $0x170] sm:$0xff] %vm489, %v4360
    %4425 = vst.msk [vmem:[#allocation4 + $0x178] sm:$0xff] %vm489, %v4361
    %4426 = vst.msk [vmem:[#allocation4 + $0x180] sm:$0xff] %vm489, %v4362
    %4427 = vst.msk [vmem:[#allocation4 + $0x188] sm:$0xff] %vm489, %v4363
    %4428 = vst.msk [vmem:[#allocation4 + $0x190] sm:$0xff] %vm489, %v4364
    %4429 = vst.msk [vmem:[#allocation4 + $0x198] sm:$0xff] %vm489, %v4365
    %4430 = vst.msk [vmem:[#allocation4 + $0x1a0] sm:$0xff] %vm489, %v4366
    %4431 = vst.msk [vmem:[#allocation4 + $0x1a8] sm:$0xff] %vm489, %v4367
    %4432 = vst.msk [vmem:[#allocation4 + $0x1b0] sm:$0xff] %vm489, %v4368
    %4433 = vst.msk [vmem:[#allocation4 + $0x1b8] sm:$0xff] %vm489, %v4369
    %4434 = vst.msk [vmem:[#allocation4 + $0x1c0] sm:$0xff] %vm489, %v4370
    %4435 = vst.msk [vmem:[#allocation4 + $0x1c8] sm:$0xff] %vm489, %v4371
    %4436 = vst.msk [vmem:[#allocation4 + $0x1d0] sm:$0xff] %vm489, %v4372
    %4437 = vst.msk [vmem:[#allocation4 + $0x1d8] sm:$0xff] %vm489, %v4373
    %4438 = vst.msk [vmem:[#allocation4 + $0x1e0] sm:$0xff] %vm489, %v4374
    %4439 = vst.msk [vmem:[#allocation4 + $0x1e8] sm:$0xff] %vm489, %v4375
    %4440 = vst.msk [vmem:[#allocation4 + $0x1f0] sm:$0xff] %vm489, %v4376
    %4441 = vst.msk [vmem:[#allocation4 + $0x1f8] sm:$0xff] %vm489, %v4377
    %4442 = vst.msk [vmem:[#allocation2] sm:$0xff] %vm2961, %v1809
    %4443 = vst.msk [vmem:[#allocation2 + $0x8] sm:$0xff] %vm2961, %v1810
    %4444 = vst.msk [vmem:[#allocation2 + $0x10] sm:$0xff] %vm2961, %v1811
    %4445 = vst.msk [vmem:[#allocation2 + $0x18] sm:$0xff] %vm2961, %v1812
    %4446 = vst.msk [vmem:[#allocation2 + $0x20] sm:$0xff] %vm2961, %v1813
    %4447 = vst.msk [vmem:[#allocation2 + $0x28] sm:$0xff] %vm2961, %v1814
    %4448 = vst.msk [vmem:[#allocation2 + $0x30] sm:$0xff] %vm2961, %v1815
    %4449 = vst.msk [vmem:[#allocation2 + $0x38] sm:$0xff] %vm2961, %v1816
    %4450 = vst.msk [vmem:[#allocation2 + $0x40] sm:$0xff] %vm2961, %v1817
    %4451 = vst.msk [vmem:[#allocation2 + $0x48] sm:$0xff] %vm2961, %v1818
    %4452 = vst.msk [vmem:[#allocation2 + $0x50] sm:$0xff] %vm2961, %v1819
    %4453 = vst.msk [vmem:[#allocation2 + $0x58] sm:$0xff] %vm2961, %v1820
    %4454 = vst.msk [vmem:[#allocation2 + $0x60] sm:$0xff] %vm2961, %v1821
    %4455 = vst.msk [vmem:[#allocation2 + $0x68] sm:$0xff] %vm2961, %v1822
    %4456 = vst.msk [vmem:[#allocation2 + $0x70] sm:$0xff] %vm2961, %v1823
    %4457 = vst.msk [vmem:[#allocation2 + $0x78] sm:$0xff] %vm2961, %v1824
    %4458 = vst.msk [vmem:[#allocation2 + $0x80] sm:$0xff] %vm2961, %v1825
    %4459 = vst.msk [vmem:[#allocation2 + $0x88] sm:$0xff] %vm2961, %v1826
    %4460 = vst.msk [vmem:[#allocation2 + $0x90] sm:$0xff] %vm2961, %v1827
    %4461 = vst.msk [vmem:[#allocation2 + $0x98] sm:$0xff] %vm2961, %v1828
    %4462 = vst.msk [vmem:[#allocation2 + $0xa0] sm:$0xff] %vm2961, %v1829
    %4463 = vst.msk [vmem:[#allocation2 + $0xa8] sm:$0xff] %vm2961, %v1830
    %4464 = vst.msk [vmem:[#allocation2 + $0xb0] sm:$0xff] %vm2961, %v1831
    %4465 = vst.msk [vmem:[#allocation2 + $0xb8] sm:$0xff] %vm2961, %v1832
    %4466 = vst.msk [vmem:[#allocation2 + $0xc0] sm:$0xff] %vm2961, %v1833
    %4467 = vst.msk [vmem:[#allocation2 + $0xc8] sm:$0xff] %vm2961, %v1834
    %4468 = vst.msk [vmem:[#allocation2 + $0xd0] sm:$0xff] %vm2961, %v1835
    %4469 = vst.msk [vmem:[#allocation2 + $0xd8] sm:$0xff] %vm2961, %v1836
    %4470 = vst.msk [vmem:[#allocation2 + $0xe0] sm:$0xff] %vm2961, %v1837
    %4471 = vst.msk [vmem:[#allocation2 + $0xe8] sm:$0xff] %vm2961, %v1838
    %4472 = vst.msk [vmem:[#allocation2 + $0xf0] sm:$0xff] %vm2961, %v1839
    %4473 = vst.msk [vmem:[#allocation2 + $0xf8] sm:$0xff] %vm2961, %v1840
    %4474 = vst.msk [vmem:[#allocation2 + $0x100] sm:$0xff] %vm2961, %v1841
    %4475 = vst.msk [vmem:[#allocation2 + $0x108] sm:$0xff] %vm2961, %v1842
    %4476 = vst.msk [vmem:[#allocation2 + $0x110] sm:$0xff] %vm2961, %v1843
    %4477 = vst.msk [vmem:[#allocation2 + $0x118] sm:$0xff] %vm2961, %v1844
    %4478 = vst.msk [vmem:[#allocation2 + $0x120] sm:$0xff] %vm2961, %v1845
    %4479 = vst.msk [vmem:[#allocation2 + $0x128] sm:$0xff] %vm2961, %v1846
    %4480 = vst.msk [vmem:[#allocation2 + $0x130] sm:$0xff] %vm2961, %v1847
    %4481 = vst.msk [vmem:[#allocation2 + $0x138] sm:$0xff] %vm2961, %v1848
    %4482 = vst.msk [vmem:[#allocation2 + $0x140] sm:$0xff] %vm2961, %v1849
    %4483 = vst.msk [vmem:[#allocation2 + $0x148] sm:$0xff] %vm2961, %v1850
    %4484 = vst.msk [vmem:[#allocation2 + $0x150] sm:$0xff] %vm2961, %v1851
    %4485 = vst.msk [vmem:[#allocation2 + $0x158] sm:$0xff] %vm2961, %v1852
    %4486 = vst.msk [vmem:[#allocation2 + $0x160] sm:$0xff] %vm2961, %v1853
    %4487 = vst.msk [vmem:[#allocation2 + $0x168] sm:$0xff] %vm2961, %v1854
    %4488 = vst.msk [vmem:[#allocation2 + $0x170] sm:$0xff] %vm2961, %v1855
    %4489 = vst.msk [vmem:[#allocation2 + $0x178] sm:$0xff] %vm2961, %v1856
    %4490 = vst.msk [vmem:[#allocation2 + $0x180] sm:$0xff] %vm2961, %v1857
    %4491 = vst.msk [vmem:[#allocation2 + $0x188] sm:$0xff] %vm2961, %v1858
    %4492 = vst.msk [vmem:[#allocation2 + $0x190] sm:$0xff] %vm2961, %v1859
    %4493 = vst.msk [vmem:[#allocation2 + $0x198] sm:$0xff] %vm2961, %v1860
    %4494 = vst.msk [vmem:[#allocation2 + $0x1a0] sm:$0xff] %vm2961, %v1861
    %4495 = vst.msk [vmem:[#allocation2 + $0x1a8] sm:$0xff] %vm2961, %v1862
    %4496 = vst.msk [vmem:[#allocation2 + $0x1b0] sm:$0xff] %vm2961, %v1863
    %4497 = vst.msk [vmem:[#allocation2 + $0x1b8] sm:$0xff] %vm2961, %v1864
    %4498 = vst.msk [vmem:[#allocation2 + $0x1c0] sm:$0xff] %vm2961, %v1865
    %4499 = vst.msk [vmem:[#allocation2 + $0x1c8] sm:$0xff] %vm2961, %v1866
    %4500 = vst.msk [vmem:[#allocation2 + $0x1d0] sm:$0xff] %vm2961, %v1867
    %4501 = vst.msk [vmem:[#allocation2 + $0x1d8] sm:$0xff] %vm2961, %v1868
    %4502 = vst.msk [vmem:[#allocation2 + $0x1e0] sm:$0xff] %vm2961, %v1869
    %4503 = vst.msk [vmem:[#allocation2 + $0x1e8] sm:$0xff] %vm2961, %v1870
    %4504 = vst.msk [vmem:[#allocation2 + $0x1f0] sm:$0xff] %vm2961, %v1871
    %4505 = vst.msk [vmem:[#allocation2 + $0x1f8] sm:$0xff] %vm2961, %v1872
    // Predicated region
    $region30: #{transformer_encoder.9} parent=1 // pred_check
      %p4506 = pneg %p59
    $region31: #{transformer_encoder.9} parent=1 // pred_check_branch
      %4508 = sbr.rel (%p4506) target = $region33
    $region32: #{transformer_encoder.9} parent=1 // pred_region
      %v4509 = vld [vmem:[#allocation4] sm:$0xff]
      %v4510 = vld [vmem:[#allocation4 + $0x8] sm:$0xff]
      %v4511 = vld [vmem:[#allocation4 + $0x10] sm:$0xff]
      %v4512 = vld [vmem:[#allocation4 + $0x18] sm:$0xff]
      %v4513 = vld [vmem:[#allocation4 + $0x20] sm:$0xff]
      %v4514 = vld [vmem:[#allocation4 + $0x28] sm:$0xff]
      %v4515 = vld [vmem:[#allocation4 + $0x30] sm:$0xff]
      %v4516 = vld [vmem:[#allocation4 + $0x38] sm:$0xff]
      %v4517 = vld [vmem:[#allocation4 + $0x40] sm:$0xff]
      %v4518 = vld [vmem:[#allocation4 + $0x48] sm:$0xff]
      %v4519 = vld [vmem:[#allocation4 + $0x50] sm:$0xff]
      %v4520 = vld [vmem:[#allocation4 + $0x58] sm:$0xff]
      %v4521 = vld [vmem:[#allocation4 + $0x60] sm:$0xff]
      %v4522 = vld [vmem:[#allocation4 + $0x68] sm:$0xff]
      %v4523 = vld [vmem:[#allocation4 + $0x70] sm:$0xff]
      %v4524 = vld [vmem:[#allocation4 + $0x78] sm:$0xff]
      %v4525 = vld [vmem:[#allocation4 + $0x80] sm:$0xff]
      %v4526 = vld [vmem:[#allocation4 + $0x88] sm:$0xff]
      %v4527 = vld [vmem:[#allocation4 + $0x90] sm:$0xff]
      %v4528 = vld [vmem:[#allocation4 + $0x98] sm:$0xff]
      %v4529 = vld [vmem:[#allocation4 + $0xa0] sm:$0xff]
      %v4530 = vld [vmem:[#allocation4 + $0xa8] sm:$0xff]
      %v4531 = vld [vmem:[#allocation4 + $0xb0] sm:$0xff]
      %v4532 = vld [vmem:[#allocation4 + $0xb8] sm:$0xff]
      %v4533 = vld [vmem:[#allocation4 + $0xc0] sm:$0xff]
      %v4534 = vld [vmem:[#allocation4 + $0xc8] sm:$0xff]
      %v4535 = vld [vmem:[#allocation4 + $0xd0] sm:$0xff]
      %v4536 = vld [vmem:[#allocation4 + $0xd8] sm:$0xff]
      %v4537 = vld [vmem:[#allocation4 + $0xe0] sm:$0xff]
      %v4538 = vld [vmem:[#allocation4 + $0xe8] sm:$0xff]
      %v4539 = vld [vmem:[#allocation4 + $0xf0] sm:$0xff]
      %v4540 = vld [vmem:[#allocation4 + $0xf8] sm:$0xff]
      %v4541 = vld [vmem:[#allocation4 + $0x100] sm:$0xff]
      %v4542 = vld [vmem:[#allocation4 + $0x108] sm:$0xff]
      %v4543 = vld [vmem:[#allocation4 + $0x110] sm:$0xff]
      %v4544 = vld [vmem:[#allocation4 + $0x118] sm:$0xff]
      %v4545 = vld [vmem:[#allocation4 + $0x120] sm:$0xff]
      %v4546 = vld [vmem:[#allocation4 + $0x128] sm:$0xff]
      %v4547 = vld [vmem:[#allocation4 + $0x130] sm:$0xff]
      %v4548 = vld [vmem:[#allocation4 + $0x138] sm:$0xff]
      %v4549 = vld [vmem:[#allocation4 + $0x140] sm:$0xff]
      %v4550 = vld [vmem:[#allocation4 + $0x148] sm:$0xff]
      %v4551 = vld [vmem:[#allocation4 + $0x150] sm:$0xff]
      %v4552 = vld [vmem:[#allocation4 + $0x158] sm:$0xff]
      %v4553 = vld [vmem:[#allocation4 + $0x160] sm:$0xff]
      %v4554 = vld [vmem:[#allocation4 + $0x168] sm:$0xff]
      %v4555 = vld [vmem:[#allocation4 + $0x170] sm:$0xff]
      %v4556 = vld [vmem:[#allocation4 + $0x178] sm:$0xff]
      %v4557 = vld [vmem:[#allocation4 + $0x180] sm:$0xff]
      %v4558 = vld [vmem:[#allocation4 + $0x188] sm:$0xff]
      %v4559 = vld [vmem:[#allocation4 + $0x190] sm:$0xff]
      %v4560 = vld [vmem:[#allocation4 + $0x198] sm:$0xff]
      %v4561 = vld [vmem:[#allocation4 + $0x1a0] sm:$0xff]
      %v4562 = vld [vmem:[#allocation4 + $0x1a8] sm:$0xff]
      %v4563 = vld [vmem:[#allocation4 + $0x1b0] sm:$0xff]
      %v4564 = vld [vmem:[#allocation4 + $0x1b8] sm:$0xff]
      %v4565 = vld [vmem:[#allocation4 + $0x1c0] sm:$0xff]
      %v4566 = vld [vmem:[#allocation4 + $0x1c8] sm:$0xff]
      %v4567 = vld [vmem:[#allocation4 + $0x1d0] sm:$0xff]
      %v4568 = vld [vmem:[#allocation4 + $0x1d8] sm:$0xff]
      %v4569 = vld [vmem:[#allocation4 + $0x1e0] sm:$0xff]
      %v4570 = vld [vmem:[#allocation4 + $0x1e8] sm:$0xff]
      %v4571 = vld [vmem:[#allocation4 + $0x1f0] sm:$0xff]
      %v4572 = vld [vmem:[#allocation4 + $0x1f8] sm:$0xff]
      %v4573 = vld [vmem:[#allocation3] sm:$0xff]
      %v4574 = vld [vmem:[#allocation3 + $0x8] sm:$0xff]
      %v4575 = vld [vmem:[#allocation3 + $0x10] sm:$0xff]
      %v4576 = vld [vmem:[#allocation3 + $0x18] sm:$0xff]
      %v4577 = vld [vmem:[#allocation3 + $0x20] sm:$0xff]
      %v4578 = vld [vmem:[#allocation3 + $0x28] sm:$0xff]
      %v4579 = vld [vmem:[#allocation3 + $0x30] sm:$0xff]
      %v4580 = vld [vmem:[#allocation3 + $0x38] sm:$0xff]
      %v4581 = vld [vmem:[#allocation3 + $0x40] sm:$0xff]
      %v4582 = vld [vmem:[#allocation3 + $0x48] sm:$0xff]
      %v4583 = vld [vmem:[#allocation3 + $0x50] sm:$0xff]
      %v4584 = vld [vmem:[#allocation3 + $0x58] sm:$0xff]
      %v4585 = vld [vmem:[#allocation3 + $0x60] sm:$0xff]
      %v4586 = vld [vmem:[#allocation3 + $0x68] sm:$0xff]
      %v4587 = vld [vmem:[#allocation3 + $0x70] sm:$0xff]
      %v4588 = vld [vmem:[#allocation3 + $0x78] sm:$0xff]
      %v4589 = vld [vmem:[#allocation3 + $0x80] sm:$0xff]
      %v4590 = vld [vmem:[#allocation3 + $0x88] sm:$0xff]
      %v4591 = vld [vmem:[#allocation3 + $0x90] sm:$0xff]
      %v4592 = vld [vmem:[#allocation3 + $0x98] sm:$0xff]
      %v4593 = vld [vmem:[#allocation3 + $0xa0] sm:$0xff]
      %v4594 = vld [vmem:[#allocation3 + $0xa8] sm:$0xff]
      %v4595 = vld [vmem:[#allocation3 + $0xb0] sm:$0xff]
      %v4596 = vld [vmem:[#allocation3 + $0xb8] sm:$0xff]
      %v4597 = vld [vmem:[#allocation3 + $0xc0] sm:$0xff]
      %v4598 = vld [vmem:[#allocation3 + $0xc8] sm:$0xff]
      %v4599 = vld [vmem:[#allocation3 + $0xd0] sm:$0xff]
      %v4600 = vld [vmem:[#allocation3 + $0xd8] sm:$0xff]
      %v4601 = vld [vmem:[#allocation3 + $0xe0] sm:$0xff]
      %v4602 = vld [vmem:[#allocation3 + $0xe8] sm:$0xff]
      %v4603 = vld [vmem:[#allocation3 + $0xf0] sm:$0xff]
      %v4604 = vld [vmem:[#allocation3 + $0xf8] sm:$0xff]
      %v4605 = vld [vmem:[#allocation3 + $0x100] sm:$0xff]
      %v4606 = vld [vmem:[#allocation3 + $0x108] sm:$0xff]
      %v4607 = vld [vmem:[#allocation3 + $0x110] sm:$0xff]
      %v4608 = vld [vmem:[#allocation3 + $0x118] sm:$0xff]
      %v4609 = vld [vmem:[#allocation3 + $0x120] sm:$0xff]
      %v4610 = vld [vmem:[#allocation3 + $0x128] sm:$0xff]
      %v4611 = vld [vmem:[#allocation3 + $0x130] sm:$0xff]
      %v4612 = vld [vmem:[#allocation3 + $0x138] sm:$0xff]
      %v4613 = vld [vmem:[#allocation3 + $0x140] sm:$0xff]
      %v4614 = vld [vmem:[#allocation3 + $0x148] sm:$0xff]
      %v4615 = vld [vmem:[#allocation3 + $0x150] sm:$0xff]
      %v4616 = vld [vmem:[#allocation3 + $0x158] sm:$0xff]
      %v4617 = vld [vmem:[#allocation3 + $0x160] sm:$0xff]
      %v4618 = vld [vmem:[#allocation3 + $0x168] sm:$0xff]
      %v4619 = vld [vmem:[#allocation3 + $0x170] sm:$0xff]
      %v4620 = vld [vmem:[#allocation3 + $0x178] sm:$0xff]
      %v4621 = vld [vmem:[#allocation3 + $0x180] sm:$0xff]
      %v4622 = vld [vmem:[#allocation3 + $0x188] sm:$0xff]
      %v4623 = vld [vmem:[#allocation3 + $0x190] sm:$0xff]
      %v4624 = vld [vmem:[#allocation3 + $0x198] sm:$0xff]
      %v4625 = vld [vmem:[#allocation3 + $0x1a0] sm:$0xff]
      %v4626 = vld [vmem:[#allocation3 + $0x1a8] sm:$0xff]
      %v4627 = vld [vmem:[#allocation3 + $0x1b0] sm:$0xff]
      %v4628 = vld [vmem:[#allocation3 + $0x1b8] sm:$0xff]
      %v4629 = vld [vmem:[#allocation3 + $0x1c0] sm:$0xff]
      %v4630 = vld [vmem:[#allocation3 + $0x1c8] sm:$0xff]
      %v4631 = vld [vmem:[#allocation3 + $0x1d0] sm:$0xff]
      %v4632 = vld [vmem:[#allocation3 + $0x1d8] sm:$0xff]
      %v4633 = vld [vmem:[#allocation3 + $0x1e0] sm:$0xff]
      %v4634 = vld [vmem:[#allocation3 + $0x1e8] sm:$0xff]
      %v4635 = vld [vmem:[#allocation3 + $0x1f0] sm:$0xff]
      %v4636 = vld [vmem:[#allocation3 + $0x1f8] sm:$0xff]
      %v4637 = vrcp.pop %v4573
      %v4638 = vrcp.pop %v4574
      %v4639 = vrcp.pop %v4575
      %v4640 = vrcp.pop %v4576
      %v4641 = vrcp.pop %v4577
      %v4642 = vrcp.pop %v4578
      %v4643 = vrcp.pop %v4579
      %v4644 = vrcp.pop %v4580
      %v4645 = vrcp.pop %v4581
      %v4646 = vrcp.pop %v4582
      %v4647 = vrcp.pop %v4583
      %v4648 = vrcp.pop %v4584
      %v4649 = vrcp.pop %v4585
      %v4650 = vrcp.pop %v4586
      %v4651 = vrcp.pop %v4587
      %v4652 = vrcp.pop %v4588
      %v4653 = vrcp.pop %v4589
      %v4654 = vrcp.pop %v4590
      %v4655 = vrcp.pop %v4591
      %v4656 = vrcp.pop %v4592
      %v4657 = vrcp.pop %v4593
      %v4658 = vrcp.pop %v4594
      %v4659 = vrcp.pop %v4595
      %v4660 = vrcp.pop %v4596
      %v4661 = vrcp.pop %v4597
      %v4662 = vrcp.pop %v4598
      %v4663 = vrcp.pop %v4599
      %v4664 = vrcp.pop %v4600
      %v4665 = vrcp.pop %v4601
      %v4666 = vrcp.pop %v4602
      %v4667 = vrcp.pop %v4603
      %v4668 = vrcp.pop %v4604
      %v4669 = vrcp.pop %v4605
      %v4670 = vrcp.pop %v4606
      %v4671 = vrcp.pop %v4607
      %v4672 = vrcp.pop %v4608
      %v4673 = vrcp.pop %v4609
      %v4674 = vrcp.pop %v4610
      %v4675 = vrcp.pop %v4611
      %v4676 = vrcp.pop %v4612
      %v4677 = vrcp.pop %v4613
      %v4678 = vrcp.pop %v4614
      %v4679 = vrcp.pop %v4615
      %v4680 = vrcp.pop %v4616
      %v4681 = vrcp.pop %v4617
      %v4682 = vrcp.pop %v4618
      %v4683 = vrcp.pop %v4619
      %v4684 = vrcp.pop %v4620
      %v4685 = vrcp.pop %v4621
      %v4686 = vrcp.pop %v4622
      %v4687 = vrcp.pop %v4623
      %v4688 = vrcp.pop %v4624
      %v4689 = vrcp.pop %v4625
      %v4690 = vrcp.pop %v4626
      %v4691 = vrcp.pop %v4627
      %v4692 = vrcp.pop %v4628
      %v4693 = vrcp.pop %v4629
      %v4694 = vrcp.pop %v4630
      %v4695 = vrcp.pop %v4631
      %v4696 = vrcp.pop %v4632
      %v4697 = vrcp.pop %v4633
      %v4698 = vrcp.pop %v4634
      %v4699 = vrcp.pop %v4635
      %v4700 = vrcp.pop %v4636
      %4702 = vset.pattern.permute.xlu0 0
      %4703 = vperm.xlu0 %4702, %v4637
      %v4704 = vpop.permute.xlu0 %4703
      %4707 = vset.pattern.permute.xlu0 0
      %4708 = vperm.xlu0 %4707, %v4638
      %v4709 = vpop.permute.xlu0 %4708
      %4712 = vset.pattern.permute.xlu0 0
      %4713 = vperm.xlu0 %4712, %v4639
      %v4714 = vpop.permute.xlu0 %4713
      %4717 = vset.pattern.permute.xlu0 0
      %4718 = vperm.xlu0 %4717, %v4640
      %v4719 = vpop.permute.xlu0 %4718
      %4722 = vset.pattern.permute.xlu0 0
      %4723 = vperm.xlu0 %4722, %v4641
      %v4724 = vpop.permute.xlu0 %4723
      %4727 = vset.pattern.permute.xlu0 0
      %4728 = vperm.xlu0 %4727, %v4642
      %v4729 = vpop.permute.xlu0 %4728
      %4732 = vset.pattern.permute.xlu0 0
      %4733 = vperm.xlu0 %4732, %v4643
      %v4734 = vpop.permute.xlu0 %4733
      %4737 = vset.pattern.permute.xlu0 0
      %4738 = vperm.xlu0 %4737, %v4644
      %v4739 = vpop.permute.xlu0 %4738
      %4742 = vset.pattern.permute.xlu0 0
      %4743 = vperm.xlu0 %4742, %v4645
      %v4744 = vpop.permute.xlu0 %4743
      %4747 = vset.pattern.permute.xlu0 0
      %4748 = vperm.xlu0 %4747, %v4646
      %v4749 = vpop.permute.xlu0 %4748
      %4752 = vset.pattern.permute.xlu0 0
      %4753 = vperm.xlu0 %4752, %v4647
      %v4754 = vpop.permute.xlu0 %4753
      %4757 = vset.pattern.permute.xlu0 0
      %4758 = vperm.xlu0 %4757, %v4648
      %v4759 = vpop.permute.xlu0 %4758
      %4762 = vset.pattern.permute.xlu0 0
      %4763 = vperm.xlu0 %4762, %v4649
      %v4764 = vpop.permute.xlu0 %4763
      %4767 = vset.pattern.permute.xlu0 0
      %4768 = vperm.xlu0 %4767, %v4650
      %v4769 = vpop.permute.xlu0 %4768
      %4772 = vset.pattern.permute.xlu0 0
      %4773 = vperm.xlu0 %4772, %v4651
      %v4774 = vpop.permute.xlu0 %4773
      %4777 = vset.pattern.permute.xlu0 0
      %4778 = vperm.xlu0 %4777, %v4652
      %v4779 = vpop.permute.xlu0 %4778
      %4782 = vset.pattern.permute.xlu0 0
      %4783 = vperm.xlu0 %4782, %v4653
      %v4784 = vpop.permute.xlu0 %4783
      %4787 = vset.pattern.permute.xlu0 0
      %4788 = vperm.xlu0 %4787, %v4654
      %v4789 = vpop.permute.xlu0 %4788
      %4792 = vset.pattern.permute.xlu0 0
      %4793 = vperm.xlu0 %4792, %v4655
      %v4794 = vpop.permute.xlu0 %4793
      %4797 = vset.pattern.permute.xlu0 0
      %4798 = vperm.xlu0 %4797, %v4656
      %v4799 = vpop.permute.xlu0 %4798
      %4802 = vset.pattern.permute.xlu0 0
      %4803 = vperm.xlu0 %4802, %v4657
      %v4804 = vpop.permute.xlu0 %4803
      %4807 = vset.pattern.permute.xlu0 0
      %4808 = vperm.xlu0 %4807, %v4658
      %v4809 = vpop.permute.xlu0 %4808
      %4812 = vset.pattern.permute.xlu0 0
      %4813 = vperm.xlu0 %4812, %v4659
      %v4814 = vpop.permute.xlu0 %4813
      %4817 = vset.pattern.permute.xlu0 0
      %4818 = vperm.xlu0 %4817, %v4660
      %v4819 = vpop.permute.xlu0 %4818
      %4822 = vset.pattern.permute.xlu0 0
      %4823 = vperm.xlu0 %4822, %v4661
      %v4824 = vpop.permute.xlu0 %4823
      %4827 = vset.pattern.permute.xlu0 0
      %4828 = vperm.xlu0 %4827, %v4662
      %v4829 = vpop.permute.xlu0 %4828
      %4832 = vset.pattern.permute.xlu0 0
      %4833 = vperm.xlu0 %4832, %v4663
      %v4834 = vpop.permute.xlu0 %4833
      %4837 = vset.pattern.permute.xlu0 0
      %4838 = vperm.xlu0 %4837, %v4664
      %v4839 = vpop.permute.xlu0 %4838
      %4842 = vset.pattern.permute.xlu0 0
      %4843 = vperm.xlu0 %4842, %v4665
      %v4844 = vpop.permute.xlu0 %4843
      %4847 = vset.pattern.permute.xlu0 0
      %4848 = vperm.xlu0 %4847, %v4666
      %v4849 = vpop.permute.xlu0 %4848
      %4852 = vset.pattern.permute.xlu0 0
      %4853 = vperm.xlu0 %4852, %v4667
      %v4854 = vpop.permute.xlu0 %4853
      %4857 = vset.pattern.permute.xlu0 0
      %4858 = vperm.xlu0 %4857, %v4668
      %v4859 = vpop.permute.xlu0 %4858
      %4862 = vset.pattern.permute.xlu0 0
      %4863 = vperm.xlu0 %4862, %v4669
      %v4864 = vpop.permute.xlu0 %4863
      %4867 = vset.pattern.permute.xlu0 0
      %4868 = vperm.xlu0 %4867, %v4670
      %v4869 = vpop.permute.xlu0 %4868
      %4872 = vset.pattern.permute.xlu0 0
      %4873 = vperm.xlu0 %4872, %v4671
      %v4874 = vpop.permute.xlu0 %4873
      %4877 = vset.pattern.permute.xlu0 0
      %4878 = vperm.xlu0 %4877, %v4672
      %v4879 = vpop.permute.xlu0 %4878
      %4882 = vset.pattern.permute.xlu0 0
      %4883 = vperm.xlu0 %4882, %v4673
      %v4884 = vpop.permute.xlu0 %4883
      %4887 = vset.pattern.permute.xlu0 0
      %4888 = vperm.xlu0 %4887, %v4674
      %v4889 = vpop.permute.xlu0 %4888
      %4892 = vset.pattern.permute.xlu0 0
      %4893 = vperm.xlu0 %4892, %v4675
      %v4894 = vpop.permute.xlu0 %4893
      %4897 = vset.pattern.permute.xlu0 0
      %4898 = vperm.xlu0 %4897, %v4676
      %v4899 = vpop.permute.xlu0 %4898
      %4902 = vset.pattern.permute.xlu0 0
      %4903 = vperm.xlu0 %4902, %v4677
      %v4904 = vpop.permute.xlu0 %4903
      %4907 = vset.pattern.permute.xlu0 0
      %4908 = vperm.xlu0 %4907, %v4678
      %v4909 = vpop.permute.xlu0 %4908
      %4912 = vset.pattern.permute.xlu0 0
      %4913 = vperm.xlu0 %4912, %v4679
      %v4914 = vpop.permute.xlu0 %4913
      %4917 = vset.pattern.permute.xlu0 0
      %4918 = vperm.xlu0 %4917, %v4680
      %v4919 = vpop.permute.xlu0 %4918
      %4922 = vset.pattern.permute.xlu0 0
      %4923 = vperm.xlu0 %4922, %v4681
      %v4924 = vpop.permute.xlu0 %4923
      %4927 = vset.pattern.permute.xlu0 0
      %4928 = vperm.xlu0 %4927, %v4682
      %v4929 = vpop.permute.xlu0 %4928
      %4932 = vset.pattern.permute.xlu0 0
      %4933 = vperm.xlu0 %4932, %v4683
      %v4934 = vpop.permute.xlu0 %4933
      %4937 = vset.pattern.permute.xlu0 0
      %4938 = vperm.xlu0 %4937, %v4684
      %v4939 = vpop.permute.xlu0 %4938
      %4942 = vset.pattern.permute.xlu0 0
      %4943 = vperm.xlu0 %4942, %v4685
      %v4944 = vpop.permute.xlu0 %4943
      %4947 = vset.pattern.permute.xlu0 0
      %4948 = vperm.xlu0 %4947, %v4686
      %v4949 = vpop.permute.xlu0 %4948
      %4952 = vset.pattern.permute.xlu0 0
      %4953 = vperm.xlu0 %4952, %v4687
      %v4954 = vpop.permute.xlu0 %4953
      %4957 = vset.pattern.permute.xlu0 0
      %4958 = vperm.xlu0 %4957, %v4688
      %v4959 = vpop.permute.xlu0 %4958
      %4962 = vset.pattern.permute.xlu0 0
      %4963 = vperm.xlu0 %4962, %v4689
      %v4964 = vpop.permute.xlu0 %4963
      %4967 = vset.pattern.permute.xlu0 0
      %4968 = vperm.xlu0 %4967, %v4690
      %v4969 = vpop.permute.xlu0 %4968
      %4972 = vset.pattern.permute.xlu0 0
      %4973 = vperm.xlu0 %4972, %v4691
      %v4974 = vpop.permute.xlu0 %4973
      %4977 = vset.pattern.permute.xlu0 0
      %4978 = vperm.xlu0 %4977, %v4692
      %v4979 = vpop.permute.xlu0 %4978
      %4982 = vset.pattern.permute.xlu0 0
      %4983 = vperm.xlu0 %4982, %v4693
      %v4984 = vpop.permute.xlu0 %4983
      %4987 = vset.pattern.permute.xlu0 0
      %4988 = vperm.xlu0 %4987, %v4694
      %v4989 = vpop.permute.xlu0 %4988
      %4992 = vset.pattern.permute.xlu0 0
      %4993 = vperm.xlu0 %4992, %v4695
      %v4994 = vpop.permute.xlu0 %4993
      %4997 = vset.pattern.permute.xlu0 0
      %4998 = vperm.xlu0 %4997, %v4696
      %v4999 = vpop.permute.xlu0 %4998
      %5002 = vset.pattern.permute.xlu0 0
      %5003 = vperm.xlu0 %5002, %v4697
      %v5004 = vpop.permute.xlu0 %5003
      %5007 = vset.pattern.permute.xlu0 0
      %5008 = vperm.xlu0 %5007, %v4698
      %v5009 = vpop.permute.xlu0 %5008
      %5012 = vset.pattern.permute.xlu0 0
      %5013 = vperm.xlu0 %5012, %v4699
      %v5014 = vpop.permute.xlu0 %5013
      %5017 = vset.pattern.permute.xlu0 0
      %5018 = vperm.xlu0 %5017, %v4700
      %v5019 = vpop.permute.xlu0 %5018
      %v5021 = vmul.f32 %v4509, %v4704
      %v5022 = vmul.f32 %v4510, %v4709
      %v5023 = vmul.f32 %v4511, %v4714
      %v5024 = vmul.f32 %v4512, %v4719
      %v5025 = vmul.f32 %v4513, %v4724
      %v5026 = vmul.f32 %v4514, %v4729
      %v5027 = vmul.f32 %v4515, %v4734
      %v5028 = vmul.f32 %v4516, %v4739
      %v5029 = vmul.f32 %v4517, %v4744
      %v5030 = vmul.f32 %v4518, %v4749
      %v5031 = vmul.f32 %v4519, %v4754
      %v5032 = vmul.f32 %v4520, %v4759
      %v5033 = vmul.f32 %v4521, %v4764
      %v5034 = vmul.f32 %v4522, %v4769
      %v5035 = vmul.f32 %v4523, %v4774
      %v5036 = vmul.f32 %v4524, %v4779
      %v5037 = vmul.f32 %v4525, %v4784
      %v5038 = vmul.f32 %v4526, %v4789
      %v5039 = vmul.f32 %v4527, %v4794
      %v5040 = vmul.f32 %v4528, %v4799
      %v5041 = vmul.f32 %v4529, %v4804
      %v5042 = vmul.f32 %v4530, %v4809
      %v5043 = vmul.f32 %v4531, %v4814
      %v5044 = vmul.f32 %v4532, %v4819
      %v5045 = vmul.f32 %v4533, %v4824
      %v5046 = vmul.f32 %v4534, %v4829
      %v5047 = vmul.f32 %v4535, %v4834
      %v5048 = vmul.f32 %v4536, %v4839
      %v5049 = vmul.f32 %v4537, %v4844
      %v5050 = vmul.f32 %v4538, %v4849
      %v5051 = vmul.f32 %v4539, %v4854
      %v5052 = vmul.f32 %v4540, %v4859
      %v5053 = vmul.f32 %v4541, %v4864
      %v5054 = vmul.f32 %v4542, %v4869
      %v5055 = vmul.f32 %v4543, %v4874
      %v5056 = vmul.f32 %v4544, %v4879
      %v5057 = vmul.f32 %v4545, %v4884
      %v5058 = vmul.f32 %v4546, %v4889
      %v5059 = vmul.f32 %v4547, %v4894
      %v5060 = vmul.f32 %v4548, %v4899
      %v5061 = vmul.f32 %v4549, %v4904
      %v5062 = vmul.f32 %v4550, %v4909
      %v5063 = vmul.f32 %v4551, %v4914
      %v5064 = vmul.f32 %v4552, %v4919
      %v5065 = vmul.f32 %v4553, %v4924
      %v5066 = vmul.f32 %v4554, %v4929
      %v5067 = vmul.f32 %v4555, %v4934
      %v5068 = vmul.f32 %v4556, %v4939
      %v5069 = vmul.f32 %v4557, %v4944
      %v5070 = vmul.f32 %v4558, %v4949
      %v5071 = vmul.f32 %v4559, %v4954
      %v5072 = vmul.f32 %v4560, %v4959
      %v5073 = vmul.f32 %v4561, %v4964
      %v5074 = vmul.f32 %v4562, %v4969
      %v5075 = vmul.f32 %v4563, %v4974
      %v5076 = vmul.f32 %v4564, %v4979
      %v5077 = vmul.f32 %v4565, %v4984
      %v5078 = vmul.f32 %v4566, %v4989
      %v5079 = vmul.f32 %v4567, %v4994
      %v5080 = vmul.f32 %v4568, %v4999
      %v5081 = vmul.f32 %v4569, %v5004
      %v5082 = vmul.f32 %v4570, %v5009
      %v5083 = vmul.f32 %v4571, %v5014
      %v5084 = vmul.f32 %v4572, %v5019
      %v5085 = vpack.c.bf16 %v5022, %v5021
      %v5086 = vpack.c.bf16 %v5024, %v5023
      %v5087 = vpack.c.bf16 %v5026, %v5025
      %v5088 = vpack.c.bf16 %v5028, %v5027
      %v5089 = vpack.c.bf16 %v5030, %v5029
      %v5090 = vpack.c.bf16 %v5032, %v5031
      %v5091 = vpack.c.bf16 %v5034, %v5033
      %v5092 = vpack.c.bf16 %v5036, %v5035
      %v5093 = vpack.c.bf16 %v5038, %v5037
      %v5094 = vpack.c.bf16 %v5040, %v5039
      %v5095 = vpack.c.bf16 %v5042, %v5041
      %v5096 = vpack.c.bf16 %v5044, %v5043
      %v5097 = vpack.c.bf16 %v5046, %v5045
      %v5098 = vpack.c.bf16 %v5048, %v5047
      %v5099 = vpack.c.bf16 %v5050, %v5049
      %v5100 = vpack.c.bf16 %v5052, %v5051
      %v5101 = vpack.c.bf16 %v5054, %v5053
      %v5102 = vpack.c.bf16 %v5056, %v5055
      %v5103 = vpack.c.bf16 %v5058, %v5057
      %v5104 = vpack.c.bf16 %v5060, %v5059
      %v5105 = vpack.c.bf16 %v5062, %v5061
      %v5106 = vpack.c.bf16 %v5064, %v5063
      %v5107 = vpack.c.bf16 %v5066, %v5065
      %v5108 = vpack.c.bf16 %v5068, %v5067
      %v5109 = vpack.c.bf16 %v5070, %v5069
      %v5110 = vpack.c.bf16 %v5072, %v5071
      %v5111 = vpack.c.bf16 %v5074, %v5073
      %v5112 = vpack.c.bf16 %v5076, %v5075
      %v5113 = vpack.c.bf16 %v5078, %v5077
      %v5114 = vpack.c.bf16 %v5080, %v5079
      %v5115 = vpack.c.bf16 %v5082, %v5081
      %v5116 = vpack.c.bf16 %v5084, %v5083
      %v5149 = vunpack.c.l.b16 %v5085
      %v5150 = vunpack.c.h.b16 %v5085
      %v5151 = vunpack.c.l.b16 %v5086
      %v5152 = vunpack.c.h.b16 %v5086
      %v5153 = vunpack.c.l.b16 %v5087
      %v5154 = vunpack.c.h.b16 %v5087
      %v5155 = vunpack.c.l.b16 %v5088
      %v5156 = vunpack.c.h.b16 %v5088
      %v5157 = vunpack.c.l.b16 %v5089
      %v5158 = vunpack.c.h.b16 %v5089
      %v5159 = vunpack.c.l.b16 %v5090
      %v5160 = vunpack.c.h.b16 %v5090
      %v5161 = vunpack.c.l.b16 %v5091
      %v5162 = vunpack.c.h.b16 %v5091
      %v5163 = vunpack.c.l.b16 %v5092
      %v5164 = vunpack.c.h.b16 %v5092
      %v5165 = vunpack.c.l.b16 %v5093
      %v5166 = vunpack.c.h.b16 %v5093
      %v5167 = vunpack.c.l.b16 %v5094
      %v5168 = vunpack.c.h.b16 %v5094
      %v5169 = vunpack.c.l.b16 %v5095
      %v5170 = vunpack.c.h.b16 %v5095
      %v5171 = vunpack.c.l.b16 %v5096
      %v5172 = vunpack.c.h.b16 %v5096
      %v5173 = vunpack.c.l.b16 %v5097
      %v5174 = vunpack.c.h.b16 %v5097
      %v5175 = vunpack.c.l.b16 %v5098
      %v5176 = vunpack.c.h.b16 %v5098
      %v5177 = vunpack.c.l.b16 %v5099
      %v5178 = vunpack.c.h.b16 %v5099
      %v5179 = vunpack.c.l.b16 %v5100
      %v5180 = vunpack.c.h.b16 %v5100
      %v5181 = vunpack.c.l.b16 %v5101
      %v5182 = vunpack.c.h.b16 %v5101
      %v5183 = vunpack.c.l.b16 %v5102
      %v5184 = vunpack.c.h.b16 %v5102
      %v5185 = vunpack.c.l.b16 %v5103
      %v5186 = vunpack.c.h.b16 %v5103
      %v5187 = vunpack.c.l.b16 %v5104
      %v5188 = vunpack.c.h.b16 %v5104
      %v5189 = vunpack.c.l.b16 %v5105
      %v5190 = vunpack.c.h.b16 %v5105
      %v5191 = vunpack.c.l.b16 %v5106
      %v5192 = vunpack.c.h.b16 %v5106
      %v5193 = vunpack.c.l.b16 %v5107
      %v5194 = vunpack.c.h.b16 %v5107
      %v5195 = vunpack.c.l.b16 %v5108
      %v5196 = vunpack.c.h.b16 %v5108
      %v5197 = vunpack.c.l.b16 %v5109
      %v5198 = vunpack.c.h.b16 %v5109
      %v5199 = vunpack.c.l.b16 %v5110
      %v5200 = vunpack.c.h.b16 %v5110
      %v5201 = vunpack.c.l.b16 %v5111
      %v5202 = vunpack.c.h.b16 %v5111
      %v5203 = vunpack.c.l.b16 %v5112
      %v5204 = vunpack.c.h.b16 %v5112
      %v5205 = vunpack.c.l.b16 %v5113
      %v5206 = vunpack.c.h.b16 %v5113
      %v5207 = vunpack.c.l.b16 %v5114
      %v5208 = vunpack.c.h.b16 %v5114
      %v5209 = vunpack.c.l.b16 %v5115
      %v5210 = vunpack.c.h.b16 %v5115
      %v5211 = vunpack.c.l.b16 %v5116
      %v5212 = vunpack.c.h.b16 %v5116
      %v5213 = vpack.c.b16 %v5149, %v5149
      %v5214 = vpack.c.b16 %v5150, %v5150
      %v5215 = vpack.c.b16 %v5151, %v5151
      %v5216 = vpack.c.b16 %v5152, %v5152
      %v5217 = vpack.c.b16 %v5153, %v5153
      %v5218 = vpack.c.b16 %v5154, %v5154
      %v5219 = vpack.c.b16 %v5155, %v5155
      %v5220 = vpack.c.b16 %v5156, %v5156
      %v5221 = vpack.c.b16 %v5157, %v5157
      %v5222 = vpack.c.b16 %v5158, %v5158
      %v5223 = vpack.c.b16 %v5159, %v5159
      %v5224 = vpack.c.b16 %v5160, %v5160
      %v5225 = vpack.c.b16 %v5161, %v5161
      %v5226 = vpack.c.b16 %v5162, %v5162
      %v5227 = vpack.c.b16 %v5163, %v5163
      %v5228 = vpack.c.b16 %v5164, %v5164
      %v5229 = vpack.c.b16 %v5165, %v5165
      %v5230 = vpack.c.b16 %v5166, %v5166
      %v5231 = vpack.c.b16 %v5167, %v5167
      %v5232 = vpack.c.b16 %v5168, %v5168
      %v5233 = vpack.c.b16 %v5169, %v5169
      %v5234 = vpack.c.b16 %v5170, %v5170
      %v5235 = vpack.c.b16 %v5171, %v5171
      %v5236 = vpack.c.b16 %v5172, %v5172
      %v5237 = vpack.c.b16 %v5173, %v5173
      %v5238 = vpack.c.b16 %v5174, %v5174
      %v5239 = vpack.c.b16 %v5175, %v5175
      %v5240 = vpack.c.b16 %v5176, %v5176
      %v5241 = vpack.c.b16 %v5177, %v5177
      %v5242 = vpack.c.b16 %v5178, %v5178
      %v5243 = vpack.c.b16 %v5179, %v5179
      %v5244 = vpack.c.b16 %v5180, %v5180
      %v5245 = vpack.c.b16 %v5181, %v5181
      %v5246 = vpack.c.b16 %v5182, %v5182
      %v5247 = vpack.c.b16 %v5183, %v5183
      %v5248 = vpack.c.b16 %v5184, %v5184
      %v5249 = vpack.c.b16 %v5185, %v5185
      %v5250 = vpack.c.b16 %v5186, %v5186
      %v5251 = vpack.c.b16 %v5187, %v5187
      %v5252 = vpack.c.b16 %v5188, %v5188
      %v5253 = vpack.c.b16 %v5189, %v5189
      %v5254 = vpack.c.b16 %v5190, %v5190
      %v5255 = vpack.c.b16 %v5191, %v5191
      %v5256 = vpack.c.b16 %v5192, %v5192
      %v5257 = vpack.c.b16 %v5193, %v5193
      %v5258 = vpack.c.b16 %v5194, %v5194
      %v5259 = vpack.c.b16 %v5195, %v5195
      %v5260 = vpack.c.b16 %v5196, %v5196
      %v5261 = vpack.c.b16 %v5197, %v5197
      %v5262 = vpack.c.b16 %v5198, %v5198
      %v5263 = vpack.c.b16 %v5199, %v5199
      %v5264 = vpack.c.b16 %v5200, %v5200
      %v5265 = vpack.c.b16 %v5201, %v5201
      %v5266 = vpack.c.b16 %v5202, %v5202
      %v5267 = vpack.c.b16 %v5203, %v5203
      %v5268 = vpack.c.b16 %v5204, %v5204
      %v5269 = vpack.c.b16 %v5205, %v5205
      %v5270 = vpack.c.b16 %v5206, %v5206
      %v5271 = vpack.c.b16 %v5207, %v5207
      %v5272 = vpack.c.b16 %v5208, %v5208
      %v5273 = vpack.c.b16 %v5209, %v5209
      %v5274 = vpack.c.b16 %v5210, %v5210
      %v5275 = vpack.c.b16 %v5211, %v5211
      %v5276 = vpack.c.b16 %v5212, %v5212
      %vm5341 = vcmask 60416
      %5342 = vst.msk [vmem:[#allocation11] sm:$0xf] %vm5341, %v5213
      %5343 = vst.msk [vmem:[#allocation11 + $0x4] sm:$0xf] %vm5341, %v5214
      %5344 = vst.msk [vmem:[#allocation11 + $0x8] sm:$0xf] %vm5341, %v5215
      %5345 = vst.msk [vmem:[#allocation11 + $0xc] sm:$0xf] %vm5341, %v5216
      %5346 = vst.msk [vmem:[#allocation11 + $0x10] sm:$0xf] %vm5341, %v5217
      %5347 = vst.msk [vmem:[#allocation11 + $0x14] sm:$0xf] %vm5341, %v5218
      %5348 = vst.msk [vmem:[#allocation11 + $0x18] sm:$0xf] %vm5341, %v5219
      %5349 = vst.msk [vmem:[#allocation11 + $0x1c] sm:$0xf] %vm5341, %v5220
      %5350 = vst.msk [vmem:[#allocation11 + $0x20] sm:$0xf] %vm5341, %v5221
      %5351 = vst.msk [vmem:[#allocation11 + $0x24] sm:$0xf] %vm5341, %v5222
      %5352 = vst.msk [vmem:[#allocation11 + $0x28] sm:$0xf] %vm5341, %v5223
      %5353 = vst.msk [vmem:[#allocation11 + $0x2c] sm:$0xf] %vm5341, %v5224
      %5354 = vst.msk [vmem:[#allocation11 + $0x30] sm:$0xf] %vm5341, %v5225
      %5355 = vst.msk [vmem:[#allocation11 + $0x34] sm:$0xf] %vm5341, %v5226
      %5356 = vst.msk [vmem:[#allocation11 + $0x38] sm:$0xf] %vm5341, %v5227
      %5357 = vst.msk [vmem:[#allocation11 + $0x3c] sm:$0xf] %vm5341, %v5228
      %5358 = vst.msk [vmem:[#allocation11 + $0x40] sm:$0xf] %vm5341, %v5229
      %5359 = vst.msk [vmem:[#allocation11 + $0x44] sm:$0xf] %vm5341, %v5230
      %5360 = vst.msk [vmem:[#allocation11 + $0x48] sm:$0xf] %vm5341, %v5231
      %5361 = vst.msk [vmem:[#allocation11 + $0x4c] sm:$0xf] %vm5341, %v5232
      %5362 = vst.msk [vmem:[#allocation11 + $0x50] sm:$0xf] %vm5341, %v5233
      %5363 = vst.msk [vmem:[#allocation11 + $0x54] sm:$0xf] %vm5341, %v5234
      %5364 = vst.msk [vmem:[#allocation11 + $0x58] sm:$0xf] %vm5341, %v5235
      %5365 = vst.msk [vmem:[#allocation11 + $0x5c] sm:$0xf] %vm5341, %v5236
      %5366 = vst.msk [vmem:[#allocation11 + $0x60] sm:$0xf] %vm5341, %v5237
      %5367 = vst.msk [vmem:[#allocation11 + $0x64] sm:$0xf] %vm5341, %v5238
      %5368 = vst.msk [vmem:[#allocation11 + $0x68] sm:$0xf] %vm5341, %v5239
      %5369 = vst.msk [vmem:[#allocation11 + $0x6c] sm:$0xf] %vm5341, %v5240
      %5370 = vst.msk [vmem:[#allocation11 + $0x70] sm:$0xf] %vm5341, %v5241
      %5371 = vst.msk [vmem:[#allocation11 + $0x74] sm:$0xf] %vm5341, %v5242
      %5372 = vst.msk [vmem:[#allocation11 + $0x78] sm:$0xf] %vm5341, %v5243
      %5373 = vst.msk [vmem:[#allocation11 + $0x7c] sm:$0xf] %vm5341, %v5244
      %5374 = vst.msk [vmem:[#allocation11 + $0x80] sm:$0xf] %vm5341, %v5245
      %5375 = vst.msk [vmem:[#allocation11 + $0x84] sm:$0xf] %vm5341, %v5246
      %5376 = vst.msk [vmem:[#allocation11 + $0x88] sm:$0xf] %vm5341, %v5247
      %5377 = vst.msk [vmem:[#allocation11 + $0x8c] sm:$0xf] %vm5341, %v5248
      %5378 = vst.msk [vmem:[#allocation11 + $0x90] sm:$0xf] %vm5341, %v5249
      %5379 = vst.msk [vmem:[#allocation11 + $0x94] sm:$0xf] %vm5341, %v5250
      %5380 = vst.msk [vmem:[#allocation11 + $0x98] sm:$0xf] %vm5341, %v5251
      %5381 = vst.msk [vmem:[#allocation11 + $0x9c] sm:$0xf] %vm5341, %v5252
      %5382 = vst.msk [vmem:[#allocation11 + $0xa0] sm:$0xf] %vm5341, %v5253
      %5383 = vst.msk [vmem:[#allocation11 + $0xa4] sm:$0xf] %vm5341, %v5254
      %5384 = vst.msk [vmem:[#allocation11 + $0xa8] sm:$0xf] %vm5341, %v5255
      %5385 = vst.msk [vmem:[#allocation11 + $0xac] sm:$0xf] %vm5341, %v5256
      %5386 = vst.msk [vmem:[#allocation11 + $0xb0] sm:$0xf] %vm5341, %v5257
      %5387 = vst.msk [vmem:[#allocation11 + $0xb4] sm:$0xf] %vm5341, %v5258
      %5388 = vst.msk [vmem:[#allocation11 + $0xb8] sm:$0xf] %vm5341, %v5259
      %5389 = vst.msk [vmem:[#allocation11 + $0xbc] sm:$0xf] %vm5341, %v5260
      %5390 = vst.msk [vmem:[#allocation11 + $0xc0] sm:$0xf] %vm5341, %v5261
      %5391 = vst.msk [vmem:[#allocation11 + $0xc4] sm:$0xf] %vm5341, %v5262
      %5392 = vst.msk [vmem:[#allocation11 + $0xc8] sm:$0xf] %vm5341, %v5263
      %5393 = vst.msk [vmem:[#allocation11 + $0xcc] sm:$0xf] %vm5341, %v5264
      %5394 = vst.msk [vmem:[#allocation11 + $0xd0] sm:$0xf] %vm5341, %v5265
      %5395 = vst.msk [vmem:[#allocation11 + $0xd4] sm:$0xf] %vm5341, %v5266
      %5396 = vst.msk [vmem:[#allocation11 + $0xd8] sm:$0xf] %vm5341, %v5267
      %5397 = vst.msk [vmem:[#allocation11 + $0xdc] sm:$0xf] %vm5341, %v5268
      %5398 = vst.msk [vmem:[#allocation11 + $0xe0] sm:$0xf] %vm5341, %v5269
      %5399 = vst.msk [vmem:[#allocation11 + $0xe4] sm:$0xf] %vm5341, %v5270
      %5400 = vst.msk [vmem:[#allocation11 + $0xe8] sm:$0xf] %vm5341, %v5271
      %5401 = vst.msk [vmem:[#allocation11 + $0xec] sm:$0xf] %vm5341, %v5272
      %5402 = vst.msk [vmem:[#allocation11 + $0xf0] sm:$0xf] %vm5341, %v5273
      %5403 = vst.msk [vmem:[#allocation11 + $0xf4] sm:$0xf] %vm5341, %v5274
      %5404 = vst.msk [vmem:[#allocation11 + $0xf8] sm:$0xf] %vm5341, %v5275
      %5405 = vst.msk [vmem:[#allocation11 + $0xfc] sm:$0xf] %vm5341, %v5276
    $region33: #{transformer_encoder.9} parent=1 // pred_fallthru
      _
    // Predicated region
    $region34: #{transformer_encoder.9} parent=1 // pred_check
      _
    $region35: #{transformer_encoder.9} parent=1 // pred_check_branch
      %5407 = sbr.rel (0) target = $region37
    $region36: #{transformer_encoder.9} parent=1 // pred_region
      %s5409 = ssub.s32 4096, 4096
      %5410 = vsyncadd [#allocation7], %s5409
      %s5411 = sshll.u32 [#allocation11], 4
      %s5412 = int_to_ptr.vmem [resolvable:$true] %s5411
      %5417 = dma.vmem_to_hbm [thread:$0]  %s5412, 4096, %s3, [#allocation7], 64, 64, 4
    $region37: #{transformer_encoder.9} parent=1 // pred_fallthru
      _
    // Predicated region
    $region38: #{transformer_encoder.9} parent=1 // pred_check
      _
    $region39: #{transformer_encoder.9} parent=1 // pred_check_branch
      %5419 = sbr.rel (0) target = $region41
    $region40: #{transformer_encoder.9} parent=1 // pred_region
      %5420 = dma.done [#allocation7], 4096
    $region41: #{transformer_encoder.9} parent=1 // pred_fallthru
      _
    %5421 = vsyncpa [#allocation6], 1
    %5422 = vsyncpa [#allocation9], 1
    %5423 = vsyncpa [#allocation7], 1

</llo_original>
